<compile_context>
chip_gen: v6e
topology: v6e:2x2x1
jax: 0.10.0
libtpu: 0.0.40
codegen_flags: <defaults>
</compile_context>

<pallas_src>
import jax
import jax.numpy as jnp
from jax import lax
from jax.experimental import pallas as pl
from jax.experimental.pallas import tpu as pltpu

_PREC = lax.Precision.HIGHEST


# --------------------------------------------------------------------------- #
# Kernel: one grid step, all edge types handled with fused, lane-dense matmuls.
# --------------------------------------------------------------------------- #
def _messaging_kernel(node_ref, w_ref, b_ref, posemb_ref, wp_ref, bp_ref,
                      src_ref, tgt_ref, pos_ref, inv_div_ref, out_ref, msg_ref):
    N, D = node_ref.shape
    EM = tgt_ref.shape[1]          # total edges = E * M
    E = w_ref.shape[0]
    M = EM // E
    P = posemb_ref.shape[0]

    node = node_ref[...]                                            # (N, D)

    # ---- 1) gather all edge sources with one MXU matmul --------------------
    # one_hot_src[j, n] = [src[j] == n]  =>  gathered[j] = node_states[src[j]]
    src_col = src_ref[...]                                          # (EM, 1)
    iota_n_lanes = lax.broadcasted_iota(jnp.int32, (EM, N), 1)
    onehot_src = (src_col == iota_n_lanes).astype(jnp.float32)      # (EM, N)
    gathered = jnp.dot(onehot_src, node,
                       preferred_element_type=jnp.float32,
                       precision=_PREC)                             # (EM, D)

    # ---- 2) per-edge-type Linear (gather commutes with Linear) -------------
    # msg[i*M+m] = node[src] @ W_i^T + b_i  ==  (node @ W_i^T + b_i)[src]
    for i in range(E):                                              # static unroll
        msg_ref[i * M:(i + 1) * M, :] = (
            jnp.dot(gathered[i * M:(i + 1) * M, :], w_ref[i],
                    preferred_element_type=jnp.float32, precision=_PREC)
            + b_ref[i])

    # ---- 3) positional gating, gathered for all edges with one matmul -------
    pos_gate = 2.0 * jax.nn.sigmoid(
        jnp.dot(posemb_ref[...], wp_ref[...],
                preferred_element_type=jnp.float32, precision=_PREC)
        + bp_ref[...])                                              # (P, D)
    pos_col = pos_ref[...]                                          # (EM, 1)
    iota_p_lanes = lax.broadcasted_iota(jnp.int32, (EM, P), 1)
    onehot_pos = (pos_col == iota_p_lanes).astype(jnp.float32)      # (EM, P)
    gate = jnp.dot(onehot_pos, pos_gate,
                   preferred_element_type=jnp.float32,
                   precision=_PREC)                                 # (EM, D)

    gated = msg_ref[...] * gate                                     # (EM, D)

    # ---- 4) scatter-add into targets with one 128-deep matmul ---------------
    # one_hot_tgt[n, j] = [tgt[j] == n]
    tgt_row = tgt_ref[...]                                          # (1, EM)
    iota_n_sub = lax.broadcasted_iota(jnp.int32, (N, EM), 0)
    onehot_tgt = (tgt_row == iota_n_sub).astype(jnp.float32)        # (N, EM)
    acc = jnp.dot(onehot_tgt, gated,
                  preferred_element_type=jnp.float32,
                  precision=_PREC)                                  # (N, D)

    # messages_by_targets *= 1/msg_mean_divisor (reciprocal from wrapper)
    out_ref[...] = acc * inv_div_ref[...]


# --------------------------------------------------------------------------- #
# Wrapper: parameter re-layout (pure glue) + pallas_call
# --------------------------------------------------------------------------- #
def messaging_layer_forward(node_states, W, b, position_embs, Wp, bp,
                            sources, targets, pos_lists, msg_mean_divisor):
    node_states = node_states.astype(jnp.float32)
    N, D = node_states.shape
    E, M = sources.shape
    P = position_embs.shape[0]
    EM = E * M

    # nn.Linear weight is (E*D, D); per-type transposed blocks: w_stack[i] = W_i^T
    w_stack = jnp.transpose(W.astype(jnp.float32).reshape(E, D, D), (0, 2, 1))  # (E, D, D)
    b_stack = b.astype(jnp.float32).reshape(E, 1, D)                            # (E, 1, D)
    wp_t = Wp.T.astype(jnp.float32)                                             # (D, D)
    bp_r = bp.reshape(1, D).astype(jnp.float32)                                 # (1, D)
    src_r = sources.reshape(EM, 1).astype(jnp.int32)                            # (EM, 1)
    tgt_r = targets.reshape(1, EM).astype(jnp.int32)                            # (1, EM)
    pos_r = pos_lists.reshape(EM, 1).astype(jnp.int32)                          # (EM, 1)
    inv_div = (1.0 / jnp.asarray(msg_mean_divisor, jnp.float32)).reshape(N, 1)  # (N, 1)
    pos_emb = position_embs.astype(jnp.float32)                                 # (P, D)

    # Scheduler hint for the custom call.
    flops = (2 * EM * N * D            # source gather
             + 2 * EM * D * D          # per-type transforms
             + 2 * P * D * D           # positional transform
             + 2 * EM * P * D          # positional-gating gather
             + 2 * N * EM * D)         # target scatter-add
    bytes_accessed = 4 * (N * D + E * D * D + E * D + P * D + D * D + D
                          + 3 * EM + N + N * D)
    cost = pl.CostEstimate(flops=flops, transcendentals=P * D,
                           bytes_accessed=bytes_accessed)

    return pl.pallas_call(
        _messaging_kernel,
        out_shape=jax.ShapeDtypeStruct((N, D), jnp.float32),
        grid=(1,),
        in_specs=[
            pl.BlockSpec((N, D), lambda i: (0, 0)),          # node_states
            pl.BlockSpec((E, D, D), lambda i: (0, 0, 0)),    # per-type W_i^T
            pl.BlockSpec((E, 1, D), lambda i: (0, 0, 0)),    # per-type bias
            pl.BlockSpec((P, D), lambda i: (0, 0)),          # position_embs
            pl.BlockSpec((D, D), lambda i: (0, 0)),          # Wp^T
            pl.BlockSpec((1, D), lambda i: (0, 0)),          # bp
            pl.BlockSpec((EM, 1), lambda i: (0, 0)),         # edge sources (flat)
            pl.BlockSpec((1, EM), lambda i: (0, 0)),         # edge targets (flat)
            pl.BlockSpec((EM, 1), lambda i: (0, 0)),         # edge positions (flat)
            pl.BlockSpec((N, 1), lambda i: (0, 0)),          # 1 / msg_mean_divisor
        ],
        out_specs=pl.BlockSpec((N, D), lambda i: (0, 0)),
        scratch_shapes=[pltpu.VMEM((EM, D), jnp.float32)],   # transformed messages
        compiler_params=pltpu.CompilerParams(dimension_semantics=("arbitrary",)),
        cost_estimate=cost,
    )(node_states, w_stack, b_stack, pos_emb, wp_t, bp_r,
      src_r, tgt_r, pos_r, inv_div)


# --------------------------------------------------------------------------- #
# Pure-JAX reference (mirrors the PyTorch forward exactly)
# --------------------------------------------------------------------------- #
def reference_forward(node_states, W, b, position_embs, Wp, bp,
                      sources, targets, pos_lists, msg_mean_divisor):
    N, D = node_states.shape
    E = sources.shape[0]
    H = jnp.dot(node_states, W.T, precision=lax.Precision.HIGHEST) + b        # (N, E*D)
    pos_gating = 2.0 * jax.nn.sigmoid(
        jnp.dot(position_embs, Wp.T, precision=lax.Precision.HIGHEST) + bp)   # (P, D)
    out = jnp.zeros_like(node_states)
    for i in range(E):
        msg = H[:, i * D:(i + 1) * D][sources[i]]                             # (M, D)
        msg = msg * pos_gating[pos_lists[i]]
        out = out.at[targets[i]].add(msg)
    return out / msg_mean_divisor[:, None]


def sinusoid_position_embeddings(positions, demb, dpad):
    """PositionEmbeddings(): [sin(pos*inv_freq), cos(pos*inv_freq)] + dpad zeros."""
    inv_freq = 1.0 / (10000.0 ** (jnp.arange(0, demb, 2, dtype=jnp.float32) / demb))
    sinusoid = jnp.outer(positions, inv_freq)
    emb = jnp.concatenate([jnp.sin(sinusoid), jnp.cos(sinusoid)], axis=-1)
    if dpad > 0:
        emb = jnp.concatenate(
            [emb, jnp.zeros((positions.shape[0], dpad), jnp.float32)], axis=1)
    return emb


if __name__ == "__main__":
    key = jax.random.PRNGKey(0)

    # MessagingLayer config (small, consistent with __init__)
    text_emb, sel_emb = 16, 16
    D = text_emb + sel_emb                 # dimensionality = 32
    fwd_types, use_backward = 2, True
    E = fwd_types * 2 if use_backward else fwd_types   # 4 edge types
    N = 64                                 # number of nodes
    M = 32                                 # edges per edge type
    P = 64                                 # edge_position_max (small)

    ks = jax.random.split(key, 8)
    node_states = jax.random.normal(ks[0], (N, D), jnp.float32)
    W = 0.1 * jax.random.normal(ks[1], (E * D, D), jnp.float32)     # transform weight
    b = 0.01 * jax.random.normal(ks[2], (E * D,), jnp.float32)      # transform bias
    Wp = 0.1 * jax.random.normal(ks[3], (D, D), jnp.float32)        # pos_transform weight
    bp = 0.01 * jax.random.normal(ks[4], (D,), jnp.float32)         # pos_transform bias
    sources = jax.random.randint(ks[5], (E, M), 0, N, jnp.int32)    # edge_lists[:, :, 0]
    targets = jax.random.randint(ks[6], (E, M), 0, N, jnp.int32)    # edge_lists[:, :, 1]
    pos_lists = jax.random.randint(ks[7], (E, M), 0, P, jnp.int32)

    position_embs = sinusoid_position_embeddings(
        jnp.arange(P, dtype=jnp.float32), text_emb, sel_emb)        # (P, D) buffer

    # msg_mean_divisor: per-node incoming-edge count (>= 1), mean aggregation
    deg = jnp.zeros((N,), jnp.float32).at[targets.reshape(-1)].add(1.0)
    divisor = jnp.maximum(deg, 1.0)

    out = messaging_layer_forward(node_states, W, b, position_embs, Wp, bp,
                                  sources, targets, pos_lists, divisor)
    out = jax.block_until_ready(out)

    ref = reference_forward(node_states, W, b, position_embs, Wp, bp,
                            sources, targets, pos_lists, divisor)
    assert out.shape == (N, D) and out.dtype == jnp.float32
    max_err = float(jnp.max(jnp.abs(out - ref)))
    assert jnp.allclose(out, ref, rtol=1e-4, atol=1e-4), f"max_err={max_err}"
    print("KERNEL_OK")
</pallas_src>

<mosaic_0001>
module attributes {stable_mosaic.version = 11 : i64} {
  func.func @_messaging_kernel(%arg0: i32, %arg1: memref<64x32xf32, #tpu.memory_space<vmem>>, %arg2: memref<4x32x32xf32, #tpu.memory_space<vmem>>, %arg3: memref<4x1x32xf32, #tpu.memory_space<vmem>>, %arg4: memref<64x32xf32, #tpu.memory_space<vmem>>, %arg5: memref<32x32xf32, #tpu.memory_space<vmem>>, %arg6: memref<1x32xf32, #tpu.memory_space<vmem>>, %arg7: memref<128x1xi32, #tpu.memory_space<vmem>>, %arg8: memref<1x128xi32, #tpu.memory_space<vmem>>, %arg9: memref<128x1xi32, #tpu.memory_space<vmem>>, %arg10: memref<64x1xf32, #tpu.memory_space<vmem>>, %arg11: memref<64x32xf32, #tpu.memory_space<vmem>>, %arg12: memref<128x32xf32, #tpu.memory_space<vmem>>) attributes {dimension_semantics = [#tpu.dimension_semantics<arbitrary>], iteration_bounds = array<i64: 1>, scalar_prefetch = 0 : i64, scratch_operands = 1 : i64, tpu.core_type = #tpu.core_type<tc>, window_params = [{pipeline_mode = #tpu.pipeline_mode<synchronous>, transform_indices = @transform_0, window_bounds = array<i64: 64, 32>}, {pipeline_mode = #tpu.pipeline_mode<synchronous>, transform_indices = @transform_1, window_bounds = array<i64: 4, 32, 32>}, {pipeline_mode = #tpu.pipeline_mode<synchronous>, transform_indices = @transform_2, window_bounds = array<i64: 4, 1, 32>}, {pipeline_mode = #tpu.pipeline_mode<synchronous>, transform_indices = @transform_3, window_bounds = array<i64: 64, 32>}, {pipeline_mode = #tpu.pipeline_mode<synchronous>, transform_indices = @transform_4, window_bounds = array<i64: 32, 32>}, {pipeline_mode = #tpu.pipeline_mode<synchronous>, transform_indices = @transform_5, window_bounds = array<i64: 1, 32>}, {pipeline_mode = #tpu.pipeline_mode<synchronous>, transform_indices = @transform_6, window_bounds = array<i64: 128, 1>}, {pipeline_mode = #tpu.pipeline_mode<synchronous>, transform_indices = @transform_7, window_bounds = array<i64: 1, 128>}, {pipeline_mode = #tpu.pipeline_mode<synchronous>, transform_indices = @transform_8, window_bounds = array<i64: 128, 1>}, {pipeline_mode = #tpu.pipeline_mode<synchronous>, transform_indices = @transform_9, window_bounds = array<i64: 64, 1>}, {pipeline_mode = #tpu.pipeline_mode<synchronous>, transform_indices = @transform_10, window_bounds = array<i64: 64, 32>}]} {
    %c0 = arith.constant 0 : index
    %c0_0 = arith.constant 0 : index
    %0 = vector.load %arg1[%c0, %c0_0] : memref<64x32xf32, #tpu.memory_space<vmem>>, vector<64x32xf32>
    %c0_1 = arith.constant 0 : index
    %c0_2 = arith.constant 0 : index
    %1 = vector.load %arg7[%c0_1, %c0_2] : memref<128x1xi32, #tpu.memory_space<vmem>>, vector<128x1xi32>
    %2 = tpu.iota {dimensions = array<i32: 1>} : vector<128x64xi32>
    %3 = vector.broadcast %1 : vector<128x1xi32> to vector<128x64xi32>
    %4 = arith.cmpi eq, %3, %2 : vector<128x64xi32>
    %5 = arith.extui %4 : vector<128x64xi1> to vector<128x64xi32>
    %6 = arith.sitofp %5 : vector<128x64xi32> to vector<128x64xf32>
    %cst = arith.constant dense<0.000000e+00> : vector<128x32xf32>
    %7 = tpu.matmul %6, %0, %cst {dimension_numbers = #tpu.dot_dimension_numbers<[1], [0], [0], [1], [0, 0, 1, 1], [], []>, precision = #tpu.contract_precision<fp32>} : vector<128x64xf32>, vector<64x32xf32>, vector<128x32xf32> -> vector<128x32xf32>
    %8 = vector.extract_strided_slice %7 {offsets = [0, 0], sizes = [32, 32], strides = [1, 1]} : vector<128x32xf32> to vector<32x32xf32>
    %c0_3 = arith.constant 0 : index
    %c0_4 = arith.constant 0 : index
    %c0_5 = arith.constant 0 : index
    %9 = vector.load %arg2[%c0_3, %c0_4, %c0_5] : memref<4x32x32xf32, #tpu.memory_space<vmem>>, vector<1x32x32xf32>
    %10 = vector.shape_cast %9 : vector<1x32x32xf32> to vector<32x32xf32>
    %cst_6 = arith.constant dense<0.000000e+00> : vector<32x32xf32>
    %11 = tpu.matmul %8, %10, %cst_6 {dimension_numbers = #tpu.dot_dimension_numbers<[1], [0], [0], [1], [0, 0, 1, 1], [], []>, precision = #tpu.contract_precision<fp32>} : vector<32x32xf32>, vector<32x32xf32>, vector<32x32xf32> -> vector<32x32xf32>
    %c0_7 = arith.constant 0 : index
    %c0_8 = arith.constant 0 : index
    %c0_9 = arith.constant 0 : index
    %12 = vector.load %arg3[%c0_7, %c0_8, %c0_9] : memref<4x1x32xf32, #tpu.memory_space<vmem>>, vector<1x1x32xf32>
    %13 = vector.shape_cast %12 : vector<1x1x32xf32> to vector<1x32xf32>
    %14 = vector.broadcast %13 : vector<1x32xf32> to vector<32x32xf32>
    %15 = arith.addf %11, %14 : vector<32x32xf32>
    %c0_10 = arith.constant 0 : index
    %c0_11 = arith.constant 0 : index
    %16 = vector.load %arg12[%c0_10, %c0_11] : memref<128x32xf32, #tpu.memory_space<vmem>>, vector<32x32xf32>
    tpu.vector_store %arg12[%c0_10, %c0_11], %15 {strides = array<i32>} : memref<128x32xf32, #tpu.memory_space<vmem>>, vector<32x32xf32>,
    %17 = vector.extract_strided_slice %7 {offsets = [32, 0], sizes = [32, 32], strides = [1, 1]} : vector<128x32xf32> to vector<32x32xf32>
    %c1 = arith.constant 1 : index
    %c0_12 = arith.constant 0 : index
    %c0_13 = arith.constant 0 : index
    %18 = vector.load %arg2[%c1, %c0_12, %c0_13] : memref<4x32x32xf32, #tpu.memory_space<vmem>>, vector<1x32x32xf32>
    %19 = vector.shape_cast %18 : vector<1x32x32xf32> to vector<32x32xf32>
    %cst_14 = arith.constant dense<0.000000e+00> : vector<32x32xf32>
    %20 = tpu.matmul %17, %19, %cst_14 {dimension_numbers = #tpu.dot_dimension_numbers<[1], [0], [0], [1], [0, 0, 1, 1], [], []>, precision = #tpu.contract_precision<fp32>} : vector<32x32xf32>, vector<32x32xf32>, vector<32x32xf32> -> vector<32x32xf32>
    %c1_15 = arith.constant 1 : index
    %c0_16 = arith.constant 0 : index
    %c0_17 = arith.constant 0 : index
    %21 = vector.load %arg3[%c1_15, %c0_16, %c0_17] : memref<4x1x32xf32, #tpu.memory_space<vmem>>, vector<1x1x32xf32>
    %22 = vector.shape_cast %21 : vector<1x1x32xf32> to vector<1x32xf32>
    %23 = vector.broadcast %22 : vector<1x32xf32> to vector<32x32xf32>
    %24 = arith.addf %20, %23 : vector<32x32xf32>
    %c32 = arith.constant 32 : index
    %c0_18 = arith.constant 0 : index
    %25 = vector.load %arg12[%c32, %c0_18] : memref<128x32xf32, #tpu.memory_space<vmem>>, vector<32x32xf32>
    tpu.vector_store %arg12[%c32, %c0_18], %24 {strides = array<i32>} : memref<128x32xf32, #tpu.memory_space<vmem>>, vector<32x32xf32>,
    %26 = vector.extract_strided_slice %7 {offsets = [64, 0], sizes = [32, 32], strides = [1, 1]} : vector<128x32xf32> to vector<32x32xf32>
    %c2 = arith.constant 2 : index
    %c0_19 = arith.constant 0 : index
    %c0_20 = arith.constant 0 : index
    %27 = vector.load %arg2[%c2, %c0_19, %c0_20] : memref<4x32x32xf32, #tpu.memory_space<vmem>>, vector<1x32x32xf32>
    %28 = vector.shape_cast %27 : vector<1x32x32xf32> to vector<32x32xf32>
    %cst_21 = arith.constant dense<0.000000e+00> : vector<32x32xf32>
    %29 = tpu.matmul %26, %28, %cst_21 {dimension_numbers = #tpu.dot_dimension_numbers<[1], [0], [0], [1], [0, 0, 1, 1], [], []>, precision = #tpu.contract_precision<fp32>} : vector<32x32xf32>, vector<32x32xf32>, vector<32x32xf32> -> vector<32x32xf32>
    %c2_22 = arith.constant 2 : index
    %c0_23 = arith.constant 0 : index
    %c0_24 = arith.constant 0 : index
    %30 = vector.load %arg3[%c2_22, %c0_23, %c0_24] : memref<4x1x32xf32, #tpu.memory_space<vmem>>, vector<1x1x32xf32>
    %31 = vector.shape_cast %30 : vector<1x1x32xf32> to vector<1x32xf32>
    %32 = vector.broadcast %31 : vector<1x32xf32> to vector<32x32xf32>
    %33 = arith.addf %29, %32 : vector<32x32xf32>
    %c64 = arith.constant 64 : index
    %c0_25 = arith.constant 0 : index
    %34 = vector.load %arg12[%c64, %c0_25] : memref<128x32xf32, #tpu.memory_space<vmem>>, vector<32x32xf32>
    tpu.vector_store %arg12[%c64, %c0_25], %33 {strides = array<i32>} : memref<128x32xf32, #tpu.memory_space<vmem>>, vector<32x32xf32>,
    %35 = vector.extract_strided_slice %7 {offsets = [96, 0], sizes = [32, 32], strides = [1, 1]} : vector<128x32xf32> to vector<32x32xf32>
    %c3 = arith.constant 3 : index
    %c0_26 = arith.constant 0 : index
    %c0_27 = arith.constant 0 : index
    %36 = vector.load %arg2[%c3, %c0_26, %c0_27] : memref<4x32x32xf32, #tpu.memory_space<vmem>>, vector<1x32x32xf32>
    %37 = vector.shape_cast %36 : vector<1x32x32xf32> to vector<32x32xf32>
    %cst_28 = arith.constant dense<0.000000e+00> : vector<32x32xf32>
    %38 = tpu.matmul %35, %37, %cst_28 {dimension_numbers = #tpu.dot_dimension_numbers<[1], [0], [0], [1], [0, 0, 1, 1], [], []>, precision = #tpu.contract_precision<fp32>} : vector<32x32xf32>, vector<32x32xf32>, vector<32x32xf32> -> vector<32x32xf32>
    %c3_29 = arith.constant 3 : index
    %c0_30 = arith.constant 0 : index
    %c0_31 = arith.constant 0 : index
    %39 = vector.load %arg3[%c3_29, %c0_30, %c0_31] : memref<4x1x32xf32, #tpu.memory_space<vmem>>, vector<1x1x32xf32>
    %40 = vector.shape_cast %39 : vector<1x1x32xf32> to vector<1x32xf32>
    %41 = vector.broadcast %40 : vector<1x32xf32> to vector<32x32xf32>
    %42 = arith.addf %38, %41 : vector<32x32xf32>
    %c96 = arith.constant 96 : index
    %c0_32 = arith.constant 0 : index
    %43 = vector.load %arg12[%c96, %c0_32] : memref<128x32xf32, #tpu.memory_space<vmem>>, vector<32x32xf32>
    tpu.vector_store %arg12[%c96, %c0_32], %42 {strides = array<i32>} : memref<128x32xf32, #tpu.memory_space<vmem>>, vector<32x32xf32>,
    %c0_33 = arith.constant 0 : index
    %c0_34 = arith.constant 0 : index
    %44 = vector.load %arg4[%c0_33, %c0_34] : memref<64x32xf32, #tpu.memory_space<vmem>>, vector<64x32xf32>
    %c0_35 = arith.constant 0 : index
    %c0_36 = arith.constant 0 : index
    %45 = vector.load %arg5[%c0_35, %c0_36] : memref<32x32xf32, #tpu.memory_space<vmem>>, vector<32x32xf32>
    %cst_37 = arith.constant dense<0.000000e+00> : vector<64x32xf32>
    %46 = tpu.matmul %44, %45, %cst_37 {dimension_numbers = #tpu.dot_dimension_numbers<[1], [0], [0], [1], [0, 0, 1, 1], [], []>, precision = #tpu.contract_precision<fp32>} : vector<64x32xf32>, vector<32x32xf32>, vector<64x32xf32> -> vector<64x32xf32>
    %c0_38 = arith.constant 0 : index
    %c0_39 = arith.constant 0 : index
    %47 = vector.load %arg6[%c0_38, %c0_39] : memref<1x32xf32, #tpu.memory_space<vmem>>, vector<1x32xf32>
    %48 = vector.broadcast %47 : vector<1x32xf32> to vector<64x32xf32>
    %49 = arith.addf %46, %48 : vector<64x32xf32>
    %50 = arith.negf %49 : vector<64x32xf32>
    %51 = math.exp %50 : vector<64x32xf32>
    %cst_40 = arith.constant 1.000000e+00 : f32
    %52 = vector.broadcast %cst_40 : f32 to vector<64x32xf32>
    %53 = arith.addf %52, %51 : vector<64x32xf32>
    %54 = arith.divf %52, %53 : vector<64x32xf32>
    %cst_41 = arith.constant 2.000000e+00 : f32
    %55 = vector.broadcast %cst_41 : f32 to vector<64x32xf32>
    %56 = arith.mulf %55, %54 : vector<64x32xf32>
    %c0_42 = arith.constant 0 : index
    %c0_43 = arith.constant 0 : index
    %57 = vector.load %arg9[%c0_42, %c0_43] : memref<128x1xi32, #tpu.memory_space<vmem>>, vector<128x1xi32>
    %58 = tpu.iota {dimensions = array<i32: 1>} : vector<128x64xi32>
    %59 = vector.broadcast %57 : vector<128x1xi32> to vector<128x64xi32>
    %60 = arith.cmpi eq, %59, %58 : vector<128x64xi32>
    %61 = arith.extui %60 : vector<128x64xi1> to vector<128x64xi32>
    %62 = arith.sitofp %61 : vector<128x64xi32> to vector<128x64xf32>
    %cst_44 = arith.constant dense<0.000000e+00> : vector<128x32xf32>
    %63 = tpu.matmul %62, %56, %cst_44 {dimension_numbers = #tpu.dot_dimension_numbers<[1], [0], [0], [1], [0, 0, 1, 1], [], []>, precision = #tpu.contract_precision<fp32>} : vector<128x64xf32>, vector<64x32xf32>, vector<128x32xf32> -> vector<128x32xf32>
    %c0_45 = arith.constant 0 : index
    %c0_46 = arith.constant 0 : index
    %64 = vector.load %arg12[%c0_45, %c0_46] : memref<128x32xf32, #tpu.memory_space<vmem>>, vector<128x32xf32>
    %65 = arith.mulf %64, %63 : vector<128x32xf32>
    %c0_47 = arith.constant 0 : index
    %c0_48 = arith.constant 0 : index
    %66 = vector.load %arg8[%c0_47, %c0_48] : memref<1x128xi32, #tpu.memory_space<vmem>>, vector<1x128xi32>
    %67 = tpu.iota {dimensions = array<i32: 0>} : vector<64x128xi32>
    %68 = vector.broadcast %66 : vector<1x128xi32> to vector<64x128xi32>
    %69 = arith.cmpi eq, %68, %67 : vector<64x128xi32>
    %70 = arith.extui %69 : vector<64x128xi1> to vector<64x128xi32>
    %71 = arith.sitofp %70 : vector<64x128xi32> to vector<64x128xf32>
    %cst_49 = arith.constant dense<0.000000e+00> : vector<64x32xf32>
    %72 = tpu.matmul %71, %65, %cst_49 {dimension_numbers = #tpu.dot_dimension_numbers<[1], [0], [0], [1], [0, 0, 1, 1], [], []>, precision = #tpu.contract_precision<fp32>} : vector<64x128xf32>, vector<128x32xf32>, vector<64x32xf32> -> vector<64x32xf32>
    %c0_50 = arith.constant 0 : index
    %c0_51 = arith.constant 0 : index
    %73 = vector.load %arg10[%c0_50, %c0_51] : memref<64x1xf32, #tpu.memory_space<vmem>>, vector<64x1xf32>
    %74 = vector.broadcast %73 : vector<64x1xf32> to vector<64x32xf32>
    %75 = arith.mulf %72, %74 : vector<64x32xf32>
    %c0_52 = arith.constant 0 : index
    %c0_53 = arith.constant 0 : index
    %76 = vector.load %arg11[%c0_52, %c0_53] : memref<64x32xf32, #tpu.memory_space<vmem>>, vector<64x32xf32>
    tpu.vector_store %arg11[%c0_52, %c0_53], %75 {strides = array<i32>} : memref<64x32xf32, #tpu.memory_space<vmem>>, vector<64x32xf32>,
    return
  }
  func.func @transform_0(%arg0: i32) -> (i32, i32) {
    %c0_i32 = arith.constant 0 : i32
    %c0_i32_0 = arith.constant 0 : i32
    %c0_i32_1 = arith.constant 0 : i32
    return %c0_i32, %c0_i32_0 : i32, i32
  }
  func.func @transform_1(%arg0: i32) -> (i32, i32, i32) {
    %c0_i32 = arith.constant 0 : i32
    %c0_i32_0 = arith.constant 0 : i32
    %c0_i32_1 = arith.constant 0 : i32
    %c0_i32_2 = arith.constant 0 : i32
    return %c0_i32, %c0_i32_0, %c0_i32_1 : i32, i32, i32
  }
  func.func @transform_2(%arg0: i32) -> (i32, i32, i32) {
    %c0_i32 = arith.constant 0 : i32
    %c0_i32_0 = arith.constant 0 : i32
    %c0_i32_1 = arith.constant 0 : i32
    %c0_i32_2 = arith.constant 0 : i32
    return %c0_i32, %c0_i32_0, %c0_i32_1 : i32, i32, i32
  }
  func.func @transform_3(%arg0: i32) -> (i32, i32) {
    %c0_i32 = arith.constant 0 : i32
    %c0_i32_0 = arith.constant 0 : i32
    %c0_i32_1 = arith.constant 0 : i32
    return %c0_i32, %c0_i32_0 : i32, i32
  }
  func.func @transform_4(%arg0: i32) -> (i32, i32) {
    %c0_i32 = arith.constant 0 : i32
    %c0_i32_0 = arith.constant 0 : i32
    %c0_i32_1 = arith.constant 0 : i32
    return %c0_i32, %c0_i32_0 : i32, i32
  }
  func.func @transform_5(%arg0: i32) -> (i32, i32) {
    %c0_i32 = arith.constant 0 : i32
    %c0_i32_0 = arith.constant 0 : i32
    %c0_i32_1 = arith.constant 0 : i32
    return %c0_i32, %c0_i32_0 : i32, i32
  }
  func.func @transform_6(%arg0: i32) -> (i32, i32) {
    %c0_i32 = arith.constant 0 : i32
    %c0_i32_0 = arith.constant 0 : i32
    %c0_i32_1 = arith.constant 0 : i32
    return %c0_i32, %c0_i32_0 : i32, i32
  }
  func.func @transform_7(%arg0: i32) -> (i32, i32) {
    %c0_i32 = arith.constant 0 : i32
    %c0_i32_0 = arith.constant 0 : i32
    %c0_i32_1 = arith.constant 0 : i32
    return %c0_i32, %c0_i32_0 : i32, i32
  }
  func.func @transform_8(%arg0: i32) -> (i32, i32) {
    %c0_i32 = arith.constant 0 : i32
    %c0_i32_0 = arith.constant 0 : i32
    %c0_i32_1 = arith.constant 0 : i32
    return %c0_i32, %c0_i32_0 : i32, i32
  }
  func.func @transform_9(%arg0: i32) -> (i32, i32) {
    %c0_i32 = arith.constant 0 : i32
    %c0_i32_0 = arith.constant 0 : i32
    %c0_i32_1 = arith.constant 0 : i32
    return %c0_i32, %c0_i32_0 : i32, i32
  }
  func.func @transform_10(%arg0: i32) -> (i32, i32) {
    %c0_i32 = arith.constant 0 : i32
    %c0_i32_0 = arith.constant 0 : i32
    %c0_i32_1 = arith.constant 0 : i32
    return %c0_i32, %c0_i32_0 : i32, i32
  }
}

</mosaic_0001>

<llo_original>
// kernel: tpu_custom_call.1
$region0: #{tpu_custom_call.1}
  #allocation0 [shape = 'u32[]', space=smem, size = 0x4, offset = 0x4, fixed_abs, tag = 'smem constant byte address 0x4 - core index']
  #allocation1 [shape = 'u32[144,128]{1,0:T(1,128)}', space=vmem, size = 0x12000, scoped, tag = 'internal scratch']
  #allocation2 [shape = 'f32[128,32]{1,0:T(8,128)}', space=vmem, size = 0x10000, scoped, tag = 'scratch operand']
  %s0 = inlined_call_operand.vmem [shape: f32[64,32], index: 0, kind: input, shape index: {}]
  %s1 = inlined_call_operand.vmem [shape: f32[4,32,32], index: 1, kind: input, shape index: {}]
  %s2 = inlined_call_operand.vmem [shape: f32[4,1,32], index: 2, kind: input, shape index: {}]
  %s3 = inlined_call_operand.vmem [shape: f32[64,32], index: 3, kind: input, shape index: {}]
  %s4 = inlined_call_operand.vmem [shape: f32[32,32], index: 4, kind: input, shape index: {}]
  %s5 = inlined_call_operand.vmem [shape: f32[1,32], index: 5, kind: input, shape index: {}]
  %s6 = inlined_call_operand.vmem [shape: s32[128,1], index: 6, kind: input, shape index: {}]
  %s7 = inlined_call_operand.vmem [shape: s32[1,128], index: 7, kind: input, shape index: {}]
  %s8 = inlined_call_operand.vmem [shape: s32[128,1], index: 8, kind: input, shape index: {}]
  %s9 = inlined_call_operand.vmem [shape: f32[64,1], index: 9, kind: input, shape index: {}]
  %s10 = inlined_call_operand.vmem [shape: f32[64,32], index: 10, kind: output, shape index: {}]
  %s11 = sld [smem:[#allocation0]]
  $region50: #{tpu_custom_call.1} parent=0
    _
  %s13 = ssub.s32 1, %s11
  %s14 = scalar_select 0, %s13, %s11
  // Predicated region
  $region2: #{tpu_custom_call.1} parent=0 // pred_check
    _
  $region3: #{tpu_custom_call.1} parent=0 // pred_check_branch
    %16 = sbr.rel (0) target = $region5
  $region4: #{tpu_custom_call.1} parent=0 // pred_region
    _
  $region5: #{tpu_custom_call.1} parent=0 // pred_fallthru
    _
  // Predicated region
  $region6: #{tpu_custom_call.1} parent=0 // pred_check
    _
  $region7: #{tpu_custom_call.1} parent=0 // pred_check_branch
    %18 = sbr.rel (0) target = $region9
  $region8: #{tpu_custom_call.1} parent=0 // pred_region
    _
  $region9: #{tpu_custom_call.1} parent=0 // pred_fallthru
    _
  // Predicated region
  $region10: #{tpu_custom_call.1} parent=0 // pred_check
    _
  $region11: #{tpu_custom_call.1} parent=0 // pred_check_branch
    %20 = sbr.rel (0) target = $region13
  $region12: #{tpu_custom_call.1} parent=0 // pred_region
    _
  $region13: #{tpu_custom_call.1} parent=0 // pred_fallthru
    _
  // Predicated region
  $region14: #{tpu_custom_call.1} parent=0 // pred_check
    _
  $region15: #{tpu_custom_call.1} parent=0 // pred_check_branch
    %22 = sbr.rel (0) target = $region17
  $region16: #{tpu_custom_call.1} parent=0 // pred_region
    _
  $region17: #{tpu_custom_call.1} parent=0 // pred_fallthru
    _
  // Predicated region
  $region18: #{tpu_custom_call.1} parent=0 // pred_check
    _
  $region19: #{tpu_custom_call.1} parent=0 // pred_check_branch
    %24 = sbr.rel (0) target = $region21
  $region20: #{tpu_custom_call.1} parent=0 // pred_region
    _
  $region21: #{tpu_custom_call.1} parent=0 // pred_fallthru
    _
  // Predicated region
  $region22: #{tpu_custom_call.1} parent=0 // pred_check
    _
  $region23: #{tpu_custom_call.1} parent=0 // pred_check_branch
    %26 = sbr.rel (0) target = $region25
  $region24: #{tpu_custom_call.1} parent=0 // pred_region
    _
  $region25: #{tpu_custom_call.1} parent=0 // pred_fallthru
    _
  // Predicated region
  $region26: #{tpu_custom_call.1} parent=0 // pred_check
    _
  $region27: #{tpu_custom_call.1} parent=0 // pred_check_branch
    %28 = sbr.rel (0) target = $region29
  $region28: #{tpu_custom_call.1} parent=0 // pred_region
    _
  $region29: #{tpu_custom_call.1} parent=0 // pred_fallthru
    _
  // Predicated region
  $region30: #{tpu_custom_call.1} parent=0 // pred_check
    _
  $region31: #{tpu_custom_call.1} parent=0 // pred_check_branch
    %30 = sbr.rel (0) target = $region33
  $region32: #{tpu_custom_call.1} parent=0 // pred_region
    _
  $region33: #{tpu_custom_call.1} parent=0 // pred_fallthru
    _
  // Predicated region
  $region34: #{tpu_custom_call.1} parent=0 // pred_check
    _
  $region35: #{tpu_custom_call.1} parent=0 // pred_check_branch
    %32 = sbr.rel (0) target = $region37
  $region36: #{tpu_custom_call.1} parent=0 // pred_region
    _
  $region37: #{tpu_custom_call.1} parent=0 // pred_fallthru
    _
  // Predicated region
  $region38: #{tpu_custom_call.1} parent=0 // pred_check
    _
  $region39: #{tpu_custom_call.1} parent=0 // pred_check_branch
    %34 = sbr.rel (0) target = $region41
  $region40: #{tpu_custom_call.1} parent=0 // pred_region
    _
  $region41: #{tpu_custom_call.1} parent=0 // pred_fallthru
    _
  %v35 = vld [vmem:[%s0] sm:$0xff]
  %v36 = vld [vmem:[%s0 + $0x8] sm:$0xff]
  %v37 = vld [vmem:[%s0 + $0x10] sm:$0xff]
  %v38 = vld [vmem:[%s0 + $0x18] sm:$0xff]
  %v39 = vld [vmem:[%s0 + $0x20] sm:$0xff]
  %v40 = vld [vmem:[%s0 + $0x28] sm:$0xff]
  %v41 = vld [vmem:[%s0 + $0x30] sm:$0xff]
  %v42 = vld [vmem:[%s0 + $0x38] sm:$0xff]
  %v43 = vld [vmem:[%s6] sm:$0xff]
  %v44 = vld [vmem:[%s6 + $0x8] sm:$0xff]
  %v45 = vld [vmem:[%s6 + $0x10] sm:$0xff]
  %v46 = vld [vmem:[%s6 + $0x18] sm:$0xff]
  %v47 = vld [vmem:[%s6 + $0x20] sm:$0xff]
  %v48 = vld [vmem:[%s6 + $0x28] sm:$0xff]
  %v49 = vld [vmem:[%s6 + $0x30] sm:$0xff]
  %v50 = vld [vmem:[%s6 + $0x38] sm:$0xff]
  %v51 = vld [vmem:[%s6 + $0x40] sm:$0xff]
  %v52 = vld [vmem:[%s6 + $0x48] sm:$0xff]
  %v53 = vld [vmem:[%s6 + $0x50] sm:$0xff]
  %v54 = vld [vmem:[%s6 + $0x58] sm:$0xff]
  %v55 = vld [vmem:[%s6 + $0x60] sm:$0xff]
  %v56 = vld [vmem:[%s6 + $0x68] sm:$0xff]
  %v57 = vld [vmem:[%s6 + $0x70] sm:$0xff]
  %v58 = vld [vmem:[%s6 + $0x78] sm:$0xff]
  %v59 = vlaneseq
  %v60 = vand.u32 %v59, 127
  %61 = vset.pattern.permute.xlu0 0
  %62 = vperm.xlu0 %61, %v43
  %v63 = vpop.permute.xlu0 %62
  %64 = vset.pattern.permute.xlu0 0
  %65 = vperm.xlu0 %64, %v44
  %v66 = vpop.permute.xlu0 %65
  %67 = vset.pattern.permute.xlu0 0
  %68 = vperm.xlu0 %67, %v45
  %v69 = vpop.permute.xlu0 %68
  %70 = vset.pattern.permute.xlu0 0
  %71 = vperm.xlu0 %70, %v46
  %v72 = vpop.permute.xlu0 %71
  %73 = vset.pattern.permute.xlu0 0
  %74 = vperm.xlu0 %73, %v47
  %v75 = vpop.permute.xlu0 %74
  %76 = vset.pattern.permute.xlu0 0
  %77 = vperm.xlu0 %76, %v48
  %v78 = vpop.permute.xlu0 %77
  %79 = vset.pattern.permute.xlu0 0
  %80 = vperm.xlu0 %79, %v49
  %v81 = vpop.permute.xlu0 %80
  %82 = vset.pattern.permute.xlu0 0
  %83 = vperm.xlu0 %82, %v50
  %v84 = vpop.permute.xlu0 %83
  %85 = vset.pattern.permute.xlu0 0
  %86 = vperm.xlu0 %85, %v51
  %v87 = vpop.permute.xlu0 %86
  %88 = vset.pattern.permute.xlu0 0
  %89 = vperm.xlu0 %88, %v52
  %v90 = vpop.permute.xlu0 %89
  %91 = vset.pattern.permute.xlu0 0
  %92 = vperm.xlu0 %91, %v53
  %v93 = vpop.permute.xlu0 %92
  %94 = vset.pattern.permute.xlu0 0
  %95 = vperm.xlu0 %94, %v54
  %v96 = vpop.permute.xlu0 %95
  %97 = vset.pattern.permute.xlu0 0
  %98 = vperm.xlu0 %97, %v55
  %v99 = vpop.permute.xlu0 %98
  %100 = vset.pattern.permute.xlu0 0
  %101 = vperm.xlu0 %100, %v56
  %v102 = vpop.permute.xlu0 %101
  %103 = vset.pattern.permute.xlu0 0
  %104 = vperm.xlu0 %103, %v57
  %v105 = vpop.permute.xlu0 %104
  %106 = vset.pattern.permute.xlu0 0
  %107 = vperm.xlu0 %106, %v58
  %v108 = vpop.permute.xlu0 %107
  %vm109 = vcmp.eq.s32.totalorder %v63, %v60
  %vm110 = vcmp.eq.s32.totalorder %v66, %v60
  %vm111 = vcmp.eq.s32.totalorder %v69, %v60
  %vm112 = vcmp.eq.s32.totalorder %v72, %v60
  %vm113 = vcmp.eq.s32.totalorder %v75, %v60
  %vm114 = vcmp.eq.s32.totalorder %v78, %v60
  %vm115 = vcmp.eq.s32.totalorder %v81, %v60
  %vm116 = vcmp.eq.s32.totalorder %v84, %v60
  %vm117 = vcmp.eq.s32.totalorder %v87, %v60
  %vm118 = vcmp.eq.s32.totalorder %v90, %v60
  %vm119 = vcmp.eq.s32.totalorder %v93, %v60
  %vm120 = vcmp.eq.s32.totalorder %v96, %v60
  %vm121 = vcmp.eq.s32.totalorder %v99, %v60
  %vm122 = vcmp.eq.s32.totalorder %v102, %v60
  %vm123 = vcmp.eq.s32.totalorder %v105, %v60
  %vm124 = vcmp.eq.s32.totalorder %v108, %v60
  %v125 = vsel %vm109, 1, 0
  %v126 = vsel %vm110, 1, 0
  %v127 = vsel %vm111, 1, 0
  %v128 = vsel %vm112, 1, 0
  %v129 = vsel %vm113, 1, 0
  %v130 = vsel %vm114, 1, 0
  %v131 = vsel %vm115, 1, 0
  %v132 = vsel %vm116, 1, 0
  %v133 = vsel %vm117, 1, 0
  %v134 = vsel %vm118, 1, 0
  %v135 = vsel %vm119, 1, 0
  %v136 = vsel %vm120, 1, 0
  %v137 = vsel %vm121, 1, 0
  %v138 = vsel %vm122, 1, 0
  %v139 = vsel %vm123, 1, 0
  %v140 = vsel %vm124, 1, 0
  %v141 = vcvt.s32.f32 %v125
  %v142 = vcvt.s32.f32 %v126
  %v143 = vcvt.s32.f32 %v127
  %v144 = vcvt.s32.f32 %v128
  %v145 = vcvt.s32.f32 %v129
  %v146 = vcvt.s32.f32 %v130
  %v147 = vcvt.s32.f32 %v131
  %v148 = vcvt.s32.f32 %v132
  %v149 = vcvt.s32.f32 %v133
  %v150 = vcvt.s32.f32 %v134
  %v151 = vcvt.s32.f32 %v135
  %v152 = vcvt.s32.f32 %v136
  %v153 = vcvt.s32.f32 %v137
  %v154 = vcvt.s32.f32 %v138
  %v155 = vcvt.s32.f32 %v139
  %v156 = vcvt.s32.f32 %v140
  %vm157 = vcmask 523264
  %v159 = vsel %vm157, %v141, 0
  %v162 = vsel %vm157, %v142, 0
  %v165 = vsel %vm157, %v143, 0
  %v168 = vsel %vm157, %v144, 0
  %v171 = vsel %vm157, %v145, 0
  %v174 = vsel %vm157, %v146, 0
  %v177 = vsel %vm157, %v147, 0
  %v180 = vsel %vm157, %v148, 0
  %v183 = vsel %vm157, %v149, 0
  %v186 = vsel %vm157, %v150, 0
  %v189 = vsel %vm157, %v151, 0
  %v192 = vsel %vm157, %v152, 0
  %v195 = vsel %vm157, %v153, 0
  %v198 = vsel %vm157, %v154, 0
  %v201 = vsel %vm157, %v155, 0
  %v204 = vsel %vm157, %v156, 0
  %206 = vmatprep.subr.mxu0 0.0
  %207 = vmatpush1.msra.mxu0 0.0
  %208 = vmatprep.subr.mxu0 0.0
  %209 = vmatpush1.msra.mxu0 0.0
  %210 = vmatprep.subr.mxu0 0.0
  %211 = vmatpush1.msra.mxu0 0.0
  %212 = vmatprep.subr.mxu0 0.0
  %213 = vmatpush1.msra.mxu0 0.0
  %214 = vmatprep.subr.mxu0 0.0
  %215 = vmatpush1.msra.mxu0 0.0
  %216 = vmatprep.subr.mxu0 0.0
  %217 = vmatpush1.msra.mxu0 0.0
  %218 = vmatprep.subr.mxu0 0.0
  %219 = vmatpush1.msra.mxu0 0.0
  %220 = vmatprep.subr.mxu0 0.0
  %221 = vmatpush1.msra.mxu0 0.0
  %222 = vmatprep.subr.mxu0 0.0
  %v223 = vand.u32 %v42, 4294901760
  %224 = vmatpush1.msra.mxu0 %v223
  %225 = vmatprep.subr.mxu0 0.0
  %v226 = vand.u32 %v41, 4294901760
  %227 = vmatpush1.msra.mxu0 %v226
  %228 = vmatprep.subr.mxu0 0.0
  %v229 = vand.u32 %v40, 4294901760
  %230 = vmatpush1.msra.mxu0 %v229
  %231 = vmatprep.subr.mxu0 0.0
  %v232 = vand.u32 %v39, 4294901760
  %233 = vmatpush1.msra.mxu0 %v232
  %234 = vmatprep.subr.mxu0 0.0
  %v235 = vand.u32 %v38, 4294901760
  %236 = vmatpush1.msra.mxu0 %v235
  %237 = vmatprep.subr.mxu0 0.0
  %v238 = vand.u32 %v37, 4294901760
  %239 = vmatpush1.msra.mxu0 %v238
  %240 = vmatprep.subr.mxu0 0.0
  %v241 = vand.u32 %v36, 4294901760
  %242 = vmatpush1.msra.mxu0 %v241
  %243 = vmatprep.subr.mxu0 0.0
  %v244 = vand.u32 %v35, 4294901760
  %245 = vmatpush1.msra.mxu0 %v244
  %246 = vmatprep.subr.mxu0 0.0
  %247 = vmatpush2.msra.mxu0 0.0
  %248 = vmatprep.subr.mxu0 0.0
  %249 = vmatpush2.msra.mxu0 0.0
  %250 = vmatprep.subr.mxu0 0.0
  %251 = vmatpush2.msra.mxu0 0.0
  %252 = vmatprep.subr.mxu0 0.0
  %253 = vmatpush2.msra.mxu0 0.0
  %254 = vmatprep.subr.mxu0 0.0
  %255 = vmatpush2.msra.mxu0 0.0
  %256 = vmatprep.subr.mxu0 0.0
  %257 = vmatpush2.msra.mxu0 0.0
  %258 = vmatprep.subr.mxu0 0.0
  %259 = vmatpush2.msra.mxu0 0.0
  %260 = vmatprep.subr.mxu0 0.0
  %261 = vmatpush2.msra.mxu0 0.0
  %262 = vmatprep.subr.mxu0 0.0
  %263 = vmatpush2.msra.mxu0 0.0
  %264 = vmatprep.subr.mxu0 0.0
  %265 = vmatpush2.msra.mxu0 0.0
  %266 = vmatprep.subr.mxu0 0.0
  %267 = vmatpush2.msra.mxu0 0.0
  %268 = vmatprep.subr.mxu0 0.0
  %269 = vmatpush2.msra.mxu0 0.0
  %270 = vmatprep.subr.mxu0 0.0
  %271 = vmatpush2.msra.mxu0 0.0
  %272 = vmatprep.subr.mxu0 0.0
  %273 = vmatpush2.msra.mxu0 0.0
  %274 = vmatprep.subr.mxu0 0.0
  %275 = vmatpush2.msra.mxu0 0.0
  %276 = vmatprep.subr.mxu0 0.0
  %277 = vmatpush2.msra.mxu0 0.0
  %278 = vmatprep.mubr.f32.mxu0 0.0
  %v279 = vand.u32 %v159, 4294901760
  %v280 = vsub.f32 %v159, %v279
  %v281 = vand.u32 %v280, 4294901760
  %v282 = vsub.f32 %v280, %v281
  %v283 = vand.u32 %v282, 4294901760
  %284 = vmatmul.mubr.f32.gmra.mxu0 %v283
  %v285 = vpop.f32.mrf.mxu0
  %v286 = vadd.f32 0.0, %v285
  %v287 = vpop.f32.mrf.mxu0
  %288 = vmatprep.mubr.f32.mxu0 0.0
  %v289 = vand.u32 %v162, 4294901760
  %v290 = vsub.f32 %v162, %v289
  %v291 = vand.u32 %v290, 4294901760
  %v292 = vsub.f32 %v290, %v291
  %v293 = vand.u32 %v292, 4294901760
  %294 = vmatmul.mubr.f32.gmra.mxu0 %v293
  %v295 = vpop.f32.mrf.mxu0
  %v296 = vadd.f32 0.0, %v295
  %v297 = vpop.f32.mrf.mxu0
  %298 = vmatprep.mubr.f32.mxu0 0.0
  %v299 = vand.u32 %v165, 4294901760
  %v300 = vsub.f32 %v165, %v299
  %v301 = vand.u32 %v300, 4294901760
  %v302 = vsub.f32 %v300, %v301
  %v303 = vand.u32 %v302, 4294901760
  %304 = vmatmul.mubr.f32.gmra.mxu0 %v303
  %v305 = vpop.f32.mrf.mxu0
  %v306 = vadd.f32 0.0, %v305
  %v307 = vpop.f32.mrf.mxu0
  %308 = vmatprep.mubr.f32.mxu0 0.0
  %v309 = vand.u32 %v168, 4294901760
  %v310 = vsub.f32 %v168, %v309
  %v311 = vand.u32 %v310, 4294901760
  %v312 = vsub.f32 %v310, %v311
  %v313 = vand.u32 %v312, 4294901760
  %314 = vmatmul.mubr.f32.gmra.mxu0 %v313
  %v315 = vpop.f32.mrf.mxu0
  %v316 = vadd.f32 0.0, %v315
  %v317 = vpop.f32.mrf.mxu0
  %318 = vmatprep.mubr.f32.mxu0 0.0
  %v319 = vand.u32 %v171, 4294901760
  %v320 = vsub.f32 %v171, %v319
  %v321 = vand.u32 %v320, 4294901760
  %v322 = vsub.f32 %v320, %v321
  %v323 = vand.u32 %v322, 4294901760
  %324 = vmatmul.mubr.f32.gmra.mxu0 %v323
  %v325 = vpop.f32.mrf.mxu0
  %v326 = vadd.f32 0.0, %v325
  %v327 = vpop.f32.mrf.mxu0
  %328 = vmatprep.mubr.f32.mxu0 0.0
  %v329 = vand.u32 %v174, 4294901760
  %v330 = vsub.f32 %v174, %v329
  %v331 = vand.u32 %v330, 4294901760
  %v332 = vsub.f32 %v330, %v331
  %v333 = vand.u32 %v332, 4294901760
  %334 = vmatmul.mubr.f32.gmra.mxu0 %v333
  %v335 = vpop.f32.mrf.mxu0
  %v336 = vadd.f32 0.0, %v335
  %v337 = vpop.f32.mrf.mxu0
  %338 = vmatprep.mubr.f32.mxu0 0.0
  %v339 = vand.u32 %v177, 4294901760
  %v340 = vsub.f32 %v177, %v339
  %v341 = vand.u32 %v340, 4294901760
  %v342 = vsub.f32 %v340, %v341
  %v343 = vand.u32 %v342, 4294901760
  %344 = vmatmul.mubr.f32.gmra.mxu0 %v343
  %v345 = vpop.f32.mrf.mxu0
  %v346 = vadd.f32 0.0, %v345
  %v347 = vpop.f32.mrf.mxu0
  %348 = vmatprep.mubr.f32.mxu0 0.0
  %v349 = vand.u32 %v180, 4294901760
  %v350 = vsub.f32 %v180, %v349
  %v351 = vand.u32 %v350, 4294901760
  %v352 = vsub.f32 %v350, %v351
  %v353 = vand.u32 %v352, 4294901760
  %354 = vmatmul.mubr.f32.gmra.mxu0 %v353
  %v355 = vpop.f32.mrf.mxu0
  %v356 = vadd.f32 0.0, %v355
  %v357 = vpop.f32.mrf.mxu0
  %358 = vmatprep.mubr.f32.mxu0 0.0
  %v359 = vand.u32 %v183, 4294901760
  %v360 = vsub.f32 %v183, %v359
  %v361 = vand.u32 %v360, 4294901760
  %v362 = vsub.f32 %v360, %v361
  %v363 = vand.u32 %v362, 4294901760
  %364 = vmatmul.mubr.f32.gmra.mxu0 %v363
  %v365 = vpop.f32.mrf.mxu0
  %v366 = vadd.f32 0.0, %v365
  %v367 = vpop.f32.mrf.mxu0
  %368 = vmatprep.mubr.f32.mxu0 0.0
  %v369 = vand.u32 %v186, 4294901760
  %v370 = vsub.f32 %v186, %v369
  %v371 = vand.u32 %v370, 4294901760
  %v372 = vsub.f32 %v370, %v371
  %v373 = vand.u32 %v372, 4294901760
  %374 = vmatmul.mubr.f32.gmra.mxu0 %v373
  %v375 = vpop.f32.mrf.mxu0
  %v376 = vadd.f32 0.0, %v375
  %v377 = vpop.f32.mrf.mxu0
  %378 = vmatprep.mubr.f32.mxu0 0.0
  %v379 = vand.u32 %v189, 4294901760
  %v380 = vsub.f32 %v189, %v379
  %v381 = vand.u32 %v380, 4294901760
  %v382 = vsub.f32 %v380, %v381
  %v383 = vand.u32 %v382, 4294901760
  %384 = vmatmul.mubr.f32.gmra.mxu0 %v383
  %v385 = vpop.f32.mrf.mxu0
  %v386 = vadd.f32 0.0, %v385
  %v387 = vpop.f32.mrf.mxu0
  %388 = vmatprep.mubr.f32.mxu0 0.0
  %v389 = vand.u32 %v192, 4294901760
  %v390 = vsub.f32 %v192, %v389
  %v391 = vand.u32 %v390, 4294901760
  %v392 = vsub.f32 %v390, %v391
  %v393 = vand.u32 %v392, 4294901760
  %394 = vmatmul.mubr.f32.gmra.mxu0 %v393
  %v395 = vpop.f32.mrf.mxu0
  %v396 = vadd.f32 0.0, %v395
  %v397 = vpop.f32.mrf.mxu0
  %398 = vmatprep.mubr.f32.mxu0 0.0
  %v399 = vand.u32 %v195, 4294901760
  %v400 = vsub.f32 %v195, %v399
  %v401 = vand.u32 %v400, 4294901760
  %v402 = vsub.f32 %v400, %v401
  %v403 = vand.u32 %v402, 4294901760
  %404 = vmatmul.mubr.f32.gmra.mxu0 %v403
  %v405 = vpop.f32.mrf.mxu0
  %v406 = vadd.f32 0.0, %v405
  %v407 = vpop.f32.mrf.mxu0
  %408 = vmatprep.mubr.f32.mxu0 0.0
  %v409 = vand.u32 %v198, 4294901760
  %v410 = vsub.f32 %v198, %v409
  %v411 = vand.u32 %v410, 4294901760
  %v412 = vsub.f32 %v410, %v411
  %v413 = vand.u32 %v412, 4294901760
  %414 = vmatmul.mubr.f32.gmra.mxu0 %v413
  %v415 = vpop.f32.mrf.mxu0
  %v416 = vadd.f32 0.0, %v415
  %v417 = vpop.f32.mrf.mxu0
  %418 = vmatprep.mubr.f32.mxu0 0.0
  %v419 = vand.u32 %v201, 4294901760
  %v420 = vsub.f32 %v201, %v419
  %v421 = vand.u32 %v420, 4294901760
  %v422 = vsub.f32 %v420, %v421
  %v423 = vand.u32 %v422, 4294901760
  %424 = vmatmul.mubr.f32.gmra.mxu0 %v423
  %v425 = vpop.f32.mrf.mxu0
  %v426 = vadd.f32 0.0, %v425
  %v427 = vpop.f32.mrf.mxu0
  %428 = vmatprep.mubr.f32.mxu0 0.0
  %v429 = vand.u32 %v204, 4294901760
  %v430 = vsub.f32 %v204, %v429
  %v431 = vand.u32 %v430, 4294901760
  %v432 = vsub.f32 %v430, %v431
  %v433 = vand.u32 %v432, 4294901760
  %434 = vmatmul.mubr.f32.gmra.mxu0 %v433
  %v435 = vpop.f32.mrf.mxu0
  %v436 = vadd.f32 0.0, %v435
  %v437 = vpop.f32.mrf.mxu0
  %438 = vdwg.mxu0
  %439 = vmatprep.subr.mxu0 0.0
  %440 = vmatpush1.msra.mxu0 0.0
  %441 = vmatprep.subr.mxu0 0.0
  %442 = vmatpush1.msra.mxu0 0.0
  %443 = vmatprep.subr.mxu0 0.0
  %444 = vmatpush1.msra.mxu0 0.0
  %445 = vmatprep.subr.mxu0 0.0
  %446 = vmatpush1.msra.mxu0 0.0
  %447 = vmatprep.subr.mxu0 0.0
  %448 = vmatpush1.msra.mxu0 0.0
  %449 = vmatprep.subr.mxu0 0.0
  %450 = vmatpush1.msra.mxu0 0.0
  %451 = vmatprep.subr.mxu0 0.0
  %452 = vmatpush1.msra.mxu0 0.0
  %453 = vmatprep.subr.mxu0 0.0
  %454 = vmatpush1.msra.mxu0 0.0
  %455 = vmatprep.subr.mxu0 0.0
  %v456 = vand.u32 %v42, 4294901760
  %v457 = vsub.f32 %v42, %v456
  %v458 = vand.u32 %v457, 4294901760
  %v459 = vsub.f32 %v457, %v458
  %v460 = vand.u32 %v459, 4294901760
  %461 = vmatpush1.msra.mxu0 %v460
  %462 = vmatprep.subr.mxu0 0.0
  %v463 = vand.u32 %v41, 4294901760
  %v464 = vsub.f32 %v41, %v463
  %v465 = vand.u32 %v464, 4294901760
  %v466 = vsub.f32 %v464, %v465
  %v467 = vand.u32 %v466, 4294901760
  %468 = vmatpush1.msra.mxu0 %v467
  %469 = vmatprep.subr.mxu0 0.0
  %v470 = vand.u32 %v40, 4294901760
  %v471 = vsub.f32 %v40, %v470
  %v472 = vand.u32 %v471, 4294901760
  %v473 = vsub.f32 %v471, %v472
  %v474 = vand.u32 %v473, 4294901760
  %475 = vmatpush1.msra.mxu0 %v474
  %476 = vmatprep.subr.mxu0 0.0
  %v477 = vand.u32 %v39, 4294901760
  %v478 = vsub.f32 %v39, %v477
  %v479 = vand.u32 %v478, 4294901760
  %v480 = vsub.f32 %v478, %v479
  %v481 = vand.u32 %v480, 4294901760
  %482 = vmatpush1.msra.mxu0 %v481
  %483 = vmatprep.subr.mxu0 0.0
  %v484 = vand.u32 %v38, 4294901760
  %v485 = vsub.f32 %v38, %v484
  %v486 = vand.u32 %v485, 4294901760
  %v487 = vsub.f32 %v485, %v486
  %v488 = vand.u32 %v487, 4294901760
  %489 = vmatpush1.msra.mxu0 %v488
  %490 = vmatprep.subr.mxu0 0.0
  %v491 = vand.u32 %v37, 4294901760
  %v492 = vsub.f32 %v37, %v491
  %v493 = vand.u32 %v492, 4294901760
  %v494 = vsub.f32 %v492, %v493
  %v495 = vand.u32 %v494, 4294901760
  %496 = vmatpush1.msra.mxu0 %v495
  %497 = vmatprep.subr.mxu0 0.0
  %v498 = vand.u32 %v36, 4294901760
  %v499 = vsub.f32 %v36, %v498
  %v500 = vand.u32 %v499, 4294901760
  %v501 = vsub.f32 %v499, %v500
  %v502 = vand.u32 %v501, 4294901760
  %503 = vmatpush1.msra.mxu0 %v502
  %504 = vmatprep.subr.mxu0 0.0
  %v505 = vand.u32 %v35, 4294901760
  %v506 = vsub.f32 %v35, %v505
  %v507 = vand.u32 %v506, 4294901760
  %v508 = vsub.f32 %v506, %v507
  %v509 = vand.u32 %v508, 4294901760
  %510 = vmatpush1.msra.mxu0 %v509
  %511 = vmatprep.subr.mxu0 0.0
  %512 = vmatpush2.msra.mxu0 0.0
  %513 = vmatprep.subr.mxu0 0.0
  %514 = vmatpush2.msra.mxu0 0.0
  %515 = vmatprep.subr.mxu0 0.0
  %516 = vmatpush2.msra.mxu0 0.0
  %517 = vmatprep.subr.mxu0 0.0
  %518 = vmatpush2.msra.mxu0 0.0
  %519 = vmatprep.subr.mxu0 0.0
  %520 = vmatpush2.msra.mxu0 0.0
  %521 = vmatprep.subr.mxu0 0.0
  %522 = vmatpush2.msra.mxu0 0.0
  %523 = vmatprep.subr.mxu0 0.0
  %524 = vmatpush2.msra.mxu0 0.0
  %525 = vmatprep.subr.mxu0 0.0
  %526 = vmatpush2.msra.mxu0 0.0
  %527 = vmatprep.subr.mxu0 0.0
  %528 = vmatpush2.msra.mxu0 0.0
  %529 = vmatprep.subr.mxu0 0.0
  %530 = vmatpush2.msra.mxu0 0.0
  %531 = vmatprep.subr.mxu0 0.0
  %532 = vmatpush2.msra.mxu0 0.0
  %533 = vmatprep.subr.mxu0 0.0
  %534 = vmatpush2.msra.mxu0 0.0
  %535 = vmatprep.subr.mxu0 0.0
  %536 = vmatpush2.msra.mxu0 0.0
  %537 = vmatprep.subr.mxu0 0.0
  %538 = vmatpush2.msra.mxu0 0.0
  %539 = vmatprep.subr.mxu0 0.0
  %540 = vmatpush2.msra.mxu0 0.0
  %541 = vmatprep.subr.mxu0 0.0
  %542 = vmatpush2.msra.mxu0 0.0
  %543 = vmatprep.mubr.f32.mxu0 0.0
  %v544 = vand.u32 %v159, 4294901760
  %545 = vmatmul.mubr.f32.gmra.mxu0 %v544
  %v546 = vpop.f32.mrf.mxu0
  %v547 = vadd.f32 %v286, %v546
  %v548 = vpop.f32.mrf.mxu0
  %549 = vmatprep.mubr.f32.mxu0 0.0
  %v550 = vand.u32 %v162, 4294901760
  %551 = vmatmul.mubr.f32.gmra.mxu0 %v550
  %v552 = vpop.f32.mrf.mxu0
  %v553 = vadd.f32 %v296, %v552
  %v554 = vpop.f32.mrf.mxu0
  %555 = vmatprep.mubr.f32.mxu0 0.0
  %v556 = vand.u32 %v165, 4294901760
  %557 = vmatmul.mubr.f32.gmra.mxu0 %v556
  %v558 = vpop.f32.mrf.mxu0
  %v559 = vadd.f32 %v306, %v558
  %v560 = vpop.f32.mrf.mxu0
  %561 = vmatprep.mubr.f32.mxu0 0.0
  %v562 = vand.u32 %v168, 4294901760
  %563 = vmatmul.mubr.f32.gmra.mxu0 %v562
  %v564 = vpop.f32.mrf.mxu0
  %v565 = vadd.f32 %v316, %v564
  %v566 = vpop.f32.mrf.mxu0
  %567 = vmatprep.mubr.f32.mxu0 0.0
  %v568 = vand.u32 %v171, 4294901760
  %569 = vmatmul.mubr.f32.gmra.mxu0 %v568
  %v570 = vpop.f32.mrf.mxu0
  %v571 = vadd.f32 %v326, %v570
  %v572 = vpop.f32.mrf.mxu0
  %573 = vmatprep.mubr.f32.mxu0 0.0
  %v574 = vand.u32 %v174, 4294901760
  %575 = vmatmul.mubr.f32.gmra.mxu0 %v574
  %v576 = vpop.f32.mrf.mxu0
  %v577 = vadd.f32 %v336, %v576
  %v578 = vpop.f32.mrf.mxu0
  %579 = vmatprep.mubr.f32.mxu0 0.0
  %v580 = vand.u32 %v177, 4294901760
  %581 = vmatmul.mubr.f32.gmra.mxu0 %v580
  %v582 = vpop.f32.mrf.mxu0
  %v583 = vadd.f32 %v346, %v582
  %v584 = vpop.f32.mrf.mxu0
  %585 = vmatprep.mubr.f32.mxu0 0.0
  %v586 = vand.u32 %v180, 4294901760
  %587 = vmatmul.mubr.f32.gmra.mxu0 %v586
  %v588 = vpop.f32.mrf.mxu0
  %v589 = vadd.f32 %v356, %v588
  %v590 = vpop.f32.mrf.mxu0
  %591 = vmatprep.mubr.f32.mxu0 0.0
  %v592 = vand.u32 %v183, 4294901760
  %593 = vmatmul.mubr.f32.gmra.mxu0 %v592
  %v594 = vpop.f32.mrf.mxu0
  %v595 = vadd.f32 %v366, %v594
  %v596 = vpop.f32.mrf.mxu0
  %597 = vmatprep.mubr.f32.mxu0 0.0
  %v598 = vand.u32 %v186, 4294901760
  %599 = vmatmul.mubr.f32.gmra.mxu0 %v598
  %v600 = vpop.f32.mrf.mxu0
  %v601 = vadd.f32 %v376, %v600
  %v602 = vpop.f32.mrf.mxu0
  %603 = vmatprep.mubr.f32.mxu0 0.0
  %v604 = vand.u32 %v189, 4294901760
  %605 = vmatmul.mubr.f32.gmra.mxu0 %v604
  %v606 = vpop.f32.mrf.mxu0
  %v607 = vadd.f32 %v386, %v606
  %v608 = vpop.f32.mrf.mxu0
  %609 = vmatprep.mubr.f32.mxu0 0.0
  %v610 = vand.u32 %v192, 4294901760
  %611 = vmatmul.mubr.f32.gmra.mxu0 %v610
  %v612 = vpop.f32.mrf.mxu0
  %v613 = vadd.f32 %v396, %v612
  %v614 = vpop.f32.mrf.mxu0
  %615 = vmatprep.mubr.f32.mxu0 0.0
  %v616 = vand.u32 %v195, 4294901760
  %617 = vmatmul.mubr.f32.gmra.mxu0 %v616
  %v618 = vpop.f32.mrf.mxu0
  %v619 = vadd.f32 %v406, %v618
  %v620 = vpop.f32.mrf.mxu0
  %621 = vmatprep.mubr.f32.mxu0 0.0
  %v622 = vand.u32 %v198, 4294901760
  %623 = vmatmul.mubr.f32.gmra.mxu0 %v622
  %v624 = vpop.f32.mrf.mxu0
  %v625 = vadd.f32 %v416, %v624
  %v626 = vpop.f32.mrf.mxu0
  %627 = vmatprep.mubr.f32.mxu0 0.0
  %v628 = vand.u32 %v201, 4294901760
  %629 = vmatmul.mubr.f32.gmra.mxu0 %v628
  %v630 = vpop.f32.mrf.mxu0
  %v631 = vadd.f32 %v426, %v630
  %v632 = vpop.f32.mrf.mxu0
  %633 = vmatprep.mubr.f32.mxu0 0.0
  %v634 = vand.u32 %v204, 4294901760
  %635 = vmatmul.mubr.f32.gmra.mxu0 %v634
  %v636 = vpop.f32.mrf.mxu0
  %v637 = vadd.f32 %v436, %v636
  %v638 = vpop.f32.mrf.mxu0
  %639 = vdwg.mxu0
  %640 = vmatprep.subr.mxu0 0.0
  %641 = vmatpush1.msra.mxu0 0.0
  %642 = vmatprep.subr.mxu0 0.0
  %643 = vmatpush1.msra.mxu0 0.0
  %644 = vmatprep.subr.mxu0 0.0
  %645 = vmatpush1.msra.mxu0 0.0
  %646 = vmatprep.subr.mxu0 0.0
  %647 = vmatpush1.msra.mxu0 0.0
  %648 = vmatprep.subr.mxu0 0.0
  %649 = vmatpush1.msra.mxu0 0.0
  %650 = vmatprep.subr.mxu0 0.0
  %651 = vmatpush1.msra.mxu0 0.0
  %652 = vmatprep.subr.mxu0 0.0
  %653 = vmatpush1.msra.mxu0 0.0
  %654 = vmatprep.subr.mxu0 0.0
  %655 = vmatpush1.msra.mxu0 0.0
  %656 = vmatprep.subr.mxu0 0.0
  %v657 = vand.u32 %v42, 4294901760
  %v658 = vsub.f32 %v42, %v657
  %659 = vmatpush1.msra.mxu0 %v658
  %660 = vmatprep.subr.mxu0 0.0
  %v661 = vand.u32 %v41, 4294901760
  %v662 = vsub.f32 %v41, %v661
  %663 = vmatpush1.msra.mxu0 %v662
  %664 = vmatprep.subr.mxu0 0.0
  %v665 = vand.u32 %v40, 4294901760
  %v666 = vsub.f32 %v40, %v665
  %667 = vmatpush1.msra.mxu0 %v666
  %668 = vmatprep.subr.mxu0 0.0
  %v669 = vand.u32 %v39, 4294901760
  %v670 = vsub.f32 %v39, %v669
  %671 = vmatpush1.msra.mxu0 %v670
  %672 = vmatprep.subr.mxu0 0.0
  %v673 = vand.u32 %v38, 4294901760
  %v674 = vsub.f32 %v38, %v673
  %675 = vmatpush1.msra.mxu0 %v674
  %676 = vmatprep.subr.mxu0 0.0
  %v677 = vand.u32 %v37, 4294901760
  %v678 = vsub.f32 %v37, %v677
  %679 = vmatpush1.msra.mxu0 %v678
  %680 = vmatprep.subr.mxu0 0.0
  %v681 = vand.u32 %v36, 4294901760
  %v682 = vsub.f32 %v36, %v681
  %683 = vmatpush1.msra.mxu0 %v682
  %684 = vmatprep.subr.mxu0 0.0
  %v685 = vand.u32 %v35, 4294901760
  %v686 = vsub.f32 %v35, %v685
  %687 = vmatpush1.msra.mxu0 %v686
  %688 = vmatprep.subr.mxu0 0.0
  %689 = vmatpush2.msra.mxu0 0.0
  %690 = vmatprep.subr.mxu0 0.0
  %691 = vmatpush2.msra.mxu0 0.0
  %692 = vmatprep.subr.mxu0 0.0
  %693 = vmatpush2.msra.mxu0 0.0
  %694 = vmatprep.subr.mxu0 0.0
  %695 = vmatpush2.msra.mxu0 0.0
  %696 = vmatprep.subr.mxu0 0.0
  %697 = vmatpush2.msra.mxu0 0.0
  %698 = vmatprep.subr.mxu0 0.0
  %699 = vmatpush2.msra.mxu0 0.0
  %700 = vmatprep.subr.mxu0 0.0
  %701 = vmatpush2.msra.mxu0 0.0
  %702 = vmatprep.subr.mxu0 0.0
  %703 = vmatpush2.msra.mxu0 0.0
  %704 = vmatprep.subr.mxu0 0.0
  %705 = vmatpush2.msra.mxu0 0.0
  %706 = vmatprep.subr.mxu0 0.0
  %707 = vmatpush2.msra.mxu0 0.0
  %708 = vmatprep.subr.mxu0 0.0
  %709 = vmatpush2.msra.mxu0 0.0
  %710 = vmatprep.subr.mxu0 0.0
  %711 = vmatpush2.msra.mxu0 0.0
  %712 = vmatprep.subr.mxu0 0.0
  %713 = vmatpush2.msra.mxu0 0.0
  %714 = vmatprep.subr.mxu0 0.0
  %715 = vmatpush2.msra.mxu0 0.0
  %716 = vmatprep.subr.mxu0 0.0
  %717 = vmatpush2.msra.mxu0 0.0
  %718 = vmatprep.subr.mxu0 0.0
  %719 = vmatpush2.msra.mxu0 0.0
  %720 = vmatprep.mubr.f32.mxu0 0.0
  %v721 = vand.u32 %v159, 4294901760
  %v722 = vsub.f32 %v159, %v721
  %723 = vmatmul.mubr.f32.gmra.mxu0 %v722
  %v724 = vpop.f32.mrf.mxu0
  %v725 = vadd.f32 %v547, %v724
  %v726 = vpop.f32.mrf.mxu0
  %727 = vmatprep.mubr.f32.mxu0 0.0
  %v728 = vand.u32 %v162, 4294901760
  %v729 = vsub.f32 %v162, %v728
  %730 = vmatmul.mubr.f32.gmra.mxu0 %v729
  %v731 = vpop.f32.mrf.mxu0
  %v732 = vadd.f32 %v553, %v731
  %v733 = vpop.f32.mrf.mxu0
  %734 = vmatprep.mubr.f32.mxu0 0.0
  %v735 = vand.u32 %v165, 4294901760
  %v736 = vsub.f32 %v165, %v735
  %737 = vmatmul.mubr.f32.gmra.mxu0 %v736
  %v738 = vpop.f32.mrf.mxu0
  %v739 = vadd.f32 %v559, %v738
  %v740 = vpop.f32.mrf.mxu0
  %741 = vmatprep.mubr.f32.mxu0 0.0
  %v742 = vand.u32 %v168, 4294901760
  %v743 = vsub.f32 %v168, %v742
  %744 = vmatmul.mubr.f32.gmra.mxu0 %v743
  %v745 = vpop.f32.mrf.mxu0
  %v746 = vadd.f32 %v565, %v745
  %v747 = vpop.f32.mrf.mxu0
  %748 = vmatprep.mubr.f32.mxu0 0.0
  %v749 = vand.u32 %v171, 4294901760
  %v750 = vsub.f32 %v171, %v749
  %751 = vmatmul.mubr.f32.gmra.mxu0 %v750
  %v752 = vpop.f32.mrf.mxu0
  %v753 = vadd.f32 %v571, %v752
  %v754 = vpop.f32.mrf.mxu0
  %755 = vmatprep.mubr.f32.mxu0 0.0
  %v756 = vand.u32 %v174, 4294901760
  %v757 = vsub.f32 %v174, %v756
  %758 = vmatmul.mubr.f32.gmra.mxu0 %v757
  %v759 = vpop.f32.mrf.mxu0
  %v760 = vadd.f32 %v577, %v759
  %v761 = vpop.f32.mrf.mxu0
  %762 = vmatprep.mubr.f32.mxu0 0.0
  %v763 = vand.u32 %v177, 4294901760
  %v764 = vsub.f32 %v177, %v763
  %765 = vmatmul.mubr.f32.gmra.mxu0 %v764
  %v766 = vpop.f32.mrf.mxu0
  %v767 = vadd.f32 %v583, %v766
  %v768 = vpop.f32.mrf.mxu0
  %769 = vmatprep.mubr.f32.mxu0 0.0
  %v770 = vand.u32 %v180, 4294901760
  %v771 = vsub.f32 %v180, %v770
  %772 = vmatmul.mubr.f32.gmra.mxu0 %v771
  %v773 = vpop.f32.mrf.mxu0
  %v774 = vadd.f32 %v589, %v773
  %v775 = vpop.f32.mrf.mxu0
  %776 = vmatprep.mubr.f32.mxu0 0.0
  %v777 = vand.u32 %v183, 4294901760
  %v778 = vsub.f32 %v183, %v777
  %779 = vmatmul.mubr.f32.gmra.mxu0 %v778
  %v780 = vpop.f32.mrf.mxu0
  %v781 = vadd.f32 %v595, %v780
  %v782 = vpop.f32.mrf.mxu0
  %783 = vmatprep.mubr.f32.mxu0 0.0
  %v784 = vand.u32 %v186, 4294901760
  %v785 = vsub.f32 %v186, %v784
  %786 = vmatmul.mubr.f32.gmra.mxu0 %v785
  %v787 = vpop.f32.mrf.mxu0
  %v788 = vadd.f32 %v601, %v787
  %v789 = vpop.f32.mrf.mxu0
  %790 = vmatprep.mubr.f32.mxu0 0.0
  %v791 = vand.u32 %v189, 4294901760
  %v792 = vsub.f32 %v189, %v791
  %793 = vmatmul.mubr.f32.gmra.mxu0 %v792
  %v794 = vpop.f32.mrf.mxu0
  %v795 = vadd.f32 %v607, %v794
  %v796 = vpop.f32.mrf.mxu0
  %797 = vmatprep.mubr.f32.mxu0 0.0
  %v798 = vand.u32 %v192, 4294901760
  %v799 = vsub.f32 %v192, %v798
  %800 = vmatmul.mubr.f32.gmra.mxu0 %v799
  %v801 = vpop.f32.mrf.mxu0
  %v802 = vadd.f32 %v613, %v801
  %v803 = vpop.f32.mrf.mxu0
  %804 = vmatprep.mubr.f32.mxu0 0.0
  %v805 = vand.u32 %v195, 4294901760
  %v806 = vsub.f32 %v195, %v805
  %807 = vmatmul.mubr.f32.gmra.mxu0 %v806
  %v808 = vpop.f32.mrf.mxu0
  %v809 = vadd.f32 %v619, %v808
  %v810 = vpop.f32.mrf.mxu0
  %811 = vmatprep.mubr.f32.mxu0 0.0
  %v812 = vand.u32 %v198, 4294901760
  %v813 = vsub.f32 %v198, %v812
  %814 = vmatmul.mubr.f32.gmra.mxu0 %v813
  %v815 = vpop.f32.mrf.mxu0
  %v816 = vadd.f32 %v625, %v815
  %v817 = vpop.f32.mrf.mxu0
  %818 = vmatprep.mubr.f32.mxu0 0.0
  %v819 = vand.u32 %v201, 4294901760
  %v820 = vsub.f32 %v201, %v819
  %821 = vmatmul.mubr.f32.gmra.mxu0 %v820
  %v822 = vpop.f32.mrf.mxu0
  %v823 = vadd.f32 %v631, %v822
  %v824 = vpop.f32.mrf.mxu0
  %825 = vmatprep.mubr.f32.mxu0 0.0
  %v826 = vand.u32 %v204, 4294901760
  %v827 = vsub.f32 %v204, %v826
  %828 = vmatmul.mubr.f32.gmra.mxu0 %v827
  %v829 = vpop.f32.mrf.mxu0
  %v830 = vadd.f32 %v637, %v829
  %v831 = vpop.f32.mrf.mxu0
  %832 = vdwg.mxu0
  %833 = vmatprep.subr.mxu0 0.0
  %834 = vmatpush1.msra.mxu0 0.0
  %835 = vmatprep.subr.mxu0 0.0
  %836 = vmatpush1.msra.mxu0 0.0
  %837 = vmatprep.subr.mxu0 0.0
  %838 = vmatpush1.msra.mxu0 0.0
  %839 = vmatprep.subr.mxu0 0.0
  %840 = vmatpush1.msra.mxu0 0.0
  %841 = vmatprep.subr.mxu0 0.0
  %842 = vmatpush1.msra.mxu0 0.0
  %843 = vmatprep.subr.mxu0 0.0
  %844 = vmatpush1.msra.mxu0 0.0
  %845 = vmatprep.subr.mxu0 0.0
  %846 = vmatpush1.msra.mxu0 0.0
  %847 = vmatprep.subr.mxu0 0.0
  %848 = vmatpush1.msra.mxu0 0.0
  %849 = vmatprep.subr.mxu0 0.0
  %v850 = vand.u32 %v42, 4294901760
  %851 = vmatpush1.msra.mxu0 %v850
  %852 = vmatprep.subr.mxu0 0.0
  %v853 = vand.u32 %v41, 4294901760
  %854 = vmatpush1.msra.mxu0 %v853
  %855 = vmatprep.subr.mxu0 0.0
  %v856 = vand.u32 %v40, 4294901760
  %857 = vmatpush1.msra.mxu0 %v856
  %858 = vmatprep.subr.mxu0 0.0
  %v859 = vand.u32 %v39, 4294901760
  %860 = vmatpush1.msra.mxu0 %v859
  %861 = vmatprep.subr.mxu0 0.0
  %v862 = vand.u32 %v38, 4294901760
  %863 = vmatpush1.msra.mxu0 %v862
  %864 = vmatprep.subr.mxu0 0.0
  %v865 = vand.u32 %v37, 4294901760
  %866 = vmatpush1.msra.mxu0 %v865
  %867 = vmatprep.subr.mxu0 0.0
  %v868 = vand.u32 %v36, 4294901760
  %869 = vmatpush1.msra.mxu0 %v868
  %870 = vmatprep.subr.mxu0 0.0
  %v871 = vand.u32 %v35, 4294901760
  %872 = vmatpush1.msra.mxu0 %v871
  %873 = vmatprep.subr.mxu0 0.0
  %874 = vmatpush2.msra.mxu0 0.0
  %875 = vmatprep.subr.mxu0 0.0
  %876 = vmatpush2.msra.mxu0 0.0
  %877 = vmatprep.subr.mxu0 0.0
  %878 = vmatpush2.msra.mxu0 0.0
  %879 = vmatprep.subr.mxu0 0.0
  %880 = vmatpush2.msra.mxu0 0.0
  %881 = vmatprep.subr.mxu0 0.0
  %882 = vmatpush2.msra.mxu0 0.0
  %883 = vmatprep.subr.mxu0 0.0
  %884 = vmatpush2.msra.mxu0 0.0
  %885 = vmatprep.subr.mxu0 0.0
  %886 = vmatpush2.msra.mxu0 0.0
  %887 = vmatprep.subr.mxu0 0.0
  %888 = vmatpush2.msra.mxu0 0.0
  %889 = vmatprep.subr.mxu0 0.0
  %890 = vmatpush2.msra.mxu0 0.0
  %891 = vmatprep.subr.mxu0 0.0
  %892 = vmatpush2.msra.mxu0 0.0
  %893 = vmatprep.subr.mxu0 0.0
  %894 = vmatpush2.msra.mxu0 0.0
  %895 = vmatprep.subr.mxu0 0.0
  %896 = vmatpush2.msra.mxu0 0.0
  %897 = vmatprep.subr.mxu0 0.0
  %898 = vmatpush2.msra.mxu0 0.0
  %899 = vmatprep.subr.mxu0 0.0
  %900 = vmatpush2.msra.mxu0 0.0
  %901 = vmatprep.subr.mxu0 0.0
  %902 = vmatpush2.msra.mxu0 0.0
  %903 = vmatprep.subr.mxu0 0.0
  %904 = vmatpush2.msra.mxu0 0.0
  %905 = vmatprep.mubr.f32.mxu0 0.0
  %v906 = vand.u32 %v159, 4294901760
  %v907 = vsub.f32 %v159, %v906
  %v908 = vand.u32 %v907, 4294901760
  %909 = vmatmul.mubr.f32.gmra.mxu0 %v908
  %v910 = vpop.f32.mrf.mxu0
  %v911 = vadd.f32 %v725, %v910
  %v912 = vpop.f32.mrf.mxu0
  %913 = vmatprep.mubr.f32.mxu0 0.0
  %v914 = vand.u32 %v162, 4294901760
  %v915 = vsub.f32 %v162, %v914
  %v916 = vand.u32 %v915, 4294901760
  %917 = vmatmul.mubr.f32.gmra.mxu0 %v916
  %v918 = vpop.f32.mrf.mxu0
  %v919 = vadd.f32 %v732, %v918
  %v920 = vpop.f32.mrf.mxu0
  %921 = vmatprep.mubr.f32.mxu0 0.0
  %v922 = vand.u32 %v165, 4294901760
  %v923 = vsub.f32 %v165, %v922
  %v924 = vand.u32 %v923, 4294901760
  %925 = vmatmul.mubr.f32.gmra.mxu0 %v924
  %v926 = vpop.f32.mrf.mxu0
  %v927 = vadd.f32 %v739, %v926
  %v928 = vpop.f32.mrf.mxu0
  %929 = vmatprep.mubr.f32.mxu0 0.0
  %v930 = vand.u32 %v168, 4294901760
  %v931 = vsub.f32 %v168, %v930
  %v932 = vand.u32 %v931, 4294901760
  %933 = vmatmul.mubr.f32.gmra.mxu0 %v932
  %v934 = vpop.f32.mrf.mxu0
  %v935 = vadd.f32 %v746, %v934
  %v936 = vpop.f32.mrf.mxu0
  %937 = vmatprep.mubr.f32.mxu0 0.0
  %v938 = vand.u32 %v171, 4294901760
  %v939 = vsub.f32 %v171, %v938
  %v940 = vand.u32 %v939, 4294901760
  %941 = vmatmul.mubr.f32.gmra.mxu0 %v940
  %v942 = vpop.f32.mrf.mxu0
  %v943 = vadd.f32 %v753, %v942
  %v944 = vpop.f32.mrf.mxu0
  %945 = vmatprep.mubr.f32.mxu0 0.0
  %v946 = vand.u32 %v174, 4294901760
  %v947 = vsub.f32 %v174, %v946
  %v948 = vand.u32 %v947, 4294901760
  %949 = vmatmul.mubr.f32.gmra.mxu0 %v948
  %v950 = vpop.f32.mrf.mxu0
  %v951 = vadd.f32 %v760, %v950
  %v952 = vpop.f32.mrf.mxu0
  %953 = vmatprep.mubr.f32.mxu0 0.0
  %v954 = vand.u32 %v177, 4294901760
  %v955 = vsub.f32 %v177, %v954
  %v956 = vand.u32 %v955, 4294901760
  %957 = vmatmul.mubr.f32.gmra.mxu0 %v956
  %v958 = vpop.f32.mrf.mxu0
  %v959 = vadd.f32 %v767, %v958
  %v960 = vpop.f32.mrf.mxu0
  %961 = vmatprep.mubr.f32.mxu0 0.0
  %v962 = vand.u32 %v180, 4294901760
  %v963 = vsub.f32 %v180, %v962
  %v964 = vand.u32 %v963, 4294901760
  %965 = vmatmul.mubr.f32.gmra.mxu0 %v964
  %v966 = vpop.f32.mrf.mxu0
  %v967 = vadd.f32 %v774, %v966
  %v968 = vpop.f32.mrf.mxu0
  %969 = vmatprep.mubr.f32.mxu0 0.0
  %v970 = vand.u32 %v183, 4294901760
  %v971 = vsub.f32 %v183, %v970
  %v972 = vand.u32 %v971, 4294901760
  %973 = vmatmul.mubr.f32.gmra.mxu0 %v972
  %v974 = vpop.f32.mrf.mxu0
  %v975 = vadd.f32 %v781, %v974
  %v976 = vpop.f32.mrf.mxu0
  %977 = vmatprep.mubr.f32.mxu0 0.0
  %v978 = vand.u32 %v186, 4294901760
  %v979 = vsub.f32 %v186, %v978
  %v980 = vand.u32 %v979, 4294901760
  %981 = vmatmul.mubr.f32.gmra.mxu0 %v980
  %v982 = vpop.f32.mrf.mxu0
  %v983 = vadd.f32 %v788, %v982
  %v984 = vpop.f32.mrf.mxu0
  %985 = vmatprep.mubr.f32.mxu0 0.0
  %v986 = vand.u32 %v189, 4294901760
  %v987 = vsub.f32 %v189, %v986
  %v988 = vand.u32 %v987, 4294901760
  %989 = vmatmul.mubr.f32.gmra.mxu0 %v988
  %v990 = vpop.f32.mrf.mxu0
  %v991 = vadd.f32 %v795, %v990
  %v992 = vpop.f32.mrf.mxu0
  %993 = vmatprep.mubr.f32.mxu0 0.0
  %v994 = vand.u32 %v192, 4294901760
  %v995 = vsub.f32 %v192, %v994
  %v996 = vand.u32 %v995, 4294901760
  %997 = vmatmul.mubr.f32.gmra.mxu0 %v996
  %v998 = vpop.f32.mrf.mxu0
  %v999 = vadd.f32 %v802, %v998
  %v1000 = vpop.f32.mrf.mxu0
  %1001 = vmatprep.mubr.f32.mxu0 0.0
  %v1002 = vand.u32 %v195, 4294901760
  %v1003 = vsub.f32 %v195, %v1002
  %v1004 = vand.u32 %v1003, 4294901760
  %1005 = vmatmul.mubr.f32.gmra.mxu0 %v1004
  %v1006 = vpop.f32.mrf.mxu0
  %v1007 = vadd.f32 %v809, %v1006
  %v1008 = vpop.f32.mrf.mxu0
  %1009 = vmatprep.mubr.f32.mxu0 0.0
  %v1010 = vand.u32 %v198, 4294901760
  %v1011 = vsub.f32 %v198, %v1010
  %v1012 = vand.u32 %v1011, 4294901760
  %1013 = vmatmul.mubr.f32.gmra.mxu0 %v1012
  %v1014 = vpop.f32.mrf.mxu0
  %v1015 = vadd.f32 %v816, %v1014
  %v1016 = vpop.f32.mrf.mxu0
  %1017 = vmatprep.mubr.f32.mxu0 0.0
  %v1018 = vand.u32 %v201, 4294901760
  %v1019 = vsub.f32 %v201, %v1018
  %v1020 = vand.u32 %v1019, 4294901760
  %1021 = vmatmul.mubr.f32.gmra.mxu0 %v1020
  %v1022 = vpop.f32.mrf.mxu0
  %v1023 = vadd.f32 %v823, %v1022
  %v1024 = vpop.f32.mrf.mxu0
  %1025 = vmatprep.mubr.f32.mxu0 0.0
  %v1026 = vand.u32 %v204, 4294901760
  %v1027 = vsub.f32 %v204, %v1026
  %v1028 = vand.u32 %v1027, 4294901760
  %1029 = vmatmul.mubr.f32.gmra.mxu0 %v1028
  %v1030 = vpop.f32.mrf.mxu0
  %v1031 = vadd.f32 %v830, %v1030
  %v1032 = vpop.f32.mrf.mxu0
  %1033 = vdwg.mxu0
  %1034 = vmatprep.subr.mxu0 0.0
  %1035 = vmatpush1.msra.mxu0 0.0
  %1036 = vmatprep.subr.mxu0 0.0
  %1037 = vmatpush1.msra.mxu0 0.0
  %1038 = vmatprep.subr.mxu0 0.0
  %1039 = vmatpush1.msra.mxu0 0.0
  %1040 = vmatprep.subr.mxu0 0.0
  %1041 = vmatpush1.msra.mxu0 0.0
  %1042 = vmatprep.subr.mxu0 0.0
  %1043 = vmatpush1.msra.mxu0 0.0
  %1044 = vmatprep.subr.mxu0 0.0
  %1045 = vmatpush1.msra.mxu0 0.0
  %1046 = vmatprep.subr.mxu0 0.0
  %1047 = vmatpush1.msra.mxu0 0.0
  %1048 = vmatprep.subr.mxu0 0.0
  %1049 = vmatpush1.msra.mxu0 0.0
  %1050 = vmatprep.subr.mxu0 0.0
  %v1051 = vand.u32 %v42, 4294901760
  %v1052 = vsub.f32 %v42, %v1051
  %v1053 = vand.u32 %v1052, 4294901760
  %1054 = vmatpush1.msra.mxu0 %v1053
  %1055 = vmatprep.subr.mxu0 0.0
  %v1056 = vand.u32 %v41, 4294901760
  %v1057 = vsub.f32 %v41, %v1056
  %v1058 = vand.u32 %v1057, 4294901760
  %1059 = vmatpush1.msra.mxu0 %v1058
  %1060 = vmatprep.subr.mxu0 0.0
  %v1061 = vand.u32 %v40, 4294901760
  %v1062 = vsub.f32 %v40, %v1061
  %v1063 = vand.u32 %v1062, 4294901760
  %1064 = vmatpush1.msra.mxu0 %v1063
  %1065 = vmatprep.subr.mxu0 0.0
  %v1066 = vand.u32 %v39, 4294901760
  %v1067 = vsub.f32 %v39, %v1066
  %v1068 = vand.u32 %v1067, 4294901760
  %1069 = vmatpush1.msra.mxu0 %v1068
  %1070 = vmatprep.subr.mxu0 0.0
  %v1071 = vand.u32 %v38, 4294901760
  %v1072 = vsub.f32 %v38, %v1071
  %v1073 = vand.u32 %v1072, 4294901760
  %1074 = vmatpush1.msra.mxu0 %v1073
  %1075 = vmatprep.subr.mxu0 0.0
  %v1076 = vand.u32 %v37, 4294901760
  %v1077 = vsub.f32 %v37, %v1076
  %v1078 = vand.u32 %v1077, 4294901760
  %1079 = vmatpush1.msra.mxu0 %v1078
  %1080 = vmatprep.subr.mxu0 0.0
  %v1081 = vand.u32 %v36, 4294901760
  %v1082 = vsub.f32 %v36, %v1081
  %v1083 = vand.u32 %v1082, 4294901760
  %1084 = vmatpush1.msra.mxu0 %v1083
  %1085 = vmatprep.subr.mxu0 0.0
  %v1086 = vand.u32 %v35, 4294901760
  %v1087 = vsub.f32 %v35, %v1086
  %v1088 = vand.u32 %v1087, 4294901760
  %1089 = vmatpush1.msra.mxu0 %v1088
  %1090 = vmatprep.subr.mxu0 0.0
  %1091 = vmatpush2.msra.mxu0 0.0
  %1092 = vmatprep.subr.mxu0 0.0
  %1093 = vmatpush2.msra.mxu0 0.0
  %1094 = vmatprep.subr.mxu0 0.0
  %1095 = vmatpush2.msra.mxu0 0.0
  %1096 = vmatprep.subr.mxu0 0.0
  %1097 = vmatpush2.msra.mxu0 0.0
  %1098 = vmatprep.subr.mxu0 0.0
  %1099 = vmatpush2.msra.mxu0 0.0
  %1100 = vmatprep.subr.mxu0 0.0
  %1101 = vmatpush2.msra.mxu0 0.0
  %1102 = vmatprep.subr.mxu0 0.0
  %1103 = vmatpush2.msra.mxu0 0.0
  %1104 = vmatprep.subr.mxu0 0.0
  %1105 = vmatpush2.msra.mxu0 0.0
  %1106 = vmatprep.subr.mxu0 0.0
  %1107 = vmatpush2.msra.mxu0 0.0
  %1108 = vmatprep.subr.mxu0 0.0
  %1109 = vmatpush2.msra.mxu0 0.0
  %1110 = vmatprep.subr.mxu0 0.0
  %1111 = vmatpush2.msra.mxu0 0.0
  %1112 = vmatprep.subr.mxu0 0.0
  %1113 = vmatpush2.msra.mxu0 0.0
  %1114 = vmatprep.subr.mxu0 0.0
  %1115 = vmatpush2.msra.mxu0 0.0
  %1116 = vmatprep.subr.mxu0 0.0
  %1117 = vmatpush2.msra.mxu0 0.0
  %1118 = vmatprep.subr.mxu0 0.0
  %1119 = vmatpush2.msra.mxu0 0.0
  %1120 = vmatprep.subr.mxu0 0.0
  %1121 = vmatpush2.msra.mxu0 0.0
  %1122 = vmatprep.mubr.f32.mxu0 0.0
  %v1123 = vand.u32 %v159, 4294901760
  %1124 = vmatmul.mubr.f32.gmra.mxu0 %v1123
  %v1125 = vpop.f32.mrf.mxu0
  %v1126 = vadd.f32 %v911, %v1125
  %v1127 = vpop.f32.mrf.mxu0
  %1128 = vmatprep.mubr.f32.mxu0 0.0
  %v1129 = vand.u32 %v162, 4294901760
  %1130 = vmatmul.mubr.f32.gmra.mxu0 %v1129
  %v1131 = vpop.f32.mrf.mxu0
  %v1132 = vadd.f32 %v919, %v1131
  %v1133 = vpop.f32.mrf.mxu0
  %1134 = vmatprep.mubr.f32.mxu0 0.0
  %v1135 = vand.u32 %v165, 4294901760
  %1136 = vmatmul.mubr.f32.gmra.mxu0 %v1135
  %v1137 = vpop.f32.mrf.mxu0
  %v1138 = vadd.f32 %v927, %v1137
  %v1139 = vpop.f32.mrf.mxu0
  %1140 = vmatprep.mubr.f32.mxu0 0.0
  %v1141 = vand.u32 %v168, 4294901760
  %1142 = vmatmul.mubr.f32.gmra.mxu0 %v1141
  %v1143 = vpop.f32.mrf.mxu0
  %v1144 = vadd.f32 %v935, %v1143
  %v1145 = vpop.f32.mrf.mxu0
  %1146 = vmatprep.mubr.f32.mxu0 0.0
  %v1147 = vand.u32 %v171, 4294901760
  %1148 = vmatmul.mubr.f32.gmra.mxu0 %v1147
  %v1149 = vpop.f32.mrf.mxu0
  %v1150 = vadd.f32 %v943, %v1149
  %v1151 = vpop.f32.mrf.mxu0
  %1152 = vmatprep.mubr.f32.mxu0 0.0
  %v1153 = vand.u32 %v174, 4294901760
  %1154 = vmatmul.mubr.f32.gmra.mxu0 %v1153
  %v1155 = vpop.f32.mrf.mxu0
  %v1156 = vadd.f32 %v951, %v1155
  %v1157 = vpop.f32.mrf.mxu0
  %1158 = vmatprep.mubr.f32.mxu0 0.0
  %v1159 = vand.u32 %v177, 4294901760
  %1160 = vmatmul.mubr.f32.gmra.mxu0 %v1159
  %v1161 = vpop.f32.mrf.mxu0
  %v1162 = vadd.f32 %v959, %v1161
  %v1163 = vpop.f32.mrf.mxu0
  %1164 = vmatprep.mubr.f32.mxu0 0.0
  %v1165 = vand.u32 %v180, 4294901760
  %1166 = vmatmul.mubr.f32.gmra.mxu0 %v1165
  %v1167 = vpop.f32.mrf.mxu0
  %v1168 = vadd.f32 %v967, %v1167
  %v1169 = vpop.f32.mrf.mxu0
  %1170 = vmatprep.mubr.f32.mxu0 0.0
  %v1171 = vand.u32 %v183, 4294901760
  %1172 = vmatmul.mubr.f32.gmra.mxu0 %v1171
  %v1173 = vpop.f32.mrf.mxu0
  %v1174 = vadd.f32 %v975, %v1173
  %v1175 = vpop.f32.mrf.mxu0
  %1176 = vmatprep.mubr.f32.mxu0 0.0
  %v1177 = vand.u32 %v186, 4294901760
  %1178 = vmatmul.mubr.f32.gmra.mxu0 %v1177
  %v1179 = vpop.f32.mrf.mxu0
  %v1180 = vadd.f32 %v983, %v1179
  %v1181 = vpop.f32.mrf.mxu0
  %1182 = vmatprep.mubr.f32.mxu0 0.0
  %v1183 = vand.u32 %v189, 4294901760
  %1184 = vmatmul.mubr.f32.gmra.mxu0 %v1183
  %v1185 = vpop.f32.mrf.mxu0
  %v1186 = vadd.f32 %v991, %v1185
  %v1187 = vpop.f32.mrf.mxu0
  %1188 = vmatprep.mubr.f32.mxu0 0.0
  %v1189 = vand.u32 %v192, 4294901760
  %1190 = vmatmul.mubr.f32.gmra.mxu0 %v1189
  %v1191 = vpop.f32.mrf.mxu0
  %v1192 = vadd.f32 %v999, %v1191
  %v1193 = vpop.f32.mrf.mxu0
  %1194 = vmatprep.mubr.f32.mxu0 0.0
  %v1195 = vand.u32 %v195, 4294901760
  %1196 = vmatmul.mubr.f32.gmra.mxu0 %v1195
  %v1197 = vpop.f32.mrf.mxu0
  %v1198 = vadd.f32 %v1007, %v1197
  %v1199 = vpop.f32.mrf.mxu0
  %1200 = vmatprep.mubr.f32.mxu0 0.0
  %v1201 = vand.u32 %v198, 4294901760
  %1202 = vmatmul.mubr.f32.gmra.mxu0 %v1201
  %v1203 = vpop.f32.mrf.mxu0
  %v1204 = vadd.f32 %v1015, %v1203
  %v1205 = vpop.f32.mrf.mxu0
  %1206 = vmatprep.mubr.f32.mxu0 0.0
  %v1207 = vand.u32 %v201, 4294901760
  %1208 = vmatmul.mubr.f32.gmra.mxu0 %v1207
  %v1209 = vpop.f32.mrf.mxu0
  %v1210 = vadd.f32 %v1023, %v1209
  %v1211 = vpop.f32.mrf.mxu0
  %1212 = vmatprep.mubr.f32.mxu0 0.0
  %v1213 = vand.u32 %v204, 4294901760
  %1214 = vmatmul.mubr.f32.gmra.mxu0 %v1213
  %v1215 = vpop.f32.mrf.mxu0
  %v1216 = vadd.f32 %v1031, %v1215
  %v1217 = vpop.f32.mrf.mxu0
  %1218 = vdwg.mxu0
  %1219 = vmatprep.subr.mxu0 0.0
  %1220 = vmatpush1.msra.mxu0 0.0
  %1221 = vmatprep.subr.mxu0 0.0
  %1222 = vmatpush1.msra.mxu0 0.0
  %1223 = vmatprep.subr.mxu0 0.0
  %1224 = vmatpush1.msra.mxu0 0.0
  %1225 = vmatprep.subr.mxu0 0.0
  %1226 = vmatpush1.msra.mxu0 0.0
  %1227 = vmatprep.subr.mxu0 0.0
  %1228 = vmatpush1.msra.mxu0 0.0
  %1229 = vmatprep.subr.mxu0 0.0
  %1230 = vmatpush1.msra.mxu0 0.0
  %1231 = vmatprep.subr.mxu0 0.0
  %1232 = vmatpush1.msra.mxu0 0.0
  %1233 = vmatprep.subr.mxu0 0.0
  %1234 = vmatpush1.msra.mxu0 0.0
  %1235 = vmatprep.subr.mxu0 0.0
  %v1236 = vand.u32 %v42, 4294901760
  %1237 = vmatpush1.msra.mxu0 %v1236
  %1238 = vmatprep.subr.mxu0 0.0
  %v1239 = vand.u32 %v41, 4294901760
  %1240 = vmatpush1.msra.mxu0 %v1239
  %1241 = vmatprep.subr.mxu0 0.0
  %v1242 = vand.u32 %v40, 4294901760
  %1243 = vmatpush1.msra.mxu0 %v1242
  %1244 = vmatprep.subr.mxu0 0.0
  %v1245 = vand.u32 %v39, 4294901760
  %1246 = vmatpush1.msra.mxu0 %v1245
  %1247 = vmatprep.subr.mxu0 0.0
  %v1248 = vand.u32 %v38, 4294901760
  %1249 = vmatpush1.msra.mxu0 %v1248
  %1250 = vmatprep.subr.mxu0 0.0
  %v1251 = vand.u32 %v37, 4294901760
  %1252 = vmatpush1.msra.mxu0 %v1251
  %1253 = vmatprep.subr.mxu0 0.0
  %v1254 = vand.u32 %v36, 4294901760
  %1255 = vmatpush1.msra.mxu0 %v1254
  %1256 = vmatprep.subr.mxu0 0.0
  %v1257 = vand.u32 %v35, 4294901760
  %1258 = vmatpush1.msra.mxu0 %v1257
  %1259 = vmatprep.subr.mxu0 0.0
  %1260 = vmatpush2.msra.mxu0 0.0
  %1261 = vmatprep.subr.mxu0 0.0
  %1262 = vmatpush2.msra.mxu0 0.0
  %1263 = vmatprep.subr.mxu0 0.0
  %1264 = vmatpush2.msra.mxu0 0.0
  %1265 = vmatprep.subr.mxu0 0.0
  %1266 = vmatpush2.msra.mxu0 0.0
  %1267 = vmatprep.subr.mxu0 0.0
  %1268 = vmatpush2.msra.mxu0 0.0
  %1269 = vmatprep.subr.mxu0 0.0
  %1270 = vmatpush2.msra.mxu0 0.0
  %1271 = vmatprep.subr.mxu0 0.0
  %1272 = vmatpush2.msra.mxu0 0.0
  %1273 = vmatprep.subr.mxu0 0.0
  %1274 = vmatpush2.msra.mxu0 0.0
  %1275 = vmatprep.subr.mxu0 0.0
  %1276 = vmatpush2.msra.mxu0 0.0
  %1277 = vmatprep.subr.mxu0 0.0
  %1278 = vmatpush2.msra.mxu0 0.0
  %1279 = vmatprep.subr.mxu0 0.0
  %1280 = vmatpush2.msra.mxu0 0.0
  %1281 = vmatprep.subr.mxu0 0.0
  %1282 = vmatpush2.msra.mxu0 0.0
  %1283 = vmatprep.subr.mxu0 0.0
  %1284 = vmatpush2.msra.mxu0 0.0
  %1285 = vmatprep.subr.mxu0 0.0
  %1286 = vmatpush2.msra.mxu0 0.0
  %1287 = vmatprep.subr.mxu0 0.0
  %1288 = vmatpush2.msra.mxu0 0.0
  %1289 = vmatprep.subr.mxu0 0.0
  %1290 = vmatpush2.msra.mxu0 0.0
  %1291 = vmatprep.mubr.f32.mxu0 0.0
  %v1292 = vand.u32 %v159, 4294901760
  %1293 = vmatmul.mubr.f32.gmra.mxu0 %v1292
  %v1294 = vpop.f32.mrf.mxu0
  %v1295 = vadd.f32 %v1126, %v1294
  %v1296 = vpop.f32.mrf.mxu0
  %1297 = vmatprep.mubr.f32.mxu0 0.0
  %v1298 = vand.u32 %v162, 4294901760
  %1299 = vmatmul.mubr.f32.gmra.mxu0 %v1298
  %v1300 = vpop.f32.mrf.mxu0
  %v1301 = vadd.f32 %v1132, %v1300
  %v1302 = vpop.f32.mrf.mxu0
  %1303 = vmatprep.mubr.f32.mxu0 0.0
  %v1304 = vand.u32 %v165, 4294901760
  %1305 = vmatmul.mubr.f32.gmra.mxu0 %v1304
  %v1306 = vpop.f32.mrf.mxu0
  %v1307 = vadd.f32 %v1138, %v1306
  %v1308 = vpop.f32.mrf.mxu0
  %1309 = vmatprep.mubr.f32.mxu0 0.0
  %v1310 = vand.u32 %v168, 4294901760
  %1311 = vmatmul.mubr.f32.gmra.mxu0 %v1310
  %v1312 = vpop.f32.mrf.mxu0
  %v1313 = vadd.f32 %v1144, %v1312
  %v1314 = vpop.f32.mrf.mxu0
  %1315 = vmatprep.mubr.f32.mxu0 0.0
  %v1316 = vand.u32 %v171, 4294901760
  %1317 = vmatmul.mubr.f32.gmra.mxu0 %v1316
  %v1318 = vpop.f32.mrf.mxu0
  %v1319 = vadd.f32 %v1150, %v1318
  %v1320 = vpop.f32.mrf.mxu0
  %1321 = vmatprep.mubr.f32.mxu0 0.0
  %v1322 = vand.u32 %v174, 4294901760
  %1323 = vmatmul.mubr.f32.gmra.mxu0 %v1322
  %v1324 = vpop.f32.mrf.mxu0
  %v1325 = vadd.f32 %v1156, %v1324
  %v1326 = vpop.f32.mrf.mxu0
  %1327 = vmatprep.mubr.f32.mxu0 0.0
  %v1328 = vand.u32 %v177, 4294901760
  %1329 = vmatmul.mubr.f32.gmra.mxu0 %v1328
  %v1330 = vpop.f32.mrf.mxu0
  %v1331 = vadd.f32 %v1162, %v1330
  %v1332 = vpop.f32.mrf.mxu0
  %1333 = vmatprep.mubr.f32.mxu0 0.0
  %v1334 = vand.u32 %v180, 4294901760
  %1335 = vmatmul.mubr.f32.gmra.mxu0 %v1334
  %v1336 = vpop.f32.mrf.mxu0
  %v1337 = vadd.f32 %v1168, %v1336
  %v1338 = vpop.f32.mrf.mxu0
  %1339 = vmatprep.mubr.f32.mxu0 0.0
  %v1340 = vand.u32 %v183, 4294901760
  %1341 = vmatmul.mubr.f32.gmra.mxu0 %v1340
  %v1342 = vpop.f32.mrf.mxu0
  %v1343 = vadd.f32 %v1174, %v1342
  %v1344 = vpop.f32.mrf.mxu0
  %1345 = vmatprep.mubr.f32.mxu0 0.0
  %v1346 = vand.u32 %v186, 4294901760
  %1347 = vmatmul.mubr.f32.gmra.mxu0 %v1346
  %v1348 = vpop.f32.mrf.mxu0
  %v1349 = vadd.f32 %v1180, %v1348
  %v1350 = vpop.f32.mrf.mxu0
  %1351 = vmatprep.mubr.f32.mxu0 0.0
  %v1352 = vand.u32 %v189, 4294901760
  %1353 = vmatmul.mubr.f32.gmra.mxu0 %v1352
  %v1354 = vpop.f32.mrf.mxu0
  %v1355 = vadd.f32 %v1186, %v1354
  %v1356 = vpop.f32.mrf.mxu0
  %1357 = vmatprep.mubr.f32.mxu0 0.0
  %v1358 = vand.u32 %v192, 4294901760
  %1359 = vmatmul.mubr.f32.gmra.mxu0 %v1358
  %v1360 = vpop.f32.mrf.mxu0
  %v1361 = vadd.f32 %v1192, %v1360
  %v1362 = vpop.f32.mrf.mxu0
  %1363 = vmatprep.mubr.f32.mxu0 0.0
  %v1364 = vand.u32 %v195, 4294901760
  %1365 = vmatmul.mubr.f32.gmra.mxu0 %v1364
  %v1366 = vpop.f32.mrf.mxu0
  %v1367 = vadd.f32 %v1198, %v1366
  %v1368 = vpop.f32.mrf.mxu0
  %1369 = vmatprep.mubr.f32.mxu0 0.0
  %v1370 = vand.u32 %v198, 4294901760
  %1371 = vmatmul.mubr.f32.gmra.mxu0 %v1370
  %v1372 = vpop.f32.mrf.mxu0
  %v1373 = vadd.f32 %v1204, %v1372
  %v1374 = vpop.f32.mrf.mxu0
  %1375 = vmatprep.mubr.f32.mxu0 0.0
  %v1376 = vand.u32 %v201, 4294901760
  %1377 = vmatmul.mubr.f32.gmra.mxu0 %v1376
  %v1378 = vpop.f32.mrf.mxu0
  %v1379 = vadd.f32 %v1210, %v1378
  %v1380 = vpop.f32.mrf.mxu0
  %1381 = vmatprep.mubr.f32.mxu0 0.0
  %v1382 = vand.u32 %v204, 4294901760
  %1383 = vmatmul.mubr.f32.gmra.mxu0 %v1382
  %v1384 = vpop.f32.mrf.mxu0
  %v1385 = vadd.f32 %v1216, %v1384
  %v1386 = vpop.f32.mrf.mxu0
  %1387 = vdwg.mxu0
  %v1388 = vld [vmem:[%s1] sm:$0xff]
  %v1389 = vld [vmem:[%s1 + $0x8] sm:$0xff]
  %v1390 = vld [vmem:[%s1 + $0x10] sm:$0xff]
  %v1391 = vld [vmem:[%s1 + $0x18] sm:$0xff]
  %v1392 = vld [vmem:[%s2] sm:$0x1]
  %v1394 = vlaneseq
  %v1395 = vshrl.u32 %v1394, 7
  %v1396 = vsub.s32 0, %v1395
  %v1397 = vrot.slane %v1392, %v1396
  %vm1399 = vcmask 261120
  %v1401 = vsel %vm1399, %v1295, 0
  %v1404 = vsel %vm1399, %v1301, 0
  %v1407 = vsel %vm1399, %v1307, 0
  %v1410 = vsel %vm1399, %v1313, 0
  %1412 = vmatprep.subr.mxu0 0.0
  %1413 = vmatpush1.msra.mxu0 0.0
  %1414 = vmatprep.subr.mxu0 0.0
  %1415 = vmatpush1.msra.mxu0 0.0
  %1416 = vmatprep.subr.mxu0 0.0
  %1417 = vmatpush1.msra.mxu0 0.0
  %1418 = vmatprep.subr.mxu0 0.0
  %1419 = vmatpush1.msra.mxu0 0.0
  %1420 = vmatprep.subr.mxu0 0.0
  %1421 = vmatpush1.msra.mxu0 0.0
  %1422 = vmatprep.subr.mxu0 0.0
  %1423 = vmatpush1.msra.mxu0 0.0
  %1424 = vmatprep.subr.mxu0 0.0
  %1425 = vmatpush1.msra.mxu0 0.0
  %1426 = vmatprep.subr.mxu0 0.0
  %1427 = vmatpush1.msra.mxu0 0.0
  %1428 = vmatprep.subr.mxu0 0.0
  %1429 = vmatpush1.msra.mxu0 0.0
  %1430 = vmatprep.subr.mxu0 0.0
  %1431 = vmatpush1.msra.mxu0 0.0
  %1432 = vmatprep.subr.mxu0 0.0
  %1433 = vmatpush1.msra.mxu0 0.0
  %1434 = vmatprep.subr.mxu0 0.0
  %1435 = vmatpush1.msra.mxu0 0.0
  %1436 = vmatprep.subr.mxu0 0.0
  %v1437 = vand.u32 %v1391, 4294901760
  %1438 = vmatpush1.msra.mxu0 %v1437
  %1439 = vmatprep.subr.mxu0 0.0
  %v1440 = vand.u32 %v1390, 4294901760
  %1441 = vmatpush1.msra.mxu0 %v1440
  %1442 = vmatprep.subr.mxu0 0.0
  %v1443 = vand.u32 %v1389, 4294901760
  %1444 = vmatpush1.msra.mxu0 %v1443
  %1445 = vmatprep.subr.mxu0 0.0
  %v1446 = vand.u32 %v1388, 4294901760
  %1447 = vmatpush1.msra.mxu0 %v1446
  %1448 = vmatprep.subr.mxu0 0.0
  %1449 = vmatpush2.msra.mxu0 0.0
  %1450 = vmatprep.subr.mxu0 0.0
  %1451 = vmatpush2.msra.mxu0 0.0
  %1452 = vmatprep.subr.mxu0 0.0
  %1453 = vmatpush2.msra.mxu0 0.0
  %1454 = vmatprep.subr.mxu0 0.0
  %1455 = vmatpush2.msra.mxu0 0.0
  %1456 = vmatprep.subr.mxu0 0.0
  %1457 = vmatpush2.msra.mxu0 0.0
  %1458 = vmatprep.subr.mxu0 0.0
  %1459 = vmatpush2.msra.mxu0 0.0
  %1460 = vmatprep.subr.mxu0 0.0
  %1461 = vmatpush2.msra.mxu0 0.0
  %1462 = vmatprep.subr.mxu0 0.0
  %1463 = vmatpush2.msra.mxu0 0.0
  %1464 = vmatprep.subr.mxu0 0.0
  %1465 = vmatpush2.msra.mxu0 0.0
  %1466 = vmatprep.subr.mxu0 0.0
  %1467 = vmatpush2.msra.mxu0 0.0
  %1468 = vmatprep.subr.mxu0 0.0
  %1469 = vmatpush2.msra.mxu0 0.0
  %1470 = vmatprep.subr.mxu0 0.0
  %1471 = vmatpush2.msra.mxu0 0.0
  %1472 = vmatprep.subr.mxu0 0.0
  %1473 = vmatpush2.msra.mxu0 0.0
  %1474 = vmatprep.subr.mxu0 0.0
  %1475 = vmatpush2.msra.mxu0 0.0
  %1476 = vmatprep.subr.mxu0 0.0
  %1477 = vmatpush2.msra.mxu0 0.0
  %1478 = vmatprep.subr.mxu0 0.0
  %1479 = vmatpush2.msra.mxu0 0.0
  %1480 = vmatprep.mubr.f32.mxu0 0.0
  %v1481 = vand.u32 %v1401, 4294901760
  %v1482 = vsub.f32 %v1401, %v1481
  %v1483 = vand.u32 %v1482, 4294901760
  %v1484 = vsub.f32 %v1482, %v1483
  %v1485 = vand.u32 %v1484, 4294901760
  %1486 = vmatmul.mubr.f32.gmra.mxu0 %v1485
  %v1487 = vpop.f32.mrf.mxu0
  %v1488 = vadd.f32 %v1397, %v1487
  %v1489 = vpop.f32.mrf.mxu0
  %1490 = vmatprep.mubr.f32.mxu0 0.0
  %v1491 = vand.u32 %v1404, 4294901760
  %v1492 = vsub.f32 %v1404, %v1491
  %v1493 = vand.u32 %v1492, 4294901760
  %v1494 = vsub.f32 %v1492, %v1493
  %v1495 = vand.u32 %v1494, 4294901760
  %1496 = vmatmul.mubr.f32.gmra.mxu0 %v1495
  %v1497 = vpop.f32.mrf.mxu0
  %v1498 = vadd.f32 %v1397, %v1497
  %v1499 = vpop.f32.mrf.mxu0
  %1500 = vmatprep.mubr.f32.mxu0 0.0
  %v1501 = vand.u32 %v1407, 4294901760
  %v1502 = vsub.f32 %v1407, %v1501
  %v1503 = vand.u32 %v1502, 4294901760
  %v1504 = vsub.f32 %v1502, %v1503
  %v1505 = vand.u32 %v1504, 4294901760
  %1506 = vmatmul.mubr.f32.gmra.mxu0 %v1505
  %v1507 = vpop.f32.mrf.mxu0
  %v1508 = vadd.f32 %v1397, %v1507
  %v1509 = vpop.f32.mrf.mxu0
  %1510 = vmatprep.mubr.f32.mxu0 0.0
  %v1511 = vand.u32 %v1410, 4294901760
  %v1512 = vsub.f32 %v1410, %v1511
  %v1513 = vand.u32 %v1512, 4294901760
  %v1514 = vsub.f32 %v1512, %v1513
  %v1515 = vand.u32 %v1514, 4294901760
  %1516 = vmatmul.mubr.f32.gmra.mxu0 %v1515
  %v1517 = vpop.f32.mrf.mxu0
  %v1518 = vadd.f32 %v1397, %v1517
  %v1519 = vpop.f32.mrf.mxu0
  %1520 = vdwg.mxu0
  %1521 = vmatprep.subr.mxu0 0.0
  %1522 = vmatpush1.msra.mxu0 0.0
  %1523 = vmatprep.subr.mxu0 0.0
  %1524 = vmatpush1.msra.mxu0 0.0
  %1525 = vmatprep.subr.mxu0 0.0
  %1526 = vmatpush1.msra.mxu0 0.0
  %1527 = vmatprep.subr.mxu0 0.0
  %1528 = vmatpush1.msra.mxu0 0.0
  %1529 = vmatprep.subr.mxu0 0.0
  %1530 = vmatpush1.msra.mxu0 0.0
  %1531 = vmatprep.subr.mxu0 0.0
  %1532 = vmatpush1.msra.mxu0 0.0
  %1533 = vmatprep.subr.mxu0 0.0
  %1534 = vmatpush1.msra.mxu0 0.0
  %1535 = vmatprep.subr.mxu0 0.0
  %1536 = vmatpush1.msra.mxu0 0.0
  %1537 = vmatprep.subr.mxu0 0.0
  %1538 = vmatpush1.msra.mxu0 0.0
  %1539 = vmatprep.subr.mxu0 0.0
  %1540 = vmatpush1.msra.mxu0 0.0
  %1541 = vmatprep.subr.mxu0 0.0
  %1542 = vmatpush1.msra.mxu0 0.0
  %1543 = vmatprep.subr.mxu0 0.0
  %1544 = vmatpush1.msra.mxu0 0.0
  %1545 = vmatprep.subr.mxu0 0.0
  %v1546 = vand.u32 %v1391, 4294901760
  %v1547 = vsub.f32 %v1391, %v1546
  %v1548 = vand.u32 %v1547, 4294901760
  %v1549 = vsub.f32 %v1547, %v1548
  %v1550 = vand.u32 %v1549, 4294901760
  %1551 = vmatpush1.msra.mxu0 %v1550
  %1552 = vmatprep.subr.mxu0 0.0
  %v1553 = vand.u32 %v1390, 4294901760
  %v1554 = vsub.f32 %v1390, %v1553
  %v1555 = vand.u32 %v1554, 4294901760
  %v1556 = vsub.f32 %v1554, %v1555
  %v1557 = vand.u32 %v1556, 4294901760
  %1558 = vmatpush1.msra.mxu0 %v1557
  %1559 = vmatprep.subr.mxu0 0.0
  %v1560 = vand.u32 %v1389, 4294901760
  %v1561 = vsub.f32 %v1389, %v1560
  %v1562 = vand.u32 %v1561, 4294901760
  %v1563 = vsub.f32 %v1561, %v1562
  %v1564 = vand.u32 %v1563, 4294901760
  %1565 = vmatpush1.msra.mxu0 %v1564
  %1566 = vmatprep.subr.mxu0 0.0
  %v1567 = vand.u32 %v1388, 4294901760
  %v1568 = vsub.f32 %v1388, %v1567
  %v1569 = vand.u32 %v1568, 4294901760
  %v1570 = vsub.f32 %v1568, %v1569
  %v1571 = vand.u32 %v1570, 4294901760
  %1572 = vmatpush1.msra.mxu0 %v1571
  %1573 = vmatprep.subr.mxu0 0.0
  %1574 = vmatpush2.msra.mxu0 0.0
  %1575 = vmatprep.subr.mxu0 0.0
  %1576 = vmatpush2.msra.mxu0 0.0
  %1577 = vmatprep.subr.mxu0 0.0
  %1578 = vmatpush2.msra.mxu0 0.0
  %1579 = vmatprep.subr.mxu0 0.0
  %1580 = vmatpush2.msra.mxu0 0.0
  %1581 = vmatprep.subr.mxu0 0.0
  %1582 = vmatpush2.msra.mxu0 0.0
  %1583 = vmatprep.subr.mxu0 0.0
  %1584 = vmatpush2.msra.mxu0 0.0
  %1585 = vmatprep.subr.mxu0 0.0
  %1586 = vmatpush2.msra.mxu0 0.0
  %1587 = vmatprep.subr.mxu0 0.0
  %1588 = vmatpush2.msra.mxu0 0.0
  %1589 = vmatprep.subr.mxu0 0.0
  %1590 = vmatpush2.msra.mxu0 0.0
  %1591 = vmatprep.subr.mxu0 0.0
  %1592 = vmatpush2.msra.mxu0 0.0
  %1593 = vmatprep.subr.mxu0 0.0
  %1594 = vmatpush2.msra.mxu0 0.0
  %1595 = vmatprep.subr.mxu0 0.0
  %1596 = vmatpush2.msra.mxu0 0.0
  %1597 = vmatprep.subr.mxu0 0.0
  %1598 = vmatpush2.msra.mxu0 0.0
  %1599 = vmatprep.subr.mxu0 0.0
  %1600 = vmatpush2.msra.mxu0 0.0
  %1601 = vmatprep.subr.mxu0 0.0
  %1602 = vmatpush2.msra.mxu0 0.0
  %1603 = vmatprep.subr.mxu0 0.0
  %1604 = vmatpush2.msra.mxu0 0.0
  %1605 = vmatprep.mubr.f32.mxu0 0.0
  %v1606 = vand.u32 %v1401, 4294901760
  %1607 = vmatmul.mubr.f32.gmra.mxu0 %v1606
  %v1608 = vpop.f32.mrf.mxu0
  %v1609 = vadd.f32 %v1488, %v1608
  %v1610 = vpop.f32.mrf.mxu0
  %1611 = vmatprep.mubr.f32.mxu0 0.0
  %v1612 = vand.u32 %v1404, 4294901760
  %1613 = vmatmul.mubr.f32.gmra.mxu0 %v1612
  %v1614 = vpop.f32.mrf.mxu0
  %v1615 = vadd.f32 %v1498, %v1614
  %v1616 = vpop.f32.mrf.mxu0
  %1617 = vmatprep.mubr.f32.mxu0 0.0
  %v1618 = vand.u32 %v1407, 4294901760
  %1619 = vmatmul.mubr.f32.gmra.mxu0 %v1618
  %v1620 = vpop.f32.mrf.mxu0
  %v1621 = vadd.f32 %v1508, %v1620
  %v1622 = vpop.f32.mrf.mxu0
  %1623 = vmatprep.mubr.f32.mxu0 0.0
  %v1624 = vand.u32 %v1410, 4294901760
  %1625 = vmatmul.mubr.f32.gmra.mxu0 %v1624
  %v1626 = vpop.f32.mrf.mxu0
  %v1627 = vadd.f32 %v1518, %v1626
  %v1628 = vpop.f32.mrf.mxu0
  %1629 = vdwg.mxu0
  %1630 = vmatprep.subr.mxu0 0.0
  %1631 = vmatpush1.msra.mxu0 0.0
  %1632 = vmatprep.subr.mxu0 0.0
  %1633 = vmatpush1.msra.mxu0 0.0
  %1634 = vmatprep.subr.mxu0 0.0
  %1635 = vmatpush1.msra.mxu0 0.0
  %1636 = vmatprep.subr.mxu0 0.0
  %1637 = vmatpush1.msra.mxu0 0.0
  %1638 = vmatprep.subr.mxu0 0.0
  %1639 = vmatpush1.msra.mxu0 0.0
  %1640 = vmatprep.subr.mxu0 0.0
  %1641 = vmatpush1.msra.mxu0 0.0
  %1642 = vmatprep.subr.mxu0 0.0
  %1643 = vmatpush1.msra.mxu0 0.0
  %1644 = vmatprep.subr.mxu0 0.0
  %1645 = vmatpush1.msra.mxu0 0.0
  %1646 = vmatprep.subr.mxu0 0.0
  %1647 = vmatpush1.msra.mxu0 0.0
  %1648 = vmatprep.subr.mxu0 0.0
  %1649 = vmatpush1.msra.mxu0 0.0
  %1650 = vmatprep.subr.mxu0 0.0
  %1651 = vmatpush1.msra.mxu0 0.0
  %1652 = vmatprep.subr.mxu0 0.0
  %1653 = vmatpush1.msra.mxu0 0.0
  %1654 = vmatprep.subr.mxu0 0.0
  %v1655 = vand.u32 %v1391, 4294901760
  %v1656 = vsub.f32 %v1391, %v1655
  %1657 = vmatpush1.msra.mxu0 %v1656
  %1658 = vmatprep.subr.mxu0 0.0
  %v1659 = vand.u32 %v1390, 4294901760
  %v1660 = vsub.f32 %v1390, %v1659
  %1661 = vmatpush1.msra.mxu0 %v1660
  %1662 = vmatprep.subr.mxu0 0.0
  %v1663 = vand.u32 %v1389, 4294901760
  %v1664 = vsub.f32 %v1389, %v1663
  %1665 = vmatpush1.msra.mxu0 %v1664
  %1666 = vmatprep.subr.mxu0 0.0
  %v1667 = vand.u32 %v1388, 4294901760
  %v1668 = vsub.f32 %v1388, %v1667
  %1669 = vmatpush1.msra.mxu0 %v1668
  %1670 = vmatprep.subr.mxu0 0.0
  %1671 = vmatpush2.msra.mxu0 0.0
  %1672 = vmatprep.subr.mxu0 0.0
  %1673 = vmatpush2.msra.mxu0 0.0
  %1674 = vmatprep.subr.mxu0 0.0
  %1675 = vmatpush2.msra.mxu0 0.0
  %1676 = vmatprep.subr.mxu0 0.0
  %1677 = vmatpush2.msra.mxu0 0.0
  %1678 = vmatprep.subr.mxu0 0.0
  %1679 = vmatpush2.msra.mxu0 0.0
  %1680 = vmatprep.subr.mxu0 0.0
  %1681 = vmatpush2.msra.mxu0 0.0
  %1682 = vmatprep.subr.mxu0 0.0
  %1683 = vmatpush2.msra.mxu0 0.0
  %1684 = vmatprep.subr.mxu0 0.0
  %1685 = vmatpush2.msra.mxu0 0.0
  %1686 = vmatprep.subr.mxu0 0.0
  %1687 = vmatpush2.msra.mxu0 0.0
  %1688 = vmatprep.subr.mxu0 0.0
  %1689 = vmatpush2.msra.mxu0 0.0
  %1690 = vmatprep.subr.mxu0 0.0
  %1691 = vmatpush2.msra.mxu0 0.0
  %1692 = vmatprep.subr.mxu0 0.0
  %1693 = vmatpush2.msra.mxu0 0.0
  %1694 = vmatprep.subr.mxu0 0.0
  %1695 = vmatpush2.msra.mxu0 0.0
  %1696 = vmatprep.subr.mxu0 0.0
  %1697 = vmatpush2.msra.mxu0 0.0
  %1698 = vmatprep.subr.mxu0 0.0
  %1699 = vmatpush2.msra.mxu0 0.0
  %1700 = vmatprep.subr.mxu0 0.0
  %1701 = vmatpush2.msra.mxu0 0.0
  %1702 = vmatprep.mubr.f32.mxu0 0.0
  %v1703 = vand.u32 %v1401, 4294901760
  %v1704 = vsub.f32 %v1401, %v1703
  %1705 = vmatmul.mubr.f32.gmra.mxu0 %v1704
  %v1706 = vpop.f32.mrf.mxu0
  %v1707 = vadd.f32 %v1609, %v1706
  %v1708 = vpop.f32.mrf.mxu0
  %1709 = vmatprep.mubr.f32.mxu0 0.0
  %v1710 = vand.u32 %v1404, 4294901760
  %v1711 = vsub.f32 %v1404, %v1710
  %1712 = vmatmul.mubr.f32.gmra.mxu0 %v1711
  %v1713 = vpop.f32.mrf.mxu0
  %v1714 = vadd.f32 %v1615, %v1713
  %v1715 = vpop.f32.mrf.mxu0
  %1716 = vmatprep.mubr.f32.mxu0 0.0
  %v1717 = vand.u32 %v1407, 4294901760
  %v1718 = vsub.f32 %v1407, %v1717
  %1719 = vmatmul.mubr.f32.gmra.mxu0 %v1718
  %v1720 = vpop.f32.mrf.mxu0
  %v1721 = vadd.f32 %v1621, %v1720
  %v1722 = vpop.f32.mrf.mxu0
  %1723 = vmatprep.mubr.f32.mxu0 0.0
  %v1724 = vand.u32 %v1410, 4294901760
  %v1725 = vsub.f32 %v1410, %v1724
  %1726 = vmatmul.mubr.f32.gmra.mxu0 %v1725
  %v1727 = vpop.f32.mrf.mxu0
  %v1728 = vadd.f32 %v1627, %v1727
  %v1729 = vpop.f32.mrf.mxu0
  %1730 = vdwg.mxu0
  %1731 = vmatprep.subr.mxu0 0.0
  %1732 = vmatpush1.msra.mxu0 0.0
  %1733 = vmatprep.subr.mxu0 0.0
  %1734 = vmatpush1.msra.mxu0 0.0
  %1735 = vmatprep.subr.mxu0 0.0
  %1736 = vmatpush1.msra.mxu0 0.0
  %1737 = vmatprep.subr.mxu0 0.0
  %1738 = vmatpush1.msra.mxu0 0.0
  %1739 = vmatprep.subr.mxu0 0.0
  %1740 = vmatpush1.msra.mxu0 0.0
  %1741 = vmatprep.subr.mxu0 0.0
  %1742 = vmatpush1.msra.mxu0 0.0
  %1743 = vmatprep.subr.mxu0 0.0
  %1744 = vmatpush1.msra.mxu0 0.0
  %1745 = vmatprep.subr.mxu0 0.0
  %1746 = vmatpush1.msra.mxu0 0.0
  %1747 = vmatprep.subr.mxu0 0.0
  %1748 = vmatpush1.msra.mxu0 0.0
  %1749 = vmatprep.subr.mxu0 0.0
  %1750 = vmatpush1.msra.mxu0 0.0
  %1751 = vmatprep.subr.mxu0 0.0
  %1752 = vmatpush1.msra.mxu0 0.0
  %1753 = vmatprep.subr.mxu0 0.0
  %1754 = vmatpush1.msra.mxu0 0.0
  %1755 = vmatprep.subr.mxu0 0.0
  %v1756 = vand.u32 %v1391, 4294901760
  %1757 = vmatpush1.msra.mxu0 %v1756
  %1758 = vmatprep.subr.mxu0 0.0
  %v1759 = vand.u32 %v1390, 4294901760
  %1760 = vmatpush1.msra.mxu0 %v1759
  %1761 = vmatprep.subr.mxu0 0.0
  %v1762 = vand.u32 %v1389, 4294901760
  %1763 = vmatpush1.msra.mxu0 %v1762
  %1764 = vmatprep.subr.mxu0 0.0
  %v1765 = vand.u32 %v1388, 4294901760
  %1766 = vmatpush1.msra.mxu0 %v1765
  %1767 = vmatprep.subr.mxu0 0.0
  %1768 = vmatpush2.msra.mxu0 0.0
  %1769 = vmatprep.subr.mxu0 0.0
  %1770 = vmatpush2.msra.mxu0 0.0
  %1771 = vmatprep.subr.mxu0 0.0
  %1772 = vmatpush2.msra.mxu0 0.0
  %1773 = vmatprep.subr.mxu0 0.0
  %1774 = vmatpush2.msra.mxu0 0.0
  %1775 = vmatprep.subr.mxu0 0.0
  %1776 = vmatpush2.msra.mxu0 0.0
  %1777 = vmatprep.subr.mxu0 0.0
  %1778 = vmatpush2.msra.mxu0 0.0
  %1779 = vmatprep.subr.mxu0 0.0
  %1780 = vmatpush2.msra.mxu0 0.0
  %1781 = vmatprep.subr.mxu0 0.0
  %1782 = vmatpush2.msra.mxu0 0.0
  %1783 = vmatprep.subr.mxu0 0.0
  %1784 = vmatpush2.msra.mxu0 0.0
  %1785 = vmatprep.subr.mxu0 0.0
  %1786 = vmatpush2.msra.mxu0 0.0
  %1787 = vmatprep.subr.mxu0 0.0
  %1788 = vmatpush2.msra.mxu0 0.0
  %1789 = vmatprep.subr.mxu0 0.0
  %1790 = vmatpush2.msra.mxu0 0.0
  %1791 = vmatprep.subr.mxu0 0.0
  %1792 = vmatpush2.msra.mxu0 0.0
  %1793 = vmatprep.subr.mxu0 0.0
  %1794 = vmatpush2.msra.mxu0 0.0
  %1795 = vmatprep.subr.mxu0 0.0
  %1796 = vmatpush2.msra.mxu0 0.0
  %1797 = vmatprep.subr.mxu0 0.0
  %1798 = vmatpush2.msra.mxu0 0.0
  %1799 = vmatprep.mubr.f32.mxu0 0.0
  %v1800 = vand.u32 %v1401, 4294901760
  %v1801 = vsub.f32 %v1401, %v1800
  %v1802 = vand.u32 %v1801, 4294901760
  %1803 = vmatmul.mubr.f32.gmra.mxu0 %v1802
  %v1804 = vpop.f32.mrf.mxu0
  %v1805 = vadd.f32 %v1707, %v1804
  %v1806 = vpop.f32.mrf.mxu0
  %1807 = vmatprep.mubr.f32.mxu0 0.0
  %v1808 = vand.u32 %v1404, 4294901760
  %v1809 = vsub.f32 %v1404, %v1808
  %v1810 = vand.u32 %v1809, 4294901760
  %1811 = vmatmul.mubr.f32.gmra.mxu0 %v1810
  %v1812 = vpop.f32.mrf.mxu0
  %v1813 = vadd.f32 %v1714, %v1812
  %v1814 = vpop.f32.mrf.mxu0
  %1815 = vmatprep.mubr.f32.mxu0 0.0
  %v1816 = vand.u32 %v1407, 4294901760
  %v1817 = vsub.f32 %v1407, %v1816
  %v1818 = vand.u32 %v1817, 4294901760
  %1819 = vmatmul.mubr.f32.gmra.mxu0 %v1818
  %v1820 = vpop.f32.mrf.mxu0
  %v1821 = vadd.f32 %v1721, %v1820
  %v1822 = vpop.f32.mrf.mxu0
  %1823 = vmatprep.mubr.f32.mxu0 0.0
  %v1824 = vand.u32 %v1410, 4294901760
  %v1825 = vsub.f32 %v1410, %v1824
  %v1826 = vand.u32 %v1825, 4294901760
  %1827 = vmatmul.mubr.f32.gmra.mxu0 %v1826
  %v1828 = vpop.f32.mrf.mxu0
  %v1829 = vadd.f32 %v1728, %v1828
  %v1830 = vpop.f32.mrf.mxu0
  %1831 = vdwg.mxu0
  %1832 = vmatprep.subr.mxu0 0.0
  %1833 = vmatpush1.msra.mxu0 0.0
  %1834 = vmatprep.subr.mxu0 0.0
  %1835 = vmatpush1.msra.mxu0 0.0
  %1836 = vmatprep.subr.mxu0 0.0
  %1837 = vmatpush1.msra.mxu0 0.0
  %1838 = vmatprep.subr.mxu0 0.0
  %1839 = vmatpush1.msra.mxu0 0.0
  %1840 = vmatprep.subr.mxu0 0.0
  %1841 = vmatpush1.msra.mxu0 0.0
  %1842 = vmatprep.subr.mxu0 0.0
  %1843 = vmatpush1.msra.mxu0 0.0
  %1844 = vmatprep.subr.mxu0 0.0
  %1845 = vmatpush1.msra.mxu0 0.0
  %1846 = vmatprep.subr.mxu0 0.0
  %1847 = vmatpush1.msra.mxu0 0.0
  %1848 = vmatprep.subr.mxu0 0.0
  %1849 = vmatpush1.msra.mxu0 0.0
  %1850 = vmatprep.subr.mxu0 0.0
  %1851 = vmatpush1.msra.mxu0 0.0
  %1852 = vmatprep.subr.mxu0 0.0
  %1853 = vmatpush1.msra.mxu0 0.0
  %1854 = vmatprep.subr.mxu0 0.0
  %1855 = vmatpush1.msra.mxu0 0.0
  %1856 = vmatprep.subr.mxu0 0.0
  %v1857 = vand.u32 %v1391, 4294901760
  %v1858 = vsub.f32 %v1391, %v1857
  %v1859 = vand.u32 %v1858, 4294901760
  %1860 = vmatpush1.msra.mxu0 %v1859
  %1861 = vmatprep.subr.mxu0 0.0
  %v1862 = vand.u32 %v1390, 4294901760
  %v1863 = vsub.f32 %v1390, %v1862
  %v1864 = vand.u32 %v1863, 4294901760
  %1865 = vmatpush1.msra.mxu0 %v1864
  %1866 = vmatprep.subr.mxu0 0.0
  %v1867 = vand.u32 %v1389, 4294901760
  %v1868 = vsub.f32 %v1389, %v1867
  %v1869 = vand.u32 %v1868, 4294901760
  %1870 = vmatpush1.msra.mxu0 %v1869
  %1871 = vmatprep.subr.mxu0 0.0
  %v1872 = vand.u32 %v1388, 4294901760
  %v1873 = vsub.f32 %v1388, %v1872
  %v1874 = vand.u32 %v1873, 4294901760
  %1875 = vmatpush1.msra.mxu0 %v1874
  %1876 = vmatprep.subr.mxu0 0.0
  %1877 = vmatpush2.msra.mxu0 0.0
  %1878 = vmatprep.subr.mxu0 0.0
  %1879 = vmatpush2.msra.mxu0 0.0
  %1880 = vmatprep.subr.mxu0 0.0
  %1881 = vmatpush2.msra.mxu0 0.0
  %1882 = vmatprep.subr.mxu0 0.0
  %1883 = vmatpush2.msra.mxu0 0.0
  %1884 = vmatprep.subr.mxu0 0.0
  %1885 = vmatpush2.msra.mxu0 0.0
  %1886 = vmatprep.subr.mxu0 0.0
  %1887 = vmatpush2.msra.mxu0 0.0
  %1888 = vmatprep.subr.mxu0 0.0
  %1889 = vmatpush2.msra.mxu0 0.0
  %1890 = vmatprep.subr.mxu0 0.0
  %1891 = vmatpush2.msra.mxu0 0.0
  %1892 = vmatprep.subr.mxu0 0.0
  %1893 = vmatpush2.msra.mxu0 0.0
  %1894 = vmatprep.subr.mxu0 0.0
  %1895 = vmatpush2.msra.mxu0 0.0
  %1896 = vmatprep.subr.mxu0 0.0
  %1897 = vmatpush2.msra.mxu0 0.0
  %1898 = vmatprep.subr.mxu0 0.0
  %1899 = vmatpush2.msra.mxu0 0.0
  %1900 = vmatprep.subr.mxu0 0.0
  %1901 = vmatpush2.msra.mxu0 0.0
  %1902 = vmatprep.subr.mxu0 0.0
  %1903 = vmatpush2.msra.mxu0 0.0
  %1904 = vmatprep.subr.mxu0 0.0
  %1905 = vmatpush2.msra.mxu0 0.0
  %1906 = vmatprep.subr.mxu0 0.0
  %1907 = vmatpush2.msra.mxu0 0.0
  %1908 = vmatprep.mubr.f32.mxu0 0.0
  %v1909 = vand.u32 %v1401, 4294901760
  %1910 = vmatmul.mubr.f32.gmra.mxu0 %v1909
  %v1911 = vpop.f32.mrf.mxu0
  %v1912 = vadd.f32 %v1805, %v1911
  %v1913 = vpop.f32.mrf.mxu0
  %1914 = vmatprep.mubr.f32.mxu0 0.0
  %v1915 = vand.u32 %v1404, 4294901760
  %1916 = vmatmul.mubr.f32.gmra.mxu0 %v1915
  %v1917 = vpop.f32.mrf.mxu0
  %v1918 = vadd.f32 %v1813, %v1917
  %v1919 = vpop.f32.mrf.mxu0
  %1920 = vmatprep.mubr.f32.mxu0 0.0
  %v1921 = vand.u32 %v1407, 4294901760
  %1922 = vmatmul.mubr.f32.gmra.mxu0 %v1921
  %v1923 = vpop.f32.mrf.mxu0
  %v1924 = vadd.f32 %v1821, %v1923
  %v1925 = vpop.f32.mrf.mxu0
  %1926 = vmatprep.mubr.f32.mxu0 0.0
  %v1927 = vand.u32 %v1410, 4294901760
  %1928 = vmatmul.mubr.f32.gmra.mxu0 %v1927
  %v1929 = vpop.f32.mrf.mxu0
  %v1930 = vadd.f32 %v1829, %v1929
  %v1931 = vpop.f32.mrf.mxu0
  %1932 = vdwg.mxu0
  %1933 = vmatprep.subr.mxu0 0.0
  %1934 = vmatpush1.msra.mxu0 0.0
  %1935 = vmatprep.subr.mxu0 0.0
  %1936 = vmatpush1.msra.mxu0 0.0
  %1937 = vmatprep.subr.mxu0 0.0
  %1938 = vmatpush1.msra.mxu0 0.0
  %1939 = vmatprep.subr.mxu0 0.0
  %1940 = vmatpush1.msra.mxu0 0.0
  %1941 = vmatprep.subr.mxu0 0.0
  %1942 = vmatpush1.msra.mxu0 0.0
  %1943 = vmatprep.subr.mxu0 0.0
  %1944 = vmatpush1.msra.mxu0 0.0
  %1945 = vmatprep.subr.mxu0 0.0
  %1946 = vmatpush1.msra.mxu0 0.0
  %1947 = vmatprep.subr.mxu0 0.0
  %1948 = vmatpush1.msra.mxu0 0.0
  %1949 = vmatprep.subr.mxu0 0.0
  %1950 = vmatpush1.msra.mxu0 0.0
  %1951 = vmatprep.subr.mxu0 0.0
  %1952 = vmatpush1.msra.mxu0 0.0
  %1953 = vmatprep.subr.mxu0 0.0
  %1954 = vmatpush1.msra.mxu0 0.0
  %1955 = vmatprep.subr.mxu0 0.0
  %1956 = vmatpush1.msra.mxu0 0.0
  %1957 = vmatprep.subr.mxu0 0.0
  %v1958 = vand.u32 %v1391, 4294901760
  %1959 = vmatpush1.msra.mxu0 %v1958
  %1960 = vmatprep.subr.mxu0 0.0
  %v1961 = vand.u32 %v1390, 4294901760
  %1962 = vmatpush1.msra.mxu0 %v1961
  %1963 = vmatprep.subr.mxu0 0.0
  %v1964 = vand.u32 %v1389, 4294901760
  %1965 = vmatpush1.msra.mxu0 %v1964
  %1966 = vmatprep.subr.mxu0 0.0
  %v1967 = vand.u32 %v1388, 4294901760
  %1968 = vmatpush1.msra.mxu0 %v1967
  %1969 = vmatprep.subr.mxu0 0.0
  %1970 = vmatpush2.msra.mxu0 0.0
  %1971 = vmatprep.subr.mxu0 0.0
  %1972 = vmatpush2.msra.mxu0 0.0
  %1973 = vmatprep.subr.mxu0 0.0
  %1974 = vmatpush2.msra.mxu0 0.0
  %1975 = vmatprep.subr.mxu0 0.0
  %1976 = vmatpush2.msra.mxu0 0.0
  %1977 = vmatprep.subr.mxu0 0.0
  %1978 = vmatpush2.msra.mxu0 0.0
  %1979 = vmatprep.subr.mxu0 0.0
  %1980 = vmatpush2.msra.mxu0 0.0
  %1981 = vmatprep.subr.mxu0 0.0
  %1982 = vmatpush2.msra.mxu0 0.0
  %1983 = vmatprep.subr.mxu0 0.0
  %1984 = vmatpush2.msra.mxu0 0.0
  %1985 = vmatprep.subr.mxu0 0.0
  %1986 = vmatpush2.msra.mxu0 0.0
  %1987 = vmatprep.subr.mxu0 0.0
  %1988 = vmatpush2.msra.mxu0 0.0
  %1989 = vmatprep.subr.mxu0 0.0
  %1990 = vmatpush2.msra.mxu0 0.0
  %1991 = vmatprep.subr.mxu0 0.0
  %1992 = vmatpush2.msra.mxu0 0.0
  %1993 = vmatprep.subr.mxu0 0.0
  %1994 = vmatpush2.msra.mxu0 0.0
  %1995 = vmatprep.subr.mxu0 0.0
  %1996 = vmatpush2.msra.mxu0 0.0
  %1997 = vmatprep.subr.mxu0 0.0
  %1998 = vmatpush2.msra.mxu0 0.0
  %1999 = vmatprep.subr.mxu0 0.0
  %2000 = vmatpush2.msra.mxu0 0.0
  %2001 = vmatprep.mubr.f32.mxu0 0.0
  %v2002 = vand.u32 %v1401, 4294901760
  %2003 = vmatmul.mubr.f32.gmra.mxu0 %v2002
  %v2004 = vpop.f32.mrf.mxu0
  %v2005 = vadd.f32 %v1912, %v2004
  %v2006 = vpop.f32.mrf.mxu0
  %2007 = vmatprep.mubr.f32.mxu0 0.0
  %v2008 = vand.u32 %v1404, 4294901760
  %2009 = vmatmul.mubr.f32.gmra.mxu0 %v2008
  %v2010 = vpop.f32.mrf.mxu0
  %v2011 = vadd.f32 %v1918, %v2010
  %v2012 = vpop.f32.mrf.mxu0
  %2013 = vmatprep.mubr.f32.mxu0 0.0
  %v2014 = vand.u32 %v1407, 4294901760
  %2015 = vmatmul.mubr.f32.gmra.mxu0 %v2014
  %v2016 = vpop.f32.mrf.mxu0
  %v2017 = vadd.f32 %v1924, %v2016
  %v2018 = vpop.f32.mrf.mxu0
  %2019 = vmatprep.mubr.f32.mxu0 0.0
  %v2020 = vand.u32 %v1410, 4294901760
  %2021 = vmatmul.mubr.f32.gmra.mxu0 %v2020
  %v2022 = vpop.f32.mrf.mxu0
  %v2023 = vadd.f32 %v1930, %v2022
  %v2024 = vpop.f32.mrf.mxu0
  %2025 = vdwg.mxu0
  %2026 = vst.msk [vmem:[#allocation2] sm:$0xff] %vm1399, %v2005
  %2027 = vst.msk [vmem:[#allocation2 + $0x8] sm:$0xff] %vm1399, %v2011
  %2028 = vst.msk [vmem:[#allocation2 + $0x10] sm:$0xff] %vm1399, %v2017
  %2029 = vst.msk [vmem:[#allocation2 + $0x18] sm:$0xff] %vm1399, %v2023
  %s2030 = scalar_lea.vmem %s1, 32
  %v2031 = vld [vmem:[%s2030] sm:$0xff]
  %v2032 = vld [vmem:[%s2030 + $0x8] sm:$0xff]
  %v2033 = vld [vmem:[%s2030 + $0x10] sm:$0xff]
  %v2034 = vld [vmem:[%s2030 + $0x18] sm:$0xff]
  %s2035 = scalar_lea.vmem %s2, 1
  %v2036 = vld [vmem:[%s2035] sm:$0x1]
  %v2038 = vlaneseq
  %v2039 = vshrl.u32 %v2038, 7
  %v2040 = vsub.s32 0, %v2039
  %v2041 = vrot.slane %v2036, %v2040
  %v2044 = vsel %vm1399, %v1319, 0
  %v2047 = vsel %vm1399, %v1325, 0
  %v2050 = vsel %vm1399, %v1331, 0
  %v2053 = vsel %vm1399, %v1337, 0
  %2055 = vmatprep.subr.mxu0 0.0
  %2056 = vmatpush1.msra.mxu0 0.0
  %2057 = vmatprep.subr.mxu0 0.0
  %2058 = vmatpush1.msra.mxu0 0.0
  %2059 = vmatprep.subr.mxu0 0.0
  %2060 = vmatpush1.msra.mxu0 0.0
  %2061 = vmatprep.subr.mxu0 0.0
  %2062 = vmatpush1.msra.mxu0 0.0
  %2063 = vmatprep.subr.mxu0 0.0
  %2064 = vmatpush1.msra.mxu0 0.0
  %2065 = vmatprep.subr.mxu0 0.0
  %2066 = vmatpush1.msra.mxu0 0.0
  %2067 = vmatprep.subr.mxu0 0.0
  %2068 = vmatpush1.msra.mxu0 0.0
  %2069 = vmatprep.subr.mxu0 0.0
  %2070 = vmatpush1.msra.mxu0 0.0
  %2071 = vmatprep.subr.mxu0 0.0
  %2072 = vmatpush1.msra.mxu0 0.0
  %2073 = vmatprep.subr.mxu0 0.0
  %2074 = vmatpush1.msra.mxu0 0.0
  %2075 = vmatprep.subr.mxu0 0.0
  %2076 = vmatpush1.msra.mxu0 0.0
  %2077 = vmatprep.subr.mxu0 0.0
  %2078 = vmatpush1.msra.mxu0 0.0
  %2079 = vmatprep.subr.mxu0 0.0
  %v2080 = vand.u32 %v2034, 4294901760
  %2081 = vmatpush1.msra.mxu0 %v2080
  %2082 = vmatprep.subr.mxu0 0.0
  %v2083 = vand.u32 %v2033, 4294901760
  %2084 = vmatpush1.msra.mxu0 %v2083
  %2085 = vmatprep.subr.mxu0 0.0
  %v2086 = vand.u32 %v2032, 4294901760
  %2087 = vmatpush1.msra.mxu0 %v2086
  %2088 = vmatprep.subr.mxu0 0.0
  %v2089 = vand.u32 %v2031, 4294901760
  %2090 = vmatpush1.msra.mxu0 %v2089
  %2091 = vmatprep.subr.mxu0 0.0
  %2092 = vmatpush2.msra.mxu0 0.0
  %2093 = vmatprep.subr.mxu0 0.0
  %2094 = vmatpush2.msra.mxu0 0.0
  %2095 = vmatprep.subr.mxu0 0.0
  %2096 = vmatpush2.msra.mxu0 0.0
  %2097 = vmatprep.subr.mxu0 0.0
  %2098 = vmatpush2.msra.mxu0 0.0
  %2099 = vmatprep.subr.mxu0 0.0
  %2100 = vmatpush2.msra.mxu0 0.0
  %2101 = vmatprep.subr.mxu0 0.0
  %2102 = vmatpush2.msra.mxu0 0.0
  %2103 = vmatprep.subr.mxu0 0.0
  %2104 = vmatpush2.msra.mxu0 0.0
  %2105 = vmatprep.subr.mxu0 0.0
  %2106 = vmatpush2.msra.mxu0 0.0
  %2107 = vmatprep.subr.mxu0 0.0
  %2108 = vmatpush2.msra.mxu0 0.0
  %2109 = vmatprep.subr.mxu0 0.0
  %2110 = vmatpush2.msra.mxu0 0.0
  %2111 = vmatprep.subr.mxu0 0.0
  %2112 = vmatpush2.msra.mxu0 0.0
  %2113 = vmatprep.subr.mxu0 0.0
  %2114 = vmatpush2.msra.mxu0 0.0
  %2115 = vmatprep.subr.mxu0 0.0
  %2116 = vmatpush2.msra.mxu0 0.0
  %2117 = vmatprep.subr.mxu0 0.0
  %2118 = vmatpush2.msra.mxu0 0.0
  %2119 = vmatprep.subr.mxu0 0.0
  %2120 = vmatpush2.msra.mxu0 0.0
  %2121 = vmatprep.subr.mxu0 0.0
  %2122 = vmatpush2.msra.mxu0 0.0
  %2123 = vmatprep.mubr.f32.mxu0 0.0
  %v2124 = vand.u32 %v2044, 4294901760
  %v2125 = vsub.f32 %v2044, %v2124
  %v2126 = vand.u32 %v2125, 4294901760
  %v2127 = vsub.f32 %v2125, %v2126
  %v2128 = vand.u32 %v2127, 4294901760
  %2129 = vmatmul.mubr.f32.gmra.mxu0 %v2128
  %v2130 = vpop.f32.mrf.mxu0
  %v2131 = vadd.f32 %v2041, %v2130
  %v2132 = vpop.f32.mrf.mxu0
  %2133 = vmatprep.mubr.f32.mxu0 0.0
  %v2134 = vand.u32 %v2047, 4294901760
  %v2135 = vsub.f32 %v2047, %v2134
  %v2136 = vand.u32 %v2135, 4294901760
  %v2137 = vsub.f32 %v2135, %v2136
  %v2138 = vand.u32 %v2137, 4294901760
  %2139 = vmatmul.mubr.f32.gmra.mxu0 %v2138
  %v2140 = vpop.f32.mrf.mxu0
  %v2141 = vadd.f32 %v2041, %v2140
  %v2142 = vpop.f32.mrf.mxu0
  %2143 = vmatprep.mubr.f32.mxu0 0.0
  %v2144 = vand.u32 %v2050, 4294901760
  %v2145 = vsub.f32 %v2050, %v2144
  %v2146 = vand.u32 %v2145, 4294901760
  %v2147 = vsub.f32 %v2145, %v2146
  %v2148 = vand.u32 %v2147, 4294901760
  %2149 = vmatmul.mubr.f32.gmra.mxu0 %v2148
  %v2150 = vpop.f32.mrf.mxu0
  %v2151 = vadd.f32 %v2041, %v2150
  %v2152 = vpop.f32.mrf.mxu0
  %2153 = vmatprep.mubr.f32.mxu0 0.0
  %v2154 = vand.u32 %v2053, 4294901760
  %v2155 = vsub.f32 %v2053, %v2154
  %v2156 = vand.u32 %v2155, 4294901760
  %v2157 = vsub.f32 %v2155, %v2156
  %v2158 = vand.u32 %v2157, 4294901760
  %2159 = vmatmul.mubr.f32.gmra.mxu0 %v2158
  %v2160 = vpop.f32.mrf.mxu0
  %v2161 = vadd.f32 %v2041, %v2160
  %v2162 = vpop.f32.mrf.mxu0
  %2163 = vdwg.mxu0
  %2164 = vmatprep.subr.mxu0 0.0
  %2165 = vmatpush1.msra.mxu0 0.0
  %2166 = vmatprep.subr.mxu0 0.0
  %2167 = vmatpush1.msra.mxu0 0.0
  %2168 = vmatprep.subr.mxu0 0.0
  %2169 = vmatpush1.msra.mxu0 0.0
  %2170 = vmatprep.subr.mxu0 0.0
  %2171 = vmatpush1.msra.mxu0 0.0
  %2172 = vmatprep.subr.mxu0 0.0
  %2173 = vmatpush1.msra.mxu0 0.0
  %2174 = vmatprep.subr.mxu0 0.0
  %2175 = vmatpush1.msra.mxu0 0.0
  %2176 = vmatprep.subr.mxu0 0.0
  %2177 = vmatpush1.msra.mxu0 0.0
  %2178 = vmatprep.subr.mxu0 0.0
  %2179 = vmatpush1.msra.mxu0 0.0
  %2180 = vmatprep.subr.mxu0 0.0
  %2181 = vmatpush1.msra.mxu0 0.0
  %2182 = vmatprep.subr.mxu0 0.0
  %2183 = vmatpush1.msra.mxu0 0.0
  %2184 = vmatprep.subr.mxu0 0.0
  %2185 = vmatpush1.msra.mxu0 0.0
  %2186 = vmatprep.subr.mxu0 0.0
  %2187 = vmatpush1.msra.mxu0 0.0
  %2188 = vmatprep.subr.mxu0 0.0
  %v2189 = vand.u32 %v2034, 4294901760
  %v2190 = vsub.f32 %v2034, %v2189
  %v2191 = vand.u32 %v2190, 4294901760
  %v2192 = vsub.f32 %v2190, %v2191
  %v2193 = vand.u32 %v2192, 4294901760
  %2194 = vmatpush1.msra.mxu0 %v2193
  %2195 = vmatprep.subr.mxu0 0.0
  %v2196 = vand.u32 %v2033, 4294901760
  %v2197 = vsub.f32 %v2033, %v2196
  %v2198 = vand.u32 %v2197, 4294901760
  %v2199 = vsub.f32 %v2197, %v2198
  %v2200 = vand.u32 %v2199, 4294901760
  %2201 = vmatpush1.msra.mxu0 %v2200
  %2202 = vmatprep.subr.mxu0 0.0
  %v2203 = vand.u32 %v2032, 4294901760
  %v2204 = vsub.f32 %v2032, %v2203
  %v2205 = vand.u32 %v2204, 4294901760
  %v2206 = vsub.f32 %v2204, %v2205
  %v2207 = vand.u32 %v2206, 4294901760
  %2208 = vmatpush1.msra.mxu0 %v2207
  %2209 = vmatprep.subr.mxu0 0.0
  %v2210 = vand.u32 %v2031, 4294901760
  %v2211 = vsub.f32 %v2031, %v2210
  %v2212 = vand.u32 %v2211, 4294901760
  %v2213 = vsub.f32 %v2211, %v2212
  %v2214 = vand.u32 %v2213, 4294901760
  %2215 = vmatpush1.msra.mxu0 %v2214
  %2216 = vmatprep.subr.mxu0 0.0
  %2217 = vmatpush2.msra.mxu0 0.0
  %2218 = vmatprep.subr.mxu0 0.0
  %2219 = vmatpush2.msra.mxu0 0.0
  %2220 = vmatprep.subr.mxu0 0.0
  %2221 = vmatpush2.msra.mxu0 0.0
  %2222 = vmatprep.subr.mxu0 0.0
  %2223 = vmatpush2.msra.mxu0 0.0
  %2224 = vmatprep.subr.mxu0 0.0
  %2225 = vmatpush2.msra.mxu0 0.0
  %2226 = vmatprep.subr.mxu0 0.0
  %2227 = vmatpush2.msra.mxu0 0.0
  %2228 = vmatprep.subr.mxu0 0.0
  %2229 = vmatpush2.msra.mxu0 0.0
  %2230 = vmatprep.subr.mxu0 0.0
  %2231 = vmatpush2.msra.mxu0 0.0
  %2232 = vmatprep.subr.mxu0 0.0
  %2233 = vmatpush2.msra.mxu0 0.0
  %2234 = vmatprep.subr.mxu0 0.0
  %2235 = vmatpush2.msra.mxu0 0.0
  %2236 = vmatprep.subr.mxu0 0.0
  %2237 = vmatpush2.msra.mxu0 0.0
  %2238 = vmatprep.subr.mxu0 0.0
  %2239 = vmatpush2.msra.mxu0 0.0
  %2240 = vmatprep.subr.mxu0 0.0
  %2241 = vmatpush2.msra.mxu0 0.0
  %2242 = vmatprep.subr.mxu0 0.0
  %2243 = vmatpush2.msra.mxu0 0.0
  %2244 = vmatprep.subr.mxu0 0.0
  %2245 = vmatpush2.msra.mxu0 0.0
  %2246 = vmatprep.subr.mxu0 0.0
  %2247 = vmatpush2.msra.mxu0 0.0
  %2248 = vmatprep.mubr.f32.mxu0 0.0
  %v2249 = vand.u32 %v2044, 4294901760
  %2250 = vmatmul.mubr.f32.gmra.mxu0 %v2249
  %v2251 = vpop.f32.mrf.mxu0
  %v2252 = vadd.f32 %v2131, %v2251
  %v2253 = vpop.f32.mrf.mxu0
  %2254 = vmatprep.mubr.f32.mxu0 0.0
  %v2255 = vand.u32 %v2047, 4294901760
  %2256 = vmatmul.mubr.f32.gmra.mxu0 %v2255
  %v2257 = vpop.f32.mrf.mxu0
  %v2258 = vadd.f32 %v2141, %v2257
  %v2259 = vpop.f32.mrf.mxu0
  %2260 = vmatprep.mubr.f32.mxu0 0.0
  %v2261 = vand.u32 %v2050, 4294901760
  %2262 = vmatmul.mubr.f32.gmra.mxu0 %v2261
  %v2263 = vpop.f32.mrf.mxu0
  %v2264 = vadd.f32 %v2151, %v2263
  %v2265 = vpop.f32.mrf.mxu0
  %2266 = vmatprep.mubr.f32.mxu0 0.0
  %v2267 = vand.u32 %v2053, 4294901760
  %2268 = vmatmul.mubr.f32.gmra.mxu0 %v2267
  %v2269 = vpop.f32.mrf.mxu0
  %v2270 = vadd.f32 %v2161, %v2269
  %v2271 = vpop.f32.mrf.mxu0
  %2272 = vdwg.mxu0
  %2273 = vmatprep.subr.mxu0 0.0
  %2274 = vmatpush1.msra.mxu0 0.0
  %2275 = vmatprep.subr.mxu0 0.0
  %2276 = vmatpush1.msra.mxu0 0.0
  %2277 = vmatprep.subr.mxu0 0.0
  %2278 = vmatpush1.msra.mxu0 0.0
  %2279 = vmatprep.subr.mxu0 0.0
  %2280 = vmatpush1.msra.mxu0 0.0
  %2281 = vmatprep.subr.mxu0 0.0
  %2282 = vmatpush1.msra.mxu0 0.0
  %2283 = vmatprep.subr.mxu0 0.0
  %2284 = vmatpush1.msra.mxu0 0.0
  %2285 = vmatprep.subr.mxu0 0.0
  %2286 = vmatpush1.msra.mxu0 0.0
  %2287 = vmatprep.subr.mxu0 0.0
  %2288 = vmatpush1.msra.mxu0 0.0
  %2289 = vmatprep.subr.mxu0 0.0
  %2290 = vmatpush1.msra.mxu0 0.0
  %2291 = vmatprep.subr.mxu0 0.0
  %2292 = vmatpush1.msra.mxu0 0.0
  %2293 = vmatprep.subr.mxu0 0.0
  %2294 = vmatpush1.msra.mxu0 0.0
  %2295 = vmatprep.subr.mxu0 0.0
  %2296 = vmatpush1.msra.mxu0 0.0
  %2297 = vmatprep.subr.mxu0 0.0
  %v2298 = vand.u32 %v2034, 4294901760
  %v2299 = vsub.f32 %v2034, %v2298
  %2300 = vmatpush1.msra.mxu0 %v2299
  %2301 = vmatprep.subr.mxu0 0.0
  %v2302 = vand.u32 %v2033, 4294901760
  %v2303 = vsub.f32 %v2033, %v2302
  %2304 = vmatpush1.msra.mxu0 %v2303
  %2305 = vmatprep.subr.mxu0 0.0
  %v2306 = vand.u32 %v2032, 4294901760
  %v2307 = vsub.f32 %v2032, %v2306
  %2308 = vmatpush1.msra.mxu0 %v2307
  %2309 = vmatprep.subr.mxu0 0.0
  %v2310 = vand.u32 %v2031, 4294901760
  %v2311 = vsub.f32 %v2031, %v2310
  %2312 = vmatpush1.msra.mxu0 %v2311
  %2313 = vmatprep.subr.mxu0 0.0
  %2314 = vmatpush2.msra.mxu0 0.0
  %2315 = vmatprep.subr.mxu0 0.0
  %2316 = vmatpush2.msra.mxu0 0.0
  %2317 = vmatprep.subr.mxu0 0.0
  %2318 = vmatpush2.msra.mxu0 0.0
  %2319 = vmatprep.subr.mxu0 0.0
  %2320 = vmatpush2.msra.mxu0 0.0
  %2321 = vmatprep.subr.mxu0 0.0
  %2322 = vmatpush2.msra.mxu0 0.0
  %2323 = vmatprep.subr.mxu0 0.0
  %2324 = vmatpush2.msra.mxu0 0.0
  %2325 = vmatprep.subr.mxu0 0.0
  %2326 = vmatpush2.msra.mxu0 0.0
  %2327 = vmatprep.subr.mxu0 0.0
  %2328 = vmatpush2.msra.mxu0 0.0
  %2329 = vmatprep.subr.mxu0 0.0
  %2330 = vmatpush2.msra.mxu0 0.0
  %2331 = vmatprep.subr.mxu0 0.0
  %2332 = vmatpush2.msra.mxu0 0.0
  %2333 = vmatprep.subr.mxu0 0.0
  %2334 = vmatpush2.msra.mxu0 0.0
  %2335 = vmatprep.subr.mxu0 0.0
  %2336 = vmatpush2.msra.mxu0 0.0
  %2337 = vmatprep.subr.mxu0 0.0
  %2338 = vmatpush2.msra.mxu0 0.0
  %2339 = vmatprep.subr.mxu0 0.0
  %2340 = vmatpush2.msra.mxu0 0.0
  %2341 = vmatprep.subr.mxu0 0.0
  %2342 = vmatpush2.msra.mxu0 0.0
  %2343 = vmatprep.subr.mxu0 0.0
  %2344 = vmatpush2.msra.mxu0 0.0
  %2345 = vmatprep.mubr.f32.mxu0 0.0
  %v2346 = vand.u32 %v2044, 4294901760
  %v2347 = vsub.f32 %v2044, %v2346
  %2348 = vmatmul.mubr.f32.gmra.mxu0 %v2347
  %v2349 = vpop.f32.mrf.mxu0
  %v2350 = vadd.f32 %v2252, %v2349
  %v2351 = vpop.f32.mrf.mxu0
  %2352 = vmatprep.mubr.f32.mxu0 0.0
  %v2353 = vand.u32 %v2047, 4294901760
  %v2354 = vsub.f32 %v2047, %v2353
  %2355 = vmatmul.mubr.f32.gmra.mxu0 %v2354
  %v2356 = vpop.f32.mrf.mxu0
  %v2357 = vadd.f32 %v2258, %v2356
  %v2358 = vpop.f32.mrf.mxu0
  %2359 = vmatprep.mubr.f32.mxu0 0.0
  %v2360 = vand.u32 %v2050, 4294901760
  %v2361 = vsub.f32 %v2050, %v2360
  %2362 = vmatmul.mubr.f32.gmra.mxu0 %v2361
  %v2363 = vpop.f32.mrf.mxu0
  %v2364 = vadd.f32 %v2264, %v2363
  %v2365 = vpop.f32.mrf.mxu0
  %2366 = vmatprep.mubr.f32.mxu0 0.0
  %v2367 = vand.u32 %v2053, 4294901760
  %v2368 = vsub.f32 %v2053, %v2367
  %2369 = vmatmul.mubr.f32.gmra.mxu0 %v2368
  %v2370 = vpop.f32.mrf.mxu0
  %v2371 = vadd.f32 %v2270, %v2370
  %v2372 = vpop.f32.mrf.mxu0
  %2373 = vdwg.mxu0
  %2374 = vmatprep.subr.mxu0 0.0
  %2375 = vmatpush1.msra.mxu0 0.0
  %2376 = vmatprep.subr.mxu0 0.0
  %2377 = vmatpush1.msra.mxu0 0.0
  %2378 = vmatprep.subr.mxu0 0.0
  %2379 = vmatpush1.msra.mxu0 0.0
  %2380 = vmatprep.subr.mxu0 0.0
  %2381 = vmatpush1.msra.mxu0 0.0
  %2382 = vmatprep.subr.mxu0 0.0
  %2383 = vmatpush1.msra.mxu0 0.0
  %2384 = vmatprep.subr.mxu0 0.0
  %2385 = vmatpush1.msra.mxu0 0.0
  %2386 = vmatprep.subr.mxu0 0.0
  %2387 = vmatpush1.msra.mxu0 0.0
  %2388 = vmatprep.subr.mxu0 0.0
  %2389 = vmatpush1.msra.mxu0 0.0
  %2390 = vmatprep.subr.mxu0 0.0
  %2391 = vmatpush1.msra.mxu0 0.0
  %2392 = vmatprep.subr.mxu0 0.0
  %2393 = vmatpush1.msra.mxu0 0.0
  %2394 = vmatprep.subr.mxu0 0.0
  %2395 = vmatpush1.msra.mxu0 0.0
  %2396 = vmatprep.subr.mxu0 0.0
  %2397 = vmatpush1.msra.mxu0 0.0
  %2398 = vmatprep.subr.mxu0 0.0
  %v2399 = vand.u32 %v2034, 4294901760
  %2400 = vmatpush1.msra.mxu0 %v2399
  %2401 = vmatprep.subr.mxu0 0.0
  %v2402 = vand.u32 %v2033, 4294901760
  %2403 = vmatpush1.msra.mxu0 %v2402
  %2404 = vmatprep.subr.mxu0 0.0
  %v2405 = vand.u32 %v2032, 4294901760
  %2406 = vmatpush1.msra.mxu0 %v2405
  %2407 = vmatprep.subr.mxu0 0.0
  %v2408 = vand.u32 %v2031, 4294901760
  %2409 = vmatpush1.msra.mxu0 %v2408
  %2410 = vmatprep.subr.mxu0 0.0
  %2411 = vmatpush2.msra.mxu0 0.0
  %2412 = vmatprep.subr.mxu0 0.0
  %2413 = vmatpush2.msra.mxu0 0.0
  %2414 = vmatprep.subr.mxu0 0.0
  %2415 = vmatpush2.msra.mxu0 0.0
  %2416 = vmatprep.subr.mxu0 0.0
  %2417 = vmatpush2.msra.mxu0 0.0
  %2418 = vmatprep.subr.mxu0 0.0
  %2419 = vmatpush2.msra.mxu0 0.0
  %2420 = vmatprep.subr.mxu0 0.0
  %2421 = vmatpush2.msra.mxu0 0.0
  %2422 = vmatprep.subr.mxu0 0.0
  %2423 = vmatpush2.msra.mxu0 0.0
  %2424 = vmatprep.subr.mxu0 0.0
  %2425 = vmatpush2.msra.mxu0 0.0
  %2426 = vmatprep.subr.mxu0 0.0
  %2427 = vmatpush2.msra.mxu0 0.0
  %2428 = vmatprep.subr.mxu0 0.0
  %2429 = vmatpush2.msra.mxu0 0.0
  %2430 = vmatprep.subr.mxu0 0.0
  %2431 = vmatpush2.msra.mxu0 0.0
  %2432 = vmatprep.subr.mxu0 0.0
  %2433 = vmatpush2.msra.mxu0 0.0
  %2434 = vmatprep.subr.mxu0 0.0
  %2435 = vmatpush2.msra.mxu0 0.0
  %2436 = vmatprep.subr.mxu0 0.0
  %2437 = vmatpush2.msra.mxu0 0.0
  %2438 = vmatprep.subr.mxu0 0.0
  %2439 = vmatpush2.msra.mxu0 0.0
  %2440 = vmatprep.subr.mxu0 0.0
  %2441 = vmatpush2.msra.mxu0 0.0
  %2442 = vmatprep.mubr.f32.mxu0 0.0
  %v2443 = vand.u32 %v2044, 4294901760
  %v2444 = vsub.f32 %v2044, %v2443
  %v2445 = vand.u32 %v2444, 4294901760
  %2446 = vmatmul.mubr.f32.gmra.mxu0 %v2445
  %v2447 = vpop.f32.mrf.mxu0
  %v2448 = vadd.f32 %v2350, %v2447
  %v2449 = vpop.f32.mrf.mxu0
  %2450 = vmatprep.mubr.f32.mxu0 0.0
  %v2451 = vand.u32 %v2047, 4294901760
  %v2452 = vsub.f32 %v2047, %v2451
  %v2453 = vand.u32 %v2452, 4294901760
  %2454 = vmatmul.mubr.f32.gmra.mxu0 %v2453
  %v2455 = vpop.f32.mrf.mxu0
  %v2456 = vadd.f32 %v2357, %v2455
  %v2457 = vpop.f32.mrf.mxu0
  %2458 = vmatprep.mubr.f32.mxu0 0.0
  %v2459 = vand.u32 %v2050, 4294901760
  %v2460 = vsub.f32 %v2050, %v2459
  %v2461 = vand.u32 %v2460, 4294901760
  %2462 = vmatmul.mubr.f32.gmra.mxu0 %v2461
  %v2463 = vpop.f32.mrf.mxu0
  %v2464 = vadd.f32 %v2364, %v2463
  %v2465 = vpop.f32.mrf.mxu0
  %2466 = vmatprep.mubr.f32.mxu0 0.0
  %v2467 = vand.u32 %v2053, 4294901760
  %v2468 = vsub.f32 %v2053, %v2467
  %v2469 = vand.u32 %v2468, 4294901760
  %2470 = vmatmul.mubr.f32.gmra.mxu0 %v2469
  %v2471 = vpop.f32.mrf.mxu0
  %v2472 = vadd.f32 %v2371, %v2471
  %v2473 = vpop.f32.mrf.mxu0
  %2474 = vdwg.mxu0
  %2475 = vmatprep.subr.mxu0 0.0
  %2476 = vmatpush1.msra.mxu0 0.0
  %2477 = vmatprep.subr.mxu0 0.0
  %2478 = vmatpush1.msra.mxu0 0.0
  %2479 = vmatprep.subr.mxu0 0.0
  %2480 = vmatpush1.msra.mxu0 0.0
  %2481 = vmatprep.subr.mxu0 0.0
  %2482 = vmatpush1.msra.mxu0 0.0
  %2483 = vmatprep.subr.mxu0 0.0
  %2484 = vmatpush1.msra.mxu0 0.0
  %2485 = vmatprep.subr.mxu0 0.0
  %2486 = vmatpush1.msra.mxu0 0.0
  %2487 = vmatprep.subr.mxu0 0.0
  %2488 = vmatpush1.msra.mxu0 0.0
  %2489 = vmatprep.subr.mxu0 0.0
  %2490 = vmatpush1.msra.mxu0 0.0
  %2491 = vmatprep.subr.mxu0 0.0
  %2492 = vmatpush1.msra.mxu0 0.0
  %2493 = vmatprep.subr.mxu0 0.0
  %2494 = vmatpush1.msra.mxu0 0.0
  %2495 = vmatprep.subr.mxu0 0.0
  %2496 = vmatpush1.msra.mxu0 0.0
  %2497 = vmatprep.subr.mxu0 0.0
  %2498 = vmatpush1.msra.mxu0 0.0
  %2499 = vmatprep.subr.mxu0 0.0
  %v2500 = vand.u32 %v2034, 4294901760
  %v2501 = vsub.f32 %v2034, %v2500
  %v2502 = vand.u32 %v2501, 4294901760
  %2503 = vmatpush1.msra.mxu0 %v2502
  %2504 = vmatprep.subr.mxu0 0.0
  %v2505 = vand.u32 %v2033, 4294901760
  %v2506 = vsub.f32 %v2033, %v2505
  %v2507 = vand.u32 %v2506, 4294901760
  %2508 = vmatpush1.msra.mxu0 %v2507
  %2509 = vmatprep.subr.mxu0 0.0
  %v2510 = vand.u32 %v2032, 4294901760
  %v2511 = vsub.f32 %v2032, %v2510
  %v2512 = vand.u32 %v2511, 4294901760
  %2513 = vmatpush1.msra.mxu0 %v2512
  %2514 = vmatprep.subr.mxu0 0.0
  %v2515 = vand.u32 %v2031, 4294901760
  %v2516 = vsub.f32 %v2031, %v2515
  %v2517 = vand.u32 %v2516, 4294901760
  %2518 = vmatpush1.msra.mxu0 %v2517
  %2519 = vmatprep.subr.mxu0 0.0
  %2520 = vmatpush2.msra.mxu0 0.0
  %2521 = vmatprep.subr.mxu0 0.0
  %2522 = vmatpush2.msra.mxu0 0.0
  %2523 = vmatprep.subr.mxu0 0.0
  %2524 = vmatpush2.msra.mxu0 0.0
  %2525 = vmatprep.subr.mxu0 0.0
  %2526 = vmatpush2.msra.mxu0 0.0
  %2527 = vmatprep.subr.mxu0 0.0
  %2528 = vmatpush2.msra.mxu0 0.0
  %2529 = vmatprep.subr.mxu0 0.0
  %2530 = vmatpush2.msra.mxu0 0.0
  %2531 = vmatprep.subr.mxu0 0.0
  %2532 = vmatpush2.msra.mxu0 0.0
  %2533 = vmatprep.subr.mxu0 0.0
  %2534 = vmatpush2.msra.mxu0 0.0
  %2535 = vmatprep.subr.mxu0 0.0
  %2536 = vmatpush2.msra.mxu0 0.0
  %2537 = vmatprep.subr.mxu0 0.0
  %2538 = vmatpush2.msra.mxu0 0.0
  %2539 = vmatprep.subr.mxu0 0.0
  %2540 = vmatpush2.msra.mxu0 0.0
  %2541 = vmatprep.subr.mxu0 0.0
  %2542 = vmatpush2.msra.mxu0 0.0
  %2543 = vmatprep.subr.mxu0 0.0
  %2544 = vmatpush2.msra.mxu0 0.0
  %2545 = vmatprep.subr.mxu0 0.0
  %2546 = vmatpush2.msra.mxu0 0.0
  %2547 = vmatprep.subr.mxu0 0.0
  %2548 = vmatpush2.msra.mxu0 0.0
  %2549 = vmatprep.subr.mxu0 0.0
  %2550 = vmatpush2.msra.mxu0 0.0
  %2551 = vmatprep.mubr.f32.mxu0 0.0
  %v2552 = vand.u32 %v2044, 4294901760
  %2553 = vmatmul.mubr.f32.gmra.mxu0 %v2552
  %v2554 = vpop.f32.mrf.mxu0
  %v2555 = vadd.f32 %v2448, %v2554
  %v2556 = vpop.f32.mrf.mxu0
  %2557 = vmatprep.mubr.f32.mxu0 0.0
  %v2558 = vand.u32 %v2047, 4294901760
  %2559 = vmatmul.mubr.f32.gmra.mxu0 %v2558
  %v2560 = vpop.f32.mrf.mxu0
  %v2561 = vadd.f32 %v2456, %v2560
  %v2562 = vpop.f32.mrf.mxu0
  %2563 = vmatprep.mubr.f32.mxu0 0.0
  %v2564 = vand.u32 %v2050, 4294901760
  %2565 = vmatmul.mubr.f32.gmra.mxu0 %v2564
  %v2566 = vpop.f32.mrf.mxu0
  %v2567 = vadd.f32 %v2464, %v2566
  %v2568 = vpop.f32.mrf.mxu0
  %2569 = vmatprep.mubr.f32.mxu0 0.0
  %v2570 = vand.u32 %v2053, 4294901760
  %2571 = vmatmul.mubr.f32.gmra.mxu0 %v2570
  %v2572 = vpop.f32.mrf.mxu0
  %v2573 = vadd.f32 %v2472, %v2572
  %v2574 = vpop.f32.mrf.mxu0
  %2575 = vdwg.mxu0
  %2576 = vmatprep.subr.mxu0 0.0
  %2577 = vmatpush1.msra.mxu0 0.0
  %2578 = vmatprep.subr.mxu0 0.0
  %2579 = vmatpush1.msra.mxu0 0.0
  %2580 = vmatprep.subr.mxu0 0.0
  %2581 = vmatpush1.msra.mxu0 0.0
  %2582 = vmatprep.subr.mxu0 0.0
  %2583 = vmatpush1.msra.mxu0 0.0
  %2584 = vmatprep.subr.mxu0 0.0
  %2585 = vmatpush1.msra.mxu0 0.0
  %2586 = vmatprep.subr.mxu0 0.0
  %2587 = vmatpush1.msra.mxu0 0.0
  %2588 = vmatprep.subr.mxu0 0.0
  %2589 = vmatpush1.msra.mxu0 0.0
  %2590 = vmatprep.subr.mxu0 0.0
  %2591 = vmatpush1.msra.mxu0 0.0
  %2592 = vmatprep.subr.mxu0 0.0
  %2593 = vmatpush1.msra.mxu0 0.0
  %2594 = vmatprep.subr.mxu0 0.0
  %2595 = vmatpush1.msra.mxu0 0.0
  %2596 = vmatprep.subr.mxu0 0.0
  %2597 = vmatpush1.msra.mxu0 0.0
  %2598 = vmatprep.subr.mxu0 0.0
  %2599 = vmatpush1.msra.mxu0 0.0
  %2600 = vmatprep.subr.mxu0 0.0
  %v2601 = vand.u32 %v2034, 4294901760
  %2602 = vmatpush1.msra.mxu0 %v2601
  %2603 = vmatprep.subr.mxu0 0.0
  %v2604 = vand.u32 %v2033, 4294901760
  %2605 = vmatpush1.msra.mxu0 %v2604
  %2606 = vmatprep.subr.mxu0 0.0
  %v2607 = vand.u32 %v2032, 4294901760
  %2608 = vmatpush1.msra.mxu0 %v2607
  %2609 = vmatprep.subr.mxu0 0.0
  %v2610 = vand.u32 %v2031, 4294901760
  %2611 = vmatpush1.msra.mxu0 %v2610
  %2612 = vmatprep.subr.mxu0 0.0
  %2613 = vmatpush2.msra.mxu0 0.0
  %2614 = vmatprep.subr.mxu0 0.0
  %2615 = vmatpush2.msra.mxu0 0.0
  %2616 = vmatprep.subr.mxu0 0.0
  %2617 = vmatpush2.msra.mxu0 0.0
  %2618 = vmatprep.subr.mxu0 0.0
  %2619 = vmatpush2.msra.mxu0 0.0
  %2620 = vmatprep.subr.mxu0 0.0
  %2621 = vmatpush2.msra.mxu0 0.0
  %2622 = vmatprep.subr.mxu0 0.0
  %2623 = vmatpush2.msra.mxu0 0.0
  %2624 = vmatprep.subr.mxu0 0.0
  %2625 = vmatpush2.msra.mxu0 0.0
  %2626 = vmatprep.subr.mxu0 0.0
  %2627 = vmatpush2.msra.mxu0 0.0
  %2628 = vmatprep.subr.mxu0 0.0
  %2629 = vmatpush2.msra.mxu0 0.0
  %2630 = vmatprep.subr.mxu0 0.0
  %2631 = vmatpush2.msra.mxu0 0.0
  %2632 = vmatprep.subr.mxu0 0.0
  %2633 = vmatpush2.msra.mxu0 0.0
  %2634 = vmatprep.subr.mxu0 0.0
  %2635 = vmatpush2.msra.mxu0 0.0
  %2636 = vmatprep.subr.mxu0 0.0
  %2637 = vmatpush2.msra.mxu0 0.0
  %2638 = vmatprep.subr.mxu0 0.0
  %2639 = vmatpush2.msra.mxu0 0.0
  %2640 = vmatprep.subr.mxu0 0.0
  %2641 = vmatpush2.msra.mxu0 0.0
  %2642 = vmatprep.subr.mxu0 0.0
  %2643 = vmatpush2.msra.mxu0 0.0
  %2644 = vmatprep.mubr.f32.mxu0 0.0
  %v2645 = vand.u32 %v2044, 4294901760
  %2646 = vmatmul.mubr.f32.gmra.mxu0 %v2645
  %v2647 = vpop.f32.mrf.mxu0
  %v2648 = vadd.f32 %v2555, %v2647
  %v2649 = vpop.f32.mrf.mxu0
  %2650 = vmatprep.mubr.f32.mxu0 0.0
  %v2651 = vand.u32 %v2047, 4294901760
  %2652 = vmatmul.mubr.f32.gmra.mxu0 %v2651
  %v2653 = vpop.f32.mrf.mxu0
  %v2654 = vadd.f32 %v2561, %v2653
  %v2655 = vpop.f32.mrf.mxu0
  %2656 = vmatprep.mubr.f32.mxu0 0.0
  %v2657 = vand.u32 %v2050, 4294901760
  %2658 = vmatmul.mubr.f32.gmra.mxu0 %v2657
  %v2659 = vpop.f32.mrf.mxu0
  %v2660 = vadd.f32 %v2567, %v2659
  %v2661 = vpop.f32.mrf.mxu0
  %2662 = vmatprep.mubr.f32.mxu0 0.0
  %v2663 = vand.u32 %v2053, 4294901760
  %2664 = vmatmul.mubr.f32.gmra.mxu0 %v2663
  %v2665 = vpop.f32.mrf.mxu0
  %v2666 = vadd.f32 %v2573, %v2665
  %v2667 = vpop.f32.mrf.mxu0
  %2668 = vdwg.mxu0
  %2669 = vst.msk [vmem:[#allocation2 + $0x20] sm:$0xff] %vm1399, %v2648
  %2670 = vst.msk [vmem:[#allocation2 + $0x28] sm:$0xff] %vm1399, %v2654
  %2671 = vst.msk [vmem:[#allocation2 + $0x30] sm:$0xff] %vm1399, %v2660
  %2672 = vst.msk [vmem:[#allocation2 + $0x38] sm:$0xff] %vm1399, %v2666
  %s2673 = scalar_lea.vmem %s1, 64
  %v2674 = vld [vmem:[%s2673] sm:$0xff]
  %v2675 = vld [vmem:[%s2673 + $0x8] sm:$0xff]
  %v2676 = vld [vmem:[%s2673 + $0x10] sm:$0xff]
  %v2677 = vld [vmem:[%s2673 + $0x18] sm:$0xff]
  %s2678 = scalar_lea.vmem %s2, 2
  %v2679 = vld [vmem:[%s2678] sm:$0x1]
  %v2681 = vlaneseq
  %v2682 = vshrl.u32 %v2681, 7
  %v2683 = vsub.s32 0, %v2682
  %v2684 = vrot.slane %v2679, %v2683
  %v2687 = vsel %vm1399, %v1343, 0
  %v2690 = vsel %vm1399, %v1349, 0
  %v2693 = vsel %vm1399, %v1355, 0
  %v2696 = vsel %vm1399, %v1361, 0
  %2698 = vmatprep.subr.mxu0 0.0
  %2699 = vmatpush1.msra.mxu0 0.0
  %2700 = vmatprep.subr.mxu0 0.0
  %2701 = vmatpush1.msra.mxu0 0.0
  %2702 = vmatprep.subr.mxu0 0.0
  %2703 = vmatpush1.msra.mxu0 0.0
  %2704 = vmatprep.subr.mxu0 0.0
  %2705 = vmatpush1.msra.mxu0 0.0
  %2706 = vmatprep.subr.mxu0 0.0
  %2707 = vmatpush1.msra.mxu0 0.0
  %2708 = vmatprep.subr.mxu0 0.0
  %2709 = vmatpush1.msra.mxu0 0.0
  %2710 = vmatprep.subr.mxu0 0.0
  %2711 = vmatpush1.msra.mxu0 0.0
  %2712 = vmatprep.subr.mxu0 0.0
  %2713 = vmatpush1.msra.mxu0 0.0
  %2714 = vmatprep.subr.mxu0 0.0
  %2715 = vmatpush1.msra.mxu0 0.0
  %2716 = vmatprep.subr.mxu0 0.0
  %2717 = vmatpush1.msra.mxu0 0.0
  %2718 = vmatprep.subr.mxu0 0.0
  %2719 = vmatpush1.msra.mxu0 0.0
  %2720 = vmatprep.subr.mxu0 0.0
  %2721 = vmatpush1.msra.mxu0 0.0
  %2722 = vmatprep.subr.mxu0 0.0
  %v2723 = vand.u32 %v2677, 4294901760
  %2724 = vmatpush1.msra.mxu0 %v2723
  %2725 = vmatprep.subr.mxu0 0.0
  %v2726 = vand.u32 %v2676, 4294901760
  %2727 = vmatpush1.msra.mxu0 %v2726
  %2728 = vmatprep.subr.mxu0 0.0
  %v2729 = vand.u32 %v2675, 4294901760
  %2730 = vmatpush1.msra.mxu0 %v2729
  %2731 = vmatprep.subr.mxu0 0.0
  %v2732 = vand.u32 %v2674, 4294901760
  %2733 = vmatpush1.msra.mxu0 %v2732
  %2734 = vmatprep.subr.mxu0 0.0
  %2735 = vmatpush2.msra.mxu0 0.0
  %2736 = vmatprep.subr.mxu0 0.0
  %2737 = vmatpush2.msra.mxu0 0.0
  %2738 = vmatprep.subr.mxu0 0.0
  %2739 = vmatpush2.msra.mxu0 0.0
  %2740 = vmatprep.subr.mxu0 0.0
  %2741 = vmatpush2.msra.mxu0 0.0
  %2742 = vmatprep.subr.mxu0 0.0
  %2743 = vmatpush2.msra.mxu0 0.0
  %2744 = vmatprep.subr.mxu0 0.0
  %2745 = vmatpush2.msra.mxu0 0.0
  %2746 = vmatprep.subr.mxu0 0.0
  %2747 = vmatpush2.msra.mxu0 0.0
  %2748 = vmatprep.subr.mxu0 0.0
  %2749 = vmatpush2.msra.mxu0 0.0
  %2750 = vmatprep.subr.mxu0 0.0
  %2751 = vmatpush2.msra.mxu0 0.0
  %2752 = vmatprep.subr.mxu0 0.0
  %2753 = vmatpush2.msra.mxu0 0.0
  %2754 = vmatprep.subr.mxu0 0.0
  %2755 = vmatpush2.msra.mxu0 0.0
  %2756 = vmatprep.subr.mxu0 0.0
  %2757 = vmatpush2.msra.mxu0 0.0
  %2758 = vmatprep.subr.mxu0 0.0
  %2759 = vmatpush2.msra.mxu0 0.0
  %2760 = vmatprep.subr.mxu0 0.0
  %2761 = vmatpush2.msra.mxu0 0.0
  %2762 = vmatprep.subr.mxu0 0.0
  %2763 = vmatpush2.msra.mxu0 0.0
  %2764 = vmatprep.subr.mxu0 0.0
  %2765 = vmatpush2.msra.mxu0 0.0
  %2766 = vmatprep.mubr.f32.mxu0 0.0
  %v2767 = vand.u32 %v2687, 4294901760
  %v2768 = vsub.f32 %v2687, %v2767
  %v2769 = vand.u32 %v2768, 4294901760
  %v2770 = vsub.f32 %v2768, %v2769
  %v2771 = vand.u32 %v2770, 4294901760
  %2772 = vmatmul.mubr.f32.gmra.mxu0 %v2771
  %v2773 = vpop.f32.mrf.mxu0
  %v2774 = vadd.f32 %v2684, %v2773
  %v2775 = vpop.f32.mrf.mxu0
  %2776 = vmatprep.mubr.f32.mxu0 0.0
  %v2777 = vand.u32 %v2690, 4294901760
  %v2778 = vsub.f32 %v2690, %v2777
  %v2779 = vand.u32 %v2778, 4294901760
  %v2780 = vsub.f32 %v2778, %v2779
  %v2781 = vand.u32 %v2780, 4294901760
  %2782 = vmatmul.mubr.f32.gmra.mxu0 %v2781
  %v2783 = vpop.f32.mrf.mxu0
  %v2784 = vadd.f32 %v2684, %v2783
  %v2785 = vpop.f32.mrf.mxu0
  %2786 = vmatprep.mubr.f32.mxu0 0.0
  %v2787 = vand.u32 %v2693, 4294901760
  %v2788 = vsub.f32 %v2693, %v2787
  %v2789 = vand.u32 %v2788, 4294901760
  %v2790 = vsub.f32 %v2788, %v2789
  %v2791 = vand.u32 %v2790, 4294901760
  %2792 = vmatmul.mubr.f32.gmra.mxu0 %v2791
  %v2793 = vpop.f32.mrf.mxu0
  %v2794 = vadd.f32 %v2684, %v2793
  %v2795 = vpop.f32.mrf.mxu0
  %2796 = vmatprep.mubr.f32.mxu0 0.0
  %v2797 = vand.u32 %v2696, 4294901760
  %v2798 = vsub.f32 %v2696, %v2797
  %v2799 = vand.u32 %v2798, 4294901760
  %v2800 = vsub.f32 %v2798, %v2799
  %v2801 = vand.u32 %v2800, 4294901760
  %2802 = vmatmul.mubr.f32.gmra.mxu0 %v2801
  %v2803 = vpop.f32.mrf.mxu0
  %v2804 = vadd.f32 %v2684, %v2803
  %v2805 = vpop.f32.mrf.mxu0
  %2806 = vdwg.mxu0
  %2807 = vmatprep.subr.mxu0 0.0
  %2808 = vmatpush1.msra.mxu0 0.0
  %2809 = vmatprep.subr.mxu0 0.0
  %2810 = vmatpush1.msra.mxu0 0.0
  %2811 = vmatprep.subr.mxu0 0.0
  %2812 = vmatpush1.msra.mxu0 0.0
  %2813 = vmatprep.subr.mxu0 0.0
  %2814 = vmatpush1.msra.mxu0 0.0
  %2815 = vmatprep.subr.mxu0 0.0
  %2816 = vmatpush1.msra.mxu0 0.0
  %2817 = vmatprep.subr.mxu0 0.0
  %2818 = vmatpush1.msra.mxu0 0.0
  %2819 = vmatprep.subr.mxu0 0.0
  %2820 = vmatpush1.msra.mxu0 0.0
  %2821 = vmatprep.subr.mxu0 0.0
  %2822 = vmatpush1.msra.mxu0 0.0
  %2823 = vmatprep.subr.mxu0 0.0
  %2824 = vmatpush1.msra.mxu0 0.0
  %2825 = vmatprep.subr.mxu0 0.0
  %2826 = vmatpush1.msra.mxu0 0.0
  %2827 = vmatprep.subr.mxu0 0.0
  %2828 = vmatpush1.msra.mxu0 0.0
  %2829 = vmatprep.subr.mxu0 0.0
  %2830 = vmatpush1.msra.mxu0 0.0
  %2831 = vmatprep.subr.mxu0 0.0
  %v2832 = vand.u32 %v2677, 4294901760
  %v2833 = vsub.f32 %v2677, %v2832
  %v2834 = vand.u32 %v2833, 4294901760
  %v2835 = vsub.f32 %v2833, %v2834
  %v2836 = vand.u32 %v2835, 4294901760
  %2837 = vmatpush1.msra.mxu0 %v2836
  %2838 = vmatprep.subr.mxu0 0.0
  %v2839 = vand.u32 %v2676, 4294901760
  %v2840 = vsub.f32 %v2676, %v2839
  %v2841 = vand.u32 %v2840, 4294901760
  %v2842 = vsub.f32 %v2840, %v2841
  %v2843 = vand.u32 %v2842, 4294901760
  %2844 = vmatpush1.msra.mxu0 %v2843
  %2845 = vmatprep.subr.mxu0 0.0
  %v2846 = vand.u32 %v2675, 4294901760
  %v2847 = vsub.f32 %v2675, %v2846
  %v2848 = vand.u32 %v2847, 4294901760
  %v2849 = vsub.f32 %v2847, %v2848
  %v2850 = vand.u32 %v2849, 4294901760
  %2851 = vmatpush1.msra.mxu0 %v2850
  %2852 = vmatprep.subr.mxu0 0.0
  %v2853 = vand.u32 %v2674, 4294901760
  %v2854 = vsub.f32 %v2674, %v2853
  %v2855 = vand.u32 %v2854, 4294901760
  %v2856 = vsub.f32 %v2854, %v2855
  %v2857 = vand.u32 %v2856, 4294901760
  %2858 = vmatpush1.msra.mxu0 %v2857
  %2859 = vmatprep.subr.mxu0 0.0
  %2860 = vmatpush2.msra.mxu0 0.0
  %2861 = vmatprep.subr.mxu0 0.0
  %2862 = vmatpush2.msra.mxu0 0.0
  %2863 = vmatprep.subr.mxu0 0.0
  %2864 = vmatpush2.msra.mxu0 0.0
  %2865 = vmatprep.subr.mxu0 0.0
  %2866 = vmatpush2.msra.mxu0 0.0
  %2867 = vmatprep.subr.mxu0 0.0
  %2868 = vmatpush2.msra.mxu0 0.0
  %2869 = vmatprep.subr.mxu0 0.0
  %2870 = vmatpush2.msra.mxu0 0.0
  %2871 = vmatprep.subr.mxu0 0.0
  %2872 = vmatpush2.msra.mxu0 0.0
  %2873 = vmatprep.subr.mxu0 0.0
  %2874 = vmatpush2.msra.mxu0 0.0
  %2875 = vmatprep.subr.mxu0 0.0
  %2876 = vmatpush2.msra.mxu0 0.0
  %2877 = vmatprep.subr.mxu0 0.0
  %2878 = vmatpush2.msra.mxu0 0.0
  %2879 = vmatprep.subr.mxu0 0.0
  %2880 = vmatpush2.msra.mxu0 0.0
  %2881 = vmatprep.subr.mxu0 0.0
  %2882 = vmatpush2.msra.mxu0 0.0
  %2883 = vmatprep.subr.mxu0 0.0
  %2884 = vmatpush2.msra.mxu0 0.0
  %2885 = vmatprep.subr.mxu0 0.0
  %2886 = vmatpush2.msra.mxu0 0.0
  %2887 = vmatprep.subr.mxu0 0.0
  %2888 = vmatpush2.msra.mxu0 0.0
  %2889 = vmatprep.subr.mxu0 0.0
  %2890 = vmatpush2.msra.mxu0 0.0
  %2891 = vmatprep.mubr.f32.mxu0 0.0
  %v2892 = vand.u32 %v2687, 4294901760
  %2893 = vmatmul.mubr.f32.gmra.mxu0 %v2892
  %v2894 = vpop.f32.mrf.mxu0
  %v2895 = vadd.f32 %v2774, %v2894
  %v2896 = vpop.f32.mrf.mxu0
  %2897 = vmatprep.mubr.f32.mxu0 0.0
  %v2898 = vand.u32 %v2690, 4294901760
  %2899 = vmatmul.mubr.f32.gmra.mxu0 %v2898
  %v2900 = vpop.f32.mrf.mxu0
  %v2901 = vadd.f32 %v2784, %v2900
  %v2902 = vpop.f32.mrf.mxu0
  %2903 = vmatprep.mubr.f32.mxu0 0.0
  %v2904 = vand.u32 %v2693, 4294901760
  %2905 = vmatmul.mubr.f32.gmra.mxu0 %v2904
  %v2906 = vpop.f32.mrf.mxu0
  %v2907 = vadd.f32 %v2794, %v2906
  %v2908 = vpop.f32.mrf.mxu0
  %2909 = vmatprep.mubr.f32.mxu0 0.0
  %v2910 = vand.u32 %v2696, 4294901760
  %2911 = vmatmul.mubr.f32.gmra.mxu0 %v2910
  %v2912 = vpop.f32.mrf.mxu0
  %v2913 = vadd.f32 %v2804, %v2912
  %v2914 = vpop.f32.mrf.mxu0
  %2915 = vdwg.mxu0
  %2916 = vmatprep.subr.mxu0 0.0
  %2917 = vmatpush1.msra.mxu0 0.0
  %2918 = vmatprep.subr.mxu0 0.0
  %2919 = vmatpush1.msra.mxu0 0.0
  %2920 = vmatprep.subr.mxu0 0.0
  %2921 = vmatpush1.msra.mxu0 0.0
  %2922 = vmatprep.subr.mxu0 0.0
  %2923 = vmatpush1.msra.mxu0 0.0
  %2924 = vmatprep.subr.mxu0 0.0
  %2925 = vmatpush1.msra.mxu0 0.0
  %2926 = vmatprep.subr.mxu0 0.0
  %2927 = vmatpush1.msra.mxu0 0.0
  %2928 = vmatprep.subr.mxu0 0.0
  %2929 = vmatpush1.msra.mxu0 0.0
  %2930 = vmatprep.subr.mxu0 0.0
  %2931 = vmatpush1.msra.mxu0 0.0
  %2932 = vmatprep.subr.mxu0 0.0
  %2933 = vmatpush1.msra.mxu0 0.0
  %2934 = vmatprep.subr.mxu0 0.0
  %2935 = vmatpush1.msra.mxu0 0.0
  %2936 = vmatprep.subr.mxu0 0.0
  %2937 = vmatpush1.msra.mxu0 0.0
  %2938 = vmatprep.subr.mxu0 0.0
  %2939 = vmatpush1.msra.mxu0 0.0
  %2940 = vmatprep.subr.mxu0 0.0
  %v2941 = vand.u32 %v2677, 4294901760
  %v2942 = vsub.f32 %v2677, %v2941
  %2943 = vmatpush1.msra.mxu0 %v2942
  %2944 = vmatprep.subr.mxu0 0.0
  %v2945 = vand.u32 %v2676, 4294901760
  %v2946 = vsub.f32 %v2676, %v2945
  %2947 = vmatpush1.msra.mxu0 %v2946
  %2948 = vmatprep.subr.mxu0 0.0
  %v2949 = vand.u32 %v2675, 4294901760
  %v2950 = vsub.f32 %v2675, %v2949
  %2951 = vmatpush1.msra.mxu0 %v2950
  %2952 = vmatprep.subr.mxu0 0.0
  %v2953 = vand.u32 %v2674, 4294901760
  %v2954 = vsub.f32 %v2674, %v2953
  %2955 = vmatpush1.msra.mxu0 %v2954
  %2956 = vmatprep.subr.mxu0 0.0
  %2957 = vmatpush2.msra.mxu0 0.0
  %2958 = vmatprep.subr.mxu0 0.0
  %2959 = vmatpush2.msra.mxu0 0.0
  %2960 = vmatprep.subr.mxu0 0.0
  %2961 = vmatpush2.msra.mxu0 0.0
  %2962 = vmatprep.subr.mxu0 0.0
  %2963 = vmatpush2.msra.mxu0 0.0
  %2964 = vmatprep.subr.mxu0 0.0
  %2965 = vmatpush2.msra.mxu0 0.0
  %2966 = vmatprep.subr.mxu0 0.0
  %2967 = vmatpush2.msra.mxu0 0.0
  %2968 = vmatprep.subr.mxu0 0.0
  %2969 = vmatpush2.msra.mxu0 0.0
  %2970 = vmatprep.subr.mxu0 0.0
  %2971 = vmatpush2.msra.mxu0 0.0
  %2972 = vmatprep.subr.mxu0 0.0
  %2973 = vmatpush2.msra.mxu0 0.0
  %2974 = vmatprep.subr.mxu0 0.0
  %2975 = vmatpush2.msra.mxu0 0.0
  %2976 = vmatprep.subr.mxu0 0.0
  %2977 = vmatpush2.msra.mxu0 0.0
  %2978 = vmatprep.subr.mxu0 0.0
  %2979 = vmatpush2.msra.mxu0 0.0
  %2980 = vmatprep.subr.mxu0 0.0
  %2981 = vmatpush2.msra.mxu0 0.0
  %2982 = vmatprep.subr.mxu0 0.0
  %2983 = vmatpush2.msra.mxu0 0.0
  %2984 = vmatprep.subr.mxu0 0.0
  %2985 = vmatpush2.msra.mxu0 0.0
  %2986 = vmatprep.subr.mxu0 0.0
  %2987 = vmatpush2.msra.mxu0 0.0
  %2988 = vmatprep.mubr.f32.mxu0 0.0
  %v2989 = vand.u32 %v2687, 4294901760
  %v2990 = vsub.f32 %v2687, %v2989
  %2991 = vmatmul.mubr.f32.gmra.mxu0 %v2990
  %v2992 = vpop.f32.mrf.mxu0
  %v2993 = vadd.f32 %v2895, %v2992
  %v2994 = vpop.f32.mrf.mxu0
  %2995 = vmatprep.mubr.f32.mxu0 0.0
  %v2996 = vand.u32 %v2690, 4294901760
  %v2997 = vsub.f32 %v2690, %v2996
  %2998 = vmatmul.mubr.f32.gmra.mxu0 %v2997
  %v2999 = vpop.f32.mrf.mxu0
  %v3000 = vadd.f32 %v2901, %v2999
  %v3001 = vpop.f32.mrf.mxu0
  %3002 = vmatprep.mubr.f32.mxu0 0.0
  %v3003 = vand.u32 %v2693, 4294901760
  %v3004 = vsub.f32 %v2693, %v3003
  %3005 = vmatmul.mubr.f32.gmra.mxu0 %v3004
  %v3006 = vpop.f32.mrf.mxu0
  %v3007 = vadd.f32 %v2907, %v3006
  %v3008 = vpop.f32.mrf.mxu0
  %3009 = vmatprep.mubr.f32.mxu0 0.0
  %v3010 = vand.u32 %v2696, 4294901760
  %v3011 = vsub.f32 %v2696, %v3010
  %3012 = vmatmul.mubr.f32.gmra.mxu0 %v3011
  %v3013 = vpop.f32.mrf.mxu0
  %v3014 = vadd.f32 %v2913, %v3013
  %v3015 = vpop.f32.mrf.mxu0
  %3016 = vdwg.mxu0
  %3017 = vmatprep.subr.mxu0 0.0
  %3018 = vmatpush1.msra.mxu0 0.0
  %3019 = vmatprep.subr.mxu0 0.0
  %3020 = vmatpush1.msra.mxu0 0.0
  %3021 = vmatprep.subr.mxu0 0.0
  %3022 = vmatpush1.msra.mxu0 0.0
  %3023 = vmatprep.subr.mxu0 0.0
  %3024 = vmatpush1.msra.mxu0 0.0
  %3025 = vmatprep.subr.mxu0 0.0
  %3026 = vmatpush1.msra.mxu0 0.0
  %3027 = vmatprep.subr.mxu0 0.0
  %3028 = vmatpush1.msra.mxu0 0.0
  %3029 = vmatprep.subr.mxu0 0.0
  %3030 = vmatpush1.msra.mxu0 0.0
  %3031 = vmatprep.subr.mxu0 0.0
  %3032 = vmatpush1.msra.mxu0 0.0
  %3033 = vmatprep.subr.mxu0 0.0
  %3034 = vmatpush1.msra.mxu0 0.0
  %3035 = vmatprep.subr.mxu0 0.0
  %3036 = vmatpush1.msra.mxu0 0.0
  %3037 = vmatprep.subr.mxu0 0.0
  %3038 = vmatpush1.msra.mxu0 0.0
  %3039 = vmatprep.subr.mxu0 0.0
  %3040 = vmatpush1.msra.mxu0 0.0
  %3041 = vmatprep.subr.mxu0 0.0
  %v3042 = vand.u32 %v2677, 4294901760
  %3043 = vmatpush1.msra.mxu0 %v3042
  %3044 = vmatprep.subr.mxu0 0.0
  %v3045 = vand.u32 %v2676, 4294901760
  %3046 = vmatpush1.msra.mxu0 %v3045
  %3047 = vmatprep.subr.mxu0 0.0
  %v3048 = vand.u32 %v2675, 4294901760
  %3049 = vmatpush1.msra.mxu0 %v3048
  %3050 = vmatprep.subr.mxu0 0.0
  %v3051 = vand.u32 %v2674, 4294901760
  %3052 = vmatpush1.msra.mxu0 %v3051
  %3053 = vmatprep.subr.mxu0 0.0
  %3054 = vmatpush2.msra.mxu0 0.0
  %3055 = vmatprep.subr.mxu0 0.0
  %3056 = vmatpush2.msra.mxu0 0.0
  %3057 = vmatprep.subr.mxu0 0.0
  %3058 = vmatpush2.msra.mxu0 0.0
  %3059 = vmatprep.subr.mxu0 0.0
  %3060 = vmatpush2.msra.mxu0 0.0
  %3061 = vmatprep.subr.mxu0 0.0
  %3062 = vmatpush2.msra.mxu0 0.0
  %3063 = vmatprep.subr.mxu0 0.0
  %3064 = vmatpush2.msra.mxu0 0.0
  %3065 = vmatprep.subr.mxu0 0.0
  %3066 = vmatpush2.msra.mxu0 0.0
  %3067 = vmatprep.subr.mxu0 0.0
  %3068 = vmatpush2.msra.mxu0 0.0
  %3069 = vmatprep.subr.mxu0 0.0
  %3070 = vmatpush2.msra.mxu0 0.0
  %3071 = vmatprep.subr.mxu0 0.0
  %3072 = vmatpush2.msra.mxu0 0.0
  %3073 = vmatprep.subr.mxu0 0.0
  %3074 = vmatpush2.msra.mxu0 0.0
  %3075 = vmatprep.subr.mxu0 0.0
  %3076 = vmatpush2.msra.mxu0 0.0
  %3077 = vmatprep.subr.mxu0 0.0
  %3078 = vmatpush2.msra.mxu0 0.0
  %3079 = vmatprep.subr.mxu0 0.0
  %3080 = vmatpush2.msra.mxu0 0.0
  %3081 = vmatprep.subr.mxu0 0.0
  %3082 = vmatpush2.msra.mxu0 0.0
  %3083 = vmatprep.subr.mxu0 0.0
  %3084 = vmatpush2.msra.mxu0 0.0
  %3085 = vmatprep.mubr.f32.mxu0 0.0
  %v3086 = vand.u32 %v2687, 4294901760
  %v3087 = vsub.f32 %v2687, %v3086
  %v3088 = vand.u32 %v3087, 4294901760
  %3089 = vmatmul.mubr.f32.gmra.mxu0 %v3088
  %v3090 = vpop.f32.mrf.mxu0
  %v3091 = vadd.f32 %v2993, %v3090
  %v3092 = vpop.f32.mrf.mxu0
  %3093 = vmatprep.mubr.f32.mxu0 0.0
  %v3094 = vand.u32 %v2690, 4294901760
  %v3095 = vsub.f32 %v2690, %v3094
  %v3096 = vand.u32 %v3095, 4294901760
  %3097 = vmatmul.mubr.f32.gmra.mxu0 %v3096
  %v3098 = vpop.f32.mrf.mxu0
  %v3099 = vadd.f32 %v3000, %v3098
  %v3100 = vpop.f32.mrf.mxu0
  %3101 = vmatprep.mubr.f32.mxu0 0.0
  %v3102 = vand.u32 %v2693, 4294901760
  %v3103 = vsub.f32 %v2693, %v3102
  %v3104 = vand.u32 %v3103, 4294901760
  %3105 = vmatmul.mubr.f32.gmra.mxu0 %v3104
  %v3106 = vpop.f32.mrf.mxu0
  %v3107 = vadd.f32 %v3007, %v3106
  %v3108 = vpop.f32.mrf.mxu0
  %3109 = vmatprep.mubr.f32.mxu0 0.0
  %v3110 = vand.u32 %v2696, 4294901760
  %v3111 = vsub.f32 %v2696, %v3110
  %v3112 = vand.u32 %v3111, 4294901760
  %3113 = vmatmul.mubr.f32.gmra.mxu0 %v3112
  %v3114 = vpop.f32.mrf.mxu0
  %v3115 = vadd.f32 %v3014, %v3114
  %v3116 = vpop.f32.mrf.mxu0
  %3117 = vdwg.mxu0
  %3118 = vmatprep.subr.mxu0 0.0
  %3119 = vmatpush1.msra.mxu0 0.0
  %3120 = vmatprep.subr.mxu0 0.0
  %3121 = vmatpush1.msra.mxu0 0.0
  %3122 = vmatprep.subr.mxu0 0.0
  %3123 = vmatpush1.msra.mxu0 0.0
  %3124 = vmatprep.subr.mxu0 0.0
  %3125 = vmatpush1.msra.mxu0 0.0
  %3126 = vmatprep.subr.mxu0 0.0
  %3127 = vmatpush1.msra.mxu0 0.0
  %3128 = vmatprep.subr.mxu0 0.0
  %3129 = vmatpush1.msra.mxu0 0.0
  %3130 = vmatprep.subr.mxu0 0.0
  %3131 = vmatpush1.msra.mxu0 0.0
  %3132 = vmatprep.subr.mxu0 0.0
  %3133 = vmatpush1.msra.mxu0 0.0
  %3134 = vmatprep.subr.mxu0 0.0
  %3135 = vmatpush1.msra.mxu0 0.0
  %3136 = vmatprep.subr.mxu0 0.0
  %3137 = vmatpush1.msra.mxu0 0.0
  %3138 = vmatprep.subr.mxu0 0.0
  %3139 = vmatpush1.msra.mxu0 0.0
  %3140 = vmatprep.subr.mxu0 0.0
  %3141 = vmatpush1.msra.mxu0 0.0
  %3142 = vmatprep.subr.mxu0 0.0
  %v3143 = vand.u32 %v2677, 4294901760
  %v3144 = vsub.f32 %v2677, %v3143
  %v3145 = vand.u32 %v3144, 4294901760
  %3146 = vmatpush1.msra.mxu0 %v3145
  %3147 = vmatprep.subr.mxu0 0.0
  %v3148 = vand.u32 %v2676, 4294901760
  %v3149 = vsub.f32 %v2676, %v3148
  %v3150 = vand.u32 %v3149, 4294901760
  %3151 = vmatpush1.msra.mxu0 %v3150
  %3152 = vmatprep.subr.mxu0 0.0
  %v3153 = vand.u32 %v2675, 4294901760
  %v3154 = vsub.f32 %v2675, %v3153
  %v3155 = vand.u32 %v3154, 4294901760
  %3156 = vmatpush1.msra.mxu0 %v3155
  %3157 = vmatprep.subr.mxu0 0.0
  %v3158 = vand.u32 %v2674, 4294901760
  %v3159 = vsub.f32 %v2674, %v3158
  %v3160 = vand.u32 %v3159, 4294901760
  %3161 = vmatpush1.msra.mxu0 %v3160
  %3162 = vmatprep.subr.mxu0 0.0
  %3163 = vmatpush2.msra.mxu0 0.0
  %3164 = vmatprep.subr.mxu0 0.0
  %3165 = vmatpush2.msra.mxu0 0.0
  %3166 = vmatprep.subr.mxu0 0.0
  %3167 = vmatpush2.msra.mxu0 0.0
  %3168 = vmatprep.subr.mxu0 0.0
  %3169 = vmatpush2.msra.mxu0 0.0
  %3170 = vmatprep.subr.mxu0 0.0
  %3171 = vmatpush2.msra.mxu0 0.0
  %3172 = vmatprep.subr.mxu0 0.0
  %3173 = vmatpush2.msra.mxu0 0.0
  %3174 = vmatprep.subr.mxu0 0.0
  %3175 = vmatpush2.msra.mxu0 0.0
  %3176 = vmatprep.subr.mxu0 0.0
  %3177 = vmatpush2.msra.mxu0 0.0
  %3178 = vmatprep.subr.mxu0 0.0
  %3179 = vmatpush2.msra.mxu0 0.0
  %3180 = vmatprep.subr.mxu0 0.0
  %3181 = vmatpush2.msra.mxu0 0.0
  %3182 = vmatprep.subr.mxu0 0.0
  %3183 = vmatpush2.msra.mxu0 0.0
  %3184 = vmatprep.subr.mxu0 0.0
  %3185 = vmatpush2.msra.mxu0 0.0
  %3186 = vmatprep.subr.mxu0 0.0
  %3187 = vmatpush2.msra.mxu0 0.0
  %3188 = vmatprep.subr.mxu0 0.0
  %3189 = vmatpush2.msra.mxu0 0.0
  %3190 = vmatprep.subr.mxu0 0.0
  %3191 = vmatpush2.msra.mxu0 0.0
  %3192 = vmatprep.subr.mxu0 0.0
  %3193 = vmatpush2.msra.mxu0 0.0
  %3194 = vmatprep.mubr.f32.mxu0 0.0
  %v3195 = vand.u32 %v2687, 4294901760
  %3196 = vmatmul.mubr.f32.gmra.mxu0 %v3195
  %v3197 = vpop.f32.mrf.mxu0
  %v3198 = vadd.f32 %v3091, %v3197
  %v3199 = vpop.f32.mrf.mxu0
  %3200 = vmatprep.mubr.f32.mxu0 0.0
  %v3201 = vand.u32 %v2690, 4294901760
  %3202 = vmatmul.mubr.f32.gmra.mxu0 %v3201
  %v3203 = vpop.f32.mrf.mxu0
  %v3204 = vadd.f32 %v3099, %v3203
  %v3205 = vpop.f32.mrf.mxu0
  %3206 = vmatprep.mubr.f32.mxu0 0.0
  %v3207 = vand.u32 %v2693, 4294901760
  %3208 = vmatmul.mubr.f32.gmra.mxu0 %v3207
  %v3209 = vpop.f32.mrf.mxu0
  %v3210 = vadd.f32 %v3107, %v3209
  %v3211 = vpop.f32.mrf.mxu0
  %3212 = vmatprep.mubr.f32.mxu0 0.0
  %v3213 = vand.u32 %v2696, 4294901760
  %3214 = vmatmul.mubr.f32.gmra.mxu0 %v3213
  %v3215 = vpop.f32.mrf.mxu0
  %v3216 = vadd.f32 %v3115, %v3215
  %v3217 = vpop.f32.mrf.mxu0
  %3218 = vdwg.mxu0
  %3219 = vmatprep.subr.mxu0 0.0
  %3220 = vmatpush1.msra.mxu0 0.0
  %3221 = vmatprep.subr.mxu0 0.0
  %3222 = vmatpush1.msra.mxu0 0.0
  %3223 = vmatprep.subr.mxu0 0.0
  %3224 = vmatpush1.msra.mxu0 0.0
  %3225 = vmatprep.subr.mxu0 0.0
  %3226 = vmatpush1.msra.mxu0 0.0
  %3227 = vmatprep.subr.mxu0 0.0
  %3228 = vmatpush1.msra.mxu0 0.0
  %3229 = vmatprep.subr.mxu0 0.0
  %3230 = vmatpush1.msra.mxu0 0.0
  %3231 = vmatprep.subr.mxu0 0.0
  %3232 = vmatpush1.msra.mxu0 0.0
  %3233 = vmatprep.subr.mxu0 0.0
  %3234 = vmatpush1.msra.mxu0 0.0
  %3235 = vmatprep.subr.mxu0 0.0
  %3236 = vmatpush1.msra.mxu0 0.0
  %3237 = vmatprep.subr.mxu0 0.0
  %3238 = vmatpush1.msra.mxu0 0.0
  %3239 = vmatprep.subr.mxu0 0.0
  %3240 = vmatpush1.msra.mxu0 0.0
  %3241 = vmatprep.subr.mxu0 0.0
  %3242 = vmatpush1.msra.mxu0 0.0
  %3243 = vmatprep.subr.mxu0 0.0
  %v3244 = vand.u32 %v2677, 4294901760
  %3245 = vmatpush1.msra.mxu0 %v3244
  %3246 = vmatprep.subr.mxu0 0.0
  %v3247 = vand.u32 %v2676, 4294901760
  %3248 = vmatpush1.msra.mxu0 %v3247
  %3249 = vmatprep.subr.mxu0 0.0
  %v3250 = vand.u32 %v2675, 4294901760
  %3251 = vmatpush1.msra.mxu0 %v3250
  %3252 = vmatprep.subr.mxu0 0.0
  %v3253 = vand.u32 %v2674, 4294901760
  %3254 = vmatpush1.msra.mxu0 %v3253
  %3255 = vmatprep.subr.mxu0 0.0
  %3256 = vmatpush2.msra.mxu0 0.0
  %3257 = vmatprep.subr.mxu0 0.0
  %3258 = vmatpush2.msra.mxu0 0.0
  %3259 = vmatprep.subr.mxu0 0.0
  %3260 = vmatpush2.msra.mxu0 0.0
  %3261 = vmatprep.subr.mxu0 0.0
  %3262 = vmatpush2.msra.mxu0 0.0
  %3263 = vmatprep.subr.mxu0 0.0
  %3264 = vmatpush2.msra.mxu0 0.0
  %3265 = vmatprep.subr.mxu0 0.0
  %3266 = vmatpush2.msra.mxu0 0.0
  %3267 = vmatprep.subr.mxu0 0.0
  %3268 = vmatpush2.msra.mxu0 0.0
  %3269 = vmatprep.subr.mxu0 0.0
  %3270 = vmatpush2.msra.mxu0 0.0
  %3271 = vmatprep.subr.mxu0 0.0
  %3272 = vmatpush2.msra.mxu0 0.0
  %3273 = vmatprep.subr.mxu0 0.0
  %3274 = vmatpush2.msra.mxu0 0.0
  %3275 = vmatprep.subr.mxu0 0.0
  %3276 = vmatpush2.msra.mxu0 0.0
  %3277 = vmatprep.subr.mxu0 0.0
  %3278 = vmatpush2.msra.mxu0 0.0
  %3279 = vmatprep.subr.mxu0 0.0
  %3280 = vmatpush2.msra.mxu0 0.0
  %3281 = vmatprep.subr.mxu0 0.0
  %3282 = vmatpush2.msra.mxu0 0.0
  %3283 = vmatprep.subr.mxu0 0.0
  %3284 = vmatpush2.msra.mxu0 0.0
  %3285 = vmatprep.subr.mxu0 0.0
  %3286 = vmatpush2.msra.mxu0 0.0
  %3287 = vmatprep.mubr.f32.mxu0 0.0
  %v3288 = vand.u32 %v2687, 4294901760
  %3289 = vmatmul.mubr.f32.gmra.mxu0 %v3288
  %v3290 = vpop.f32.mrf.mxu0
  %v3291 = vadd.f32 %v3198, %v3290
  %v3292 = vpop.f32.mrf.mxu0
  %3293 = vmatprep.mubr.f32.mxu0 0.0
  %v3294 = vand.u32 %v2690, 4294901760
  %3295 = vmatmul.mubr.f32.gmra.mxu0 %v3294
  %v3296 = vpop.f32.mrf.mxu0
  %v3297 = vadd.f32 %v3204, %v3296
  %v3298 = vpop.f32.mrf.mxu0
  %3299 = vmatprep.mubr.f32.mxu0 0.0
  %v3300 = vand.u32 %v2693, 4294901760
  %3301 = vmatmul.mubr.f32.gmra.mxu0 %v3300
  %v3302 = vpop.f32.mrf.mxu0
  %v3303 = vadd.f32 %v3210, %v3302
  %v3304 = vpop.f32.mrf.mxu0
  %3305 = vmatprep.mubr.f32.mxu0 0.0
  %v3306 = vand.u32 %v2696, 4294901760
  %3307 = vmatmul.mubr.f32.gmra.mxu0 %v3306
  %v3308 = vpop.f32.mrf.mxu0
  %v3309 = vadd.f32 %v3216, %v3308
  %v3310 = vpop.f32.mrf.mxu0
  %3311 = vdwg.mxu0
  %3312 = vst.msk [vmem:[#allocation2 + $0x40] sm:$0xff] %vm1399, %v3291
  %3313 = vst.msk [vmem:[#allocation2 + $0x48] sm:$0xff] %vm1399, %v3297
  %3314 = vst.msk [vmem:[#allocation2 + $0x50] sm:$0xff] %vm1399, %v3303
  %3315 = vst.msk [vmem:[#allocation2 + $0x58] sm:$0xff] %vm1399, %v3309
  %s3316 = scalar_lea.vmem %s1, 96
  %v3317 = vld [vmem:[%s3316] sm:$0xff]
  %v3318 = vld [vmem:[%s3316 + $0x8] sm:$0xff]
  %v3319 = vld [vmem:[%s3316 + $0x10] sm:$0xff]
  %v3320 = vld [vmem:[%s3316 + $0x18] sm:$0xff]
  %s3321 = scalar_lea.vmem %s2, 3
  %v3322 = vld [vmem:[%s3321] sm:$0x1]
  %v3324 = vlaneseq
  %v3325 = vshrl.u32 %v3324, 7
  %v3326 = vsub.s32 0, %v3325
  %v3327 = vrot.slane %v3322, %v3326
  %v3330 = vsel %vm1399, %v1367, 0
  %v3333 = vsel %vm1399, %v1373, 0
  %v3336 = vsel %vm1399, %v1379, 0
  %v3339 = vsel %vm1399, %v1385, 0
  %3341 = vmatprep.subr.mxu0 0.0
  %3342 = vmatpush1.msra.mxu0 0.0
  %3343 = vmatprep.subr.mxu0 0.0
  %3344 = vmatpush1.msra.mxu0 0.0
  %3345 = vmatprep.subr.mxu0 0.0
  %3346 = vmatpush1.msra.mxu0 0.0
  %3347 = vmatprep.subr.mxu0 0.0
  %3348 = vmatpush1.msra.mxu0 0.0
  %3349 = vmatprep.subr.mxu0 0.0
  %3350 = vmatpush1.msra.mxu0 0.0
  %3351 = vmatprep.subr.mxu0 0.0
  %3352 = vmatpush1.msra.mxu0 0.0
  %3353 = vmatprep.subr.mxu0 0.0
  %3354 = vmatpush1.msra.mxu0 0.0
  %3355 = vmatprep.subr.mxu0 0.0
  %3356 = vmatpush1.msra.mxu0 0.0
  %3357 = vmatprep.subr.mxu0 0.0
  %3358 = vmatpush1.msra.mxu0 0.0
  %3359 = vmatprep.subr.mxu0 0.0
  %3360 = vmatpush1.msra.mxu0 0.0
  %3361 = vmatprep.subr.mxu0 0.0
  %3362 = vmatpush1.msra.mxu0 0.0
  %3363 = vmatprep.subr.mxu0 0.0
  %3364 = vmatpush1.msra.mxu0 0.0
  %3365 = vmatprep.subr.mxu0 0.0
  %v3366 = vand.u32 %v3320, 4294901760
  %3367 = vmatpush1.msra.mxu0 %v3366
  %3368 = vmatprep.subr.mxu0 0.0
  %v3369 = vand.u32 %v3319, 4294901760
  %3370 = vmatpush1.msra.mxu0 %v3369
  %3371 = vmatprep.subr.mxu0 0.0
  %v3372 = vand.u32 %v3318, 4294901760
  %3373 = vmatpush1.msra.mxu0 %v3372
  %3374 = vmatprep.subr.mxu0 0.0
  %v3375 = vand.u32 %v3317, 4294901760
  %3376 = vmatpush1.msra.mxu0 %v3375
  %3377 = vmatprep.subr.mxu0 0.0
  %3378 = vmatpush2.msra.mxu0 0.0
  %3379 = vmatprep.subr.mxu0 0.0
  %3380 = vmatpush2.msra.mxu0 0.0
  %3381 = vmatprep.subr.mxu0 0.0
  %3382 = vmatpush2.msra.mxu0 0.0
  %3383 = vmatprep.subr.mxu0 0.0
  %3384 = vmatpush2.msra.mxu0 0.0
  %3385 = vmatprep.subr.mxu0 0.0
  %3386 = vmatpush2.msra.mxu0 0.0
  %3387 = vmatprep.subr.mxu0 0.0
  %3388 = vmatpush2.msra.mxu0 0.0
  %3389 = vmatprep.subr.mxu0 0.0
  %3390 = vmatpush2.msra.mxu0 0.0
  %3391 = vmatprep.subr.mxu0 0.0
  %3392 = vmatpush2.msra.mxu0 0.0
  %3393 = vmatprep.subr.mxu0 0.0
  %3394 = vmatpush2.msra.mxu0 0.0
  %3395 = vmatprep.subr.mxu0 0.0
  %3396 = vmatpush2.msra.mxu0 0.0
  %3397 = vmatprep.subr.mxu0 0.0
  %3398 = vmatpush2.msra.mxu0 0.0
  %3399 = vmatprep.subr.mxu0 0.0
  %3400 = vmatpush2.msra.mxu0 0.0
  %3401 = vmatprep.subr.mxu0 0.0
  %3402 = vmatpush2.msra.mxu0 0.0
  %3403 = vmatprep.subr.mxu0 0.0
  %3404 = vmatpush2.msra.mxu0 0.0
  %3405 = vmatprep.subr.mxu0 0.0
  %3406 = vmatpush2.msra.mxu0 0.0
  %3407 = vmatprep.subr.mxu0 0.0
  %3408 = vmatpush2.msra.mxu0 0.0
  %3409 = vmatprep.mubr.f32.mxu0 0.0
  %v3410 = vand.u32 %v3330, 4294901760
  %v3411 = vsub.f32 %v3330, %v3410
  %v3412 = vand.u32 %v3411, 4294901760
  %v3413 = vsub.f32 %v3411, %v3412
  %v3414 = vand.u32 %v3413, 4294901760
  %3415 = vmatmul.mubr.f32.gmra.mxu0 %v3414
  %v3416 = vpop.f32.mrf.mxu0
  %v3417 = vadd.f32 %v3327, %v3416
  %v3418 = vpop.f32.mrf.mxu0
  %3419 = vmatprep.mubr.f32.mxu0 0.0
  %v3420 = vand.u32 %v3333, 4294901760
  %v3421 = vsub.f32 %v3333, %v3420
  %v3422 = vand.u32 %v3421, 4294901760
  %v3423 = vsub.f32 %v3421, %v3422
  %v3424 = vand.u32 %v3423, 4294901760
  %3425 = vmatmul.mubr.f32.gmra.mxu0 %v3424
  %v3426 = vpop.f32.mrf.mxu0
  %v3427 = vadd.f32 %v3327, %v3426
  %v3428 = vpop.f32.mrf.mxu0
  %3429 = vmatprep.mubr.f32.mxu0 0.0
  %v3430 = vand.u32 %v3336, 4294901760
  %v3431 = vsub.f32 %v3336, %v3430
  %v3432 = vand.u32 %v3431, 4294901760
  %v3433 = vsub.f32 %v3431, %v3432
  %v3434 = vand.u32 %v3433, 4294901760
  %3435 = vmatmul.mubr.f32.gmra.mxu0 %v3434
  %v3436 = vpop.f32.mrf.mxu0
  %v3437 = vadd.f32 %v3327, %v3436
  %v3438 = vpop.f32.mrf.mxu0
  %3439 = vmatprep.mubr.f32.mxu0 0.0
  %v3440 = vand.u32 %v3339, 4294901760
  %v3441 = vsub.f32 %v3339, %v3440
  %v3442 = vand.u32 %v3441, 4294901760
  %v3443 = vsub.f32 %v3441, %v3442
  %v3444 = vand.u32 %v3443, 4294901760
  %3445 = vmatmul.mubr.f32.gmra.mxu0 %v3444
  %v3446 = vpop.f32.mrf.mxu0
  %v3447 = vadd.f32 %v3327, %v3446
  %v3448 = vpop.f32.mrf.mxu0
  %3449 = vdwg.mxu0
  %3450 = vmatprep.subr.mxu0 0.0
  %3451 = vmatpush1.msra.mxu0 0.0
  %3452 = vmatprep.subr.mxu0 0.0
  %3453 = vmatpush1.msra.mxu0 0.0
  %3454 = vmatprep.subr.mxu0 0.0
  %3455 = vmatpush1.msra.mxu0 0.0
  %3456 = vmatprep.subr.mxu0 0.0
  %3457 = vmatpush1.msra.mxu0 0.0
  %3458 = vmatprep.subr.mxu0 0.0
  %3459 = vmatpush1.msra.mxu0 0.0
  %3460 = vmatprep.subr.mxu0 0.0
  %3461 = vmatpush1.msra.mxu0 0.0
  %3462 = vmatprep.subr.mxu0 0.0
  %3463 = vmatpush1.msra.mxu0 0.0
  %3464 = vmatprep.subr.mxu0 0.0
  %3465 = vmatpush1.msra.mxu0 0.0
  %3466 = vmatprep.subr.mxu0 0.0
  %3467 = vmatpush1.msra.mxu0 0.0
  %3468 = vmatprep.subr.mxu0 0.0
  %3469 = vmatpush1.msra.mxu0 0.0
  %3470 = vmatprep.subr.mxu0 0.0
  %3471 = vmatpush1.msra.mxu0 0.0
  %3472 = vmatprep.subr.mxu0 0.0
  %3473 = vmatpush1.msra.mxu0 0.0
  %3474 = vmatprep.subr.mxu0 0.0
  %v3475 = vand.u32 %v3320, 4294901760
  %v3476 = vsub.f32 %v3320, %v3475
  %v3477 = vand.u32 %v3476, 4294901760
  %v3478 = vsub.f32 %v3476, %v3477
  %v3479 = vand.u32 %v3478, 4294901760
  %3480 = vmatpush1.msra.mxu0 %v3479
  %3481 = vmatprep.subr.mxu0 0.0
  %v3482 = vand.u32 %v3319, 4294901760
  %v3483 = vsub.f32 %v3319, %v3482
  %v3484 = vand.u32 %v3483, 4294901760
  %v3485 = vsub.f32 %v3483, %v3484
  %v3486 = vand.u32 %v3485, 4294901760
  %3487 = vmatpush1.msra.mxu0 %v3486
  %3488 = vmatprep.subr.mxu0 0.0
  %v3489 = vand.u32 %v3318, 4294901760
  %v3490 = vsub.f32 %v3318, %v3489
  %v3491 = vand.u32 %v3490, 4294901760
  %v3492 = vsub.f32 %v3490, %v3491
  %v3493 = vand.u32 %v3492, 4294901760
  %3494 = vmatpush1.msra.mxu0 %v3493
  %3495 = vmatprep.subr.mxu0 0.0
  %v3496 = vand.u32 %v3317, 4294901760
  %v3497 = vsub.f32 %v3317, %v3496
  %v3498 = vand.u32 %v3497, 4294901760
  %v3499 = vsub.f32 %v3497, %v3498
  %v3500 = vand.u32 %v3499, 4294901760
  %3501 = vmatpush1.msra.mxu0 %v3500
  %3502 = vmatprep.subr.mxu0 0.0
  %3503 = vmatpush2.msra.mxu0 0.0
  %3504 = vmatprep.subr.mxu0 0.0
  %3505 = vmatpush2.msra.mxu0 0.0
  %3506 = vmatprep.subr.mxu0 0.0
  %3507 = vmatpush2.msra.mxu0 0.0
  %3508 = vmatprep.subr.mxu0 0.0
  %3509 = vmatpush2.msra.mxu0 0.0
  %3510 = vmatprep.subr.mxu0 0.0
  %3511 = vmatpush2.msra.mxu0 0.0
  %3512 = vmatprep.subr.mxu0 0.0
  %3513 = vmatpush2.msra.mxu0 0.0
  %3514 = vmatprep.subr.mxu0 0.0
  %3515 = vmatpush2.msra.mxu0 0.0
  %3516 = vmatprep.subr.mxu0 0.0
  %3517 = vmatpush2.msra.mxu0 0.0
  %3518 = vmatprep.subr.mxu0 0.0
  %3519 = vmatpush2.msra.mxu0 0.0
  %3520 = vmatprep.subr.mxu0 0.0
  %3521 = vmatpush2.msra.mxu0 0.0
  %3522 = vmatprep.subr.mxu0 0.0
  %3523 = vmatpush2.msra.mxu0 0.0
  %3524 = vmatprep.subr.mxu0 0.0
  %3525 = vmatpush2.msra.mxu0 0.0
  %3526 = vmatprep.subr.mxu0 0.0
  %3527 = vmatpush2.msra.mxu0 0.0
  %3528 = vmatprep.subr.mxu0 0.0
  %3529 = vmatpush2.msra.mxu0 0.0
  %3530 = vmatprep.subr.mxu0 0.0
  %3531 = vmatpush2.msra.mxu0 0.0
  %3532 = vmatprep.subr.mxu0 0.0
  %3533 = vmatpush2.msra.mxu0 0.0
  %3534 = vmatprep.mubr.f32.mxu0 0.0
  %v3535 = vand.u32 %v3330, 4294901760
  %3536 = vmatmul.mubr.f32.gmra.mxu0 %v3535
  %v3537 = vpop.f32.mrf.mxu0
  %v3538 = vadd.f32 %v3417, %v3537
  %v3539 = vpop.f32.mrf.mxu0
  %3540 = vmatprep.mubr.f32.mxu0 0.0
  %v3541 = vand.u32 %v3333, 4294901760
  %3542 = vmatmul.mubr.f32.gmra.mxu0 %v3541
  %v3543 = vpop.f32.mrf.mxu0
  %v3544 = vadd.f32 %v3427, %v3543
  %v3545 = vpop.f32.mrf.mxu0
  %3546 = vmatprep.mubr.f32.mxu0 0.0
  %v3547 = vand.u32 %v3336, 4294901760
  %3548 = vmatmul.mubr.f32.gmra.mxu0 %v3547
  %v3549 = vpop.f32.mrf.mxu0
  %v3550 = vadd.f32 %v3437, %v3549
  %v3551 = vpop.f32.mrf.mxu0
  %3552 = vmatprep.mubr.f32.mxu0 0.0
  %v3553 = vand.u32 %v3339, 4294901760
  %3554 = vmatmul.mubr.f32.gmra.mxu0 %v3553
  %v3555 = vpop.f32.mrf.mxu0
  %v3556 = vadd.f32 %v3447, %v3555
  %v3557 = vpop.f32.mrf.mxu0
  %3558 = vdwg.mxu0
  %3559 = vmatprep.subr.mxu0 0.0
  %3560 = vmatpush1.msra.mxu0 0.0
  %3561 = vmatprep.subr.mxu0 0.0
  %3562 = vmatpush1.msra.mxu0 0.0
  %3563 = vmatprep.subr.mxu0 0.0
  %3564 = vmatpush1.msra.mxu0 0.0
  %3565 = vmatprep.subr.mxu0 0.0
  %3566 = vmatpush1.msra.mxu0 0.0
  %3567 = vmatprep.subr.mxu0 0.0
  %3568 = vmatpush1.msra.mxu0 0.0
  %3569 = vmatprep.subr.mxu0 0.0
  %3570 = vmatpush1.msra.mxu0 0.0
  %3571 = vmatprep.subr.mxu0 0.0
  %3572 = vmatpush1.msra.mxu0 0.0
  %3573 = vmatprep.subr.mxu0 0.0
  %3574 = vmatpush1.msra.mxu0 0.0
  %3575 = vmatprep.subr.mxu0 0.0
  %3576 = vmatpush1.msra.mxu0 0.0
  %3577 = vmatprep.subr.mxu0 0.0
  %3578 = vmatpush1.msra.mxu0 0.0
  %3579 = vmatprep.subr.mxu0 0.0
  %3580 = vmatpush1.msra.mxu0 0.0
  %3581 = vmatprep.subr.mxu0 0.0
  %3582 = vmatpush1.msra.mxu0 0.0
  %3583 = vmatprep.subr.mxu0 0.0
  %v3584 = vand.u32 %v3320, 4294901760
  %v3585 = vsub.f32 %v3320, %v3584
  %3586 = vmatpush1.msra.mxu0 %v3585
  %3587 = vmatprep.subr.mxu0 0.0
  %v3588 = vand.u32 %v3319, 4294901760
  %v3589 = vsub.f32 %v3319, %v3588
  %3590 = vmatpush1.msra.mxu0 %v3589
  %3591 = vmatprep.subr.mxu0 0.0
  %v3592 = vand.u32 %v3318, 4294901760
  %v3593 = vsub.f32 %v3318, %v3592
  %3594 = vmatpush1.msra.mxu0 %v3593
  %3595 = vmatprep.subr.mxu0 0.0
  %v3596 = vand.u32 %v3317, 4294901760
  %v3597 = vsub.f32 %v3317, %v3596
  %3598 = vmatpush1.msra.mxu0 %v3597
  %3599 = vmatprep.subr.mxu0 0.0
  %3600 = vmatpush2.msra.mxu0 0.0
  %3601 = vmatprep.subr.mxu0 0.0
  %3602 = vmatpush2.msra.mxu0 0.0
  %3603 = vmatprep.subr.mxu0 0.0
  %3604 = vmatpush2.msra.mxu0 0.0
  %3605 = vmatprep.subr.mxu0 0.0
  %3606 = vmatpush2.msra.mxu0 0.0
  %3607 = vmatprep.subr.mxu0 0.0
  %3608 = vmatpush2.msra.mxu0 0.0
  %3609 = vmatprep.subr.mxu0 0.0
  %3610 = vmatpush2.msra.mxu0 0.0
  %3611 = vmatprep.subr.mxu0 0.0
  %3612 = vmatpush2.msra.mxu0 0.0
  %3613 = vmatprep.subr.mxu0 0.0
  %3614 = vmatpush2.msra.mxu0 0.0
  %3615 = vmatprep.subr.mxu0 0.0
  %3616 = vmatpush2.msra.mxu0 0.0
  %3617 = vmatprep.subr.mxu0 0.0
  %3618 = vmatpush2.msra.mxu0 0.0
  %3619 = vmatprep.subr.mxu0 0.0
  %3620 = vmatpush2.msra.mxu0 0.0
  %3621 = vmatprep.subr.mxu0 0.0
  %3622 = vmatpush2.msra.mxu0 0.0
  %3623 = vmatprep.subr.mxu0 0.0
  %3624 = vmatpush2.msra.mxu0 0.0
  %3625 = vmatprep.subr.mxu0 0.0
  %3626 = vmatpush2.msra.mxu0 0.0
  %3627 = vmatprep.subr.mxu0 0.0
  %3628 = vmatpush2.msra.mxu0 0.0
  %3629 = vmatprep.subr.mxu0 0.0
  %3630 = vmatpush2.msra.mxu0 0.0
  %3631 = vmatprep.mubr.f32.mxu0 0.0
  %v3632 = vand.u32 %v3330, 4294901760
  %v3633 = vsub.f32 %v3330, %v3632
  %3634 = vmatmul.mubr.f32.gmra.mxu0 %v3633
  %v3635 = vpop.f32.mrf.mxu0
  %v3636 = vadd.f32 %v3538, %v3635
  %v3637 = vpop.f32.mrf.mxu0
  %3638 = vmatprep.mubr.f32.mxu0 0.0
  %v3639 = vand.u32 %v3333, 4294901760
  %v3640 = vsub.f32 %v3333, %v3639
  %3641 = vmatmul.mubr.f32.gmra.mxu0 %v3640
  %v3642 = vpop.f32.mrf.mxu0
  %v3643 = vadd.f32 %v3544, %v3642
  %v3644 = vpop.f32.mrf.mxu0
  %3645 = vmatprep.mubr.f32.mxu0 0.0
  %v3646 = vand.u32 %v3336, 4294901760
  %v3647 = vsub.f32 %v3336, %v3646
  %3648 = vmatmul.mubr.f32.gmra.mxu0 %v3647
  %v3649 = vpop.f32.mrf.mxu0
  %v3650 = vadd.f32 %v3550, %v3649
  %v3651 = vpop.f32.mrf.mxu0
  %3652 = vmatprep.mubr.f32.mxu0 0.0
  %v3653 = vand.u32 %v3339, 4294901760
  %v3654 = vsub.f32 %v3339, %v3653
  %3655 = vmatmul.mubr.f32.gmra.mxu0 %v3654
  %v3656 = vpop.f32.mrf.mxu0
  %v3657 = vadd.f32 %v3556, %v3656
  %v3658 = vpop.f32.mrf.mxu0
  %3659 = vdwg.mxu0
  %3660 = vmatprep.subr.mxu0 0.0
  %3661 = vmatpush1.msra.mxu0 0.0
  %3662 = vmatprep.subr.mxu0 0.0
  %3663 = vmatpush1.msra.mxu0 0.0
  %3664 = vmatprep.subr.mxu0 0.0
  %3665 = vmatpush1.msra.mxu0 0.0
  %3666 = vmatprep.subr.mxu0 0.0
  %3667 = vmatpush1.msra.mxu0 0.0
  %3668 = vmatprep.subr.mxu0 0.0
  %3669 = vmatpush1.msra.mxu0 0.0
  %3670 = vmatprep.subr.mxu0 0.0
  %3671 = vmatpush1.msra.mxu0 0.0
  %3672 = vmatprep.subr.mxu0 0.0
  %3673 = vmatpush1.msra.mxu0 0.0
  %3674 = vmatprep.subr.mxu0 0.0
  %3675 = vmatpush1.msra.mxu0 0.0
  %3676 = vmatprep.subr.mxu0 0.0
  %3677 = vmatpush1.msra.mxu0 0.0
  %3678 = vmatprep.subr.mxu0 0.0
  %3679 = vmatpush1.msra.mxu0 0.0
  %3680 = vmatprep.subr.mxu0 0.0
  %3681 = vmatpush1.msra.mxu0 0.0
  %3682 = vmatprep.subr.mxu0 0.0
  %3683 = vmatpush1.msra.mxu0 0.0
  %3684 = vmatprep.subr.mxu0 0.0
  %v3685 = vand.u32 %v3320, 4294901760
  %3686 = vmatpush1.msra.mxu0 %v3685
  %3687 = vmatprep.subr.mxu0 0.0
  %v3688 = vand.u32 %v3319, 4294901760
  %3689 = vmatpush1.msra.mxu0 %v3688
  %3690 = vmatprep.subr.mxu0 0.0
  %v3691 = vand.u32 %v3318, 4294901760
  %3692 = vmatpush1.msra.mxu0 %v3691
  %3693 = vmatprep.subr.mxu0 0.0
  %v3694 = vand.u32 %v3317, 4294901760
  %3695 = vmatpush1.msra.mxu0 %v3694
  %3696 = vmatprep.subr.mxu0 0.0
  %3697 = vmatpush2.msra.mxu0 0.0
  %3698 = vmatprep.subr.mxu0 0.0
  %3699 = vmatpush2.msra.mxu0 0.0
  %3700 = vmatprep.subr.mxu0 0.0
  %3701 = vmatpush2.msra.mxu0 0.0
  %3702 = vmatprep.subr.mxu0 0.0
  %3703 = vmatpush2.msra.mxu0 0.0
  %3704 = vmatprep.subr.mxu0 0.0
  %3705 = vmatpush2.msra.mxu0 0.0
  %3706 = vmatprep.subr.mxu0 0.0
  %3707 = vmatpush2.msra.mxu0 0.0
  %3708 = vmatprep.subr.mxu0 0.0
  %3709 = vmatpush2.msra.mxu0 0.0
  %3710 = vmatprep.subr.mxu0 0.0
  %3711 = vmatpush2.msra.mxu0 0.0
  %3712 = vmatprep.subr.mxu0 0.0
  %3713 = vmatpush2.msra.mxu0 0.0
  %3714 = vmatprep.subr.mxu0 0.0
  %3715 = vmatpush2.msra.mxu0 0.0
  %3716 = vmatprep.subr.mxu0 0.0
  %3717 = vmatpush2.msra.mxu0 0.0
  %3718 = vmatprep.subr.mxu0 0.0
  %3719 = vmatpush2.msra.mxu0 0.0
  %3720 = vmatprep.subr.mxu0 0.0
  %3721 = vmatpush2.msra.mxu0 0.0
  %3722 = vmatprep.subr.mxu0 0.0
  %3723 = vmatpush2.msra.mxu0 0.0
  %3724 = vmatprep.subr.mxu0 0.0
  %3725 = vmatpush2.msra.mxu0 0.0
  %3726 = vmatprep.subr.mxu0 0.0
  %3727 = vmatpush2.msra.mxu0 0.0
  %3728 = vmatprep.mubr.f32.mxu0 0.0
  %v3729 = vand.u32 %v3330, 4294901760
  %v3730 = vsub.f32 %v3330, %v3729
  %v3731 = vand.u32 %v3730, 4294901760
  %3732 = vmatmul.mubr.f32.gmra.mxu0 %v3731
  %v3733 = vpop.f32.mrf.mxu0
  %v3734 = vadd.f32 %v3636, %v3733
  %v3735 = vpop.f32.mrf.mxu0
  %3736 = vmatprep.mubr.f32.mxu0 0.0
  %v3737 = vand.u32 %v3333, 4294901760
  %v3738 = vsub.f32 %v3333, %v3737
  %v3739 = vand.u32 %v3738, 4294901760
  %3740 = vmatmul.mubr.f32.gmra.mxu0 %v3739
  %v3741 = vpop.f32.mrf.mxu0
  %v3742 = vadd.f32 %v3643, %v3741
  %v3743 = vpop.f32.mrf.mxu0
  %3744 = vmatprep.mubr.f32.mxu0 0.0
  %v3745 = vand.u32 %v3336, 4294901760
  %v3746 = vsub.f32 %v3336, %v3745
  %v3747 = vand.u32 %v3746, 4294901760
  %3748 = vmatmul.mubr.f32.gmra.mxu0 %v3747
  %v3749 = vpop.f32.mrf.mxu0
  %v3750 = vadd.f32 %v3650, %v3749
  %v3751 = vpop.f32.mrf.mxu0
  %3752 = vmatprep.mubr.f32.mxu0 0.0
  %v3753 = vand.u32 %v3339, 4294901760
  %v3754 = vsub.f32 %v3339, %v3753
  %v3755 = vand.u32 %v3754, 4294901760
  %3756 = vmatmul.mubr.f32.gmra.mxu0 %v3755
  %v3757 = vpop.f32.mrf.mxu0
  %v3758 = vadd.f32 %v3657, %v3757
  %v3759 = vpop.f32.mrf.mxu0
  %3760 = vdwg.mxu0
  %3761 = vmatprep.subr.mxu0 0.0
  %3762 = vmatpush1.msra.mxu0 0.0
  %3763 = vmatprep.subr.mxu0 0.0
  %3764 = vmatpush1.msra.mxu0 0.0
  %3765 = vmatprep.subr.mxu0 0.0
  %3766 = vmatpush1.msra.mxu0 0.0
  %3767 = vmatprep.subr.mxu0 0.0
  %3768 = vmatpush1.msra.mxu0 0.0
  %3769 = vmatprep.subr.mxu0 0.0
  %3770 = vmatpush1.msra.mxu0 0.0
  %3771 = vmatprep.subr.mxu0 0.0
  %3772 = vmatpush1.msra.mxu0 0.0
  %3773 = vmatprep.subr.mxu0 0.0
  %3774 = vmatpush1.msra.mxu0 0.0
  %3775 = vmatprep.subr.mxu0 0.0
  %3776 = vmatpush1.msra.mxu0 0.0
  %3777 = vmatprep.subr.mxu0 0.0
  %3778 = vmatpush1.msra.mxu0 0.0
  %3779 = vmatprep.subr.mxu0 0.0
  %3780 = vmatpush1.msra.mxu0 0.0
  %3781 = vmatprep.subr.mxu0 0.0
  %3782 = vmatpush1.msra.mxu0 0.0
  %3783 = vmatprep.subr.mxu0 0.0
  %3784 = vmatpush1.msra.mxu0 0.0
  %3785 = vmatprep.subr.mxu0 0.0
  %v3786 = vand.u32 %v3320, 4294901760
  %v3787 = vsub.f32 %v3320, %v3786
  %v3788 = vand.u32 %v3787, 4294901760
  %3789 = vmatpush1.msra.mxu0 %v3788
  %3790 = vmatprep.subr.mxu0 0.0
  %v3791 = vand.u32 %v3319, 4294901760
  %v3792 = vsub.f32 %v3319, %v3791
  %v3793 = vand.u32 %v3792, 4294901760
  %3794 = vmatpush1.msra.mxu0 %v3793
  %3795 = vmatprep.subr.mxu0 0.0
  %v3796 = vand.u32 %v3318, 4294901760
  %v3797 = vsub.f32 %v3318, %v3796
  %v3798 = vand.u32 %v3797, 4294901760
  %3799 = vmatpush1.msra.mxu0 %v3798
  %3800 = vmatprep.subr.mxu0 0.0
  %v3801 = vand.u32 %v3317, 4294901760
  %v3802 = vsub.f32 %v3317, %v3801
  %v3803 = vand.u32 %v3802, 4294901760
  %3804 = vmatpush1.msra.mxu0 %v3803
  %3805 = vmatprep.subr.mxu0 0.0
  %3806 = vmatpush2.msra.mxu0 0.0
  %3807 = vmatprep.subr.mxu0 0.0
  %3808 = vmatpush2.msra.mxu0 0.0
  %3809 = vmatprep.subr.mxu0 0.0
  %3810 = vmatpush2.msra.mxu0 0.0
  %3811 = vmatprep.subr.mxu0 0.0
  %3812 = vmatpush2.msra.mxu0 0.0
  %3813 = vmatprep.subr.mxu0 0.0
  %3814 = vmatpush2.msra.mxu0 0.0
  %3815 = vmatprep.subr.mxu0 0.0
  %3816 = vmatpush2.msra.mxu0 0.0
  %3817 = vmatprep.subr.mxu0 0.0
  %3818 = vmatpush2.msra.mxu0 0.0
  %3819 = vmatprep.subr.mxu0 0.0
  %3820 = vmatpush2.msra.mxu0 0.0
  %3821 = vmatprep.subr.mxu0 0.0
  %3822 = vmatpush2.msra.mxu0 0.0
  %3823 = vmatprep.subr.mxu0 0.0
  %3824 = vmatpush2.msra.mxu0 0.0
  %3825 = vmatprep.subr.mxu0 0.0
  %3826 = vmatpush2.msra.mxu0 0.0
  %3827 = vmatprep.subr.mxu0 0.0
  %3828 = vmatpush2.msra.mxu0 0.0
  %3829 = vmatprep.subr.mxu0 0.0
  %3830 = vmatpush2.msra.mxu0 0.0
  %3831 = vmatprep.subr.mxu0 0.0
  %3832 = vmatpush2.msra.mxu0 0.0
  %3833 = vmatprep.subr.mxu0 0.0
  %3834 = vmatpush2.msra.mxu0 0.0
  %3835 = vmatprep.subr.mxu0 0.0
  %3836 = vmatpush2.msra.mxu0 0.0
  %3837 = vmatprep.mubr.f32.mxu0 0.0
  %v3838 = vand.u32 %v3330, 4294901760
  %3839 = vmatmul.mubr.f32.gmra.mxu0 %v3838
  %v3840 = vpop.f32.mrf.mxu0
  %v3841 = vadd.f32 %v3734, %v3840
  %v3842 = vpop.f32.mrf.mxu0
  %3843 = vmatprep.mubr.f32.mxu0 0.0
  %v3844 = vand.u32 %v3333, 4294901760
  %3845 = vmatmul.mubr.f32.gmra.mxu0 %v3844
  %v3846 = vpop.f32.mrf.mxu0
  %v3847 = vadd.f32 %v3742, %v3846
  %v3848 = vpop.f32.mrf.mxu0
  %3849 = vmatprep.mubr.f32.mxu0 0.0
  %v3850 = vand.u32 %v3336, 4294901760
  %3851 = vmatmul.mubr.f32.gmra.mxu0 %v3850
  %v3852 = vpop.f32.mrf.mxu0
  %v3853 = vadd.f32 %v3750, %v3852
  %v3854 = vpop.f32.mrf.mxu0
  %3855 = vmatprep.mubr.f32.mxu0 0.0
  %v3856 = vand.u32 %v3339, 4294901760
  %3857 = vmatmul.mubr.f32.gmra.mxu0 %v3856
  %v3858 = vpop.f32.mrf.mxu0
  %v3859 = vadd.f32 %v3758, %v3858
  %v3860 = vpop.f32.mrf.mxu0
  %3861 = vdwg.mxu0
  %3862 = vmatprep.subr.mxu0 0.0
  %3863 = vmatpush1.msra.mxu0 0.0
  %3864 = vmatprep.subr.mxu0 0.0
  %3865 = vmatpush1.msra.mxu0 0.0
  %3866 = vmatprep.subr.mxu0 0.0
  %3867 = vmatpush1.msra.mxu0 0.0
  %3868 = vmatprep.subr.mxu0 0.0
  %3869 = vmatpush1.msra.mxu0 0.0
  %3870 = vmatprep.subr.mxu0 0.0
  %3871 = vmatpush1.msra.mxu0 0.0
  %3872 = vmatprep.subr.mxu0 0.0
  %3873 = vmatpush1.msra.mxu0 0.0
  %3874 = vmatprep.subr.mxu0 0.0
  %3875 = vmatpush1.msra.mxu0 0.0
  %3876 = vmatprep.subr.mxu0 0.0
  %3877 = vmatpush1.msra.mxu0 0.0
  %3878 = vmatprep.subr.mxu0 0.0
  %3879 = vmatpush1.msra.mxu0 0.0
  %3880 = vmatprep.subr.mxu0 0.0
  %3881 = vmatpush1.msra.mxu0 0.0
  %3882 = vmatprep.subr.mxu0 0.0
  %3883 = vmatpush1.msra.mxu0 0.0
  %3884 = vmatprep.subr.mxu0 0.0
  %3885 = vmatpush1.msra.mxu0 0.0
  %3886 = vmatprep.subr.mxu0 0.0
  %v3887 = vand.u32 %v3320, 4294901760
  %3888 = vmatpush1.msra.mxu0 %v3887
  %3889 = vmatprep.subr.mxu0 0.0
  %v3890 = vand.u32 %v3319, 4294901760
  %3891 = vmatpush1.msra.mxu0 %v3890
  %3892 = vmatprep.subr.mxu0 0.0
  %v3893 = vand.u32 %v3318, 4294901760
  %3894 = vmatpush1.msra.mxu0 %v3893
  %3895 = vmatprep.subr.mxu0 0.0
  %v3896 = vand.u32 %v3317, 4294901760
  %3897 = vmatpush1.msra.mxu0 %v3896
  %3898 = vmatprep.subr.mxu0 0.0
  %3899 = vmatpush2.msra.mxu0 0.0
  %3900 = vmatprep.subr.mxu0 0.0
  %3901 = vmatpush2.msra.mxu0 0.0
  %3902 = vmatprep.subr.mxu0 0.0
  %3903 = vmatpush2.msra.mxu0 0.0
  %3904 = vmatprep.subr.mxu0 0.0
  %3905 = vmatpush2.msra.mxu0 0.0
  %3906 = vmatprep.subr.mxu0 0.0
  %3907 = vmatpush2.msra.mxu0 0.0
  %3908 = vmatprep.subr.mxu0 0.0
  %3909 = vmatpush2.msra.mxu0 0.0
  %3910 = vmatprep.subr.mxu0 0.0
  %3911 = vmatpush2.msra.mxu0 0.0
  %3912 = vmatprep.subr.mxu0 0.0
  %3913 = vmatpush2.msra.mxu0 0.0
  %3914 = vmatprep.subr.mxu0 0.0
  %3915 = vmatpush2.msra.mxu0 0.0
  %3916 = vmatprep.subr.mxu0 0.0
  %3917 = vmatpush2.msra.mxu0 0.0
  %3918 = vmatprep.subr.mxu0 0.0
  %3919 = vmatpush2.msra.mxu0 0.0
  %3920 = vmatprep.subr.mxu0 0.0
  %3921 = vmatpush2.msra.mxu0 0.0
  %3922 = vmatprep.subr.mxu0 0.0
  %3923 = vmatpush2.msra.mxu0 0.0
  %3924 = vmatprep.subr.mxu0 0.0
  %3925 = vmatpush2.msra.mxu0 0.0
  %3926 = vmatprep.subr.mxu0 0.0
  %3927 = vmatpush2.msra.mxu0 0.0
  %3928 = vmatprep.subr.mxu0 0.0
  %3929 = vmatpush2.msra.mxu0 0.0
  %3930 = vmatprep.mubr.f32.mxu0 0.0
  %v3931 = vand.u32 %v3330, 4294901760
  %3932 = vmatmul.mubr.f32.gmra.mxu0 %v3931
  %v3933 = vpop.f32.mrf.mxu0
  %v3934 = vadd.f32 %v3841, %v3933
  %v3935 = vpop.f32.mrf.mxu0
  %3936 = vmatprep.mubr.f32.mxu0 0.0
  %v3937 = vand.u32 %v3333, 4294901760
  %3938 = vmatmul.mubr.f32.gmra.mxu0 %v3937
  %v3939 = vpop.f32.mrf.mxu0
  %v3940 = vadd.f32 %v3847, %v3939
  %v3941 = vpop.f32.mrf.mxu0
  %3942 = vmatprep.mubr.f32.mxu0 0.0
  %v3943 = vand.u32 %v3336, 4294901760
  %3944 = vmatmul.mubr.f32.gmra.mxu0 %v3943
  %v3945 = vpop.f32.mrf.mxu0
  %v3946 = vadd.f32 %v3853, %v3945
  %v3947 = vpop.f32.mrf.mxu0
  %3948 = vmatprep.mubr.f32.mxu0 0.0
  %v3949 = vand.u32 %v3339, 4294901760
  %3950 = vmatmul.mubr.f32.gmra.mxu0 %v3949
  %v3951 = vpop.f32.mrf.mxu0
  %v3952 = vadd.f32 %v3859, %v3951
  %v3953 = vpop.f32.mrf.mxu0
  %3954 = vdwg.mxu0
  %3955 = vst.msk [vmem:[#allocation2 + $0x60] sm:$0xff] %vm1399, %v3934
  %3956 = vst.msk [vmem:[#allocation2 + $0x68] sm:$0xff] %vm1399, %v3940
  %3957 = vst.msk [vmem:[#allocation2 + $0x70] sm:$0xff] %vm1399, %v3946
  %3958 = vst.msk [vmem:[#allocation2 + $0x78] sm:$0xff] %vm1399, %v3952
  %v3959 = vld [vmem:[%s3] sm:$0xff]
  %v3960 = vld [vmem:[%s3 + $0x8] sm:$0xff]
  %v3961 = vld [vmem:[%s3 + $0x10] sm:$0xff]
  %v3962 = vld [vmem:[%s3 + $0x18] sm:$0xff]
  %v3963 = vld [vmem:[%s3 + $0x20] sm:$0xff]
  %v3964 = vld [vmem:[%s3 + $0x28] sm:$0xff]
  %v3965 = vld [vmem:[%s3 + $0x30] sm:$0xff]
  %v3966 = vld [vmem:[%s3 + $0x38] sm:$0xff]
  %v3967 = vld [vmem:[%s4] sm:$0xff]
  %v3968 = vld [vmem:[%s4 + $0x8] sm:$0xff]
  %v3969 = vld [vmem:[%s4 + $0x10] sm:$0xff]
  %v3970 = vld [vmem:[%s4 + $0x18] sm:$0xff]
  %v3971 = vld [vmem:[%s5] sm:$0x1]
  %v3973 = vlaneseq
  %v3974 = vshrl.u32 %v3973, 7
  %v3975 = vsub.s32 0, %v3974
  %v3976 = vrot.slane %v3971, %v3975
  %v3979 = vsel %vm1399, %v3959, 0
  %v3982 = vsel %vm1399, %v3960, 0
  %v3985 = vsel %vm1399, %v3961, 0
  %v3988 = vsel %vm1399, %v3962, 0
  %v3991 = vsel %vm1399, %v3963, 0
  %v3994 = vsel %vm1399, %v3964, 0
  %v3997 = vsel %vm1399, %v3965, 0
  %v4000 = vsel %vm1399, %v3966, 0
  %4002 = vmatprep.subr.mxu0 0.0
  %4003 = vmatpush1.msra.mxu0 0.0
  %4004 = vmatprep.subr.mxu0 0.0
  %4005 = vmatpush1.msra.mxu0 0.0
  %4006 = vmatprep.subr.mxu0 0.0
  %4007 = vmatpush1.msra.mxu0 0.0
  %4008 = vmatprep.subr.mxu0 0.0
  %4009 = vmatpush1.msra.mxu0 0.0
  %4010 = vmatprep.subr.mxu0 0.0
  %4011 = vmatpush1.msra.mxu0 0.0
  %4012 = vmatprep.subr.mxu0 0.0
  %4013 = vmatpush1.msra.mxu0 0.0
  %4014 = vmatprep.subr.mxu0 0.0
  %4015 = vmatpush1.msra.mxu0 0.0
  %4016 = vmatprep.subr.mxu0 0.0
  %4017 = vmatpush1.msra.mxu0 0.0
  %4018 = vmatprep.subr.mxu0 0.0
  %4019 = vmatpush1.msra.mxu0 0.0
  %4020 = vmatprep.subr.mxu0 0.0
  %4021 = vmatpush1.msra.mxu0 0.0
  %4022 = vmatprep.subr.mxu0 0.0
  %4023 = vmatpush1.msra.mxu0 0.0
  %4024 = vmatprep.subr.mxu0 0.0
  %4025 = vmatpush1.msra.mxu0 0.0
  %4026 = vmatprep.subr.mxu0 0.0
  %v4027 = vand.u32 %v3970, 4294901760
  %4028 = vmatpush1.msra.mxu0 %v4027
  %4029 = vmatprep.subr.mxu0 0.0
  %v4030 = vand.u32 %v3969, 4294901760
  %4031 = vmatpush1.msra.mxu0 %v4030
  %4032 = vmatprep.subr.mxu0 0.0
  %v4033 = vand.u32 %v3968, 4294901760
  %4034 = vmatpush1.msra.mxu0 %v4033
  %4035 = vmatprep.subr.mxu0 0.0
  %v4036 = vand.u32 %v3967, 4294901760
  %4037 = vmatpush1.msra.mxu0 %v4036
  %4038 = vmatprep.subr.mxu0 0.0
  %4039 = vmatpush2.msra.mxu0 0.0
  %4040 = vmatprep.subr.mxu0 0.0
  %4041 = vmatpush2.msra.mxu0 0.0
  %4042 = vmatprep.subr.mxu0 0.0
  %4043 = vmatpush2.msra.mxu0 0.0
  %4044 = vmatprep.subr.mxu0 0.0
  %4045 = vmatpush2.msra.mxu0 0.0
  %4046 = vmatprep.subr.mxu0 0.0
  %4047 = vmatpush2.msra.mxu0 0.0
  %4048 = vmatprep.subr.mxu0 0.0
  %4049 = vmatpush2.msra.mxu0 0.0
  %4050 = vmatprep.subr.mxu0 0.0
  %4051 = vmatpush2.msra.mxu0 0.0
  %4052 = vmatprep.subr.mxu0 0.0
  %4053 = vmatpush2.msra.mxu0 0.0
  %4054 = vmatprep.subr.mxu0 0.0
  %4055 = vmatpush2.msra.mxu0 0.0
  %4056 = vmatprep.subr.mxu0 0.0
  %4057 = vmatpush2.msra.mxu0 0.0
  %4058 = vmatprep.subr.mxu0 0.0
  %4059 = vmatpush2.msra.mxu0 0.0
  %4060 = vmatprep.subr.mxu0 0.0
  %4061 = vmatpush2.msra.mxu0 0.0
  %4062 = vmatprep.subr.mxu0 0.0
  %4063 = vmatpush2.msra.mxu0 0.0
  %4064 = vmatprep.subr.mxu0 0.0
  %4065 = vmatpush2.msra.mxu0 0.0
  %4066 = vmatprep.subr.mxu0 0.0
  %4067 = vmatpush2.msra.mxu0 0.0
  %4068 = vmatprep.subr.mxu0 0.0
  %4069 = vmatpush2.msra.mxu0 0.0
  %4070 = vmatprep.mubr.f32.mxu0 0.0
  %v4071 = vand.u32 %v3979, 4294901760
  %v4072 = vsub.f32 %v3979, %v4071
  %v4073 = vand.u32 %v4072, 4294901760
  %v4074 = vsub.f32 %v4072, %v4073
  %v4075 = vand.u32 %v4074, 4294901760
  %4076 = vmatmul.mubr.f32.gmra.mxu0 %v4075
  %v4077 = vpop.f32.mrf.mxu0
  %v4078 = vadd.f32 %v3976, %v4077
  %v4079 = vpop.f32.mrf.mxu0
  %4080 = vmatprep.mubr.f32.mxu0 0.0
  %v4081 = vand.u32 %v3982, 4294901760
  %v4082 = vsub.f32 %v3982, %v4081
  %v4083 = vand.u32 %v4082, 4294901760
  %v4084 = vsub.f32 %v4082, %v4083
  %v4085 = vand.u32 %v4084, 4294901760
  %4086 = vmatmul.mubr.f32.gmra.mxu0 %v4085
  %v4087 = vpop.f32.mrf.mxu0
  %v4088 = vadd.f32 %v3976, %v4087
  %v4089 = vpop.f32.mrf.mxu0
  %4090 = vmatprep.mubr.f32.mxu0 0.0
  %v4091 = vand.u32 %v3985, 4294901760
  %v4092 = vsub.f32 %v3985, %v4091
  %v4093 = vand.u32 %v4092, 4294901760
  %v4094 = vsub.f32 %v4092, %v4093
  %v4095 = vand.u32 %v4094, 4294901760
  %4096 = vmatmul.mubr.f32.gmra.mxu0 %v4095
  %v4097 = vpop.f32.mrf.mxu0
  %v4098 = vadd.f32 %v3976, %v4097
  %v4099 = vpop.f32.mrf.mxu0
  %4100 = vmatprep.mubr.f32.mxu0 0.0
  %v4101 = vand.u32 %v3988, 4294901760
  %v4102 = vsub.f32 %v3988, %v4101
  %v4103 = vand.u32 %v4102, 4294901760
  %v4104 = vsub.f32 %v4102, %v4103
  %v4105 = vand.u32 %v4104, 4294901760
  %4106 = vmatmul.mubr.f32.gmra.mxu0 %v4105
  %v4107 = vpop.f32.mrf.mxu0
  %v4108 = vadd.f32 %v3976, %v4107
  %v4109 = vpop.f32.mrf.mxu0
  %4110 = vmatprep.mubr.f32.mxu0 0.0
  %v4111 = vand.u32 %v3991, 4294901760
  %v4112 = vsub.f32 %v3991, %v4111
  %v4113 = vand.u32 %v4112, 4294901760
  %v4114 = vsub.f32 %v4112, %v4113
  %v4115 = vand.u32 %v4114, 4294901760
  %4116 = vmatmul.mubr.f32.gmra.mxu0 %v4115
  %v4117 = vpop.f32.mrf.mxu0
  %v4118 = vadd.f32 %v3976, %v4117
  %v4119 = vpop.f32.mrf.mxu0
  %4120 = vmatprep.mubr.f32.mxu0 0.0
  %v4121 = vand.u32 %v3994, 4294901760
  %v4122 = vsub.f32 %v3994, %v4121
  %v4123 = vand.u32 %v4122, 4294901760
  %v4124 = vsub.f32 %v4122, %v4123
  %v4125 = vand.u32 %v4124, 4294901760
  %4126 = vmatmul.mubr.f32.gmra.mxu0 %v4125
  %v4127 = vpop.f32.mrf.mxu0
  %v4128 = vadd.f32 %v3976, %v4127
  %v4129 = vpop.f32.mrf.mxu0
  %4130 = vmatprep.mubr.f32.mxu0 0.0
  %v4131 = vand.u32 %v3997, 4294901760
  %v4132 = vsub.f32 %v3997, %v4131
  %v4133 = vand.u32 %v4132, 4294901760
  %v4134 = vsub.f32 %v4132, %v4133
  %v4135 = vand.u32 %v4134, 4294901760
  %4136 = vmatmul.mubr.f32.gmra.mxu0 %v4135
  %v4137 = vpop.f32.mrf.mxu0
  %v4138 = vadd.f32 %v3976, %v4137
  %v4139 = vpop.f32.mrf.mxu0
  %4140 = vmatprep.mubr.f32.mxu0 0.0
  %v4141 = vand.u32 %v4000, 4294901760
  %v4142 = vsub.f32 %v4000, %v4141
  %v4143 = vand.u32 %v4142, 4294901760
  %v4144 = vsub.f32 %v4142, %v4143
  %v4145 = vand.u32 %v4144, 4294901760
  %4146 = vmatmul.mubr.f32.gmra.mxu0 %v4145
  %v4147 = vpop.f32.mrf.mxu0
  %v4148 = vadd.f32 %v3976, %v4147
  %v4149 = vpop.f32.mrf.mxu0
  %4150 = vdwg.mxu0
  %4151 = vmatprep.subr.mxu0 0.0
  %4152 = vmatpush1.msra.mxu0 0.0
  %4153 = vmatprep.subr.mxu0 0.0
  %4154 = vmatpush1.msra.mxu0 0.0
  %4155 = vmatprep.subr.mxu0 0.0
  %4156 = vmatpush1.msra.mxu0 0.0
  %4157 = vmatprep.subr.mxu0 0.0
  %4158 = vmatpush1.msra.mxu0 0.0
  %4159 = vmatprep.subr.mxu0 0.0
  %4160 = vmatpush1.msra.mxu0 0.0
  %4161 = vmatprep.subr.mxu0 0.0
  %4162 = vmatpush1.msra.mxu0 0.0
  %4163 = vmatprep.subr.mxu0 0.0
  %4164 = vmatpush1.msra.mxu0 0.0
  %4165 = vmatprep.subr.mxu0 0.0
  %4166 = vmatpush1.msra.mxu0 0.0
  %4167 = vmatprep.subr.mxu0 0.0
  %4168 = vmatpush1.msra.mxu0 0.0
  %4169 = vmatprep.subr.mxu0 0.0
  %4170 = vmatpush1.msra.mxu0 0.0
  %4171 = vmatprep.subr.mxu0 0.0
  %4172 = vmatpush1.msra.mxu0 0.0
  %4173 = vmatprep.subr.mxu0 0.0
  %4174 = vmatpush1.msra.mxu0 0.0
  %4175 = vmatprep.subr.mxu0 0.0
  %v4176 = vand.u32 %v3970, 4294901760
  %v4177 = vsub.f32 %v3970, %v4176
  %v4178 = vand.u32 %v4177, 4294901760
  %v4179 = vsub.f32 %v4177, %v4178
  %v4180 = vand.u32 %v4179, 4294901760
  %4181 = vmatpush1.msra.mxu0 %v4180
  %4182 = vmatprep.subr.mxu0 0.0
  %v4183 = vand.u32 %v3969, 4294901760
  %v4184 = vsub.f32 %v3969, %v4183
  %v4185 = vand.u32 %v4184, 4294901760
  %v4186 = vsub.f32 %v4184, %v4185
  %v4187 = vand.u32 %v4186, 4294901760
  %4188 = vmatpush1.msra.mxu0 %v4187
  %4189 = vmatprep.subr.mxu0 0.0
  %v4190 = vand.u32 %v3968, 4294901760
  %v4191 = vsub.f32 %v3968, %v4190
  %v4192 = vand.u32 %v4191, 4294901760
  %v4193 = vsub.f32 %v4191, %v4192
  %v4194 = vand.u32 %v4193, 4294901760
  %4195 = vmatpush1.msra.mxu0 %v4194
  %4196 = vmatprep.subr.mxu0 0.0
  %v4197 = vand.u32 %v3967, 4294901760
  %v4198 = vsub.f32 %v3967, %v4197
  %v4199 = vand.u32 %v4198, 4294901760
  %v4200 = vsub.f32 %v4198, %v4199
  %v4201 = vand.u32 %v4200, 4294901760
  %4202 = vmatpush1.msra.mxu0 %v4201
  %4203 = vmatprep.subr.mxu0 0.0
  %4204 = vmatpush2.msra.mxu0 0.0
  %4205 = vmatprep.subr.mxu0 0.0
  %4206 = vmatpush2.msra.mxu0 0.0
  %4207 = vmatprep.subr.mxu0 0.0
  %4208 = vmatpush2.msra.mxu0 0.0
  %4209 = vmatprep.subr.mxu0 0.0
  %4210 = vmatpush2.msra.mxu0 0.0
  %4211 = vmatprep.subr.mxu0 0.0
  %4212 = vmatpush2.msra.mxu0 0.0
  %4213 = vmatprep.subr.mxu0 0.0
  %4214 = vmatpush2.msra.mxu0 0.0
  %4215 = vmatprep.subr.mxu0 0.0
  %4216 = vmatpush2.msra.mxu0 0.0
  %4217 = vmatprep.subr.mxu0 0.0
  %4218 = vmatpush2.msra.mxu0 0.0
  %4219 = vmatprep.subr.mxu0 0.0
  %4220 = vmatpush2.msra.mxu0 0.0
  %4221 = vmatprep.subr.mxu0 0.0
  %4222 = vmatpush2.msra.mxu0 0.0
  %4223 = vmatprep.subr.mxu0 0.0
  %4224 = vmatpush2.msra.mxu0 0.0
  %4225 = vmatprep.subr.mxu0 0.0
  %4226 = vmatpush2.msra.mxu0 0.0
  %4227 = vmatprep.subr.mxu0 0.0
  %4228 = vmatpush2.msra.mxu0 0.0
  %4229 = vmatprep.subr.mxu0 0.0
  %4230 = vmatpush2.msra.mxu0 0.0
  %4231 = vmatprep.subr.mxu0 0.0
  %4232 = vmatpush2.msra.mxu0 0.0
  %4233 = vmatprep.subr.mxu0 0.0
  %4234 = vmatpush2.msra.mxu0 0.0
  %4235 = vmatprep.mubr.f32.mxu0 0.0
  %v4236 = vand.u32 %v3979, 4294901760
  %4237 = vmatmul.mubr.f32.gmra.mxu0 %v4236
  %v4238 = vpop.f32.mrf.mxu0
  %v4239 = vadd.f32 %v4078, %v4238
  %v4240 = vpop.f32.mrf.mxu0
  %4241 = vmatprep.mubr.f32.mxu0 0.0
  %v4242 = vand.u32 %v3982, 4294901760
  %4243 = vmatmul.mubr.f32.gmra.mxu0 %v4242
  %v4244 = vpop.f32.mrf.mxu0
  %v4245 = vadd.f32 %v4088, %v4244
  %v4246 = vpop.f32.mrf.mxu0
  %4247 = vmatprep.mubr.f32.mxu0 0.0
  %v4248 = vand.u32 %v3985, 4294901760
  %4249 = vmatmul.mubr.f32.gmra.mxu0 %v4248
  %v4250 = vpop.f32.mrf.mxu0
  %v4251 = vadd.f32 %v4098, %v4250
  %v4252 = vpop.f32.mrf.mxu0
  %4253 = vmatprep.mubr.f32.mxu0 0.0
  %v4254 = vand.u32 %v3988, 4294901760
  %4255 = vmatmul.mubr.f32.gmra.mxu0 %v4254
  %v4256 = vpop.f32.mrf.mxu0
  %v4257 = vadd.f32 %v4108, %v4256
  %v4258 = vpop.f32.mrf.mxu0
  %4259 = vmatprep.mubr.f32.mxu0 0.0
  %v4260 = vand.u32 %v3991, 4294901760
  %4261 = vmatmul.mubr.f32.gmra.mxu0 %v4260
  %v4262 = vpop.f32.mrf.mxu0
  %v4263 = vadd.f32 %v4118, %v4262
  %v4264 = vpop.f32.mrf.mxu0
  %4265 = vmatprep.mubr.f32.mxu0 0.0
  %v4266 = vand.u32 %v3994, 4294901760
  %4267 = vmatmul.mubr.f32.gmra.mxu0 %v4266
  %v4268 = vpop.f32.mrf.mxu0
  %v4269 = vadd.f32 %v4128, %v4268
  %v4270 = vpop.f32.mrf.mxu0
  %4271 = vmatprep.mubr.f32.mxu0 0.0
  %v4272 = vand.u32 %v3997, 4294901760
  %4273 = vmatmul.mubr.f32.gmra.mxu0 %v4272
  %v4274 = vpop.f32.mrf.mxu0
  %v4275 = vadd.f32 %v4138, %v4274
  %v4276 = vpop.f32.mrf.mxu0
  %4277 = vmatprep.mubr.f32.mxu0 0.0
  %v4278 = vand.u32 %v4000, 4294901760
  %4279 = vmatmul.mubr.f32.gmra.mxu0 %v4278
  %v4280 = vpop.f32.mrf.mxu0
  %v4281 = vadd.f32 %v4148, %v4280
  %v4282 = vpop.f32.mrf.mxu0
  %4283 = vdwg.mxu0
  %4284 = vmatprep.subr.mxu0 0.0
  %4285 = vmatpush1.msra.mxu0 0.0
  %4286 = vmatprep.subr.mxu0 0.0
  %4287 = vmatpush1.msra.mxu0 0.0
  %4288 = vmatprep.subr.mxu0 0.0
  %4289 = vmatpush1.msra.mxu0 0.0
  %4290 = vmatprep.subr.mxu0 0.0
  %4291 = vmatpush1.msra.mxu0 0.0
  %4292 = vmatprep.subr.mxu0 0.0
  %4293 = vmatpush1.msra.mxu0 0.0
  %4294 = vmatprep.subr.mxu0 0.0
  %4295 = vmatpush1.msra.mxu0 0.0
  %4296 = vmatprep.subr.mxu0 0.0
  %4297 = vmatpush1.msra.mxu0 0.0
  %4298 = vmatprep.subr.mxu0 0.0
  %4299 = vmatpush1.msra.mxu0 0.0
  %4300 = vmatprep.subr.mxu0 0.0
  %4301 = vmatpush1.msra.mxu0 0.0
  %4302 = vmatprep.subr.mxu0 0.0
  %4303 = vmatpush1.msra.mxu0 0.0
  %4304 = vmatprep.subr.mxu0 0.0
  %4305 = vmatpush1.msra.mxu0 0.0
  %4306 = vmatprep.subr.mxu0 0.0
  %4307 = vmatpush1.msra.mxu0 0.0
  %4308 = vmatprep.subr.mxu0 0.0
  %v4309 = vand.u32 %v3970, 4294901760
  %v4310 = vsub.f32 %v3970, %v4309
  %4311 = vmatpush1.msra.mxu0 %v4310
  %4312 = vmatprep.subr.mxu0 0.0
  %v4313 = vand.u32 %v3969, 4294901760
  %v4314 = vsub.f32 %v3969, %v4313
  %4315 = vmatpush1.msra.mxu0 %v4314
  %4316 = vmatprep.subr.mxu0 0.0
  %v4317 = vand.u32 %v3968, 4294901760
  %v4318 = vsub.f32 %v3968, %v4317
  %4319 = vmatpush1.msra.mxu0 %v4318
  %4320 = vmatprep.subr.mxu0 0.0
  %v4321 = vand.u32 %v3967, 4294901760
  %v4322 = vsub.f32 %v3967, %v4321
  %4323 = vmatpush1.msra.mxu0 %v4322
  %4324 = vmatprep.subr.mxu0 0.0
  %4325 = vmatpush2.msra.mxu0 0.0
  %4326 = vmatprep.subr.mxu0 0.0
  %4327 = vmatpush2.msra.mxu0 0.0
  %4328 = vmatprep.subr.mxu0 0.0
  %4329 = vmatpush2.msra.mxu0 0.0
  %4330 = vmatprep.subr.mxu0 0.0
  %4331 = vmatpush2.msra.mxu0 0.0
  %4332 = vmatprep.subr.mxu0 0.0
  %4333 = vmatpush2.msra.mxu0 0.0
  %4334 = vmatprep.subr.mxu0 0.0
  %4335 = vmatpush2.msra.mxu0 0.0
  %4336 = vmatprep.subr.mxu0 0.0
  %4337 = vmatpush2.msra.mxu0 0.0
  %4338 = vmatprep.subr.mxu0 0.0
  %4339 = vmatpush2.msra.mxu0 0.0
  %4340 = vmatprep.subr.mxu0 0.0
  %4341 = vmatpush2.msra.mxu0 0.0
  %4342 = vmatprep.subr.mxu0 0.0
  %4343 = vmatpush2.msra.mxu0 0.0
  %4344 = vmatprep.subr.mxu0 0.0
  %4345 = vmatpush2.msra.mxu0 0.0
  %4346 = vmatprep.subr.mxu0 0.0
  %4347 = vmatpush2.msra.mxu0 0.0
  %4348 = vmatprep.subr.mxu0 0.0
  %4349 = vmatpush2.msra.mxu0 0.0
  %4350 = vmatprep.subr.mxu0 0.0
  %4351 = vmatpush2.msra.mxu0 0.0
  %4352 = vmatprep.subr.mxu0 0.0
  %4353 = vmatpush2.msra.mxu0 0.0
  %4354 = vmatprep.subr.mxu0 0.0
  %4355 = vmatpush2.msra.mxu0 0.0
  %4356 = vmatprep.mubr.f32.mxu0 0.0
  %v4357 = vand.u32 %v3979, 4294901760
  %v4358 = vsub.f32 %v3979, %v4357
  %4359 = vmatmul.mubr.f32.gmra.mxu0 %v4358
  %v4360 = vpop.f32.mrf.mxu0
  %v4361 = vadd.f32 %v4239, %v4360
  %v4362 = vpop.f32.mrf.mxu0
  %4363 = vmatprep.mubr.f32.mxu0 0.0
  %v4364 = vand.u32 %v3982, 4294901760
  %v4365 = vsub.f32 %v3982, %v4364
  %4366 = vmatmul.mubr.f32.gmra.mxu0 %v4365
  %v4367 = vpop.f32.mrf.mxu0
  %v4368 = vadd.f32 %v4245, %v4367
  %v4369 = vpop.f32.mrf.mxu0
  %4370 = vmatprep.mubr.f32.mxu0 0.0
  %v4371 = vand.u32 %v3985, 4294901760
  %v4372 = vsub.f32 %v3985, %v4371
  %4373 = vmatmul.mubr.f32.gmra.mxu0 %v4372
  %v4374 = vpop.f32.mrf.mxu0
  %v4375 = vadd.f32 %v4251, %v4374
  %v4376 = vpop.f32.mrf.mxu0
  %4377 = vmatprep.mubr.f32.mxu0 0.0
  %v4378 = vand.u32 %v3988, 4294901760
  %v4379 = vsub.f32 %v3988, %v4378
  %4380 = vmatmul.mubr.f32.gmra.mxu0 %v4379
  %v4381 = vpop.f32.mrf.mxu0
  %v4382 = vadd.f32 %v4257, %v4381
  %v4383 = vpop.f32.mrf.mxu0
  %4384 = vmatprep.mubr.f32.mxu0 0.0
  %v4385 = vand.u32 %v3991, 4294901760
  %v4386 = vsub.f32 %v3991, %v4385
  %4387 = vmatmul.mubr.f32.gmra.mxu0 %v4386
  %v4388 = vpop.f32.mrf.mxu0
  %v4389 = vadd.f32 %v4263, %v4388
  %v4390 = vpop.f32.mrf.mxu0
  %4391 = vmatprep.mubr.f32.mxu0 0.0
  %v4392 = vand.u32 %v3994, 4294901760
  %v4393 = vsub.f32 %v3994, %v4392
  %4394 = vmatmul.mubr.f32.gmra.mxu0 %v4393
  %v4395 = vpop.f32.mrf.mxu0
  %v4396 = vadd.f32 %v4269, %v4395
  %v4397 = vpop.f32.mrf.mxu0
  %4398 = vmatprep.mubr.f32.mxu0 0.0
  %v4399 = vand.u32 %v3997, 4294901760
  %v4400 = vsub.f32 %v3997, %v4399
  %4401 = vmatmul.mubr.f32.gmra.mxu0 %v4400
  %v4402 = vpop.f32.mrf.mxu0
  %v4403 = vadd.f32 %v4275, %v4402
  %v4404 = vpop.f32.mrf.mxu0
  %4405 = vmatprep.mubr.f32.mxu0 0.0
  %v4406 = vand.u32 %v4000, 4294901760
  %v4407 = vsub.f32 %v4000, %v4406
  %4408 = vmatmul.mubr.f32.gmra.mxu0 %v4407
  %v4409 = vpop.f32.mrf.mxu0
  %v4410 = vadd.f32 %v4281, %v4409
  %v4411 = vpop.f32.mrf.mxu0
  %4412 = vdwg.mxu0
  %4413 = vmatprep.subr.mxu0 0.0
  %4414 = vmatpush1.msra.mxu0 0.0
  %4415 = vmatprep.subr.mxu0 0.0
  %4416 = vmatpush1.msra.mxu0 0.0
  %4417 = vmatprep.subr.mxu0 0.0
  %4418 = vmatpush1.msra.mxu0 0.0
  %4419 = vmatprep.subr.mxu0 0.0
  %4420 = vmatpush1.msra.mxu0 0.0
  %4421 = vmatprep.subr.mxu0 0.0
  %4422 = vmatpush1.msra.mxu0 0.0
  %4423 = vmatprep.subr.mxu0 0.0
  %4424 = vmatpush1.msra.mxu0 0.0
  %4425 = vmatprep.subr.mxu0 0.0
  %4426 = vmatpush1.msra.mxu0 0.0
  %4427 = vmatprep.subr.mxu0 0.0
  %4428 = vmatpush1.msra.mxu0 0.0
  %4429 = vmatprep.subr.mxu0 0.0
  %4430 = vmatpush1.msra.mxu0 0.0
  %4431 = vmatprep.subr.mxu0 0.0
  %4432 = vmatpush1.msra.mxu0 0.0
  %4433 = vmatprep.subr.mxu0 0.0
  %4434 = vmatpush1.msra.mxu0 0.0
  %4435 = vmatprep.subr.mxu0 0.0
  %4436 = vmatpush1.msra.mxu0 0.0
  %4437 = vmatprep.subr.mxu0 0.0
  %v4438 = vand.u32 %v3970, 4294901760
  %4439 = vmatpush1.msra.mxu0 %v4438
  %4440 = vmatprep.subr.mxu0 0.0
  %v4441 = vand.u32 %v3969, 4294901760
  %4442 = vmatpush1.msra.mxu0 %v4441
  %4443 = vmatprep.subr.mxu0 0.0
  %v4444 = vand.u32 %v3968, 4294901760
  %4445 = vmatpush1.msra.mxu0 %v4444
  %4446 = vmatprep.subr.mxu0 0.0
  %v4447 = vand.u32 %v3967, 4294901760
  %4448 = vmatpush1.msra.mxu0 %v4447
  %4449 = vmatprep.subr.mxu0 0.0
  %4450 = vmatpush2.msra.mxu0 0.0
  %4451 = vmatprep.subr.mxu0 0.0
  %4452 = vmatpush2.msra.mxu0 0.0
  %4453 = vmatprep.subr.mxu0 0.0
  %4454 = vmatpush2.msra.mxu0 0.0
  %4455 = vmatprep.subr.mxu0 0.0
  %4456 = vmatpush2.msra.mxu0 0.0
  %4457 = vmatprep.subr.mxu0 0.0
  %4458 = vmatpush2.msra.mxu0 0.0
  %4459 = vmatprep.subr.mxu0 0.0
  %4460 = vmatpush2.msra.mxu0 0.0
  %4461 = vmatprep.subr.mxu0 0.0
  %4462 = vmatpush2.msra.mxu0 0.0
  %4463 = vmatprep.subr.mxu0 0.0
  %4464 = vmatpush2.msra.mxu0 0.0
  %4465 = vmatprep.subr.mxu0 0.0
  %4466 = vmatpush2.msra.mxu0 0.0
  %4467 = vmatprep.subr.mxu0 0.0
  %4468 = vmatpush2.msra.mxu0 0.0
  %4469 = vmatprep.subr.mxu0 0.0
  %4470 = vmatpush2.msra.mxu0 0.0
  %4471 = vmatprep.subr.mxu0 0.0
  %4472 = vmatpush2.msra.mxu0 0.0
  %4473 = vmatprep.subr.mxu0 0.0
  %4474 = vmatpush2.msra.mxu0 0.0
  %4475 = vmatprep.subr.mxu0 0.0
  %4476 = vmatpush2.msra.mxu0 0.0
  %4477 = vmatprep.subr.mxu0 0.0
  %4478 = vmatpush2.msra.mxu0 0.0
  %4479 = vmatprep.subr.mxu0 0.0
  %4480 = vmatpush2.msra.mxu0 0.0
  %4481 = vmatprep.mubr.f32.mxu0 0.0
  %v4482 = vand.u32 %v3979, 4294901760
  %v4483 = vsub.f32 %v3979, %v4482
  %v4484 = vand.u32 %v4483, 4294901760
  %4485 = vmatmul.mubr.f32.gmra.mxu0 %v4484
  %v4486 = vpop.f32.mrf.mxu0
  %v4487 = vadd.f32 %v4361, %v4486
  %v4488 = vpop.f32.mrf.mxu0
  %4489 = vmatprep.mubr.f32.mxu0 0.0
  %v4490 = vand.u32 %v3982, 4294901760
  %v4491 = vsub.f32 %v3982, %v4490
  %v4492 = vand.u32 %v4491, 4294901760
  %4493 = vmatmul.mubr.f32.gmra.mxu0 %v4492
  %v4494 = vpop.f32.mrf.mxu0
  %v4495 = vadd.f32 %v4368, %v4494
  %v4496 = vpop.f32.mrf.mxu0
  %4497 = vmatprep.mubr.f32.mxu0 0.0
  %v4498 = vand.u32 %v3985, 4294901760
  %v4499 = vsub.f32 %v3985, %v4498
  %v4500 = vand.u32 %v4499, 4294901760
  %4501 = vmatmul.mubr.f32.gmra.mxu0 %v4500
  %v4502 = vpop.f32.mrf.mxu0
  %v4503 = vadd.f32 %v4375, %v4502
  %v4504 = vpop.f32.mrf.mxu0
  %4505 = vmatprep.mubr.f32.mxu0 0.0
  %v4506 = vand.u32 %v3988, 4294901760
  %v4507 = vsub.f32 %v3988, %v4506
  %v4508 = vand.u32 %v4507, 4294901760
  %4509 = vmatmul.mubr.f32.gmra.mxu0 %v4508
  %v4510 = vpop.f32.mrf.mxu0
  %v4511 = vadd.f32 %v4382, %v4510
  %v4512 = vpop.f32.mrf.mxu0
  %4513 = vmatprep.mubr.f32.mxu0 0.0
  %v4514 = vand.u32 %v3991, 4294901760
  %v4515 = vsub.f32 %v3991, %v4514
  %v4516 = vand.u32 %v4515, 4294901760
  %4517 = vmatmul.mubr.f32.gmra.mxu0 %v4516
  %v4518 = vpop.f32.mrf.mxu0
  %v4519 = vadd.f32 %v4389, %v4518
  %v4520 = vpop.f32.mrf.mxu0
  %4521 = vmatprep.mubr.f32.mxu0 0.0
  %v4522 = vand.u32 %v3994, 4294901760
  %v4523 = vsub.f32 %v3994, %v4522
  %v4524 = vand.u32 %v4523, 4294901760
  %4525 = vmatmul.mubr.f32.gmra.mxu0 %v4524
  %v4526 = vpop.f32.mrf.mxu0
  %v4527 = vadd.f32 %v4396, %v4526
  %v4528 = vpop.f32.mrf.mxu0
  %4529 = vmatprep.mubr.f32.mxu0 0.0
  %v4530 = vand.u32 %v3997, 4294901760
  %v4531 = vsub.f32 %v3997, %v4530
  %v4532 = vand.u32 %v4531, 4294901760
  %4533 = vmatmul.mubr.f32.gmra.mxu0 %v4532
  %v4534 = vpop.f32.mrf.mxu0
  %v4535 = vadd.f32 %v4403, %v4534
  %v4536 = vpop.f32.mrf.mxu0
  %4537 = vmatprep.mubr.f32.mxu0 0.0
  %v4538 = vand.u32 %v4000, 4294901760
  %v4539 = vsub.f32 %v4000, %v4538
  %v4540 = vand.u32 %v4539, 4294901760
  %4541 = vmatmul.mubr.f32.gmra.mxu0 %v4540
  %v4542 = vpop.f32.mrf.mxu0
  %v4543 = vadd.f32 %v4410, %v4542
  %v4544 = vpop.f32.mrf.mxu0
  %4545 = vdwg.mxu0
  %4546 = vmatprep.subr.mxu0 0.0
  %4547 = vmatpush1.msra.mxu0 0.0
  %4548 = vmatprep.subr.mxu0 0.0
  %4549 = vmatpush1.msra.mxu0 0.0
  %4550 = vmatprep.subr.mxu0 0.0
  %4551 = vmatpush1.msra.mxu0 0.0
  %4552 = vmatprep.subr.mxu0 0.0
  %4553 = vmatpush1.msra.mxu0 0.0
  %4554 = vmatprep.subr.mxu0 0.0
  %4555 = vmatpush1.msra.mxu0 0.0
  %4556 = vmatprep.subr.mxu0 0.0
  %4557 = vmatpush1.msra.mxu0 0.0
  %4558 = vmatprep.subr.mxu0 0.0
  %4559 = vmatpush1.msra.mxu0 0.0
  %4560 = vmatprep.subr.mxu0 0.0
  %4561 = vmatpush1.msra.mxu0 0.0
  %4562 = vmatprep.subr.mxu0 0.0
  %4563 = vmatpush1.msra.mxu0 0.0
  %4564 = vmatprep.subr.mxu0 0.0
  %4565 = vmatpush1.msra.mxu0 0.0
  %4566 = vmatprep.subr.mxu0 0.0
  %4567 = vmatpush1.msra.mxu0 0.0
  %4568 = vmatprep.subr.mxu0 0.0
  %4569 = vmatpush1.msra.mxu0 0.0
  %4570 = vmatprep.subr.mxu0 0.0
  %v4571 = vand.u32 %v3970, 4294901760
  %v4572 = vsub.f32 %v3970, %v4571
  %v4573 = vand.u32 %v4572, 4294901760
  %4574 = vmatpush1.msra.mxu0 %v4573
  %4575 = vmatprep.subr.mxu0 0.0
  %v4576 = vand.u32 %v3969, 4294901760
  %v4577 = vsub.f32 %v3969, %v4576
  %v4578 = vand.u32 %v4577, 4294901760
  %4579 = vmatpush1.msra.mxu0 %v4578
  %4580 = vmatprep.subr.mxu0 0.0
  %v4581 = vand.u32 %v3968, 4294901760
  %v4582 = vsub.f32 %v3968, %v4581
  %v4583 = vand.u32 %v4582, 4294901760
  %4584 = vmatpush1.msra.mxu0 %v4583
  %4585 = vmatprep.subr.mxu0 0.0
  %v4586 = vand.u32 %v3967, 4294901760
  %v4587 = vsub.f32 %v3967, %v4586
  %v4588 = vand.u32 %v4587, 4294901760
  %4589 = vmatpush1.msra.mxu0 %v4588
  %4590 = vmatprep.subr.mxu0 0.0
  %4591 = vmatpush2.msra.mxu0 0.0
  %4592 = vmatprep.subr.mxu0 0.0
  %4593 = vmatpush2.msra.mxu0 0.0
  %4594 = vmatprep.subr.mxu0 0.0
  %4595 = vmatpush2.msra.mxu0 0.0
  %4596 = vmatprep.subr.mxu0 0.0
  %4597 = vmatpush2.msra.mxu0 0.0
  %4598 = vmatprep.subr.mxu0 0.0
  %4599 = vmatpush2.msra.mxu0 0.0
  %4600 = vmatprep.subr.mxu0 0.0
  %4601 = vmatpush2.msra.mxu0 0.0
  %4602 = vmatprep.subr.mxu0 0.0
  %4603 = vmatpush2.msra.mxu0 0.0
  %4604 = vmatprep.subr.mxu0 0.0
  %4605 = vmatpush2.msra.mxu0 0.0
  %4606 = vmatprep.subr.mxu0 0.0
  %4607 = vmatpush2.msra.mxu0 0.0
  %4608 = vmatprep.subr.mxu0 0.0
  %4609 = vmatpush2.msra.mxu0 0.0
  %4610 = vmatprep.subr.mxu0 0.0
  %4611 = vmatpush2.msra.mxu0 0.0
  %4612 = vmatprep.subr.mxu0 0.0
  %4613 = vmatpush2.msra.mxu0 0.0
  %4614 = vmatprep.subr.mxu0 0.0
  %4615 = vmatpush2.msra.mxu0 0.0
  %4616 = vmatprep.subr.mxu0 0.0
  %4617 = vmatpush2.msra.mxu0 0.0
  %4618 = vmatprep.subr.mxu0 0.0
  %4619 = vmatpush2.msra.mxu0 0.0
  %4620 = vmatprep.subr.mxu0 0.0
  %4621 = vmatpush2.msra.mxu0 0.0
  %4622 = vmatprep.mubr.f32.mxu0 0.0
  %v4623 = vand.u32 %v3979, 4294901760
  %4624 = vmatmul.mubr.f32.gmra.mxu0 %v4623
  %v4625 = vpop.f32.mrf.mxu0
  %v4626 = vadd.f32 %v4487, %v4625
  %v4627 = vpop.f32.mrf.mxu0
  %4628 = vmatprep.mubr.f32.mxu0 0.0
  %v4629 = vand.u32 %v3982, 4294901760
  %4630 = vmatmul.mubr.f32.gmra.mxu0 %v4629
  %v4631 = vpop.f32.mrf.mxu0
  %v4632 = vadd.f32 %v4495, %v4631
  %v4633 = vpop.f32.mrf.mxu0
  %4634 = vmatprep.mubr.f32.mxu0 0.0
  %v4635 = vand.u32 %v3985, 4294901760
  %4636 = vmatmul.mubr.f32.gmra.mxu0 %v4635
  %v4637 = vpop.f32.mrf.mxu0
  %v4638 = vadd.f32 %v4503, %v4637
  %v4639 = vpop.f32.mrf.mxu0
  %4640 = vmatprep.mubr.f32.mxu0 0.0
  %v4641 = vand.u32 %v3988, 4294901760
  %4642 = vmatmul.mubr.f32.gmra.mxu0 %v4641
  %v4643 = vpop.f32.mrf.mxu0
  %v4644 = vadd.f32 %v4511, %v4643
  %v4645 = vpop.f32.mrf.mxu0
  %4646 = vmatprep.mubr.f32.mxu0 0.0
  %v4647 = vand.u32 %v3991, 4294901760
  %4648 = vmatmul.mubr.f32.gmra.mxu0 %v4647
  %v4649 = vpop.f32.mrf.mxu0
  %v4650 = vadd.f32 %v4519, %v4649
  %v4651 = vpop.f32.mrf.mxu0
  %4652 = vmatprep.mubr.f32.mxu0 0.0
  %v4653 = vand.u32 %v3994, 4294901760
  %4654 = vmatmul.mubr.f32.gmra.mxu0 %v4653
  %v4655 = vpop.f32.mrf.mxu0
  %v4656 = vadd.f32 %v4527, %v4655
  %v4657 = vpop.f32.mrf.mxu0
  %4658 = vmatprep.mubr.f32.mxu0 0.0
  %v4659 = vand.u32 %v3997, 4294901760
  %4660 = vmatmul.mubr.f32.gmra.mxu0 %v4659
  %v4661 = vpop.f32.mrf.mxu0
  %v4662 = vadd.f32 %v4535, %v4661
  %v4663 = vpop.f32.mrf.mxu0
  %4664 = vmatprep.mubr.f32.mxu0 0.0
  %v4665 = vand.u32 %v4000, 4294901760
  %4666 = vmatmul.mubr.f32.gmra.mxu0 %v4665
  %v4667 = vpop.f32.mrf.mxu0
  %v4668 = vadd.f32 %v4543, %v4667
  %v4669 = vpop.f32.mrf.mxu0
  %4670 = vdwg.mxu0
  %4671 = vmatprep.subr.mxu0 0.0
  %4672 = vmatpush1.msra.mxu0 0.0
  %4673 = vmatprep.subr.mxu0 0.0
  %4674 = vmatpush1.msra.mxu0 0.0
  %4675 = vmatprep.subr.mxu0 0.0
  %4676 = vmatpush1.msra.mxu0 0.0
  %4677 = vmatprep.subr.mxu0 0.0
  %4678 = vmatpush1.msra.mxu0 0.0
  %4679 = vmatprep.subr.mxu0 0.0
  %4680 = vmatpush1.msra.mxu0 0.0
  %4681 = vmatprep.subr.mxu0 0.0
  %4682 = vmatpush1.msra.mxu0 0.0
  %4683 = vmatprep.subr.mxu0 0.0
  %4684 = vmatpush1.msra.mxu0 0.0
  %4685 = vmatprep.subr.mxu0 0.0
  %4686 = vmatpush1.msra.mxu0 0.0
  %4687 = vmatprep.subr.mxu0 0.0
  %4688 = vmatpush1.msra.mxu0 0.0
  %4689 = vmatprep.subr.mxu0 0.0
  %4690 = vmatpush1.msra.mxu0 0.0
  %4691 = vmatprep.subr.mxu0 0.0
  %4692 = vmatpush1.msra.mxu0 0.0
  %4693 = vmatprep.subr.mxu0 0.0
  %4694 = vmatpush1.msra.mxu0 0.0
  %4695 = vmatprep.subr.mxu0 0.0
  %v4696 = vand.u32 %v3970, 4294901760
  %4697 = vmatpush1.msra.mxu0 %v4696
  %4698 = vmatprep.subr.mxu0 0.0
  %v4699 = vand.u32 %v3969, 4294901760
  %4700 = vmatpush1.msra.mxu0 %v4699
  %4701 = vmatprep.subr.mxu0 0.0
  %v4702 = vand.u32 %v3968, 4294901760
  %4703 = vmatpush1.msra.mxu0 %v4702
  %4704 = vmatprep.subr.mxu0 0.0
  %v4705 = vand.u32 %v3967, 4294901760
  %4706 = vmatpush1.msra.mxu0 %v4705
  %4707 = vmatprep.subr.mxu0 0.0
  %4708 = vmatpush2.msra.mxu0 0.0
  %4709 = vmatprep.subr.mxu0 0.0
  %4710 = vmatpush2.msra.mxu0 0.0
  %4711 = vmatprep.subr.mxu0 0.0
  %4712 = vmatpush2.msra.mxu0 0.0
  %4713 = vmatprep.subr.mxu0 0.0
  %4714 = vmatpush2.msra.mxu0 0.0
  %4715 = vmatprep.subr.mxu0 0.0
  %4716 = vmatpush2.msra.mxu0 0.0
  %4717 = vmatprep.subr.mxu0 0.0
  %4718 = vmatpush2.msra.mxu0 0.0
  %4719 = vmatprep.subr.mxu0 0.0
  %4720 = vmatpush2.msra.mxu0 0.0
  %4721 = vmatprep.subr.mxu0 0.0
  %4722 = vmatpush2.msra.mxu0 0.0
  %4723 = vmatprep.subr.mxu0 0.0
  %4724 = vmatpush2.msra.mxu0 0.0
  %4725 = vmatprep.subr.mxu0 0.0
  %4726 = vmatpush2.msra.mxu0 0.0
  %4727 = vmatprep.subr.mxu0 0.0
  %4728 = vmatpush2.msra.mxu0 0.0
  %4729 = vmatprep.subr.mxu0 0.0
  %4730 = vmatpush2.msra.mxu0 0.0
  %4731 = vmatprep.subr.mxu0 0.0
  %4732 = vmatpush2.msra.mxu0 0.0
  %4733 = vmatprep.subr.mxu0 0.0
  %4734 = vmatpush2.msra.mxu0 0.0
  %4735 = vmatprep.subr.mxu0 0.0
  %4736 = vmatpush2.msra.mxu0 0.0
  %4737 = vmatprep.subr.mxu0 0.0
  %4738 = vmatpush2.msra.mxu0 0.0
  %4739 = vmatprep.mubr.f32.mxu0 0.0
  %v4740 = vand.u32 %v3979, 4294901760
  %4741 = vmatmul.mubr.f32.gmra.mxu0 %v4740
  %v4742 = vpop.f32.mrf.mxu0
  %v4743 = vadd.f32 %v4626, %v4742
  %v4744 = vpop.f32.mrf.mxu0
  %4745 = vmatprep.mubr.f32.mxu0 0.0
  %v4746 = vand.u32 %v3982, 4294901760
  %4747 = vmatmul.mubr.f32.gmra.mxu0 %v4746
  %v4748 = vpop.f32.mrf.mxu0
  %v4749 = vadd.f32 %v4632, %v4748
  %v4750 = vpop.f32.mrf.mxu0
  %4751 = vmatprep.mubr.f32.mxu0 0.0
  %v4752 = vand.u32 %v3985, 4294901760
  %4753 = vmatmul.mubr.f32.gmra.mxu0 %v4752
  %v4754 = vpop.f32.mrf.mxu0
  %v4755 = vadd.f32 %v4638, %v4754
  %v4756 = vpop.f32.mrf.mxu0
  %4757 = vmatprep.mubr.f32.mxu0 0.0
  %v4758 = vand.u32 %v3988, 4294901760
  %4759 = vmatmul.mubr.f32.gmra.mxu0 %v4758
  %v4760 = vpop.f32.mrf.mxu0
  %v4761 = vadd.f32 %v4644, %v4760
  %v4762 = vpop.f32.mrf.mxu0
  %4763 = vmatprep.mubr.f32.mxu0 0.0
  %v4764 = vand.u32 %v3991, 4294901760
  %4765 = vmatmul.mubr.f32.gmra.mxu0 %v4764
  %v4766 = vpop.f32.mrf.mxu0
  %v4767 = vadd.f32 %v4650, %v4766
  %v4768 = vpop.f32.mrf.mxu0
  %4769 = vmatprep.mubr.f32.mxu0 0.0
  %v4770 = vand.u32 %v3994, 4294901760
  %4771 = vmatmul.mubr.f32.gmra.mxu0 %v4770
  %v4772 = vpop.f32.mrf.mxu0
  %v4773 = vadd.f32 %v4656, %v4772
  %v4774 = vpop.f32.mrf.mxu0
  %4775 = vmatprep.mubr.f32.mxu0 0.0
  %v4776 = vand.u32 %v3997, 4294901760
  %4777 = vmatmul.mubr.f32.gmra.mxu0 %v4776
  %v4778 = vpop.f32.mrf.mxu0
  %v4779 = vadd.f32 %v4662, %v4778
  %v4780 = vpop.f32.mrf.mxu0
  %4781 = vmatprep.mubr.f32.mxu0 0.0
  %v4782 = vand.u32 %v4000, 4294901760
  %4783 = vmatmul.mubr.f32.gmra.mxu0 %v4782
  %v4784 = vpop.f32.mrf.mxu0
  %v4785 = vadd.f32 %v4668, %v4784
  %v4786 = vpop.f32.mrf.mxu0
  %4787 = vdwg.mxu0
  %v4788 = vxor.u32 %v4743, 2147483648
  %v4789 = vxor.u32 %v4749, 2147483648
  %v4790 = vxor.u32 %v4755, 2147483648
  %v4791 = vxor.u32 %v4761, 2147483648
  %v4792 = vxor.u32 %v4767, 2147483648
  %v4793 = vxor.u32 %v4773, 2147483648
  %v4794 = vxor.u32 %v4779, 2147483648
  %v4795 = vxor.u32 %v4785, 2147483648
  %v4796 = vmul.f32 %v4788, 1.442695
  %v4797 = vpow.pop %v4796
  %v4798 = vmul.f32 %v4789, 1.442695
  %v4799 = vpow.pop %v4798
  %v4800 = vmul.f32 %v4790, 1.442695
  %v4801 = vpow.pop %v4800
  %v4802 = vmul.f32 %v4791, 1.442695
  %v4803 = vpow.pop %v4802
  %v4804 = vmul.f32 %v4792, 1.442695
  %v4805 = vpow.pop %v4804
  %v4806 = vmul.f32 %v4793, 1.442695
  %v4807 = vpow.pop %v4806
  %v4808 = vmul.f32 %v4794, 1.442695
  %v4809 = vpow.pop %v4808
  %v4810 = vmul.f32 %v4795, 1.442695
  %v4811 = vpow.pop %v4810
  %v4812 = vadd.f32 %v4797, 1.0
  %v4813 = vadd.f32 %v4799, 1.0
  %v4814 = vadd.f32 %v4801, 1.0
  %v4815 = vadd.f32 %v4803, 1.0
  %v4816 = vadd.f32 %v4805, 1.0
  %v4817 = vadd.f32 %v4807, 1.0
  %v4818 = vadd.f32 %v4809, 1.0
  %v4819 = vadd.f32 %v4811, 1.0
  %v4820 = vrcp.pop %v4812
  %v4821 = vmul.f32 1.0, %v4820
  %v4822 = vrcp.pop %v4813
  %v4823 = vmul.f32 1.0, %v4822
  %v4824 = vrcp.pop %v4814
  %v4825 = vmul.f32 1.0, %v4824
  %v4826 = vrcp.pop %v4815
  %v4827 = vmul.f32 1.0, %v4826
  %v4828 = vrcp.pop %v4816
  %v4829 = vmul.f32 1.0, %v4828
  %v4830 = vrcp.pop %v4817
  %v4831 = vmul.f32 1.0, %v4830
  %v4832 = vrcp.pop %v4818
  %v4833 = vmul.f32 1.0, %v4832
  %v4834 = vrcp.pop %v4819
  %v4835 = vmul.f32 1.0, %v4834
  %v4836 = vmul.f32 %v4821, 2.0
  %v4837 = vmul.f32 %v4823, 2.0
  %v4838 = vmul.f32 %v4825, 2.0
  %v4839 = vmul.f32 %v4827, 2.0
  %v4840 = vmul.f32 %v4829, 2.0
  %v4841 = vmul.f32 %v4831, 2.0
  %v4842 = vmul.f32 %v4833, 2.0
  %v4843 = vmul.f32 %v4835, 2.0
  %v4844 = vld [vmem:[%s8] sm:$0xff]
  %v4845 = vld [vmem:[%s8 + $0x8] sm:$0xff]
  %v4846 = vld [vmem:[%s8 + $0x10] sm:$0xff]
  %v4847 = vld [vmem:[%s8 + $0x18] sm:$0xff]
  %v4848 = vld [vmem:[%s8 + $0x20] sm:$0xff]
  %v4849 = vld [vmem:[%s8 + $0x28] sm:$0xff]
  %v4850 = vld [vmem:[%s8 + $0x30] sm:$0xff]
  %v4851 = vld [vmem:[%s8 + $0x38] sm:$0xff]
  %v4852 = vld [vmem:[%s8 + $0x40] sm:$0xff]
  %v4853 = vld [vmem:[%s8 + $0x48] sm:$0xff]
  %v4854 = vld [vmem:[%s8 + $0x50] sm:$0xff]
  %v4855 = vld [vmem:[%s8 + $0x58] sm:$0xff]
  %v4856 = vld [vmem:[%s8 + $0x60] sm:$0xff]
  %v4857 = vld [vmem:[%s8 + $0x68] sm:$0xff]
  %v4858 = vld [vmem:[%s8 + $0x70] sm:$0xff]
  %v4859 = vld [vmem:[%s8 + $0x78] sm:$0xff]
  %4860 = vset.pattern.permute.xlu0 0
  %4861 = vperm.xlu0 %4860, %v4844
  %v4862 = vpop.permute.xlu0 %4861
  %4863 = vset.pattern.permute.xlu0 0
  %4864 = vperm.xlu0 %4863, %v4845
  %v4865 = vpop.permute.xlu0 %4864
  %4866 = vset.pattern.permute.xlu0 0
  %4867 = vperm.xlu0 %4866, %v4846
  %v4868 = vpop.permute.xlu0 %4867
  %4869 = vset.pattern.permute.xlu0 0
  %4870 = vperm.xlu0 %4869, %v4847
  %v4871 = vpop.permute.xlu0 %4870
  %4872 = vset.pattern.permute.xlu0 0
  %4873 = vperm.xlu0 %4872, %v4848
  %v4874 = vpop.permute.xlu0 %4873
  %4875 = vset.pattern.permute.xlu0 0
  %4876 = vperm.xlu0 %4875, %v4849
  %v4877 = vpop.permute.xlu0 %4876
  %4878 = vset.pattern.permute.xlu0 0
  %4879 = vperm.xlu0 %4878, %v4850
  %v4880 = vpop.permute.xlu0 %4879
  %4881 = vset.pattern.permute.xlu0 0
  %4882 = vperm.xlu0 %4881, %v4851
  %v4883 = vpop.permute.xlu0 %4882
  %4884 = vset.pattern.permute.xlu0 0
  %4885 = vperm.xlu0 %4884, %v4852
  %v4886 = vpop.permute.xlu0 %4885
  %4887 = vset.pattern.permute.xlu0 0
  %4888 = vperm.xlu0 %4887, %v4853
  %v4889 = vpop.permute.xlu0 %4888
  %4890 = vset.pattern.permute.xlu0 0
  %4891 = vperm.xlu0 %4890, %v4854
  %v4892 = vpop.permute.xlu0 %4891
  %4893 = vset.pattern.permute.xlu0 0
  %4894 = vperm.xlu0 %4893, %v4855
  %v4895 = vpop.permute.xlu0 %4894
  %4896 = vset.pattern.permute.xlu0 0
  %4897 = vperm.xlu0 %4896, %v4856
  %v4898 = vpop.permute.xlu0 %4897
  %4899 = vset.pattern.permute.xlu0 0
  %4900 = vperm.xlu0 %4899, %v4857
  %v4901 = vpop.permute.xlu0 %4900
  %4902 = vset.pattern.permute.xlu0 0
  %4903 = vperm.xlu0 %4902, %v4858
  %v4904 = vpop.permute.xlu0 %4903
  %4905 = vset.pattern.permute.xlu0 0
  %4906 = vperm.xlu0 %4905, %v4859
  %v4907 = vpop.permute.xlu0 %4906
  %vm4908 = vcmp.eq.s32.totalorder %v4862, %v60
  %vm4909 = vcmp.eq.s32.totalorder %v4865, %v60
  %vm4910 = vcmp.eq.s32.totalorder %v4868, %v60
  %vm4911 = vcmp.eq.s32.totalorder %v4871, %v60
  %vm4912 = vcmp.eq.s32.totalorder %v4874, %v60
  %vm4913 = vcmp.eq.s32.totalorder %v4877, %v60
  %vm4914 = vcmp.eq.s32.totalorder %v4880, %v60
  %vm4915 = vcmp.eq.s32.totalorder %v4883, %v60
  %vm4916 = vcmp.eq.s32.totalorder %v4886, %v60
  %vm4917 = vcmp.eq.s32.totalorder %v4889, %v60
  %vm4918 = vcmp.eq.s32.totalorder %v4892, %v60
  %vm4919 = vcmp.eq.s32.totalorder %v4895, %v60
  %vm4920 = vcmp.eq.s32.totalorder %v4898, %v60
  %vm4921 = vcmp.eq.s32.totalorder %v4901, %v60
  %vm4922 = vcmp.eq.s32.totalorder %v4904, %v60
  %vm4923 = vcmp.eq.s32.totalorder %v4907, %v60
  %v4924 = vsel %vm4908, 1, 0
  %v4925 = vsel %vm4909, 1, 0
  %v4926 = vsel %vm4910, 1, 0
  %v4927 = vsel %vm4911, 1, 0
  %v4928 = vsel %vm4912, 1, 0
  %v4929 = vsel %vm4913, 1, 0
  %v4930 = vsel %vm4914, 1, 0
  %v4931 = vsel %vm4915, 1, 0
  %v4932 = vsel %vm4916, 1, 0
  %v4933 = vsel %vm4917, 1, 0
  %v4934 = vsel %vm4918, 1, 0
  %v4935 = vsel %vm4919, 1, 0
  %v4936 = vsel %vm4920, 1, 0
  %v4937 = vsel %vm4921, 1, 0
  %v4938 = vsel %vm4922, 1, 0
  %v4939 = vsel %vm4923, 1, 0
  %v4940 = vcvt.s32.f32 %v4924
  %v4941 = vcvt.s32.f32 %v4925
  %v4942 = vcvt.s32.f32 %v4926
  %v4943 = vcvt.s32.f32 %v4927
  %v4944 = vcvt.s32.f32 %v4928
  %v4945 = vcvt.s32.f32 %v4929
  %v4946 = vcvt.s32.f32 %v4930
  %v4947 = vcvt.s32.f32 %v4931
  %v4948 = vcvt.s32.f32 %v4932
  %v4949 = vcvt.s32.f32 %v4933
  %v4950 = vcvt.s32.f32 %v4934
  %v4951 = vcvt.s32.f32 %v4935
  %v4952 = vcvt.s32.f32 %v4936
  %v4953 = vcvt.s32.f32 %v4937
  %v4954 = vcvt.s32.f32 %v4938
  %v4955 = vcvt.s32.f32 %v4939
  %v4957 = vsel %vm157, %v4940, 0
  %v4960 = vsel %vm157, %v4941, 0
  %v4963 = vsel %vm157, %v4942, 0
  %v4966 = vsel %vm157, %v4943, 0
  %v4969 = vsel %vm157, %v4944, 0
  %v4972 = vsel %vm157, %v4945, 0
  %v4975 = vsel %vm157, %v4946, 0
  %v4978 = vsel %vm157, %v4947, 0
  %v4981 = vsel %vm157, %v4948, 0
  %v4984 = vsel %vm157, %v4949, 0
  %v4987 = vsel %vm157, %v4950, 0
  %v4990 = vsel %vm157, %v4951, 0
  %v4993 = vsel %vm157, %v4952, 0
  %v4996 = vsel %vm157, %v4953, 0
  %v4999 = vsel %vm157, %v4954, 0
  %v5002 = vsel %vm157, %v4955, 0
  %5004 = vmatprep.subr.mxu0 0.0
  %5005 = vmatpush1.msra.mxu0 0.0
  %5006 = vmatprep.subr.mxu0 0.0
  %5007 = vmatpush1.msra.mxu0 0.0
  %5008 = vmatprep.subr.mxu0 0.0
  %5009 = vmatpush1.msra.mxu0 0.0
  %5010 = vmatprep.subr.mxu0 0.0
  %5011 = vmatpush1.msra.mxu0 0.0
  %5012 = vmatprep.subr.mxu0 0.0
  %5013 = vmatpush1.msra.mxu0 0.0
  %5014 = vmatprep.subr.mxu0 0.0
  %5015 = vmatpush1.msra.mxu0 0.0
  %5016 = vmatprep.subr.mxu0 0.0
  %5017 = vmatpush1.msra.mxu0 0.0
  %5018 = vmatprep.subr.mxu0 0.0
  %5019 = vmatpush1.msra.mxu0 0.0
  %5020 = vmatprep.subr.mxu0 0.0
  %v5021 = vand.u32 %v4843, 4294901760
  %5022 = vmatpush1.msra.mxu0 %v5021
  %5023 = vmatprep.subr.mxu0 0.0
  %v5024 = vand.u32 %v4842, 4294901760
  %5025 = vmatpush1.msra.mxu0 %v5024
  %5026 = vmatprep.subr.mxu0 0.0
  %v5027 = vand.u32 %v4841, 4294901760
  %5028 = vmatpush1.msra.mxu0 %v5027
  %5029 = vmatprep.subr.mxu0 0.0
  %v5030 = vand.u32 %v4840, 4294901760
  %5031 = vmatpush1.msra.mxu0 %v5030
  %5032 = vmatprep.subr.mxu0 0.0
  %v5033 = vand.u32 %v4839, 4294901760
  %5034 = vmatpush1.msra.mxu0 %v5033
  %5035 = vmatprep.subr.mxu0 0.0
  %v5036 = vand.u32 %v4838, 4294901760
  %5037 = vmatpush1.msra.mxu0 %v5036
  %5038 = vmatprep.subr.mxu0 0.0
  %v5039 = vand.u32 %v4837, 4294901760
  %5040 = vmatpush1.msra.mxu0 %v5039
  %5041 = vmatprep.subr.mxu0 0.0
  %v5042 = vand.u32 %v4836, 4294901760
  %5043 = vmatpush1.msra.mxu0 %v5042
  %5044 = vmatprep.subr.mxu0 0.0
  %5045 = vmatpush2.msra.mxu0 0.0
  %5046 = vmatprep.subr.mxu0 0.0
  %5047 = vmatpush2.msra.mxu0 0.0
  %5048 = vmatprep.subr.mxu0 0.0
  %5049 = vmatpush2.msra.mxu0 0.0
  %5050 = vmatprep.subr.mxu0 0.0
  %5051 = vmatpush2.msra.mxu0 0.0
  %5052 = vmatprep.subr.mxu0 0.0
  %5053 = vmatpush2.msra.mxu0 0.0
  %5054 = vmatprep.subr.mxu0 0.0
  %5055 = vmatpush2.msra.mxu0 0.0
  %5056 = vmatprep.subr.mxu0 0.0
  %5057 = vmatpush2.msra.mxu0 0.0
  %5058 = vmatprep.subr.mxu0 0.0
  %5059 = vmatpush2.msra.mxu0 0.0
  %5060 = vmatprep.subr.mxu0 0.0
  %5061 = vmatpush2.msra.mxu0 0.0
  %5062 = vmatprep.subr.mxu0 0.0
  %5063 = vmatpush2.msra.mxu0 0.0
  %5064 = vmatprep.subr.mxu0 0.0
  %5065 = vmatpush2.msra.mxu0 0.0
  %5066 = vmatprep.subr.mxu0 0.0
  %5067 = vmatpush2.msra.mxu0 0.0
  %5068 = vmatprep.subr.mxu0 0.0
  %5069 = vmatpush2.msra.mxu0 0.0
  %5070 = vmatprep.subr.mxu0 0.0
  %5071 = vmatpush2.msra.mxu0 0.0
  %5072 = vmatprep.subr.mxu0 0.0
  %5073 = vmatpush2.msra.mxu0 0.0
  %5074 = vmatprep.subr.mxu0 0.0
  %5075 = vmatpush2.msra.mxu0 0.0
  %5076 = vmatprep.mubr.f32.mxu0 0.0
  %v5077 = vand.u32 %v4957, 4294901760
  %v5078 = vsub.f32 %v4957, %v5077
  %v5079 = vand.u32 %v5078, 4294901760
  %v5080 = vsub.f32 %v5078, %v5079
  %v5081 = vand.u32 %v5080, 4294901760
  %5082 = vmatmul.mubr.f32.gmra.mxu0 %v5081
  %v5083 = vpop.f32.mrf.mxu0
  %v5084 = vadd.f32 0.0, %v5083
  %v5085 = vpop.f32.mrf.mxu0
  %5086 = vmatprep.mubr.f32.mxu0 0.0
  %v5087 = vand.u32 %v4960, 4294901760
  %v5088 = vsub.f32 %v4960, %v5087
  %v5089 = vand.u32 %v5088, 4294901760
  %v5090 = vsub.f32 %v5088, %v5089
  %v5091 = vand.u32 %v5090, 4294901760
  %5092 = vmatmul.mubr.f32.gmra.mxu0 %v5091
  %v5093 = vpop.f32.mrf.mxu0
  %v5094 = vadd.f32 0.0, %v5093
  %v5095 = vpop.f32.mrf.mxu0
  %5096 = vmatprep.mubr.f32.mxu0 0.0
  %v5097 = vand.u32 %v4963, 4294901760
  %v5098 = vsub.f32 %v4963, %v5097
  %v5099 = vand.u32 %v5098, 4294901760
  %v5100 = vsub.f32 %v5098, %v5099
  %v5101 = vand.u32 %v5100, 4294901760
  %5102 = vmatmul.mubr.f32.gmra.mxu0 %v5101
  %v5103 = vpop.f32.mrf.mxu0
  %v5104 = vadd.f32 0.0, %v5103
  %v5105 = vpop.f32.mrf.mxu0
  %5106 = vmatprep.mubr.f32.mxu0 0.0
  %v5107 = vand.u32 %v4966, 4294901760
  %v5108 = vsub.f32 %v4966, %v5107
  %v5109 = vand.u32 %v5108, 4294901760
  %v5110 = vsub.f32 %v5108, %v5109
  %v5111 = vand.u32 %v5110, 4294901760
  %5112 = vmatmul.mubr.f32.gmra.mxu0 %v5111
  %v5113 = vpop.f32.mrf.mxu0
  %v5114 = vadd.f32 0.0, %v5113
  %v5115 = vpop.f32.mrf.mxu0
  %5116 = vmatprep.mubr.f32.mxu0 0.0
  %v5117 = vand.u32 %v4969, 4294901760
  %v5118 = vsub.f32 %v4969, %v5117
  %v5119 = vand.u32 %v5118, 4294901760
  %v5120 = vsub.f32 %v5118, %v5119
  %v5121 = vand.u32 %v5120, 4294901760
  %5122 = vmatmul.mubr.f32.gmra.mxu0 %v5121
  %v5123 = vpop.f32.mrf.mxu0
  %v5124 = vadd.f32 0.0, %v5123
  %v5125 = vpop.f32.mrf.mxu0
  %5126 = vmatprep.mubr.f32.mxu0 0.0
  %v5127 = vand.u32 %v4972, 4294901760
  %v5128 = vsub.f32 %v4972, %v5127
  %v5129 = vand.u32 %v5128, 4294901760
  %v5130 = vsub.f32 %v5128, %v5129
  %v5131 = vand.u32 %v5130, 4294901760
  %5132 = vmatmul.mubr.f32.gmra.mxu0 %v5131
  %v5133 = vpop.f32.mrf.mxu0
  %v5134 = vadd.f32 0.0, %v5133
  %v5135 = vpop.f32.mrf.mxu0
  %5136 = vmatprep.mubr.f32.mxu0 0.0
  %v5137 = vand.u32 %v4975, 4294901760
  %v5138 = vsub.f32 %v4975, %v5137
  %v5139 = vand.u32 %v5138, 4294901760
  %v5140 = vsub.f32 %v5138, %v5139
  %v5141 = vand.u32 %v5140, 4294901760
  %5142 = vmatmul.mubr.f32.gmra.mxu0 %v5141
  %v5143 = vpop.f32.mrf.mxu0
  %v5144 = vadd.f32 0.0, %v5143
  %v5145 = vpop.f32.mrf.mxu0
  %5146 = vmatprep.mubr.f32.mxu0 0.0
  %v5147 = vand.u32 %v4978, 4294901760
  %v5148 = vsub.f32 %v4978, %v5147
  %v5149 = vand.u32 %v5148, 4294901760
  %v5150 = vsub.f32 %v5148, %v5149
  %v5151 = vand.u32 %v5150, 4294901760
  %5152 = vmatmul.mubr.f32.gmra.mxu0 %v5151
  %v5153 = vpop.f32.mrf.mxu0
  %v5154 = vadd.f32 0.0, %v5153
  %v5155 = vpop.f32.mrf.mxu0
  %5156 = vmatprep.mubr.f32.mxu0 0.0
  %v5157 = vand.u32 %v4981, 4294901760
  %v5158 = vsub.f32 %v4981, %v5157
  %v5159 = vand.u32 %v5158, 4294901760
  %v5160 = vsub.f32 %v5158, %v5159
  %v5161 = vand.u32 %v5160, 4294901760
  %5162 = vmatmul.mubr.f32.gmra.mxu0 %v5161
  %v5163 = vpop.f32.mrf.mxu0
  %v5164 = vadd.f32 0.0, %v5163
  %v5165 = vpop.f32.mrf.mxu0
  %5166 = vmatprep.mubr.f32.mxu0 0.0
  %v5167 = vand.u32 %v4984, 4294901760
  %v5168 = vsub.f32 %v4984, %v5167
  %v5169 = vand.u32 %v5168, 4294901760
  %v5170 = vsub.f32 %v5168, %v5169
  %v5171 = vand.u32 %v5170, 4294901760
  %5172 = vmatmul.mubr.f32.gmra.mxu0 %v5171
  %v5173 = vpop.f32.mrf.mxu0
  %v5174 = vadd.f32 0.0, %v5173
  %v5175 = vpop.f32.mrf.mxu0
  %5176 = vmatprep.mubr.f32.mxu0 0.0
  %v5177 = vand.u32 %v4987, 4294901760
  %v5178 = vsub.f32 %v4987, %v5177
  %v5179 = vand.u32 %v5178, 4294901760
  %v5180 = vsub.f32 %v5178, %v5179
  %v5181 = vand.u32 %v5180, 4294901760
  %5182 = vmatmul.mubr.f32.gmra.mxu0 %v5181
  %v5183 = vpop.f32.mrf.mxu0
  %v5184 = vadd.f32 0.0, %v5183
  %v5185 = vpop.f32.mrf.mxu0
  %5186 = vmatprep.mubr.f32.mxu0 0.0
  %v5187 = vand.u32 %v4990, 4294901760
  %v5188 = vsub.f32 %v4990, %v5187
  %v5189 = vand.u32 %v5188, 4294901760
  %v5190 = vsub.f32 %v5188, %v5189
  %v5191 = vand.u32 %v5190, 4294901760
  %5192 = vmatmul.mubr.f32.gmra.mxu0 %v5191
  %v5193 = vpop.f32.mrf.mxu0
  %v5194 = vadd.f32 0.0, %v5193
  %v5195 = vpop.f32.mrf.mxu0
  %5196 = vmatprep.mubr.f32.mxu0 0.0
  %v5197 = vand.u32 %v4993, 4294901760
  %v5198 = vsub.f32 %v4993, %v5197
  %v5199 = vand.u32 %v5198, 4294901760
  %v5200 = vsub.f32 %v5198, %v5199
  %v5201 = vand.u32 %v5200, 4294901760
  %5202 = vmatmul.mubr.f32.gmra.mxu0 %v5201
  %v5203 = vpop.f32.mrf.mxu0
  %v5204 = vadd.f32 0.0, %v5203
  %v5205 = vpop.f32.mrf.mxu0
  %5206 = vmatprep.mubr.f32.mxu0 0.0
  %v5207 = vand.u32 %v4996, 4294901760
  %v5208 = vsub.f32 %v4996, %v5207
  %v5209 = vand.u32 %v5208, 4294901760
  %v5210 = vsub.f32 %v5208, %v5209
  %v5211 = vand.u32 %v5210, 4294901760
  %5212 = vmatmul.mubr.f32.gmra.mxu0 %v5211
  %v5213 = vpop.f32.mrf.mxu0
  %v5214 = vadd.f32 0.0, %v5213
  %v5215 = vpop.f32.mrf.mxu0
  %5216 = vmatprep.mubr.f32.mxu0 0.0
  %v5217 = vand.u32 %v4999, 4294901760
  %v5218 = vsub.f32 %v4999, %v5217
  %v5219 = vand.u32 %v5218, 4294901760
  %v5220 = vsub.f32 %v5218, %v5219
  %v5221 = vand.u32 %v5220, 4294901760
  %5222 = vmatmul.mubr.f32.gmra.mxu0 %v5221
  %v5223 = vpop.f32.mrf.mxu0
  %v5224 = vadd.f32 0.0, %v5223
  %v5225 = vpop.f32.mrf.mxu0
  %5226 = vmatprep.mubr.f32.mxu0 0.0
  %v5227 = vand.u32 %v5002, 4294901760
  %v5228 = vsub.f32 %v5002, %v5227
  %v5229 = vand.u32 %v5228, 4294901760
  %v5230 = vsub.f32 %v5228, %v5229
  %v5231 = vand.u32 %v5230, 4294901760
  %5232 = vmatmul.mubr.f32.gmra.mxu0 %v5231
  %v5233 = vpop.f32.mrf.mxu0
  %v5234 = vadd.f32 0.0, %v5233
  %v5235 = vpop.f32.mrf.mxu0
  %5236 = vdwg.mxu0
  %5237 = vmatprep.subr.mxu0 0.0
  %5238 = vmatpush1.msra.mxu0 0.0
  %5239 = vmatprep.subr.mxu0 0.0
  %5240 = vmatpush1.msra.mxu0 0.0
  %5241 = vmatprep.subr.mxu0 0.0
  %5242 = vmatpush1.msra.mxu0 0.0
  %5243 = vmatprep.subr.mxu0 0.0
  %5244 = vmatpush1.msra.mxu0 0.0
  %5245 = vmatprep.subr.mxu0 0.0
  %5246 = vmatpush1.msra.mxu0 0.0
  %5247 = vmatprep.subr.mxu0 0.0
  %5248 = vmatpush1.msra.mxu0 0.0
  %5249 = vmatprep.subr.mxu0 0.0
  %5250 = vmatpush1.msra.mxu0 0.0
  %5251 = vmatprep.subr.mxu0 0.0
  %5252 = vmatpush1.msra.mxu0 0.0
  %5253 = vmatprep.subr.mxu0 0.0
  %v5254 = vand.u32 %v4843, 4294901760
  %v5255 = vsub.f32 %v4843, %v5254
  %v5256 = vand.u32 %v5255, 4294901760
  %v5257 = vsub.f32 %v5255, %v5256
  %v5258 = vand.u32 %v5257, 4294901760
  %5259 = vmatpush1.msra.mxu0 %v5258
  %5260 = vmatprep.subr.mxu0 0.0
  %v5261 = vand.u32 %v4842, 4294901760
  %v5262 = vsub.f32 %v4842, %v5261
  %v5263 = vand.u32 %v5262, 4294901760
  %v5264 = vsub.f32 %v5262, %v5263
  %v5265 = vand.u32 %v5264, 4294901760
  %5266 = vmatpush1.msra.mxu0 %v5265
  %5267 = vmatprep.subr.mxu0 0.0
  %v5268 = vand.u32 %v4841, 4294901760
  %v5269 = vsub.f32 %v4841, %v5268
  %v5270 = vand.u32 %v5269, 4294901760
  %v5271 = vsub.f32 %v5269, %v5270
  %v5272 = vand.u32 %v5271, 4294901760
  %5273 = vmatpush1.msra.mxu0 %v5272
  %5274 = vmatprep.subr.mxu0 0.0
  %v5275 = vand.u32 %v4840, 4294901760
  %v5276 = vsub.f32 %v4840, %v5275
  %v5277 = vand.u32 %v5276, 4294901760
  %v5278 = vsub.f32 %v5276, %v5277
  %v5279 = vand.u32 %v5278, 4294901760
  %5280 = vmatpush1.msra.mxu0 %v5279
  %5281 = vmatprep.subr.mxu0 0.0
  %v5282 = vand.u32 %v4839, 4294901760
  %v5283 = vsub.f32 %v4839, %v5282
  %v5284 = vand.u32 %v5283, 4294901760
  %v5285 = vsub.f32 %v5283, %v5284
  %v5286 = vand.u32 %v5285, 4294901760
  %5287 = vmatpush1.msra.mxu0 %v5286
  %5288 = vmatprep.subr.mxu0 0.0
  %v5289 = vand.u32 %v4838, 4294901760
  %v5290 = vsub.f32 %v4838, %v5289
  %v5291 = vand.u32 %v5290, 4294901760
  %v5292 = vsub.f32 %v5290, %v5291
  %v5293 = vand.u32 %v5292, 4294901760
  %5294 = vmatpush1.msra.mxu0 %v5293
  %5295 = vmatprep.subr.mxu0 0.0
  %v5296 = vand.u32 %v4837, 4294901760
  %v5297 = vsub.f32 %v4837, %v5296
  %v5298 = vand.u32 %v5297, 4294901760
  %v5299 = vsub.f32 %v5297, %v5298
  %v5300 = vand.u32 %v5299, 4294901760
  %5301 = vmatpush1.msra.mxu0 %v5300
  %5302 = vmatprep.subr.mxu0 0.0
  %v5303 = vand.u32 %v4836, 4294901760
  %v5304 = vsub.f32 %v4836, %v5303
  %v5305 = vand.u32 %v5304, 4294901760
  %v5306 = vsub.f32 %v5304, %v5305
  %v5307 = vand.u32 %v5306, 4294901760
  %5308 = vmatpush1.msra.mxu0 %v5307
  %5309 = vmatprep.subr.mxu0 0.0
  %5310 = vmatpush2.msra.mxu0 0.0
  %5311 = vmatprep.subr.mxu0 0.0
  %5312 = vmatpush2.msra.mxu0 0.0
  %5313 = vmatprep.subr.mxu0 0.0
  %5314 = vmatpush2.msra.mxu0 0.0
  %5315 = vmatprep.subr.mxu0 0.0
  %5316 = vmatpush2.msra.mxu0 0.0
  %5317 = vmatprep.subr.mxu0 0.0
  %5318 = vmatpush2.msra.mxu0 0.0
  %5319 = vmatprep.subr.mxu0 0.0
  %5320 = vmatpush2.msra.mxu0 0.0
  %5321 = vmatprep.subr.mxu0 0.0
  %5322 = vmatpush2.msra.mxu0 0.0
  %5323 = vmatprep.subr.mxu0 0.0
  %5324 = vmatpush2.msra.mxu0 0.0
  %5325 = vmatprep.subr.mxu0 0.0
  %5326 = vmatpush2.msra.mxu0 0.0
  %5327 = vmatprep.subr.mxu0 0.0
  %5328 = vmatpush2.msra.mxu0 0.0
  %5329 = vmatprep.subr.mxu0 0.0
  %5330 = vmatpush2.msra.mxu0 0.0
  %5331 = vmatprep.subr.mxu0 0.0
  %5332 = vmatpush2.msra.mxu0 0.0
  %5333 = vmatprep.subr.mxu0 0.0
  %5334 = vmatpush2.msra.mxu0 0.0
  %5335 = vmatprep.subr.mxu0 0.0
  %5336 = vmatpush2.msra.mxu0 0.0
  %5337 = vmatprep.subr.mxu0 0.0
  %5338 = vmatpush2.msra.mxu0 0.0
  %5339 = vmatprep.subr.mxu0 0.0
  %5340 = vmatpush2.msra.mxu0 0.0
  %5341 = vmatprep.mubr.f32.mxu0 0.0
  %v5342 = vand.u32 %v4957, 4294901760
  %5343 = vmatmul.mubr.f32.gmra.mxu0 %v5342
  %v5344 = vpop.f32.mrf.mxu0
  %v5345 = vadd.f32 %v5084, %v5344
  %v5346 = vpop.f32.mrf.mxu0
  %5347 = vmatprep.mubr.f32.mxu0 0.0
  %v5348 = vand.u32 %v4960, 4294901760
  %5349 = vmatmul.mubr.f32.gmra.mxu0 %v5348
  %v5350 = vpop.f32.mrf.mxu0
  %v5351 = vadd.f32 %v5094, %v5350
  %v5352 = vpop.f32.mrf.mxu0
  %5353 = vmatprep.mubr.f32.mxu0 0.0
  %v5354 = vand.u32 %v4963, 4294901760
  %5355 = vmatmul.mubr.f32.gmra.mxu0 %v5354
  %v5356 = vpop.f32.mrf.mxu0
  %v5357 = vadd.f32 %v5104, %v5356
  %v5358 = vpop.f32.mrf.mxu0
  %5359 = vmatprep.mubr.f32.mxu0 0.0
  %v5360 = vand.u32 %v4966, 4294901760
  %5361 = vmatmul.mubr.f32.gmra.mxu0 %v5360
  %v5362 = vpop.f32.mrf.mxu0
  %v5363 = vadd.f32 %v5114, %v5362
  %v5364 = vpop.f32.mrf.mxu0
  %5365 = vmatprep.mubr.f32.mxu0 0.0
  %v5366 = vand.u32 %v4969, 4294901760
  %5367 = vmatmul.mubr.f32.gmra.mxu0 %v5366
  %v5368 = vpop.f32.mrf.mxu0
  %v5369 = vadd.f32 %v5124, %v5368
  %v5370 = vpop.f32.mrf.mxu0
  %5371 = vmatprep.mubr.f32.mxu0 0.0
  %v5372 = vand.u32 %v4972, 4294901760
  %5373 = vmatmul.mubr.f32.gmra.mxu0 %v5372
  %v5374 = vpop.f32.mrf.mxu0
  %v5375 = vadd.f32 %v5134, %v5374
  %v5376 = vpop.f32.mrf.mxu0
  %5377 = vmatprep.mubr.f32.mxu0 0.0
  %v5378 = vand.u32 %v4975, 4294901760
  %5379 = vmatmul.mubr.f32.gmra.mxu0 %v5378
  %v5380 = vpop.f32.mrf.mxu0
  %v5381 = vadd.f32 %v5144, %v5380
  %v5382 = vpop.f32.mrf.mxu0
  %5383 = vmatprep.mubr.f32.mxu0 0.0
  %v5384 = vand.u32 %v4978, 4294901760
  %5385 = vmatmul.mubr.f32.gmra.mxu0 %v5384
  %v5386 = vpop.f32.mrf.mxu0
  %v5387 = vadd.f32 %v5154, %v5386
  %v5388 = vpop.f32.mrf.mxu0
  %5389 = vmatprep.mubr.f32.mxu0 0.0
  %v5390 = vand.u32 %v4981, 4294901760
  %5391 = vmatmul.mubr.f32.gmra.mxu0 %v5390
  %v5392 = vpop.f32.mrf.mxu0
  %v5393 = vadd.f32 %v5164, %v5392
  %v5394 = vpop.f32.mrf.mxu0
  %5395 = vmatprep.mubr.f32.mxu0 0.0
  %v5396 = vand.u32 %v4984, 4294901760
  %5397 = vmatmul.mubr.f32.gmra.mxu0 %v5396
  %v5398 = vpop.f32.mrf.mxu0
  %v5399 = vadd.f32 %v5174, %v5398
  %v5400 = vpop.f32.mrf.mxu0
  %5401 = vmatprep.mubr.f32.mxu0 0.0
  %v5402 = vand.u32 %v4987, 4294901760
  %5403 = vmatmul.mubr.f32.gmra.mxu0 %v5402
  %v5404 = vpop.f32.mrf.mxu0
  %v5405 = vadd.f32 %v5184, %v5404
  %v5406 = vpop.f32.mrf.mxu0
  %5407 = vmatprep.mubr.f32.mxu0 0.0
  %v5408 = vand.u32 %v4990, 4294901760
  %5409 = vmatmul.mubr.f32.gmra.mxu0 %v5408
  %v5410 = vpop.f32.mrf.mxu0
  %v5411 = vadd.f32 %v5194, %v5410
  %v5412 = vpop.f32.mrf.mxu0
  %5413 = vmatprep.mubr.f32.mxu0 0.0
  %v5414 = vand.u32 %v4993, 4294901760
  %5415 = vmatmul.mubr.f32.gmra.mxu0 %v5414
  %v5416 = vpop.f32.mrf.mxu0
  %v5417 = vadd.f32 %v5204, %v5416
  %v5418 = vpop.f32.mrf.mxu0
  %5419 = vmatprep.mubr.f32.mxu0 0.0
  %v5420 = vand.u32 %v4996, 4294901760
  %5421 = vmatmul.mubr.f32.gmra.mxu0 %v5420
  %v5422 = vpop.f32.mrf.mxu0
  %v5423 = vadd.f32 %v5214, %v5422
  %v5424 = vpop.f32.mrf.mxu0
  %5425 = vmatprep.mubr.f32.mxu0 0.0
  %v5426 = vand.u32 %v4999, 4294901760
  %5427 = vmatmul.mubr.f32.gmra.mxu0 %v5426
  %v5428 = vpop.f32.mrf.mxu0
  %v5429 = vadd.f32 %v5224, %v5428
  %v5430 = vpop.f32.mrf.mxu0
  %5431 = vmatprep.mubr.f32.mxu0 0.0
  %v5432 = vand.u32 %v5002, 4294901760
  %5433 = vmatmul.mubr.f32.gmra.mxu0 %v5432
  %v5434 = vpop.f32.mrf.mxu0
  %v5435 = vadd.f32 %v5234, %v5434
  %v5436 = vpop.f32.mrf.mxu0
  %5437 = vdwg.mxu0
  %5438 = vmatprep.subr.mxu0 0.0
  %5439 = vmatpush1.msra.mxu0 0.0
  %5440 = vmatprep.subr.mxu0 0.0
  %5441 = vmatpush1.msra.mxu0 0.0
  %5442 = vmatprep.subr.mxu0 0.0
  %5443 = vmatpush1.msra.mxu0 0.0
  %5444 = vmatprep.subr.mxu0 0.0
  %5445 = vmatpush1.msra.mxu0 0.0
  %5446 = vmatprep.subr.mxu0 0.0
  %5447 = vmatpush1.msra.mxu0 0.0
  %5448 = vmatprep.subr.mxu0 0.0
  %5449 = vmatpush1.msra.mxu0 0.0
  %5450 = vmatprep.subr.mxu0 0.0
  %5451 = vmatpush1.msra.mxu0 0.0
  %5452 = vmatprep.subr.mxu0 0.0
  %5453 = vmatpush1.msra.mxu0 0.0
  %5454 = vmatprep.subr.mxu0 0.0
  %v5455 = vand.u32 %v4843, 4294901760
  %v5456 = vsub.f32 %v4843, %v5455
  %5457 = vmatpush1.msra.mxu0 %v5456
  %5458 = vmatprep.subr.mxu0 0.0
  %v5459 = vand.u32 %v4842, 4294901760
  %v5460 = vsub.f32 %v4842, %v5459
  %5461 = vmatpush1.msra.mxu0 %v5460
  %5462 = vmatprep.subr.mxu0 0.0
  %v5463 = vand.u32 %v4841, 4294901760
  %v5464 = vsub.f32 %v4841, %v5463
  %5465 = vmatpush1.msra.mxu0 %v5464
  %5466 = vmatprep.subr.mxu0 0.0
  %v5467 = vand.u32 %v4840, 4294901760
  %v5468 = vsub.f32 %v4840, %v5467
  %5469 = vmatpush1.msra.mxu0 %v5468
  %5470 = vmatprep.subr.mxu0 0.0
  %v5471 = vand.u32 %v4839, 4294901760
  %v5472 = vsub.f32 %v4839, %v5471
  %5473 = vmatpush1.msra.mxu0 %v5472
  %5474 = vmatprep.subr.mxu0 0.0
  %v5475 = vand.u32 %v4838, 4294901760
  %v5476 = vsub.f32 %v4838, %v5475
  %5477 = vmatpush1.msra.mxu0 %v5476
  %5478 = vmatprep.subr.mxu0 0.0
  %v5479 = vand.u32 %v4837, 4294901760
  %v5480 = vsub.f32 %v4837, %v5479
  %5481 = vmatpush1.msra.mxu0 %v5480
  %5482 = vmatprep.subr.mxu0 0.0
  %v5483 = vand.u32 %v4836, 4294901760
  %v5484 = vsub.f32 %v4836, %v5483
  %5485 = vmatpush1.msra.mxu0 %v5484
  %5486 = vmatprep.subr.mxu0 0.0
  %5487 = vmatpush2.msra.mxu0 0.0
  %5488 = vmatprep.subr.mxu0 0.0
  %5489 = vmatpush2.msra.mxu0 0.0
  %5490 = vmatprep.subr.mxu0 0.0
  %5491 = vmatpush2.msra.mxu0 0.0
  %5492 = vmatprep.subr.mxu0 0.0
  %5493 = vmatpush2.msra.mxu0 0.0
  %5494 = vmatprep.subr.mxu0 0.0
  %5495 = vmatpush2.msra.mxu0 0.0
  %5496 = vmatprep.subr.mxu0 0.0
  %5497 = vmatpush2.msra.mxu0 0.0
  %5498 = vmatprep.subr.mxu0 0.0
  %5499 = vmatpush2.msra.mxu0 0.0
  %5500 = vmatprep.subr.mxu0 0.0
  %5501 = vmatpush2.msra.mxu0 0.0
  %5502 = vmatprep.subr.mxu0 0.0
  %5503 = vmatpush2.msra.mxu0 0.0
  %5504 = vmatprep.subr.mxu0 0.0
  %5505 = vmatpush2.msra.mxu0 0.0
  %5506 = vmatprep.subr.mxu0 0.0
  %5507 = vmatpush2.msra.mxu0 0.0
  %5508 = vmatprep.subr.mxu0 0.0
  %5509 = vmatpush2.msra.mxu0 0.0
  %5510 = vmatprep.subr.mxu0 0.0
  %5511 = vmatpush2.msra.mxu0 0.0
  %5512 = vmatprep.subr.mxu0 0.0
  %5513 = vmatpush2.msra.mxu0 0.0
  %5514 = vmatprep.subr.mxu0 0.0
  %5515 = vmatpush2.msra.mxu0 0.0
  %5516 = vmatprep.subr.mxu0 0.0
  %5517 = vmatpush2.msra.mxu0 0.0
  %5518 = vmatprep.mubr.f32.mxu0 0.0
  %v5519 = vand.u32 %v4957, 4294901760
  %v5520 = vsub.f32 %v4957, %v5519
  %5521 = vmatmul.mubr.f32.gmra.mxu0 %v5520
  %v5522 = vpop.f32.mrf.mxu0
  %v5523 = vadd.f32 %v5345, %v5522
  %v5524 = vpop.f32.mrf.mxu0
  %5525 = vmatprep.mubr.f32.mxu0 0.0
  %v5526 = vand.u32 %v4960, 4294901760
  %v5527 = vsub.f32 %v4960, %v5526
  %5528 = vmatmul.mubr.f32.gmra.mxu0 %v5527
  %v5529 = vpop.f32.mrf.mxu0
  %v5530 = vadd.f32 %v5351, %v5529
  %v5531 = vpop.f32.mrf.mxu0
  %5532 = vmatprep.mubr.f32.mxu0 0.0
  %v5533 = vand.u32 %v4963, 4294901760
  %v5534 = vsub.f32 %v4963, %v5533
  %5535 = vmatmul.mubr.f32.gmra.mxu0 %v5534
  %v5536 = vpop.f32.mrf.mxu0
  %v5537 = vadd.f32 %v5357, %v5536
  %v5538 = vpop.f32.mrf.mxu0
  %5539 = vmatprep.mubr.f32.mxu0 0.0
  %v5540 = vand.u32 %v4966, 4294901760
  %v5541 = vsub.f32 %v4966, %v5540
  %5542 = vmatmul.mubr.f32.gmra.mxu0 %v5541
  %v5543 = vpop.f32.mrf.mxu0
  %v5544 = vadd.f32 %v5363, %v5543
  %v5545 = vpop.f32.mrf.mxu0
  %5546 = vmatprep.mubr.f32.mxu0 0.0
  %v5547 = vand.u32 %v4969, 4294901760
  %v5548 = vsub.f32 %v4969, %v5547
  %5549 = vmatmul.mubr.f32.gmra.mxu0 %v5548
  %v5550 = vpop.f32.mrf.mxu0
  %v5551 = vadd.f32 %v5369, %v5550
  %v5552 = vpop.f32.mrf.mxu0
  %5553 = vmatprep.mubr.f32.mxu0 0.0
  %v5554 = vand.u32 %v4972, 4294901760
  %v5555 = vsub.f32 %v4972, %v5554
  %5556 = vmatmul.mubr.f32.gmra.mxu0 %v5555
  %v5557 = vpop.f32.mrf.mxu0
  %v5558 = vadd.f32 %v5375, %v5557
  %v5559 = vpop.f32.mrf.mxu0
  %5560 = vmatprep.mubr.f32.mxu0 0.0
  %v5561 = vand.u32 %v4975, 4294901760
  %v5562 = vsub.f32 %v4975, %v5561
  %5563 = vmatmul.mubr.f32.gmra.mxu0 %v5562
  %v5564 = vpop.f32.mrf.mxu0
  %v5565 = vadd.f32 %v5381, %v5564
  %v5566 = vpop.f32.mrf.mxu0
  %5567 = vmatprep.mubr.f32.mxu0 0.0
  %v5568 = vand.u32 %v4978, 4294901760
  %v5569 = vsub.f32 %v4978, %v5568
  %5570 = vmatmul.mubr.f32.gmra.mxu0 %v5569
  %v5571 = vpop.f32.mrf.mxu0
  %v5572 = vadd.f32 %v5387, %v5571
  %v5573 = vpop.f32.mrf.mxu0
  %5574 = vmatprep.mubr.f32.mxu0 0.0
  %v5575 = vand.u32 %v4981, 4294901760
  %v5576 = vsub.f32 %v4981, %v5575
  %5577 = vmatmul.mubr.f32.gmra.mxu0 %v5576
  %v5578 = vpop.f32.mrf.mxu0
  %v5579 = vadd.f32 %v5393, %v5578
  %v5580 = vpop.f32.mrf.mxu0
  %5581 = vmatprep.mubr.f32.mxu0 0.0
  %v5582 = vand.u32 %v4984, 4294901760
  %v5583 = vsub.f32 %v4984, %v5582
  %5584 = vmatmul.mubr.f32.gmra.mxu0 %v5583
  %v5585 = vpop.f32.mrf.mxu0
  %v5586 = vadd.f32 %v5399, %v5585
  %v5587 = vpop.f32.mrf.mxu0
  %5588 = vmatprep.mubr.f32.mxu0 0.0
  %v5589 = vand.u32 %v4987, 4294901760
  %v5590 = vsub.f32 %v4987, %v5589
  %5591 = vmatmul.mubr.f32.gmra.mxu0 %v5590
  %v5592 = vpop.f32.mrf.mxu0
  %v5593 = vadd.f32 %v5405, %v5592
  %v5594 = vpop.f32.mrf.mxu0
  %5595 = vmatprep.mubr.f32.mxu0 0.0
  %v5596 = vand.u32 %v4990, 4294901760
  %v5597 = vsub.f32 %v4990, %v5596
  %5598 = vmatmul.mubr.f32.gmra.mxu0 %v5597
  %v5599 = vpop.f32.mrf.mxu0
  %v5600 = vadd.f32 %v5411, %v5599
  %v5601 = vpop.f32.mrf.mxu0
  %5602 = vmatprep.mubr.f32.mxu0 0.0
  %v5603 = vand.u32 %v4993, 4294901760
  %v5604 = vsub.f32 %v4993, %v5603
  %5605 = vmatmul.mubr.f32.gmra.mxu0 %v5604
  %v5606 = vpop.f32.mrf.mxu0
  %v5607 = vadd.f32 %v5417, %v5606
  %v5608 = vpop.f32.mrf.mxu0
  %5609 = vmatprep.mubr.f32.mxu0 0.0
  %v5610 = vand.u32 %v4996, 4294901760
  %v5611 = vsub.f32 %v4996, %v5610
  %5612 = vmatmul.mubr.f32.gmra.mxu0 %v5611
  %v5613 = vpop.f32.mrf.mxu0
  %v5614 = vadd.f32 %v5423, %v5613
  %v5615 = vpop.f32.mrf.mxu0
  %5616 = vmatprep.mubr.f32.mxu0 0.0
  %v5617 = vand.u32 %v4999, 4294901760
  %v5618 = vsub.f32 %v4999, %v5617
  %5619 = vmatmul.mubr.f32.gmra.mxu0 %v5618
  %v5620 = vpop.f32.mrf.mxu0
  %v5621 = vadd.f32 %v5429, %v5620
  %v5622 = vpop.f32.mrf.mxu0
  %5623 = vmatprep.mubr.f32.mxu0 0.0
  %v5624 = vand.u32 %v5002, 4294901760
  %v5625 = vsub.f32 %v5002, %v5624
  %5626 = vmatmul.mubr.f32.gmra.mxu0 %v5625
  %v5627 = vpop.f32.mrf.mxu0
  %v5628 = vadd.f32 %v5435, %v5627
  %v5629 = vpop.f32.mrf.mxu0
  %5630 = vdwg.mxu0
  %5631 = vmatprep.subr.mxu0 0.0
  %5632 = vmatpush1.msra.mxu0 0.0
  %5633 = vmatprep.subr.mxu0 0.0
  %5634 = vmatpush1.msra.mxu0 0.0
  %5635 = vmatprep.subr.mxu0 0.0
  %5636 = vmatpush1.msra.mxu0 0.0
  %5637 = vmatprep.subr.mxu0 0.0
  %5638 = vmatpush1.msra.mxu0 0.0
  %5639 = vmatprep.subr.mxu0 0.0
  %5640 = vmatpush1.msra.mxu0 0.0
  %5641 = vmatprep.subr.mxu0 0.0
  %5642 = vmatpush1.msra.mxu0 0.0
  %5643 = vmatprep.subr.mxu0 0.0
  %5644 = vmatpush1.msra.mxu0 0.0
  %5645 = vmatprep.subr.mxu0 0.0
  %5646 = vmatpush1.msra.mxu0 0.0
  %5647 = vmatprep.subr.mxu0 0.0
  %v5648 = vand.u32 %v4843, 4294901760
  %5649 = vmatpush1.msra.mxu0 %v5648
  %5650 = vmatprep.subr.mxu0 0.0
  %v5651 = vand.u32 %v4842, 4294901760
  %5652 = vmatpush1.msra.mxu0 %v5651
  %5653 = vmatprep.subr.mxu0 0.0
  %v5654 = vand.u32 %v4841, 4294901760
  %5655 = vmatpush1.msra.mxu0 %v5654
  %5656 = vmatprep.subr.mxu0 0.0
  %v5657 = vand.u32 %v4840, 4294901760
  %5658 = vmatpush1.msra.mxu0 %v5657
  %5659 = vmatprep.subr.mxu0 0.0
  %v5660 = vand.u32 %v4839, 4294901760
  %5661 = vmatpush1.msra.mxu0 %v5660
  %5662 = vmatprep.subr.mxu0 0.0
  %v5663 = vand.u32 %v4838, 4294901760
  %5664 = vmatpush1.msra.mxu0 %v5663
  %5665 = vmatprep.subr.mxu0 0.0
  %v5666 = vand.u32 %v4837, 4294901760
  %5667 = vmatpush1.msra.mxu0 %v5666
  %5668 = vmatprep.subr.mxu0 0.0
  %v5669 = vand.u32 %v4836, 4294901760
  %5670 = vmatpush1.msra.mxu0 %v5669
  %5671 = vmatprep.subr.mxu0 0.0
  %5672 = vmatpush2.msra.mxu0 0.0
  %5673 = vmatprep.subr.mxu0 0.0
  %5674 = vmatpush2.msra.mxu0 0.0
  %5675 = vmatprep.subr.mxu0 0.0
  %5676 = vmatpush2.msra.mxu0 0.0
  %5677 = vmatprep.subr.mxu0 0.0
  %5678 = vmatpush2.msra.mxu0 0.0
  %5679 = vmatprep.subr.mxu0 0.0
  %5680 = vmatpush2.msra.mxu0 0.0
  %5681 = vmatprep.subr.mxu0 0.0
  %5682 = vmatpush2.msra.mxu0 0.0
  %5683 = vmatprep.subr.mxu0 0.0
  %5684 = vmatpush2.msra.mxu0 0.0
  %5685 = vmatprep.subr.mxu0 0.0
  %5686 = vmatpush2.msra.mxu0 0.0
  %5687 = vmatprep.subr.mxu0 0.0
  %5688 = vmatpush2.msra.mxu0 0.0
  %5689 = vmatprep.subr.mxu0 0.0
  %5690 = vmatpush2.msra.mxu0 0.0
  %5691 = vmatprep.subr.mxu0 0.0
  %5692 = vmatpush2.msra.mxu0 0.0
  %5693 = vmatprep.subr.mxu0 0.0
  %5694 = vmatpush2.msra.mxu0 0.0
  %5695 = vmatprep.subr.mxu0 0.0
  %5696 = vmatpush2.msra.mxu0 0.0
  %5697 = vmatprep.subr.mxu0 0.0
  %5698 = vmatpush2.msra.mxu0 0.0
  %5699 = vmatprep.subr.mxu0 0.0
  %5700 = vmatpush2.msra.mxu0 0.0
  %5701 = vmatprep.subr.mxu0 0.0
  %5702 = vmatpush2.msra.mxu0 0.0
  %5703 = vmatprep.mubr.f32.mxu0 0.0
  %v5704 = vand.u32 %v4957, 4294901760
  %v5705 = vsub.f32 %v4957, %v5704
  %v5706 = vand.u32 %v5705, 4294901760
  %5707 = vmatmul.mubr.f32.gmra.mxu0 %v5706
  %v5708 = vpop.f32.mrf.mxu0
  %v5709 = vadd.f32 %v5523, %v5708
  %v5710 = vpop.f32.mrf.mxu0
  %5711 = vmatprep.mubr.f32.mxu0 0.0
  %v5712 = vand.u32 %v4960, 4294901760
  %v5713 = vsub.f32 %v4960, %v5712
  %v5714 = vand.u32 %v5713, 4294901760
  %5715 = vmatmul.mubr.f32.gmra.mxu0 %v5714
  %v5716 = vpop.f32.mrf.mxu0
  %v5717 = vadd.f32 %v5530, %v5716
  %v5718 = vpop.f32.mrf.mxu0
  %5719 = vmatprep.mubr.f32.mxu0 0.0
  %v5720 = vand.u32 %v4963, 4294901760
  %v5721 = vsub.f32 %v4963, %v5720
  %v5722 = vand.u32 %v5721, 4294901760
  %5723 = vmatmul.mubr.f32.gmra.mxu0 %v5722
  %v5724 = vpop.f32.mrf.mxu0
  %v5725 = vadd.f32 %v5537, %v5724
  %v5726 = vpop.f32.mrf.mxu0
  %5727 = vmatprep.mubr.f32.mxu0 0.0
  %v5728 = vand.u32 %v4966, 4294901760
  %v5729 = vsub.f32 %v4966, %v5728
  %v5730 = vand.u32 %v5729, 4294901760
  %5731 = vmatmul.mubr.f32.gmra.mxu0 %v5730
  %v5732 = vpop.f32.mrf.mxu0
  %v5733 = vadd.f32 %v5544, %v5732
  %v5734 = vpop.f32.mrf.mxu0
  %5735 = vmatprep.mubr.f32.mxu0 0.0
  %v5736 = vand.u32 %v4969, 4294901760
  %v5737 = vsub.f32 %v4969, %v5736
  %v5738 = vand.u32 %v5737, 4294901760
  %5739 = vmatmul.mubr.f32.gmra.mxu0 %v5738
  %v5740 = vpop.f32.mrf.mxu0
  %v5741 = vadd.f32 %v5551, %v5740
  %v5742 = vpop.f32.mrf.mxu0
  %5743 = vmatprep.mubr.f32.mxu0 0.0
  %v5744 = vand.u32 %v4972, 4294901760
  %v5745 = vsub.f32 %v4972, %v5744
  %v5746 = vand.u32 %v5745, 4294901760
  %5747 = vmatmul.mubr.f32.gmra.mxu0 %v5746
  %v5748 = vpop.f32.mrf.mxu0
  %v5749 = vadd.f32 %v5558, %v5748
  %v5750 = vpop.f32.mrf.mxu0
  %5751 = vmatprep.mubr.f32.mxu0 0.0
  %v5752 = vand.u32 %v4975, 4294901760
  %v5753 = vsub.f32 %v4975, %v5752
  %v5754 = vand.u32 %v5753, 4294901760
  %5755 = vmatmul.mubr.f32.gmra.mxu0 %v5754
  %v5756 = vpop.f32.mrf.mxu0
  %v5757 = vadd.f32 %v5565, %v5756
  %v5758 = vpop.f32.mrf.mxu0
  %5759 = vmatprep.mubr.f32.mxu0 0.0
  %v5760 = vand.u32 %v4978, 4294901760
  %v5761 = vsub.f32 %v4978, %v5760
  %v5762 = vand.u32 %v5761, 4294901760
  %5763 = vmatmul.mubr.f32.gmra.mxu0 %v5762
  %v5764 = vpop.f32.mrf.mxu0
  %v5765 = vadd.f32 %v5572, %v5764
  %v5766 = vpop.f32.mrf.mxu0
  %5767 = vmatprep.mubr.f32.mxu0 0.0
  %v5768 = vand.u32 %v4981, 4294901760
  %v5769 = vsub.f32 %v4981, %v5768
  %v5770 = vand.u32 %v5769, 4294901760
  %5771 = vmatmul.mubr.f32.gmra.mxu0 %v5770
  %v5772 = vpop.f32.mrf.mxu0
  %v5773 = vadd.f32 %v5579, %v5772
  %v5774 = vpop.f32.mrf.mxu0
  %5775 = vmatprep.mubr.f32.mxu0 0.0
  %v5776 = vand.u32 %v4984, 4294901760
  %v5777 = vsub.f32 %v4984, %v5776
  %v5778 = vand.u32 %v5777, 4294901760
  %5779 = vmatmul.mubr.f32.gmra.mxu0 %v5778
  %v5780 = vpop.f32.mrf.mxu0
  %v5781 = vadd.f32 %v5586, %v5780
  %v5782 = vpop.f32.mrf.mxu0
  %5783 = vmatprep.mubr.f32.mxu0 0.0
  %v5784 = vand.u32 %v4987, 4294901760
  %v5785 = vsub.f32 %v4987, %v5784
  %v5786 = vand.u32 %v5785, 4294901760
  %5787 = vmatmul.mubr.f32.gmra.mxu0 %v5786
  %v5788 = vpop.f32.mrf.mxu0
  %v5789 = vadd.f32 %v5593, %v5788
  %v5790 = vpop.f32.mrf.mxu0
  %5791 = vmatprep.mubr.f32.mxu0 0.0
  %v5792 = vand.u32 %v4990, 4294901760
  %v5793 = vsub.f32 %v4990, %v5792
  %v5794 = vand.u32 %v5793, 4294901760
  %5795 = vmatmul.mubr.f32.gmra.mxu0 %v5794
  %v5796 = vpop.f32.mrf.mxu0
  %v5797 = vadd.f32 %v5600, %v5796
  %v5798 = vpop.f32.mrf.mxu0
  %5799 = vmatprep.mubr.f32.mxu0 0.0
  %v5800 = vand.u32 %v4993, 4294901760
  %v5801 = vsub.f32 %v4993, %v5800
  %v5802 = vand.u32 %v5801, 4294901760
  %5803 = vmatmul.mubr.f32.gmra.mxu0 %v5802
  %v5804 = vpop.f32.mrf.mxu0
  %v5805 = vadd.f32 %v5607, %v5804
  %v5806 = vpop.f32.mrf.mxu0
  %5807 = vmatprep.mubr.f32.mxu0 0.0
  %v5808 = vand.u32 %v4996, 4294901760
  %v5809 = vsub.f32 %v4996, %v5808
  %v5810 = vand.u32 %v5809, 4294901760
  %5811 = vmatmul.mubr.f32.gmra.mxu0 %v5810
  %v5812 = vpop.f32.mrf.mxu0
  %v5813 = vadd.f32 %v5614, %v5812
  %v5814 = vpop.f32.mrf.mxu0
  %5815 = vmatprep.mubr.f32.mxu0 0.0
  %v5816 = vand.u32 %v4999, 4294901760
  %v5817 = vsub.f32 %v4999, %v5816
  %v5818 = vand.u32 %v5817, 4294901760
  %5819 = vmatmul.mubr.f32.gmra.mxu0 %v5818
  %v5820 = vpop.f32.mrf.mxu0
  %v5821 = vadd.f32 %v5621, %v5820
  %v5822 = vpop.f32.mrf.mxu0
  %5823 = vmatprep.mubr.f32.mxu0 0.0
  %v5824 = vand.u32 %v5002, 4294901760
  %v5825 = vsub.f32 %v5002, %v5824
  %v5826 = vand.u32 %v5825, 4294901760
  %5827 = vmatmul.mubr.f32.gmra.mxu0 %v5826
  %v5828 = vpop.f32.mrf.mxu0
  %v5829 = vadd.f32 %v5628, %v5828
  %v5830 = vpop.f32.mrf.mxu0
  %5831 = vdwg.mxu0
  %5832 = vmatprep.subr.mxu0 0.0
  %5833 = vmatpush1.msra.mxu0 0.0
  %5834 = vmatprep.subr.mxu0 0.0
  %5835 = vmatpush1.msra.mxu0 0.0
  %5836 = vmatprep.subr.mxu0 0.0
  %5837 = vmatpush1.msra.mxu0 0.0
  %5838 = vmatprep.subr.mxu0 0.0
  %5839 = vmatpush1.msra.mxu0 0.0
  %5840 = vmatprep.subr.mxu0 0.0
  %5841 = vmatpush1.msra.mxu0 0.0
  %5842 = vmatprep.subr.mxu0 0.0
  %5843 = vmatpush1.msra.mxu0 0.0
  %5844 = vmatprep.subr.mxu0 0.0
  %5845 = vmatpush1.msra.mxu0 0.0
  %5846 = vmatprep.subr.mxu0 0.0
  %5847 = vmatpush1.msra.mxu0 0.0
  %5848 = vmatprep.subr.mxu0 0.0
  %v5849 = vand.u32 %v4843, 4294901760
  %v5850 = vsub.f32 %v4843, %v5849
  %v5851 = vand.u32 %v5850, 4294901760
  %5852 = vmatpush1.msra.mxu0 %v5851
  %5853 = vmatprep.subr.mxu0 0.0
  %v5854 = vand.u32 %v4842, 4294901760
  %v5855 = vsub.f32 %v4842, %v5854
  %v5856 = vand.u32 %v5855, 4294901760
  %5857 = vmatpush1.msra.mxu0 %v5856
  %5858 = vmatprep.subr.mxu0 0.0
  %v5859 = vand.u32 %v4841, 4294901760
  %v5860 = vsub.f32 %v4841, %v5859
  %v5861 = vand.u32 %v5860, 4294901760
  %5862 = vmatpush1.msra.mxu0 %v5861
  %5863 = vmatprep.subr.mxu0 0.0
  %v5864 = vand.u32 %v4840, 4294901760
  %v5865 = vsub.f32 %v4840, %v5864
  %v5866 = vand.u32 %v5865, 4294901760
  %5867 = vmatpush1.msra.mxu0 %v5866
  %5868 = vmatprep.subr.mxu0 0.0
  %v5869 = vand.u32 %v4839, 4294901760
  %v5870 = vsub.f32 %v4839, %v5869
  %v5871 = vand.u32 %v5870, 4294901760
  %5872 = vmatpush1.msra.mxu0 %v5871
  %5873 = vmatprep.subr.mxu0 0.0
  %v5874 = vand.u32 %v4838, 4294901760
  %v5875 = vsub.f32 %v4838, %v5874
  %v5876 = vand.u32 %v5875, 4294901760
  %5877 = vmatpush1.msra.mxu0 %v5876
  %5878 = vmatprep.subr.mxu0 0.0
  %v5879 = vand.u32 %v4837, 4294901760
  %v5880 = vsub.f32 %v4837, %v5879
  %v5881 = vand.u32 %v5880, 4294901760
  %5882 = vmatpush1.msra.mxu0 %v5881
  %5883 = vmatprep.subr.mxu0 0.0
  %v5884 = vand.u32 %v4836, 4294901760
  %v5885 = vsub.f32 %v4836, %v5884
  %v5886 = vand.u32 %v5885, 4294901760
  %5887 = vmatpush1.msra.mxu0 %v5886
  %5888 = vmatprep.subr.mxu0 0.0
  %5889 = vmatpush2.msra.mxu0 0.0
  %5890 = vmatprep.subr.mxu0 0.0
  %5891 = vmatpush2.msra.mxu0 0.0
  %5892 = vmatprep.subr.mxu0 0.0
  %5893 = vmatpush2.msra.mxu0 0.0
  %5894 = vmatprep.subr.mxu0 0.0
  %5895 = vmatpush2.msra.mxu0 0.0
  %5896 = vmatprep.subr.mxu0 0.0
  %5897 = vmatpush2.msra.mxu0 0.0
  %5898 = vmatprep.subr.mxu0 0.0
  %5899 = vmatpush2.msra.mxu0 0.0
  %5900 = vmatprep.subr.mxu0 0.0
  %5901 = vmatpush2.msra.mxu0 0.0
  %5902 = vmatprep.subr.mxu0 0.0
  %5903 = vmatpush2.msra.mxu0 0.0
  %5904 = vmatprep.subr.mxu0 0.0
  %5905 = vmatpush2.msra.mxu0 0.0
  %5906 = vmatprep.subr.mxu0 0.0
  %5907 = vmatpush2.msra.mxu0 0.0
  %5908 = vmatprep.subr.mxu0 0.0
  %5909 = vmatpush2.msra.mxu0 0.0
  %5910 = vmatprep.subr.mxu0 0.0
  %5911 = vmatpush2.msra.mxu0 0.0
  %5912 = vmatprep.subr.mxu0 0.0
  %5913 = vmatpush2.msra.mxu0 0.0
  %5914 = vmatprep.subr.mxu0 0.0
  %5915 = vmatpush2.msra.mxu0 0.0
  %5916 = vmatprep.subr.mxu0 0.0
  %5917 = vmatpush2.msra.mxu0 0.0
  %5918 = vmatprep.subr.mxu0 0.0
  %5919 = vmatpush2.msra.mxu0 0.0
  %5920 = vmatprep.mubr.f32.mxu0 0.0
  %v5921 = vand.u32 %v4957, 4294901760
  %5922 = vmatmul.mubr.f32.gmra.mxu0 %v5921
  %v5923 = vpop.f32.mrf.mxu0
  %v5924 = vadd.f32 %v5709, %v5923
  %v5925 = vpop.f32.mrf.mxu0
  %5926 = vmatprep.mubr.f32.mxu0 0.0
  %v5927 = vand.u32 %v4960, 4294901760
  %5928 = vmatmul.mubr.f32.gmra.mxu0 %v5927
  %v5929 = vpop.f32.mrf.mxu0
  %v5930 = vadd.f32 %v5717, %v5929
  %v5931 = vpop.f32.mrf.mxu0
  %5932 = vmatprep.mubr.f32.mxu0 0.0
  %v5933 = vand.u32 %v4963, 4294901760
  %5934 = vmatmul.mubr.f32.gmra.mxu0 %v5933
  %v5935 = vpop.f32.mrf.mxu0
  %v5936 = vadd.f32 %v5725, %v5935
  %v5937 = vpop.f32.mrf.mxu0
  %5938 = vmatprep.mubr.f32.mxu0 0.0
  %v5939 = vand.u32 %v4966, 4294901760
  %5940 = vmatmul.mubr.f32.gmra.mxu0 %v5939
  %v5941 = vpop.f32.mrf.mxu0
  %v5942 = vadd.f32 %v5733, %v5941
  %v5943 = vpop.f32.mrf.mxu0
  %5944 = vmatprep.mubr.f32.mxu0 0.0
  %v5945 = vand.u32 %v4969, 4294901760
  %5946 = vmatmul.mubr.f32.gmra.mxu0 %v5945
  %v5947 = vpop.f32.mrf.mxu0
  %v5948 = vadd.f32 %v5741, %v5947
  %v5949 = vpop.f32.mrf.mxu0
  %5950 = vmatprep.mubr.f32.mxu0 0.0
  %v5951 = vand.u32 %v4972, 4294901760
  %5952 = vmatmul.mubr.f32.gmra.mxu0 %v5951
  %v5953 = vpop.f32.mrf.mxu0
  %v5954 = vadd.f32 %v5749, %v5953
  %v5955 = vpop.f32.mrf.mxu0
  %5956 = vmatprep.mubr.f32.mxu0 0.0
  %v5957 = vand.u32 %v4975, 4294901760
  %5958 = vmatmul.mubr.f32.gmra.mxu0 %v5957
  %v5959 = vpop.f32.mrf.mxu0
  %v5960 = vadd.f32 %v5757, %v5959
  %v5961 = vpop.f32.mrf.mxu0
  %5962 = vmatprep.mubr.f32.mxu0 0.0
  %v5963 = vand.u32 %v4978, 4294901760
  %5964 = vmatmul.mubr.f32.gmra.mxu0 %v5963
  %v5965 = vpop.f32.mrf.mxu0
  %v5966 = vadd.f32 %v5765, %v5965
  %v5967 = vpop.f32.mrf.mxu0
  %5968 = vmatprep.mubr.f32.mxu0 0.0
  %v5969 = vand.u32 %v4981, 4294901760
  %5970 = vmatmul.mubr.f32.gmra.mxu0 %v5969
  %v5971 = vpop.f32.mrf.mxu0
  %v5972 = vadd.f32 %v5773, %v5971
  %v5973 = vpop.f32.mrf.mxu0
  %5974 = vmatprep.mubr.f32.mxu0 0.0
  %v5975 = vand.u32 %v4984, 4294901760
  %5976 = vmatmul.mubr.f32.gmra.mxu0 %v5975
  %v5977 = vpop.f32.mrf.mxu0
  %v5978 = vadd.f32 %v5781, %v5977
  %v5979 = vpop.f32.mrf.mxu0
  %5980 = vmatprep.mubr.f32.mxu0 0.0
  %v5981 = vand.u32 %v4987, 4294901760
  %5982 = vmatmul.mubr.f32.gmra.mxu0 %v5981
  %v5983 = vpop.f32.mrf.mxu0
  %v5984 = vadd.f32 %v5789, %v5983
  %v5985 = vpop.f32.mrf.mxu0
  %5986 = vmatprep.mubr.f32.mxu0 0.0
  %v5987 = vand.u32 %v4990, 4294901760
  %5988 = vmatmul.mubr.f32.gmra.mxu0 %v5987
  %v5989 = vpop.f32.mrf.mxu0
  %v5990 = vadd.f32 %v5797, %v5989
  %v5991 = vpop.f32.mrf.mxu0
  %5992 = vmatprep.mubr.f32.mxu0 0.0
  %v5993 = vand.u32 %v4993, 4294901760
  %5994 = vmatmul.mubr.f32.gmra.mxu0 %v5993
  %v5995 = vpop.f32.mrf.mxu0
  %v5996 = vadd.f32 %v5805, %v5995
  %v5997 = vpop.f32.mrf.mxu0
  %5998 = vmatprep.mubr.f32.mxu0 0.0
  %v5999 = vand.u32 %v4996, 4294901760
  %6000 = vmatmul.mubr.f32.gmra.mxu0 %v5999
  %v6001 = vpop.f32.mrf.mxu0
  %v6002 = vadd.f32 %v5813, %v6001
  %v6003 = vpop.f32.mrf.mxu0
  %6004 = vmatprep.mubr.f32.mxu0 0.0
  %v6005 = vand.u32 %v4999, 4294901760
  %6006 = vmatmul.mubr.f32.gmra.mxu0 %v6005
  %v6007 = vpop.f32.mrf.mxu0
  %v6008 = vadd.f32 %v5821, %v6007
  %v6009 = vpop.f32.mrf.mxu0
  %6010 = vmatprep.mubr.f32.mxu0 0.0
  %v6011 = vand.u32 %v5002, 4294901760
  %6012 = vmatmul.mubr.f32.gmra.mxu0 %v6011
  %v6013 = vpop.f32.mrf.mxu0
  %v6014 = vadd.f32 %v5829, %v6013
  %v6015 = vpop.f32.mrf.mxu0
  %6016 = vdwg.mxu0
  %6017 = vmatprep.subr.mxu0 0.0
  %6018 = vmatpush1.msra.mxu0 0.0
  %6019 = vmatprep.subr.mxu0 0.0
  %6020 = vmatpush1.msra.mxu0 0.0
  %6021 = vmatprep.subr.mxu0 0.0
  %6022 = vmatpush1.msra.mxu0 0.0
  %6023 = vmatprep.subr.mxu0 0.0
  %6024 = vmatpush1.msra.mxu0 0.0
  %6025 = vmatprep.subr.mxu0 0.0
  %6026 = vmatpush1.msra.mxu0 0.0
  %6027 = vmatprep.subr.mxu0 0.0
  %6028 = vmatpush1.msra.mxu0 0.0
  %6029 = vmatprep.subr.mxu0 0.0
  %6030 = vmatpush1.msra.mxu0 0.0
  %6031 = vmatprep.subr.mxu0 0.0
  %6032 = vmatpush1.msra.mxu0 0.0
  %6033 = vmatprep.subr.mxu0 0.0
  %v6034 = vand.u32 %v4843, 4294901760
  %6035 = vmatpush1.msra.mxu0 %v6034
  %6036 = vmatprep.subr.mxu0 0.0
  %v6037 = vand.u32 %v4842, 4294901760
  %6038 = vmatpush1.msra.mxu0 %v6037
  %6039 = vmatprep.subr.mxu0 0.0
  %v6040 = vand.u32 %v4841, 4294901760
  %6041 = vmatpush1.msra.mxu0 %v6040
  %6042 = vmatprep.subr.mxu0 0.0
  %v6043 = vand.u32 %v4840, 4294901760
  %6044 = vmatpush1.msra.mxu0 %v6043
  %6045 = vmatprep.subr.mxu0 0.0
  %v6046 = vand.u32 %v4839, 4294901760
  %6047 = vmatpush1.msra.mxu0 %v6046
  %6048 = vmatprep.subr.mxu0 0.0
  %v6049 = vand.u32 %v4838, 4294901760
  %6050 = vmatpush1.msra.mxu0 %v6049
  %6051 = vmatprep.subr.mxu0 0.0
  %v6052 = vand.u32 %v4837, 4294901760
  %6053 = vmatpush1.msra.mxu0 %v6052
  %6054 = vmatprep.subr.mxu0 0.0
  %v6055 = vand.u32 %v4836, 4294901760
  %6056 = vmatpush1.msra.mxu0 %v6055
  %6057 = vmatprep.subr.mxu0 0.0
  %6058 = vmatpush2.msra.mxu0 0.0
  %6059 = vmatprep.subr.mxu0 0.0
  %6060 = vmatpush2.msra.mxu0 0.0
  %6061 = vmatprep.subr.mxu0 0.0
  %6062 = vmatpush2.msra.mxu0 0.0
  %6063 = vmatprep.subr.mxu0 0.0
  %6064 = vmatpush2.msra.mxu0 0.0
  %6065 = vmatprep.subr.mxu0 0.0
  %6066 = vmatpush2.msra.mxu0 0.0
  %6067 = vmatprep.subr.mxu0 0.0
  %6068 = vmatpush2.msra.mxu0 0.0
  %6069 = vmatprep.subr.mxu0 0.0
  %6070 = vmatpush2.msra.mxu0 0.0
  %6071 = vmatprep.subr.mxu0 0.0
  %6072 = vmatpush2.msra.mxu0 0.0
  %6073 = vmatprep.subr.mxu0 0.0
  %6074 = vmatpush2.msra.mxu0 0.0
  %6075 = vmatprep.subr.mxu0 0.0
  %6076 = vmatpush2.msra.mxu0 0.0
  %6077 = vmatprep.subr.mxu0 0.0
  %6078 = vmatpush2.msra.mxu0 0.0
  %6079 = vmatprep.subr.mxu0 0.0
  %6080 = vmatpush2.msra.mxu0 0.0
  %6081 = vmatprep.subr.mxu0 0.0
  %6082 = vmatpush2.msra.mxu0 0.0
  %6083 = vmatprep.subr.mxu0 0.0
  %6084 = vmatpush2.msra.mxu0 0.0
  %6085 = vmatprep.subr.mxu0 0.0
  %6086 = vmatpush2.msra.mxu0 0.0
  %6087 = vmatprep.subr.mxu0 0.0
  %6088 = vmatpush2.msra.mxu0 0.0
  %6089 = vmatprep.mubr.f32.mxu0 0.0
  %v6090 = vand.u32 %v4957, 4294901760
  %6091 = vmatmul.mubr.f32.gmra.mxu0 %v6090
  %v6092 = vpop.f32.mrf.mxu0
  %v6093 = vadd.f32 %v5924, %v6092
  %v6094 = vpop.f32.mrf.mxu0
  %6095 = vmatprep.mubr.f32.mxu0 0.0
  %v6096 = vand.u32 %v4960, 4294901760
  %6097 = vmatmul.mubr.f32.gmra.mxu0 %v6096
  %v6098 = vpop.f32.mrf.mxu0
  %v6099 = vadd.f32 %v5930, %v6098
  %v6100 = vpop.f32.mrf.mxu0
  %6101 = vmatprep.mubr.f32.mxu0 0.0
  %v6102 = vand.u32 %v4963, 4294901760
  %6103 = vmatmul.mubr.f32.gmra.mxu0 %v6102
  %v6104 = vpop.f32.mrf.mxu0
  %v6105 = vadd.f32 %v5936, %v6104
  %v6106 = vpop.f32.mrf.mxu0
  %6107 = vmatprep.mubr.f32.mxu0 0.0
  %v6108 = vand.u32 %v4966, 4294901760
  %6109 = vmatmul.mubr.f32.gmra.mxu0 %v6108
  %v6110 = vpop.f32.mrf.mxu0
  %v6111 = vadd.f32 %v5942, %v6110
  %v6112 = vpop.f32.mrf.mxu0
  %6113 = vmatprep.mubr.f32.mxu0 0.0
  %v6114 = vand.u32 %v4969, 4294901760
  %6115 = vmatmul.mubr.f32.gmra.mxu0 %v6114
  %v6116 = vpop.f32.mrf.mxu0
  %v6117 = vadd.f32 %v5948, %v6116
  %v6118 = vpop.f32.mrf.mxu0
  %6119 = vmatprep.mubr.f32.mxu0 0.0
  %v6120 = vand.u32 %v4972, 4294901760
  %6121 = vmatmul.mubr.f32.gmra.mxu0 %v6120
  %v6122 = vpop.f32.mrf.mxu0
  %v6123 = vadd.f32 %v5954, %v6122
  %v6124 = vpop.f32.mrf.mxu0
  %6125 = vmatprep.mubr.f32.mxu0 0.0
  %v6126 = vand.u32 %v4975, 4294901760
  %6127 = vmatmul.mubr.f32.gmra.mxu0 %v6126
  %v6128 = vpop.f32.mrf.mxu0
  %v6129 = vadd.f32 %v5960, %v6128
  %v6130 = vpop.f32.mrf.mxu0
  %6131 = vmatprep.mubr.f32.mxu0 0.0
  %v6132 = vand.u32 %v4978, 4294901760
  %6133 = vmatmul.mubr.f32.gmra.mxu0 %v6132
  %v6134 = vpop.f32.mrf.mxu0
  %v6135 = vadd.f32 %v5966, %v6134
  %v6136 = vpop.f32.mrf.mxu0
  %6137 = vmatprep.mubr.f32.mxu0 0.0
  %v6138 = vand.u32 %v4981, 4294901760
  %6139 = vmatmul.mubr.f32.gmra.mxu0 %v6138
  %v6140 = vpop.f32.mrf.mxu0
  %v6141 = vadd.f32 %v5972, %v6140
  %v6142 = vpop.f32.mrf.mxu0
  %6143 = vmatprep.mubr.f32.mxu0 0.0
  %v6144 = vand.u32 %v4984, 4294901760
  %6145 = vmatmul.mubr.f32.gmra.mxu0 %v6144
  %v6146 = vpop.f32.mrf.mxu0
  %v6147 = vadd.f32 %v5978, %v6146
  %v6148 = vpop.f32.mrf.mxu0
  %6149 = vmatprep.mubr.f32.mxu0 0.0
  %v6150 = vand.u32 %v4987, 4294901760
  %6151 = vmatmul.mubr.f32.gmra.mxu0 %v6150
  %v6152 = vpop.f32.mrf.mxu0
  %v6153 = vadd.f32 %v5984, %v6152
  %v6154 = vpop.f32.mrf.mxu0
  %6155 = vmatprep.mubr.f32.mxu0 0.0
  %v6156 = vand.u32 %v4990, 4294901760
  %6157 = vmatmul.mubr.f32.gmra.mxu0 %v6156
  %v6158 = vpop.f32.mrf.mxu0
  %v6159 = vadd.f32 %v5990, %v6158
  %v6160 = vpop.f32.mrf.mxu0
  %6161 = vmatprep.mubr.f32.mxu0 0.0
  %v6162 = vand.u32 %v4993, 4294901760
  %6163 = vmatmul.mubr.f32.gmra.mxu0 %v6162
  %v6164 = vpop.f32.mrf.mxu0
  %v6165 = vadd.f32 %v5996, %v6164
  %v6166 = vpop.f32.mrf.mxu0
  %6167 = vmatprep.mubr.f32.mxu0 0.0
  %v6168 = vand.u32 %v4996, 4294901760
  %6169 = vmatmul.mubr.f32.gmra.mxu0 %v6168
  %v6170 = vpop.f32.mrf.mxu0
  %v6171 = vadd.f32 %v6002, %v6170
  %v6172 = vpop.f32.mrf.mxu0
  %6173 = vmatprep.mubr.f32.mxu0 0.0
  %v6174 = vand.u32 %v4999, 4294901760
  %6175 = vmatmul.mubr.f32.gmra.mxu0 %v6174
  %v6176 = vpop.f32.mrf.mxu0
  %v6177 = vadd.f32 %v6008, %v6176
  %v6178 = vpop.f32.mrf.mxu0
  %6179 = vmatprep.mubr.f32.mxu0 0.0
  %v6180 = vand.u32 %v5002, 4294901760
  %6181 = vmatmul.mubr.f32.gmra.mxu0 %v6180
  %v6182 = vpop.f32.mrf.mxu0
  %v6183 = vadd.f32 %v6014, %v6182
  %v6184 = vpop.f32.mrf.mxu0
  %6185 = vdwg.mxu0
  %v6186 = vld [vmem:[#allocation2] sm:$0xff]
  %v6187 = vld [vmem:[#allocation2 + $0x8] sm:$0xff]
  %v6188 = vld [vmem:[#allocation2 + $0x10] sm:$0xff]
  %v6189 = vld [vmem:[#allocation2 + $0x18] sm:$0xff]
  %v6190 = vld [vmem:[#allocation2 + $0x20] sm:$0xff]
  %v6191 = vld [vmem:[#allocation2 + $0x28] sm:$0xff]
  %v6192 = vld [vmem:[#allocation2 + $0x30] sm:$0xff]
  %v6193 = vld [vmem:[#allocation2 + $0x38] sm:$0xff]
  %v6194 = vld [vmem:[#allocation2 + $0x40] sm:$0xff]
  %v6195 = vld [vmem:[#allocation2 + $0x48] sm:$0xff]
  %v6196 = vld [vmem:[#allocation2 + $0x50] sm:$0xff]
  %v6197 = vld [vmem:[#allocation2 + $0x58] sm:$0xff]
  %v6198 = vld [vmem:[#allocation2 + $0x60] sm:$0xff]
  %v6199 = vld [vmem:[#allocation2 + $0x68] sm:$0xff]
  %v6200 = vld [vmem:[#allocation2 + $0x70] sm:$0xff]
  %v6201 = vld [vmem:[#allocation2 + $0x78] sm:$0xff]
  %v6202 = vmul.f32 %v6186, %v6093
  %v6203 = vmul.f32 %v6187, %v6099
  %v6204 = vmul.f32 %v6188, %v6105
  %v6205 = vmul.f32 %v6189, %v6111
  %v6206 = vmul.f32 %v6190, %v6117
  %v6207 = vmul.f32 %v6191, %v6123
  %v6208 = vmul.f32 %v6192, %v6129
  %v6209 = vmul.f32 %v6193, %v6135
  %v6210 = vmul.f32 %v6194, %v6141
  %v6211 = vmul.f32 %v6195, %v6147
  %v6212 = vmul.f32 %v6196, %v6153
  %v6213 = vmul.f32 %v6197, %v6159
  %v6214 = vmul.f32 %v6198, %v6165
  %v6215 = vmul.f32 %v6199, %v6171
  %v6216 = vmul.f32 %v6200, %v6177
  %v6217 = vmul.f32 %v6201, %v6183
  %v6218 = vld [vmem:[%s7] sm:$0x1]
  %v6219 = vlaneseq
  %v6220 = vshrl.u32 %v6219, 7
  %v6221 = vadd.s32 %v6220, 8
  %v6222 = vadd.s32 %v6220, 16
  %v6223 = vadd.s32 %v6220, 24
  %v6224 = vadd.s32 %v6220, 32
  %v6225 = vadd.s32 %v6220, 40
  %v6226 = vadd.s32 %v6220, 48
  %v6227 = vadd.s32 %v6220, 56
  %v6228 = vlaneseq
  %v6229 = vshrl.u32 %v6228, 7
  %v6230 = vsub.s32 0, %v6229
  %v6231 = vrot.slane %v6218, %v6230
  %vm6232 = vcmp.eq.s32.totalorder %v6231, %v6220
  %vm6233 = vcmp.eq.s32.totalorder %v6231, %v6221
  %vm6234 = vcmp.eq.s32.totalorder %v6231, %v6222
  %vm6235 = vcmp.eq.s32.totalorder %v6231, %v6223
  %vm6236 = vcmp.eq.s32.totalorder %v6231, %v6224
  %vm6237 = vcmp.eq.s32.totalorder %v6231, %v6225
  %vm6238 = vcmp.eq.s32.totalorder %v6231, %v6226
  %vm6239 = vcmp.eq.s32.totalorder %v6231, %v6227
  %v6240 = vsel %vm6232, 1, 0
  %v6241 = vsel %vm6233, 1, 0
  %v6242 = vsel %vm6234, 1, 0
  %v6243 = vsel %vm6235, 1, 0
  %v6244 = vsel %vm6236, 1, 0
  %v6245 = vsel %vm6237, 1, 0
  %v6246 = vsel %vm6238, 1, 0
  %v6247 = vsel %vm6239, 1, 0
  %v6248 = vcvt.s32.f32 %v6240
  %v6249 = vcvt.s32.f32 %v6241
  %v6250 = vcvt.s32.f32 %v6242
  %v6251 = vcvt.s32.f32 %v6243
  %v6252 = vcvt.s32.f32 %v6244
  %v6253 = vcvt.s32.f32 %v6245
  %v6254 = vcvt.s32.f32 %v6246
  %v6255 = vcvt.s32.f32 %v6247
  %6256 = vmatprep.subr.mxu0 0.0
  %v6257 = vand.u32 %v6217, 4294901760
  %6258 = vmatpush1.msra.mxu0 %v6257
  %6259 = vmatprep.subr.mxu0 0.0
  %v6260 = vand.u32 %v6216, 4294901760
  %6261 = vmatpush1.msra.mxu0 %v6260
  %6262 = vmatprep.subr.mxu0 0.0
  %v6263 = vand.u32 %v6215, 4294901760
  %6264 = vmatpush1.msra.mxu0 %v6263
  %6265 = vmatprep.subr.mxu0 0.0
  %v6266 = vand.u32 %v6214, 4294901760
  %6267 = vmatpush1.msra.mxu0 %v6266
  %6268 = vmatprep.subr.mxu0 0.0
  %v6269 = vand.u32 %v6213, 4294901760
  %6270 = vmatpush1.msra.mxu0 %v6269
  %6271 = vmatprep.subr.mxu0 0.0
  %v6272 = vand.u32 %v6212, 4294901760
  %6273 = vmatpush1.msra.mxu0 %v6272
  %6274 = vmatprep.subr.mxu0 0.0
  %v6275 = vand.u32 %v6211, 4294901760
  %6276 = vmatpush1.msra.mxu0 %v6275
  %6277 = vmatprep.subr.mxu0 0.0
  %v6278 = vand.u32 %v6210, 4294901760
  %6279 = vmatpush1.msra.mxu0 %v6278
  %6280 = vmatprep.subr.mxu0 0.0
  %v6281 = vand.u32 %v6209, 4294901760
  %6282 = vmatpush1.msra.mxu0 %v6281
  %6283 = vmatprep.subr.mxu0 0.0
  %v6284 = vand.u32 %v6208, 4294901760
  %6285 = vmatpush1.msra.mxu0 %v6284
  %6286 = vmatprep.subr.mxu0 0.0
  %v6287 = vand.u32 %v6207, 4294901760
  %6288 = vmatpush1.msra.mxu0 %v6287
  %6289 = vmatprep.subr.mxu0 0.0
  %v6290 = vand.u32 %v6206, 4294901760
  %6291 = vmatpush1.msra.mxu0 %v6290
  %6292 = vmatprep.subr.mxu0 0.0
  %v6293 = vand.u32 %v6205, 4294901760
  %6294 = vmatpush1.msra.mxu0 %v6293
  %6295 = vmatprep.subr.mxu0 0.0
  %v6296 = vand.u32 %v6204, 4294901760
  %6297 = vmatpush1.msra.mxu0 %v6296
  %6298 = vmatprep.subr.mxu0 0.0
  %v6299 = vand.u32 %v6203, 4294901760
  %6300 = vmatpush1.msra.mxu0 %v6299
  %6301 = vmatprep.subr.mxu0 0.0
  %v6302 = vand.u32 %v6202, 4294901760
  %6303 = vmatpush1.msra.mxu0 %v6302
  %6304 = vmatprep.subr.mxu0 0.0
  %6305 = vmatpush2.msra.mxu0 0.0
  %6306 = vmatprep.subr.mxu0 0.0
  %6307 = vmatpush2.msra.mxu0 0.0
  %6308 = vmatprep.subr.mxu0 0.0
  %6309 = vmatpush2.msra.mxu0 0.0
  %6310 = vmatprep.subr.mxu0 0.0
  %6311 = vmatpush2.msra.mxu0 0.0
  %6312 = vmatprep.subr.mxu0 0.0
  %6313 = vmatpush2.msra.mxu0 0.0
  %6314 = vmatprep.subr.mxu0 0.0
  %6315 = vmatpush2.msra.mxu0 0.0
  %6316 = vmatprep.subr.mxu0 0.0
  %6317 = vmatpush2.msra.mxu0 0.0
  %6318 = vmatprep.subr.mxu0 0.0
  %6319 = vmatpush2.msra.mxu0 0.0
  %6320 = vmatprep.subr.mxu0 0.0
  %6321 = vmatpush2.msra.mxu0 0.0
  %6322 = vmatprep.subr.mxu0 0.0
  %6323 = vmatpush2.msra.mxu0 0.0
  %6324 = vmatprep.subr.mxu0 0.0
  %6325 = vmatpush2.msra.mxu0 0.0
  %6326 = vmatprep.subr.mxu0 0.0
  %6327 = vmatpush2.msra.mxu0 0.0
  %6328 = vmatprep.subr.mxu0 0.0
  %6329 = vmatpush2.msra.mxu0 0.0
  %6330 = vmatprep.subr.mxu0 0.0
  %6331 = vmatpush2.msra.mxu0 0.0
  %6332 = vmatprep.subr.mxu0 0.0
  %6333 = vmatpush2.msra.mxu0 0.0
  %6334 = vmatprep.subr.mxu0 0.0
  %6335 = vmatpush2.msra.mxu0 0.0
  %6336 = vmatprep.mubr.f32.mxu0 0.0
  %v6337 = vand.u32 %v6248, 4294901760
  %v6338 = vsub.f32 %v6248, %v6337
  %v6339 = vand.u32 %v6338, 4294901760
  %v6340 = vsub.f32 %v6338, %v6339
  %v6341 = vand.u32 %v6340, 4294901760
  %6342 = vmatmul.mubr.f32.gmra.mxu0 %v6341
  %v6343 = vpop.f32.mrf.mxu0
  %v6344 = vadd.f32 0.0, %v6343
  %v6345 = vpop.f32.mrf.mxu0
  %6346 = vmatprep.mubr.f32.mxu0 0.0
  %v6347 = vand.u32 %v6249, 4294901760
  %v6348 = vsub.f32 %v6249, %v6347
  %v6349 = vand.u32 %v6348, 4294901760
  %v6350 = vsub.f32 %v6348, %v6349
  %v6351 = vand.u32 %v6350, 4294901760
  %6352 = vmatmul.mubr.f32.gmra.mxu0 %v6351
  %v6353 = vpop.f32.mrf.mxu0
  %v6354 = vadd.f32 0.0, %v6353
  %v6355 = vpop.f32.mrf.mxu0
  %6356 = vmatprep.mubr.f32.mxu0 0.0
  %v6357 = vand.u32 %v6250, 4294901760
  %v6358 = vsub.f32 %v6250, %v6357
  %v6359 = vand.u32 %v6358, 4294901760
  %v6360 = vsub.f32 %v6358, %v6359
  %v6361 = vand.u32 %v6360, 4294901760
  %6362 = vmatmul.mubr.f32.gmra.mxu0 %v6361
  %v6363 = vpop.f32.mrf.mxu0
  %v6364 = vadd.f32 0.0, %v6363
  %v6365 = vpop.f32.mrf.mxu0
  %6366 = vmatprep.mubr.f32.mxu0 0.0
  %v6367 = vand.u32 %v6251, 4294901760
  %v6368 = vsub.f32 %v6251, %v6367
  %v6369 = vand.u32 %v6368, 4294901760
  %v6370 = vsub.f32 %v6368, %v6369
  %v6371 = vand.u32 %v6370, 4294901760
  %6372 = vmatmul.mubr.f32.gmra.mxu0 %v6371
  %v6373 = vpop.f32.mrf.mxu0
  %v6374 = vadd.f32 0.0, %v6373
  %v6375 = vpop.f32.mrf.mxu0
  %6376 = vmatprep.mubr.f32.mxu0 0.0
  %v6377 = vand.u32 %v6252, 4294901760
  %v6378 = vsub.f32 %v6252, %v6377
  %v6379 = vand.u32 %v6378, 4294901760
  %v6380 = vsub.f32 %v6378, %v6379
  %v6381 = vand.u32 %v6380, 4294901760
  %6382 = vmatmul.mubr.f32.gmra.mxu0 %v6381
  %v6383 = vpop.f32.mrf.mxu0
  %v6384 = vadd.f32 0.0, %v6383
  %v6385 = vpop.f32.mrf.mxu0
  %6386 = vmatprep.mubr.f32.mxu0 0.0
  %v6387 = vand.u32 %v6253, 4294901760
  %v6388 = vsub.f32 %v6253, %v6387
  %v6389 = vand.u32 %v6388, 4294901760
  %v6390 = vsub.f32 %v6388, %v6389
  %v6391 = vand.u32 %v6390, 4294901760
  %6392 = vmatmul.mubr.f32.gmra.mxu0 %v6391
  %v6393 = vpop.f32.mrf.mxu0
  %v6394 = vadd.f32 0.0, %v6393
  %v6395 = vpop.f32.mrf.mxu0
  %6396 = vmatprep.mubr.f32.mxu0 0.0
  %v6397 = vand.u32 %v6254, 4294901760
  %v6398 = vsub.f32 %v6254, %v6397
  %v6399 = vand.u32 %v6398, 4294901760
  %v6400 = vsub.f32 %v6398, %v6399
  %v6401 = vand.u32 %v6400, 4294901760
  %6402 = vmatmul.mubr.f32.gmra.mxu0 %v6401
  %v6403 = vpop.f32.mrf.mxu0
  %v6404 = vadd.f32 0.0, %v6403
  %v6405 = vpop.f32.mrf.mxu0
  %6406 = vmatprep.mubr.f32.mxu0 0.0
  %v6407 = vand.u32 %v6255, 4294901760
  %v6408 = vsub.f32 %v6255, %v6407
  %v6409 = vand.u32 %v6408, 4294901760
  %v6410 = vsub.f32 %v6408, %v6409
  %v6411 = vand.u32 %v6410, 4294901760
  %6412 = vmatmul.mubr.f32.gmra.mxu0 %v6411
  %v6413 = vpop.f32.mrf.mxu0
  %v6414 = vadd.f32 0.0, %v6413
  %v6415 = vpop.f32.mrf.mxu0
  %6416 = vdwg.mxu0
  %6417 = vmatprep.subr.mxu0 0.0
  %v6418 = vand.u32 %v6217, 4294901760
  %v6419 = vsub.f32 %v6217, %v6418
  %v6420 = vand.u32 %v6419, 4294901760
  %v6421 = vsub.f32 %v6419, %v6420
  %v6422 = vand.u32 %v6421, 4294901760
  %6423 = vmatpush1.msra.mxu0 %v6422
  %6424 = vmatprep.subr.mxu0 0.0
  %v6425 = vand.u32 %v6216, 4294901760
  %v6426 = vsub.f32 %v6216, %v6425
  %v6427 = vand.u32 %v6426, 4294901760
  %v6428 = vsub.f32 %v6426, %v6427
  %v6429 = vand.u32 %v6428, 4294901760
  %6430 = vmatpush1.msra.mxu0 %v6429
  %6431 = vmatprep.subr.mxu0 0.0
  %v6432 = vand.u32 %v6215, 4294901760
  %v6433 = vsub.f32 %v6215, %v6432
  %v6434 = vand.u32 %v6433, 4294901760
  %v6435 = vsub.f32 %v6433, %v6434
  %v6436 = vand.u32 %v6435, 4294901760
  %6437 = vmatpush1.msra.mxu0 %v6436
  %6438 = vmatprep.subr.mxu0 0.0
  %v6439 = vand.u32 %v6214, 4294901760
  %v6440 = vsub.f32 %v6214, %v6439
  %v6441 = vand.u32 %v6440, 4294901760
  %v6442 = vsub.f32 %v6440, %v6441
  %v6443 = vand.u32 %v6442, 4294901760
  %6444 = vmatpush1.msra.mxu0 %v6443
  %6445 = vmatprep.subr.mxu0 0.0
  %v6446 = vand.u32 %v6213, 4294901760
  %v6447 = vsub.f32 %v6213, %v6446
  %v6448 = vand.u32 %v6447, 4294901760
  %v6449 = vsub.f32 %v6447, %v6448
  %v6450 = vand.u32 %v6449, 4294901760
  %6451 = vmatpush1.msra.mxu0 %v6450
  %6452 = vmatprep.subr.mxu0 0.0
  %v6453 = vand.u32 %v6212, 4294901760
  %v6454 = vsub.f32 %v6212, %v6453
  %v6455 = vand.u32 %v6454, 4294901760
  %v6456 = vsub.f32 %v6454, %v6455
  %v6457 = vand.u32 %v6456, 4294901760
  %6458 = vmatpush1.msra.mxu0 %v6457
  %6459 = vmatprep.subr.mxu0 0.0
  %v6460 = vand.u32 %v6211, 4294901760
  %v6461 = vsub.f32 %v6211, %v6460
  %v6462 = vand.u32 %v6461, 4294901760
  %v6463 = vsub.f32 %v6461, %v6462
  %v6464 = vand.u32 %v6463, 4294901760
  %6465 = vmatpush1.msra.mxu0 %v6464
  %6466 = vmatprep.subr.mxu0 0.0
  %v6467 = vand.u32 %v6210, 4294901760
  %v6468 = vsub.f32 %v6210, %v6467
  %v6469 = vand.u32 %v6468, 4294901760
  %v6470 = vsub.f32 %v6468, %v6469
  %v6471 = vand.u32 %v6470, 4294901760
  %6472 = vmatpush1.msra.mxu0 %v6471
  %6473 = vmatprep.subr.mxu0 0.0
  %v6474 = vand.u32 %v6209, 4294901760
  %v6475 = vsub.f32 %v6209, %v6474
  %v6476 = vand.u32 %v6475, 4294901760
  %v6477 = vsub.f32 %v6475, %v6476
  %v6478 = vand.u32 %v6477, 4294901760
  %6479 = vmatpush1.msra.mxu0 %v6478
  %6480 = vmatprep.subr.mxu0 0.0
  %v6481 = vand.u32 %v6208, 4294901760
  %v6482 = vsub.f32 %v6208, %v6481
  %v6483 = vand.u32 %v6482, 4294901760
  %v6484 = vsub.f32 %v6482, %v6483
  %v6485 = vand.u32 %v6484, 4294901760
  %6486 = vmatpush1.msra.mxu0 %v6485
  %6487 = vmatprep.subr.mxu0 0.0
  %v6488 = vand.u32 %v6207, 4294901760
  %v6489 = vsub.f32 %v6207, %v6488
  %v6490 = vand.u32 %v6489, 4294901760
  %v6491 = vsub.f32 %v6489, %v6490
  %v6492 = vand.u32 %v6491, 4294901760
  %6493 = vmatpush1.msra.mxu0 %v6492
  %6494 = vmatprep.subr.mxu0 0.0
  %v6495 = vand.u32 %v6206, 4294901760
  %v6496 = vsub.f32 %v6206, %v6495
  %v6497 = vand.u32 %v6496, 4294901760
  %v6498 = vsub.f32 %v6496, %v6497
  %v6499 = vand.u32 %v6498, 4294901760
  %6500 = vmatpush1.msra.mxu0 %v6499
  %6501 = vmatprep.subr.mxu0 0.0
  %v6502 = vand.u32 %v6205, 4294901760
  %v6503 = vsub.f32 %v6205, %v6502
  %v6504 = vand.u32 %v6503, 4294901760
  %v6505 = vsub.f32 %v6503, %v6504
  %v6506 = vand.u32 %v6505, 4294901760
  %6507 = vmatpush1.msra.mxu0 %v6506
  %6508 = vmatprep.subr.mxu0 0.0
  %v6509 = vand.u32 %v6204, 4294901760
  %v6510 = vsub.f32 %v6204, %v6509
  %v6511 = vand.u32 %v6510, 4294901760
  %v6512 = vsub.f32 %v6510, %v6511
  %v6513 = vand.u32 %v6512, 4294901760
  %6514 = vmatpush1.msra.mxu0 %v6513
  %6515 = vmatprep.subr.mxu0 0.0
  %v6516 = vand.u32 %v6203, 4294901760
  %v6517 = vsub.f32 %v6203, %v6516
  %v6518 = vand.u32 %v6517, 4294901760
  %v6519 = vsub.f32 %v6517, %v6518
  %v6520 = vand.u32 %v6519, 4294901760
  %6521 = vmatpush1.msra.mxu0 %v6520
  %6522 = vmatprep.subr.mxu0 0.0
  %v6523 = vand.u32 %v6202, 4294901760
  %v6524 = vsub.f32 %v6202, %v6523
  %v6525 = vand.u32 %v6524, 4294901760
  %v6526 = vsub.f32 %v6524, %v6525
  %v6527 = vand.u32 %v6526, 4294901760
  %6528 = vmatpush1.msra.mxu0 %v6527
  %6529 = vmatprep.subr.mxu0 0.0
  %6530 = vmatpush2.msra.mxu0 0.0
  %6531 = vmatprep.subr.mxu0 0.0
  %6532 = vmatpush2.msra.mxu0 0.0
  %6533 = vmatprep.subr.mxu0 0.0
  %6534 = vmatpush2.msra.mxu0 0.0
  %6535 = vmatprep.subr.mxu0 0.0
  %6536 = vmatpush2.msra.mxu0 0.0
  %6537 = vmatprep.subr.mxu0 0.0
  %6538 = vmatpush2.msra.mxu0 0.0
  %6539 = vmatprep.subr.mxu0 0.0
  %6540 = vmatpush2.msra.mxu0 0.0
  %6541 = vmatprep.subr.mxu0 0.0
  %6542 = vmatpush2.msra.mxu0 0.0
  %6543 = vmatprep.subr.mxu0 0.0
  %6544 = vmatpush2.msra.mxu0 0.0
  %6545 = vmatprep.subr.mxu0 0.0
  %6546 = vmatpush2.msra.mxu0 0.0
  %6547 = vmatprep.subr.mxu0 0.0
  %6548 = vmatpush2.msra.mxu0 0.0
  %6549 = vmatprep.subr.mxu0 0.0
  %6550 = vmatpush2.msra.mxu0 0.0
  %6551 = vmatprep.subr.mxu0 0.0
  %6552 = vmatpush2.msra.mxu0 0.0
  %6553 = vmatprep.subr.mxu0 0.0
  %6554 = vmatpush2.msra.mxu0 0.0
  %6555 = vmatprep.subr.mxu0 0.0
  %6556 = vmatpush2.msra.mxu0 0.0
  %6557 = vmatprep.subr.mxu0 0.0
  %6558 = vmatpush2.msra.mxu0 0.0
  %6559 = vmatprep.subr.mxu0 0.0
  %6560 = vmatpush2.msra.mxu0 0.0
  %6561 = vmatprep.mubr.f32.mxu0 0.0
  %v6562 = vand.u32 %v6248, 4294901760
  %6563 = vmatmul.mubr.f32.gmra.mxu0 %v6562
  %v6564 = vpop.f32.mrf.mxu0
  %v6565 = vadd.f32 %v6344, %v6564
  %v6566 = vpop.f32.mrf.mxu0
  %6567 = vmatprep.mubr.f32.mxu0 0.0
  %v6568 = vand.u32 %v6249, 4294901760
  %6569 = vmatmul.mubr.f32.gmra.mxu0 %v6568
  %v6570 = vpop.f32.mrf.mxu0
  %v6571 = vadd.f32 %v6354, %v6570
  %v6572 = vpop.f32.mrf.mxu0
  %6573 = vmatprep.mubr.f32.mxu0 0.0
  %v6574 = vand.u32 %v6250, 4294901760
  %6575 = vmatmul.mubr.f32.gmra.mxu0 %v6574
  %v6576 = vpop.f32.mrf.mxu0
  %v6577 = vadd.f32 %v6364, %v6576
  %v6578 = vpop.f32.mrf.mxu0
  %6579 = vmatprep.mubr.f32.mxu0 0.0
  %v6580 = vand.u32 %v6251, 4294901760
  %6581 = vmatmul.mubr.f32.gmra.mxu0 %v6580
  %v6582 = vpop.f32.mrf.mxu0
  %v6583 = vadd.f32 %v6374, %v6582
  %v6584 = vpop.f32.mrf.mxu0
  %6585 = vmatprep.mubr.f32.mxu0 0.0
  %v6586 = vand.u32 %v6252, 4294901760
  %6587 = vmatmul.mubr.f32.gmra.mxu0 %v6586
  %v6588 = vpop.f32.mrf.mxu0
  %v6589 = vadd.f32 %v6384, %v6588
  %v6590 = vpop.f32.mrf.mxu0
  %6591 = vmatprep.mubr.f32.mxu0 0.0
  %v6592 = vand.u32 %v6253, 4294901760
  %6593 = vmatmul.mubr.f32.gmra.mxu0 %v6592
  %v6594 = vpop.f32.mrf.mxu0
  %v6595 = vadd.f32 %v6394, %v6594
  %v6596 = vpop.f32.mrf.mxu0
  %6597 = vmatprep.mubr.f32.mxu0 0.0
  %v6598 = vand.u32 %v6254, 4294901760
  %6599 = vmatmul.mubr.f32.gmra.mxu0 %v6598
  %v6600 = vpop.f32.mrf.mxu0
  %v6601 = vadd.f32 %v6404, %v6600
  %v6602 = vpop.f32.mrf.mxu0
  %6603 = vmatprep.mubr.f32.mxu0 0.0
  %v6604 = vand.u32 %v6255, 4294901760
  %6605 = vmatmul.mubr.f32.gmra.mxu0 %v6604
  %v6606 = vpop.f32.mrf.mxu0
  %v6607 = vadd.f32 %v6414, %v6606
  %v6608 = vpop.f32.mrf.mxu0
  %6609 = vdwg.mxu0
  %6610 = vmatprep.subr.mxu0 0.0
  %v6611 = vand.u32 %v6217, 4294901760
  %v6612 = vsub.f32 %v6217, %v6611
  %6613 = vmatpush1.msra.mxu0 %v6612
  %6614 = vmatprep.subr.mxu0 0.0
  %v6615 = vand.u32 %v6216, 4294901760
  %v6616 = vsub.f32 %v6216, %v6615
  %6617 = vmatpush1.msra.mxu0 %v6616
  %6618 = vmatprep.subr.mxu0 0.0
  %v6619 = vand.u32 %v6215, 4294901760
  %v6620 = vsub.f32 %v6215, %v6619
  %6621 = vmatpush1.msra.mxu0 %v6620
  %6622 = vmatprep.subr.mxu0 0.0
  %v6623 = vand.u32 %v6214, 4294901760
  %v6624 = vsub.f32 %v6214, %v6623
  %6625 = vmatpush1.msra.mxu0 %v6624
  %6626 = vmatprep.subr.mxu0 0.0
  %v6627 = vand.u32 %v6213, 4294901760
  %v6628 = vsub.f32 %v6213, %v6627
  %6629 = vmatpush1.msra.mxu0 %v6628
  %6630 = vmatprep.subr.mxu0 0.0
  %v6631 = vand.u32 %v6212, 4294901760
  %v6632 = vsub.f32 %v6212, %v6631
  %6633 = vmatpush1.msra.mxu0 %v6632
  %6634 = vmatprep.subr.mxu0 0.0
  %v6635 = vand.u32 %v6211, 4294901760
  %v6636 = vsub.f32 %v6211, %v6635
  %6637 = vmatpush1.msra.mxu0 %v6636
  %6638 = vmatprep.subr.mxu0 0.0
  %v6639 = vand.u32 %v6210, 4294901760
  %v6640 = vsub.f32 %v6210, %v6639
  %6641 = vmatpush1.msra.mxu0 %v6640
  %6642 = vmatprep.subr.mxu0 0.0
  %v6643 = vand.u32 %v6209, 4294901760
  %v6644 = vsub.f32 %v6209, %v6643
  %6645 = vmatpush1.msra.mxu0 %v6644
  %6646 = vmatprep.subr.mxu0 0.0
  %v6647 = vand.u32 %v6208, 4294901760
  %v6648 = vsub.f32 %v6208, %v6647
  %6649 = vmatpush1.msra.mxu0 %v6648
  %6650 = vmatprep.subr.mxu0 0.0
  %v6651 = vand.u32 %v6207, 4294901760
  %v6652 = vsub.f32 %v6207, %v6651
  %6653 = vmatpush1.msra.mxu0 %v6652
  %6654 = vmatprep.subr.mxu0 0.0
  %v6655 = vand.u32 %v6206, 4294901760
  %v6656 = vsub.f32 %v6206, %v6655
  %6657 = vmatpush1.msra.mxu0 %v6656
  %6658 = vmatprep.subr.mxu0 0.0
  %v6659 = vand.u32 %v6205, 4294901760
  %v6660 = vsub.f32 %v6205, %v6659
  %6661 = vmatpush1.msra.mxu0 %v6660
  %6662 = vmatprep.subr.mxu0 0.0
  %v6663 = vand.u32 %v6204, 4294901760
  %v6664 = vsub.f32 %v6204, %v6663
  %6665 = vmatpush1.msra.mxu0 %v6664
  %6666 = vmatprep.subr.mxu0 0.0
  %v6667 = vand.u32 %v6203, 4294901760
  %v6668 = vsub.f32 %v6203, %v6667
  %6669 = vmatpush1.msra.mxu0 %v6668
  %6670 = vmatprep.subr.mxu0 0.0
  %v6671 = vand.u32 %v6202, 4294901760
  %v6672 = vsub.f32 %v6202, %v6671
  %6673 = vmatpush1.msra.mxu0 %v6672
  %6674 = vmatprep.subr.mxu0 0.0
  %6675 = vmatpush2.msra.mxu0 0.0
  %6676 = vmatprep.subr.mxu0 0.0
  %6677 = vmatpush2.msra.mxu0 0.0
  %6678 = vmatprep.subr.mxu0 0.0
  %6679 = vmatpush2.msra.mxu0 0.0
  %6680 = vmatprep.subr.mxu0 0.0
  %6681 = vmatpush2.msra.mxu0 0.0
  %6682 = vmatprep.subr.mxu0 0.0
  %6683 = vmatpush2.msra.mxu0 0.0
  %6684 = vmatprep.subr.mxu0 0.0
  %6685 = vmatpush2.msra.mxu0 0.0
  %6686 = vmatprep.subr.mxu0 0.0
  %6687 = vmatpush2.msra.mxu0 0.0
  %6688 = vmatprep.subr.mxu0 0.0
  %6689 = vmatpush2.msra.mxu0 0.0
  %6690 = vmatprep.subr.mxu0 0.0
  %6691 = vmatpush2.msra.mxu0 0.0
  %6692 = vmatprep.subr.mxu0 0.0
  %6693 = vmatpush2.msra.mxu0 0.0
  %6694 = vmatprep.subr.mxu0 0.0
  %6695 = vmatpush2.msra.mxu0 0.0
  %6696 = vmatprep.subr.mxu0 0.0
  %6697 = vmatpush2.msra.mxu0 0.0
  %6698 = vmatprep.subr.mxu0 0.0
  %6699 = vmatpush2.msra.mxu0 0.0
  %6700 = vmatprep.subr.mxu0 0.0
  %6701 = vmatpush2.msra.mxu0 0.0
  %6702 = vmatprep.subr.mxu0 0.0
  %6703 = vmatpush2.msra.mxu0 0.0
  %6704 = vmatprep.subr.mxu0 0.0
  %6705 = vmatpush2.msra.mxu0 0.0
  %6706 = vmatprep.mubr.f32.mxu0 0.0
  %v6707 = vand.u32 %v6248, 4294901760
  %v6708 = vsub.f32 %v6248, %v6707
  %6709 = vmatmul.mubr.f32.gmra.mxu0 %v6708
  %v6710 = vpop.f32.mrf.mxu0
  %v6711 = vadd.f32 %v6565, %v6710
  %v6712 = vpop.f32.mrf.mxu0
  %6713 = vmatprep.mubr.f32.mxu0 0.0
  %v6714 = vand.u32 %v6249, 4294901760
  %v6715 = vsub.f32 %v6249, %v6714
  %6716 = vmatmul.mubr.f32.gmra.mxu0 %v6715
  %v6717 = vpop.f32.mrf.mxu0
  %v6718 = vadd.f32 %v6571, %v6717
  %v6719 = vpop.f32.mrf.mxu0
  %6720 = vmatprep.mubr.f32.mxu0 0.0
  %v6721 = vand.u32 %v6250, 4294901760
  %v6722 = vsub.f32 %v6250, %v6721
  %6723 = vmatmul.mubr.f32.gmra.mxu0 %v6722
  %v6724 = vpop.f32.mrf.mxu0
  %v6725 = vadd.f32 %v6577, %v6724
  %v6726 = vpop.f32.mrf.mxu0
  %6727 = vmatprep.mubr.f32.mxu0 0.0
  %v6728 = vand.u32 %v6251, 4294901760
  %v6729 = vsub.f32 %v6251, %v6728
  %6730 = vmatmul.mubr.f32.gmra.mxu0 %v6729
  %v6731 = vpop.f32.mrf.mxu0
  %v6732 = vadd.f32 %v6583, %v6731
  %v6733 = vpop.f32.mrf.mxu0
  %6734 = vmatprep.mubr.f32.mxu0 0.0
  %v6735 = vand.u32 %v6252, 4294901760
  %v6736 = vsub.f32 %v6252, %v6735
  %6737 = vmatmul.mubr.f32.gmra.mxu0 %v6736
  %v6738 = vpop.f32.mrf.mxu0
  %v6739 = vadd.f32 %v6589, %v6738
  %v6740 = vpop.f32.mrf.mxu0
  %6741 = vmatprep.mubr.f32.mxu0 0.0
  %v6742 = vand.u32 %v6253, 4294901760
  %v6743 = vsub.f32 %v6253, %v6742
  %6744 = vmatmul.mubr.f32.gmra.mxu0 %v6743
  %v6745 = vpop.f32.mrf.mxu0
  %v6746 = vadd.f32 %v6595, %v6745
  %v6747 = vpop.f32.mrf.mxu0
  %6748 = vmatprep.mubr.f32.mxu0 0.0
  %v6749 = vand.u32 %v6254, 4294901760
  %v6750 = vsub.f32 %v6254, %v6749
  %6751 = vmatmul.mubr.f32.gmra.mxu0 %v6750
  %v6752 = vpop.f32.mrf.mxu0
  %v6753 = vadd.f32 %v6601, %v6752
  %v6754 = vpop.f32.mrf.mxu0
  %6755 = vmatprep.mubr.f32.mxu0 0.0
  %v6756 = vand.u32 %v6255, 4294901760
  %v6757 = vsub.f32 %v6255, %v6756
  %6758 = vmatmul.mubr.f32.gmra.mxu0 %v6757
  %v6759 = vpop.f32.mrf.mxu0
  %v6760 = vadd.f32 %v6607, %v6759
  %v6761 = vpop.f32.mrf.mxu0
  %6762 = vdwg.mxu0
  %6763 = vmatprep.subr.mxu0 0.0
  %v6764 = vand.u32 %v6217, 4294901760
  %6765 = vmatpush1.msra.mxu0 %v6764
  %6766 = vmatprep.subr.mxu0 0.0
  %v6767 = vand.u32 %v6216, 4294901760
  %6768 = vmatpush1.msra.mxu0 %v6767
  %6769 = vmatprep.subr.mxu0 0.0
  %v6770 = vand.u32 %v6215, 4294901760
  %6771 = vmatpush1.msra.mxu0 %v6770
  %6772 = vmatprep.subr.mxu0 0.0
  %v6773 = vand.u32 %v6214, 4294901760
  %6774 = vmatpush1.msra.mxu0 %v6773
  %6775 = vmatprep.subr.mxu0 0.0
  %v6776 = vand.u32 %v6213, 4294901760
  %6777 = vmatpush1.msra.mxu0 %v6776
  %6778 = vmatprep.subr.mxu0 0.0
  %v6779 = vand.u32 %v6212, 4294901760
  %6780 = vmatpush1.msra.mxu0 %v6779
  %6781 = vmatprep.subr.mxu0 0.0
  %v6782 = vand.u32 %v6211, 4294901760
  %6783 = vmatpush1.msra.mxu0 %v6782
  %6784 = vmatprep.subr.mxu0 0.0
  %v6785 = vand.u32 %v6210, 4294901760
  %6786 = vmatpush1.msra.mxu0 %v6785
  %6787 = vmatprep.subr.mxu0 0.0
  %v6788 = vand.u32 %v6209, 4294901760
  %6789 = vmatpush1.msra.mxu0 %v6788
  %6790 = vmatprep.subr.mxu0 0.0
  %v6791 = vand.u32 %v6208, 4294901760
  %6792 = vmatpush1.msra.mxu0 %v6791
  %6793 = vmatprep.subr.mxu0 0.0
  %v6794 = vand.u32 %v6207, 4294901760
  %6795 = vmatpush1.msra.mxu0 %v6794
  %6796 = vmatprep.subr.mxu0 0.0
  %v6797 = vand.u32 %v6206, 4294901760
  %6798 = vmatpush1.msra.mxu0 %v6797
  %6799 = vmatprep.subr.mxu0 0.0
  %v6800 = vand.u32 %v6205, 4294901760
  %6801 = vmatpush1.msra.mxu0 %v6800
  %6802 = vmatprep.subr.mxu0 0.0
  %v6803 = vand.u32 %v6204, 4294901760
  %6804 = vmatpush1.msra.mxu0 %v6803
  %6805 = vmatprep.subr.mxu0 0.0
  %v6806 = vand.u32 %v6203, 4294901760
  %6807 = vmatpush1.msra.mxu0 %v6806
  %6808 = vmatprep.subr.mxu0 0.0
  %v6809 = vand.u32 %v6202, 4294901760
  %6810 = vmatpush1.msra.mxu0 %v6809
  %6811 = vmatprep.subr.mxu0 0.0
  %6812 = vmatpush2.msra.mxu0 0.0
  %6813 = vmatprep.subr.mxu0 0.0
  %6814 = vmatpush2.msra.mxu0 0.0
  %6815 = vmatprep.subr.mxu0 0.0
  %6816 = vmatpush2.msra.mxu0 0.0
  %6817 = vmatprep.subr.mxu0 0.0
  %6818 = vmatpush2.msra.mxu0 0.0
  %6819 = vmatprep.subr.mxu0 0.0
  %6820 = vmatpush2.msra.mxu0 0.0
  %6821 = vmatprep.subr.mxu0 0.0
  %6822 = vmatpush2.msra.mxu0 0.0
  %6823 = vmatprep.subr.mxu0 0.0
  %6824 = vmatpush2.msra.mxu0 0.0
  %6825 = vmatprep.subr.mxu0 0.0
  %6826 = vmatpush2.msra.mxu0 0.0
  %6827 = vmatprep.subr.mxu0 0.0
  %6828 = vmatpush2.msra.mxu0 0.0
  %6829 = vmatprep.subr.mxu0 0.0
  %6830 = vmatpush2.msra.mxu0 0.0
  %6831 = vmatprep.subr.mxu0 0.0
  %6832 = vmatpush2.msra.mxu0 0.0
  %6833 = vmatprep.subr.mxu0 0.0
  %6834 = vmatpush2.msra.mxu0 0.0
  %6835 = vmatprep.subr.mxu0 0.0
  %6836 = vmatpush2.msra.mxu0 0.0
  %6837 = vmatprep.subr.mxu0 0.0
  %6838 = vmatpush2.msra.mxu0 0.0
  %6839 = vmatprep.subr.mxu0 0.0
  %6840 = vmatpush2.msra.mxu0 0.0
  %6841 = vmatprep.subr.mxu0 0.0
  %6842 = vmatpush2.msra.mxu0 0.0
  %6843 = vmatprep.mubr.f32.mxu0 0.0
  %v6844 = vand.u32 %v6248, 4294901760
  %v6845 = vsub.f32 %v6248, %v6844
  %v6846 = vand.u32 %v6845, 4294901760
  %6847 = vmatmul.mubr.f32.gmra.mxu0 %v6846
  %v6848 = vpop.f32.mrf.mxu0
  %v6849 = vadd.f32 %v6711, %v6848
  %v6850 = vpop.f32.mrf.mxu0
  %6851 = vmatprep.mubr.f32.mxu0 0.0
  %v6852 = vand.u32 %v6249, 4294901760
  %v6853 = vsub.f32 %v6249, %v6852
  %v6854 = vand.u32 %v6853, 4294901760
  %6855 = vmatmul.mubr.f32.gmra.mxu0 %v6854
  %v6856 = vpop.f32.mrf.mxu0
  %v6857 = vadd.f32 %v6718, %v6856
  %v6858 = vpop.f32.mrf.mxu0
  %6859 = vmatprep.mubr.f32.mxu0 0.0
  %v6860 = vand.u32 %v6250, 4294901760
  %v6861 = vsub.f32 %v6250, %v6860
  %v6862 = vand.u32 %v6861, 4294901760
  %6863 = vmatmul.mubr.f32.gmra.mxu0 %v6862
  %v6864 = vpop.f32.mrf.mxu0
  %v6865 = vadd.f32 %v6725, %v6864
  %v6866 = vpop.f32.mrf.mxu0
  %6867 = vmatprep.mubr.f32.mxu0 0.0
  %v6868 = vand.u32 %v6251, 4294901760
  %v6869 = vsub.f32 %v6251, %v6868
  %v6870 = vand.u32 %v6869, 4294901760
  %6871 = vmatmul.mubr.f32.gmra.mxu0 %v6870
  %v6872 = vpop.f32.mrf.mxu0
  %v6873 = vadd.f32 %v6732, %v6872
  %v6874 = vpop.f32.mrf.mxu0
  %6875 = vmatprep.mubr.f32.mxu0 0.0
  %v6876 = vand.u32 %v6252, 4294901760
  %v6877 = vsub.f32 %v6252, %v6876
  %v6878 = vand.u32 %v6877, 4294901760
  %6879 = vmatmul.mubr.f32.gmra.mxu0 %v6878
  %v6880 = vpop.f32.mrf.mxu0
  %v6881 = vadd.f32 %v6739, %v6880
  %v6882 = vpop.f32.mrf.mxu0
  %6883 = vmatprep.mubr.f32.mxu0 0.0
  %v6884 = vand.u32 %v6253, 4294901760
  %v6885 = vsub.f32 %v6253, %v6884
  %v6886 = vand.u32 %v6885, 4294901760
  %6887 = vmatmul.mubr.f32.gmra.mxu0 %v6886
  %v6888 = vpop.f32.mrf.mxu0
  %v6889 = vadd.f32 %v6746, %v6888
  %v6890 = vpop.f32.mrf.mxu0
  %6891 = vmatprep.mubr.f32.mxu0 0.0
  %v6892 = vand.u32 %v6254, 4294901760
  %v6893 = vsub.f32 %v6254, %v6892
  %v6894 = vand.u32 %v6893, 4294901760
  %6895 = vmatmul.mubr.f32.gmra.mxu0 %v6894
  %v6896 = vpop.f32.mrf.mxu0
  %v6897 = vadd.f32 %v6753, %v6896
  %v6898 = vpop.f32.mrf.mxu0
  %6899 = vmatprep.mubr.f32.mxu0 0.0
  %v6900 = vand.u32 %v6255, 4294901760
  %v6901 = vsub.f32 %v6255, %v6900
  %v6902 = vand.u32 %v6901, 4294901760
  %6903 = vmatmul.mubr.f32.gmra.mxu0 %v6902
  %v6904 = vpop.f32.mrf.mxu0
  %v6905 = vadd.f32 %v6760, %v6904
  %v6906 = vpop.f32.mrf.mxu0
  %6907 = vdwg.mxu0
  %6908 = vmatprep.subr.mxu0 0.0
  %v6909 = vand.u32 %v6217, 4294901760
  %v6910 = vsub.f32 %v6217, %v6909
  %v6911 = vand.u32 %v6910, 4294901760
  %6912 = vmatpush1.msra.mxu0 %v6911
  %6913 = vmatprep.subr.mxu0 0.0
  %v6914 = vand.u32 %v6216, 4294901760
  %v6915 = vsub.f32 %v6216, %v6914
  %v6916 = vand.u32 %v6915, 4294901760
  %6917 = vmatpush1.msra.mxu0 %v6916
  %6918 = vmatprep.subr.mxu0 0.0
  %v6919 = vand.u32 %v6215, 4294901760
  %v6920 = vsub.f32 %v6215, %v6919
  %v6921 = vand.u32 %v6920, 4294901760
  %6922 = vmatpush1.msra.mxu0 %v6921
  %6923 = vmatprep.subr.mxu0 0.0
  %v6924 = vand.u32 %v6214, 4294901760
  %v6925 = vsub.f32 %v6214, %v6924
  %v6926 = vand.u32 %v6925, 4294901760
  %6927 = vmatpush1.msra.mxu0 %v6926
  %6928 = vmatprep.subr.mxu0 0.0
  %v6929 = vand.u32 %v6213, 4294901760
  %v6930 = vsub.f32 %v6213, %v6929
  %v6931 = vand.u32 %v6930, 4294901760
  %6932 = vmatpush1.msra.mxu0 %v6931
  %6933 = vmatprep.subr.mxu0 0.0
  %v6934 = vand.u32 %v6212, 4294901760
  %v6935 = vsub.f32 %v6212, %v6934
  %v6936 = vand.u32 %v6935, 4294901760
  %6937 = vmatpush1.msra.mxu0 %v6936
  %6938 = vmatprep.subr.mxu0 0.0
  %v6939 = vand.u32 %v6211, 4294901760
  %v6940 = vsub.f32 %v6211, %v6939
  %v6941 = vand.u32 %v6940, 4294901760
  %6942 = vmatpush1.msra.mxu0 %v6941
  %6943 = vmatprep.subr.mxu0 0.0
  %v6944 = vand.u32 %v6210, 4294901760
  %v6945 = vsub.f32 %v6210, %v6944
  %v6946 = vand.u32 %v6945, 4294901760
  %6947 = vmatpush1.msra.mxu0 %v6946
  %6948 = vmatprep.subr.mxu0 0.0
  %v6949 = vand.u32 %v6209, 4294901760
  %v6950 = vsub.f32 %v6209, %v6949
  %v6951 = vand.u32 %v6950, 4294901760
  %6952 = vmatpush1.msra.mxu0 %v6951
  %6953 = vmatprep.subr.mxu0 0.0
  %v6954 = vand.u32 %v6208, 4294901760
  %v6955 = vsub.f32 %v6208, %v6954
  %v6956 = vand.u32 %v6955, 4294901760
  %6957 = vmatpush1.msra.mxu0 %v6956
  %6958 = vmatprep.subr.mxu0 0.0
  %v6959 = vand.u32 %v6207, 4294901760
  %v6960 = vsub.f32 %v6207, %v6959
  %v6961 = vand.u32 %v6960, 4294901760
  %6962 = vmatpush1.msra.mxu0 %v6961
  %6963 = vmatprep.subr.mxu0 0.0
  %v6964 = vand.u32 %v6206, 4294901760
  %v6965 = vsub.f32 %v6206, %v6964
  %v6966 = vand.u32 %v6965, 4294901760
  %6967 = vmatpush1.msra.mxu0 %v6966
  %6968 = vmatprep.subr.mxu0 0.0
  %v6969 = vand.u32 %v6205, 4294901760
  %v6970 = vsub.f32 %v6205, %v6969
  %v6971 = vand.u32 %v6970, 4294901760
  %6972 = vmatpush1.msra.mxu0 %v6971
  %6973 = vmatprep.subr.mxu0 0.0
  %v6974 = vand.u32 %v6204, 4294901760
  %v6975 = vsub.f32 %v6204, %v6974
  %v6976 = vand.u32 %v6975, 4294901760
  %6977 = vmatpush1.msra.mxu0 %v6976
  %6978 = vmatprep.subr.mxu0 0.0
  %v6979 = vand.u32 %v6203, 4294901760
  %v6980 = vsub.f32 %v6203, %v6979
  %v6981 = vand.u32 %v6980, 4294901760
  %6982 = vmatpush1.msra.mxu0 %v6981
  %6983 = vmatprep.subr.mxu0 0.0
  %v6984 = vand.u32 %v6202, 4294901760
  %v6985 = vsub.f32 %v6202, %v6984
  %v6986 = vand.u32 %v6985, 4294901760
  %6987 = vmatpush1.msra.mxu0 %v6986
  %6988 = vmatprep.subr.mxu0 0.0
  %6989 = vmatpush2.msra.mxu0 0.0
  %6990 = vmatprep.subr.mxu0 0.0
  %6991 = vmatpush2.msra.mxu0 0.0
  %6992 = vmatprep.subr.mxu0 0.0
  %6993 = vmatpush2.msra.mxu0 0.0
  %6994 = vmatprep.subr.mxu0 0.0
  %6995 = vmatpush2.msra.mxu0 0.0
  %6996 = vmatprep.subr.mxu0 0.0
  %6997 = vmatpush2.msra.mxu0 0.0
  %6998 = vmatprep.subr.mxu0 0.0
  %6999 = vmatpush2.msra.mxu0 0.0
  %7000 = vmatprep.subr.mxu0 0.0
  %7001 = vmatpush2.msra.mxu0 0.0
  %7002 = vmatprep.subr.mxu0 0.0
  %7003 = vmatpush2.msra.mxu0 0.0
  %7004 = vmatprep.subr.mxu0 0.0
  %7005 = vmatpush2.msra.mxu0 0.0
  %7006 = vmatprep.subr.mxu0 0.0
  %7007 = vmatpush2.msra.mxu0 0.0
  %7008 = vmatprep.subr.mxu0 0.0
  %7009 = vmatpush2.msra.mxu0 0.0
  %7010 = vmatprep.subr.mxu0 0.0
  %7011 = vmatpush2.msra.mxu0 0.0
  %7012 = vmatprep.subr.mxu0 0.0
  %7013 = vmatpush2.msra.mxu0 0.0
  %7014 = vmatprep.subr.mxu0 0.0
  %7015 = vmatpush2.msra.mxu0 0.0
  %7016 = vmatprep.subr.mxu0 0.0
  %7017 = vmatpush2.msra.mxu0 0.0
  %7018 = vmatprep.subr.mxu0 0.0
  %7019 = vmatpush2.msra.mxu0 0.0
  %7020 = vmatprep.mubr.f32.mxu0 0.0
  %v7021 = vand.u32 %v6248, 4294901760
  %7022 = vmatmul.mubr.f32.gmra.mxu0 %v7021
  %v7023 = vpop.f32.mrf.mxu0
  %v7024 = vadd.f32 %v6849, %v7023
  %v7025 = vpop.f32.mrf.mxu0
  %7026 = vmatprep.mubr.f32.mxu0 0.0
  %v7027 = vand.u32 %v6249, 4294901760
  %7028 = vmatmul.mubr.f32.gmra.mxu0 %v7027
  %v7029 = vpop.f32.mrf.mxu0
  %v7030 = vadd.f32 %v6857, %v7029
  %v7031 = vpop.f32.mrf.mxu0
  %7032 = vmatprep.mubr.f32.mxu0 0.0
  %v7033 = vand.u32 %v6250, 4294901760
  %7034 = vmatmul.mubr.f32.gmra.mxu0 %v7033
  %v7035 = vpop.f32.mrf.mxu0
  %v7036 = vadd.f32 %v6865, %v7035
  %v7037 = vpop.f32.mrf.mxu0
  %7038 = vmatprep.mubr.f32.mxu0 0.0
  %v7039 = vand.u32 %v6251, 4294901760
  %7040 = vmatmul.mubr.f32.gmra.mxu0 %v7039
  %v7041 = vpop.f32.mrf.mxu0
  %v7042 = vadd.f32 %v6873, %v7041
  %v7043 = vpop.f32.mrf.mxu0
  %7044 = vmatprep.mubr.f32.mxu0 0.0
  %v7045 = vand.u32 %v6252, 4294901760
  %7046 = vmatmul.mubr.f32.gmra.mxu0 %v7045
  %v7047 = vpop.f32.mrf.mxu0
  %v7048 = vadd.f32 %v6881, %v7047
  %v7049 = vpop.f32.mrf.mxu0
  %7050 = vmatprep.mubr.f32.mxu0 0.0
  %v7051 = vand.u32 %v6253, 4294901760
  %7052 = vmatmul.mubr.f32.gmra.mxu0 %v7051
  %v7053 = vpop.f32.mrf.mxu0
  %v7054 = vadd.f32 %v6889, %v7053
  %v7055 = vpop.f32.mrf.mxu0
  %7056 = vmatprep.mubr.f32.mxu0 0.0
  %v7057 = vand.u32 %v6254, 4294901760
  %7058 = vmatmul.mubr.f32.gmra.mxu0 %v7057
  %v7059 = vpop.f32.mrf.mxu0
  %v7060 = vadd.f32 %v6897, %v7059
  %v7061 = vpop.f32.mrf.mxu0
  %7062 = vmatprep.mubr.f32.mxu0 0.0
  %v7063 = vand.u32 %v6255, 4294901760
  %7064 = vmatmul.mubr.f32.gmra.mxu0 %v7063
  %v7065 = vpop.f32.mrf.mxu0
  %v7066 = vadd.f32 %v6905, %v7065
  %v7067 = vpop.f32.mrf.mxu0
  %7068 = vdwg.mxu0
  %7069 = vmatprep.subr.mxu0 0.0
  %v7070 = vand.u32 %v6217, 4294901760
  %7071 = vmatpush1.msra.mxu0 %v7070
  %7072 = vmatprep.subr.mxu0 0.0
  %v7073 = vand.u32 %v6216, 4294901760
  %7074 = vmatpush1.msra.mxu0 %v7073
  %7075 = vmatprep.subr.mxu0 0.0
  %v7076 = vand.u32 %v6215, 4294901760
  %7077 = vmatpush1.msra.mxu0 %v7076
  %7078 = vmatprep.subr.mxu0 0.0
  %v7079 = vand.u32 %v6214, 4294901760
  %7080 = vmatpush1.msra.mxu0 %v7079
  %7081 = vmatprep.subr.mxu0 0.0
  %v7082 = vand.u32 %v6213, 4294901760
  %7083 = vmatpush1.msra.mxu0 %v7082
  %7084 = vmatprep.subr.mxu0 0.0
  %v7085 = vand.u32 %v6212, 4294901760
  %7086 = vmatpush1.msra.mxu0 %v7085
  %7087 = vmatprep.subr.mxu0 0.0
  %v7088 = vand.u32 %v6211, 4294901760
  %7089 = vmatpush1.msra.mxu0 %v7088
  %7090 = vmatprep.subr.mxu0 0.0
  %v7091 = vand.u32 %v6210, 4294901760
  %7092 = vmatpush1.msra.mxu0 %v7091
  %7093 = vmatprep.subr.mxu0 0.0
  %v7094 = vand.u32 %v6209, 4294901760
  %7095 = vmatpush1.msra.mxu0 %v7094
  %7096 = vmatprep.subr.mxu0 0.0
  %v7097 = vand.u32 %v6208, 4294901760
  %7098 = vmatpush1.msra.mxu0 %v7097
  %7099 = vmatprep.subr.mxu0 0.0
  %v7100 = vand.u32 %v6207, 4294901760
  %7101 = vmatpush1.msra.mxu0 %v7100
  %7102 = vmatprep.subr.mxu0 0.0
  %v7103 = vand.u32 %v6206, 4294901760
  %7104 = vmatpush1.msra.mxu0 %v7103
  %7105 = vmatprep.subr.mxu0 0.0
  %v7106 = vand.u32 %v6205, 4294901760
  %7107 = vmatpush1.msra.mxu0 %v7106
  %7108 = vmatprep.subr.mxu0 0.0
  %v7109 = vand.u32 %v6204, 4294901760
  %7110 = vmatpush1.msra.mxu0 %v7109
  %7111 = vmatprep.subr.mxu0 0.0
  %v7112 = vand.u32 %v6203, 4294901760
  %7113 = vmatpush1.msra.mxu0 %v7112
  %7114 = vmatprep.subr.mxu0 0.0
  %v7115 = vand.u32 %v6202, 4294901760
  %7116 = vmatpush1.msra.mxu0 %v7115
  %7117 = vmatprep.subr.mxu0 0.0
  %7118 = vmatpush2.msra.mxu0 0.0
  %7119 = vmatprep.subr.mxu0 0.0
  %7120 = vmatpush2.msra.mxu0 0.0
  %7121 = vmatprep.subr.mxu0 0.0
  %7122 = vmatpush2.msra.mxu0 0.0
  %7123 = vmatprep.subr.mxu0 0.0
  %7124 = vmatpush2.msra.mxu0 0.0
  %7125 = vmatprep.subr.mxu0 0.0
  %7126 = vmatpush2.msra.mxu0 0.0
  %7127 = vmatprep.subr.mxu0 0.0
  %7128 = vmatpush2.msra.mxu0 0.0
  %7129 = vmatprep.subr.mxu0 0.0
  %7130 = vmatpush2.msra.mxu0 0.0
  %7131 = vmatprep.subr.mxu0 0.0
  %7132 = vmatpush2.msra.mxu0 0.0
  %7133 = vmatprep.subr.mxu0 0.0
  %7134 = vmatpush2.msra.mxu0 0.0
  %7135 = vmatprep.subr.mxu0 0.0
  %7136 = vmatpush2.msra.mxu0 0.0
  %7137 = vmatprep.subr.mxu0 0.0
  %7138 = vmatpush2.msra.mxu0 0.0
  %7139 = vmatprep.subr.mxu0 0.0
  %7140 = vmatpush2.msra.mxu0 0.0
  %7141 = vmatprep.subr.mxu0 0.0
  %7142 = vmatpush2.msra.mxu0 0.0
  %7143 = vmatprep.subr.mxu0 0.0
  %7144 = vmatpush2.msra.mxu0 0.0
  %7145 = vmatprep.subr.mxu0 0.0
  %7146 = vmatpush2.msra.mxu0 0.0
  %7147 = vmatprep.subr.mxu0 0.0
  %7148 = vmatpush2.msra.mxu0 0.0
  %7149 = vmatprep.mubr.f32.mxu0 0.0
  %v7150 = vand.u32 %v6248, 4294901760
  %7151 = vmatmul.mubr.f32.gmra.mxu0 %v7150
  %v7152 = vpop.f32.mrf.mxu0
  %v7153 = vadd.f32 %v7024, %v7152
  %v7154 = vpop.f32.mrf.mxu0
  %7155 = vmatprep.mubr.f32.mxu0 0.0
  %v7156 = vand.u32 %v6249, 4294901760
  %7157 = vmatmul.mubr.f32.gmra.mxu0 %v7156
  %v7158 = vpop.f32.mrf.mxu0
  %v7159 = vadd.f32 %v7030, %v7158
  %v7160 = vpop.f32.mrf.mxu0
  %7161 = vmatprep.mubr.f32.mxu0 0.0
  %v7162 = vand.u32 %v6250, 4294901760
  %7163 = vmatmul.mubr.f32.gmra.mxu0 %v7162
  %v7164 = vpop.f32.mrf.mxu0
  %v7165 = vadd.f32 %v7036, %v7164
  %v7166 = vpop.f32.mrf.mxu0
  %7167 = vmatprep.mubr.f32.mxu0 0.0
  %v7168 = vand.u32 %v6251, 4294901760
  %7169 = vmatmul.mubr.f32.gmra.mxu0 %v7168
  %v7170 = vpop.f32.mrf.mxu0
  %v7171 = vadd.f32 %v7042, %v7170
  %v7172 = vpop.f32.mrf.mxu0
  %7173 = vmatprep.mubr.f32.mxu0 0.0
  %v7174 = vand.u32 %v6252, 4294901760
  %7175 = vmatmul.mubr.f32.gmra.mxu0 %v7174
  %v7176 = vpop.f32.mrf.mxu0
  %v7177 = vadd.f32 %v7048, %v7176
  %v7178 = vpop.f32.mrf.mxu0
  %7179 = vmatprep.mubr.f32.mxu0 0.0
  %v7180 = vand.u32 %v6253, 4294901760
  %7181 = vmatmul.mubr.f32.gmra.mxu0 %v7180
  %v7182 = vpop.f32.mrf.mxu0
  %v7183 = vadd.f32 %v7054, %v7182
  %v7184 = vpop.f32.mrf.mxu0
  %7185 = vmatprep.mubr.f32.mxu0 0.0
  %v7186 = vand.u32 %v6254, 4294901760
  %7187 = vmatmul.mubr.f32.gmra.mxu0 %v7186
  %v7188 = vpop.f32.mrf.mxu0
  %v7189 = vadd.f32 %v7060, %v7188
  %v7190 = vpop.f32.mrf.mxu0
  %7191 = vmatprep.mubr.f32.mxu0 0.0
  %v7192 = vand.u32 %v6255, 4294901760
  %7193 = vmatmul.mubr.f32.gmra.mxu0 %v7192
  %v7194 = vpop.f32.mrf.mxu0
  %v7195 = vadd.f32 %v7066, %v7194
  %v7196 = vpop.f32.mrf.mxu0
  %7197 = vdwg.mxu0
  %v7198 = vld [vmem:[%s9] sm:$0xff]
  %v7199 = vld [vmem:[%s9 + $0x8] sm:$0xff]
  %v7200 = vld [vmem:[%s9 + $0x10] sm:$0xff]
  %v7201 = vld [vmem:[%s9 + $0x18] sm:$0xff]
  %v7202 = vld [vmem:[%s9 + $0x20] sm:$0xff]
  %v7203 = vld [vmem:[%s9 + $0x28] sm:$0xff]
  %v7204 = vld [vmem:[%s9 + $0x30] sm:$0xff]
  %v7205 = vld [vmem:[%s9 + $0x38] sm:$0xff]
  %7207 = vset.pattern.permute.xlu0 0
  %7208 = vperm.xlu0 %7207, %v7198
  %v7209 = vpop.permute.xlu0 %7208
  %7212 = vset.pattern.permute.xlu0 0
  %7213 = vperm.xlu0 %7212, %v7199
  %v7214 = vpop.permute.xlu0 %7213
  %7217 = vset.pattern.permute.xlu0 0
  %7218 = vperm.xlu0 %7217, %v7200
  %v7219 = vpop.permute.xlu0 %7218
  %7222 = vset.pattern.permute.xlu0 0
  %7223 = vperm.xlu0 %7222, %v7201
  %v7224 = vpop.permute.xlu0 %7223
  %7227 = vset.pattern.permute.xlu0 0
  %7228 = vperm.xlu0 %7227, %v7202
  %v7229 = vpop.permute.xlu0 %7228
  %7232 = vset.pattern.permute.xlu0 0
  %7233 = vperm.xlu0 %7232, %v7203
  %v7234 = vpop.permute.xlu0 %7233
  %7237 = vset.pattern.permute.xlu0 0
  %7238 = vperm.xlu0 %7237, %v7204
  %v7239 = vpop.permute.xlu0 %7238
  %7242 = vset.pattern.permute.xlu0 0
  %7243 = vperm.xlu0 %7242, %v7205
  %v7244 = vpop.permute.xlu0 %7243
  %v7246 = vmul.f32 %v7153, %v7209
  %v7247 = vmul.f32 %v7159, %v7214
  %v7248 = vmul.f32 %v7165, %v7219
  %v7249 = vmul.f32 %v7171, %v7224
  %v7250 = vmul.f32 %v7177, %v7229
  %v7251 = vmul.f32 %v7183, %v7234
  %v7252 = vmul.f32 %v7189, %v7239
  %v7253 = vmul.f32 %v7195, %v7244
  %7254 = vst.msk [vmem:[%s10] sm:$0xff] %vm1399, %v7246
  %7255 = vst.msk [vmem:[%s10 + $0x8] sm:$0xff] %vm1399, %v7247
  %7256 = vst.msk [vmem:[%s10 + $0x10] sm:$0xff] %vm1399, %v7248
  %7257 = vst.msk [vmem:[%s10 + $0x18] sm:$0xff] %vm1399, %v7249
  %7258 = vst.msk [vmem:[%s10 + $0x20] sm:$0xff] %vm1399, %v7250
  %7259 = vst.msk [vmem:[%s10 + $0x28] sm:$0xff] %vm1399, %v7251
  %7260 = vst.msk [vmem:[%s10 + $0x30] sm:$0xff] %vm1399, %v7252
  %7261 = vst.msk [vmem:[%s10 + $0x38] sm:$0xff] %vm1399, %v7253
  // Predicated region
  $region42: #{tpu_custom_call.1} parent=0 // pred_check
    _
  $region43: #{tpu_custom_call.1} parent=0 // pred_check_branch
    %7263 = sbr.rel (0) target = $region45
  $region44: #{tpu_custom_call.1} parent=0 // pred_region
    _
  $region45: #{tpu_custom_call.1} parent=0 // pred_fallthru
    _
  // Predicated region
  $region46: #{tpu_custom_call.1} parent=0 // pred_check
    _
  $region47: #{tpu_custom_call.1} parent=0 // pred_check_branch
    %7265 = sbr.rel (0) target = $region49
  $region48: #{tpu_custom_call.1} parent=0 // pred_region
    _
  $region49: #{tpu_custom_call.1} parent=0 // pred_fallthru
    _

</llo_original>
